<compile_context>
chip_gen: v7x
topology: tpu7x:2x2x1
jax: 0.10.0
libtpu: 0.0.40
codegen_flags: <defaults>
</compile_context>

<pallas_src>
import jax
import jax.numpy as jnp
from jax.experimental import pallas as pl
from jax.experimental.pallas import tpu as pltpu

F = 1024   # 32*32 flattened image
K = 5      # conv kernel size


def _lenet_kernel(x_ref, w1_ref, b1_ref, w2_ref, b2_ref, sel_ref, msk_ref,
                  fw1_ref, fb1_ref, fw2_ref, fb2_ref, fw3_ref, fb3_ref,
                  o_ref, p1_scr, a1_scr, p2_scr, b4_scr):
    f32, bf16 = jnp.float32, jnp.bfloat16
    bt, n2 = sel_ref.shape               # batch tile, bt*1024 lanes
    wc1 = p1_scr.shape[1]                # conv1 stage width
    wp1 = a1_scr.shape[1]                # pool1 stage width
    wc2 = p2_scr.shape[1]                # conv2 stage width

    # ---------------- conv1 (1->6, k=5) + tanh: ONE 2-D MXU matmul ----------
    xv = x_ref[0]                                            # (1, win) f32
    for kh in range(K):
        for kw in range(K):
            t = kh * K + kw
            s = kh * 32 + kw                                 # tap lane shift
            p1_scr[t:t + 1, :] = xv[:, s:s + wc1]
    c1 = jnp.dot(w1_ref[...], p1_scr[...].astype(bf16),
                 preferred_element_type=f32)                 # (6, wc1)
    c1 = jnp.tanh(c1 + b1_ref[...])                          # f32 VPU/EUP

    # ---------------- maxpool 2x2/2: shift+max on the flat lane axis --------
    a1 = jnp.maximum(jnp.maximum(c1[:, 0:wp1], c1[:, 1:1 + wp1]),
                     jnp.maximum(c1[:, 32:32 + wp1], c1[:, 33:33 + wp1]))
    a1_scr[0:6, :] = a1                                      # 6 channels
    a1_scr[6:8, :] = jnp.zeros((2, wp1), f32)                # Cin pad (w2 cols 0)

    # -------- conv2 (6->16, k=5) + tanh: 8-aligned im2col + ONE matmul ------
    for kh in range(K):
        for kw in range(K):
            t = kh * K + kw
            s = kh * 64 + kw * 2                             # pooled-grid shift
            p2_scr[t * 8:(t + 1) * 8, :] = a1_scr[:, s:s + wc2]
    c2 = jnp.dot(w2_ref[...], p2_scr[...].astype(bf16),
                 preferred_element_type=f32)                 # (16, wc2)
    c2 = jnp.tanh(c2 + b2_ref[...])

    # ---------------- maxpool 2x2/2 -----------------------------------------
    z2 = jnp.maximum(jnp.maximum(c2[:, 0:n2], c2[:, 2:2 + n2]),
                     jnp.maximum(c2[:, 64:64 + n2], c2[:, 66:66 + n2]))

    # ------ pool2 -> (bt, 512) NCHW flatten: ONE masked trans-B matmul ------
    # b4[c*32 + p, l] = pool2[c, l] * mask_p(l); contracting against the batch
    # selector picks lane b*1024 + 128*(p//5) + 4*(p%5) -> PyTorch flatten
    # order (fc1 weights were re-laid-out to the padded 512 rows in wrapper).
    z2b = z2.astype(bf16)
    mskv = msk_ref[...]                                      # (32, n2) bf16
    for c in range(16):
        b4_scr[c * 32:(c + 1) * 32, :] = z2b[c:c + 1, :] * mskv
    fcin = jax.lax.dot_general(sel_ref[...], b4_scr[...],
                               (((1,), (1,)), ((), ())),
                               preferred_element_type=f32)   # (bt, 512)

    # ---------------- FC head + exact softmax -------------------------------
    h = jnp.tanh(jnp.dot(fcin.astype(bf16), fw1_ref[...],
                         preferred_element_type=f32) + fb1_ref[...])
    h = jnp.tanh(jnp.dot(h.astype(bf16), fw2_ref[...],
                         preferred_element_type=f32) + fb2_ref[...])
    logits = jnp.dot(h.astype(bf16), fw3_ref[...],
                     preferred_element_type=f32) + fb3_ref[...]      # (bt, 128)
    m = jnp.max(logits, axis=1, keepdims=True)
    e = jnp.exp(logits - m)                                  # pad cols -> exactly 0
    o_ref[0] = e / jnp.sum(e, axis=1, keepdims=True)


def lenet_forward(params, x):
    f32, bf16 = jnp.float32, jnp.bfloat16
    B = x.shape[0]
    # Batch tile per grid step (must divide B).  ~2.5 MiB VMEM per batch row,
    # so bt <= 4 keeps the footprint far below the 32 MiB scoped limit
    # (re-derive upward for big-batch runs, especially on v7x's 64 MiB VMEM).
    bt = max(t for t in (4, 2, 1) if B % t == 0)
    grid = B // bt
    n2 = bt * F                     # pool2 / FC lane width
    wc2 = n2 + 128                  # conv2 width  (pool2 shifts <= 66)
    wp1 = n2 + 512                  # pool1 width  (conv2 tap shifts <= 264)
    wc1 = n2 + 640                  # conv1 width  (pool1 shifts <= 33)
    win = n2 + 896                  # input width  (conv1 tap shifts <= 132)

    # Lane-flat input: one row per batch tile, images back to back (h*32+w),
    # zero tail padding so every in-kernel tap shift is a plain static slice.
    xf = x.astype(f32).reshape(grid, 1, n2)
    xf = jnp.pad(xf, ((0, 0), (0, 0), (0, win - n2)))

    # conv weights as (Cout, K) bf16 matrices; conv2 Cin padded 6 -> 8 so the
    # in-kernel im2col writes are 8-sublane-aligned blocks.
    w1 = params["conv1_w"].reshape(6, 25).astype(bf16)
    b1 = params["conv1_b"].reshape(6, 1).astype(f32)
    w2 = jnp.pad(params["conv2_w"].transpose(0, 2, 3, 1),
                 ((0, 0), (0, 0), (0, 0), (0, 2))).reshape(16, 200).astype(bf16)
    b2 = params["conv2_b"].reshape(16, 1).astype(f32)

    # Constants for the pool2 -> (bt, 512) flatten matmul.
    lane = jnp.arange(n2)
    sel = (lane[None, :] // F == jnp.arange(bt)[:, None]).astype(bf16)     # (bt, n2)
    p = jnp.arange(32)
    pos = 128 * (p // 5) + 4 * (p % 5)          # lane of pool2 (u, v) = (p//5, p%5)
    msk = (((lane[None, :] % F) == pos[:, None]) & (p[:, None] < 25)).astype(bf16)

    # FC weights (bf16); fc1 rows moved to the padded c*32 + p order, fc3
    # padded to 128 output lanes (pad bias -1e30 -> softmax prob exactly 0).
    fw1 = jnp.zeros((16, 32, 120), f32).at[:, :25, :].set(
        params["fc1_w"].reshape(16, 25, 120)).reshape(512, 120).astype(bf16)
    fb1 = params["fc1_b"].reshape(1, -1).astype(f32)
    fw2 = params["fc2_w"].astype(bf16)
    fb2 = params["fc2_b"].reshape(1, -1).astype(f32)
    fw3 = jnp.zeros((84, 128), bf16).at[:, :10].set(params["fc3_w"].astype(bf16))
    fb3 = jnp.full((1, 128), -1e30, f32).at[0, :10].set(params["fc3_b"].astype(f32))

    full = lambda a: pl.BlockSpec(a.shape, lambda i: (0, 0))   # VMEM-resident weights

    out = pl.pallas_call(
        _lenet_kernel,
        out_shape=jax.ShapeDtypeStruct((grid, bt, 128), f32),
        grid=(grid,),
        in_specs=[pl.BlockSpec((1, 1, win), lambda i: (i, 0, 0)),
                  full(w1), full(b1), full(w2), full(b2), full(sel), full(msk),
                  full(fw1), full(fb1), full(fw2), full(fb2), full(fw3), full(fb3)],
        out_specs=pl.BlockSpec((1, bt, 128), lambda i: (i, 0, 0)),
        scratch_shapes=[pltpu.VMEM((25, wc1), f32),    # conv1 im2col taps
                        pltpu.VMEM((8, wp1), f32),     # pool1 slab (6 ch + 2 pad)
                        pltpu.VMEM((200, wc2), f32),   # conv2 im2col (8-aligned)
                        pltpu.VMEM((512, n2), bf16)],  # masked pool2 for flatten
        compiler_params=pltpu.CompilerParams(
            dimension_semantics=("parallel",),
            vmem_limit_bytes=32 * 1024 * 1024),
    )(xf, w1, b1, w2, b2, sel, msk, fw1, fb1, fw2, fb2, fw3, fb3)
    return out.reshape(B, 128)[:, :10]


def lenet_ref(params, x):
    """Pure-JAX f32 reference (matches the PyTorch module)."""
    def conv(x, w, b):
        y = jax.lax.conv_general_dilated(
            x, w, window_strides=(1, 1), padding="VALID",
            dimension_numbers=("NCHW", "OIHW", "NCHW"))
        return y + b.reshape(1, -1, 1, 1)

    def pool(x):
        b, c, h, w = x.shape
        return x.reshape(b, c, h // 2, 2, w // 2, 2).max(axis=(3, 5))

    x = pool(jnp.tanh(conv(x, params["conv1_w"], params["conv1_b"])))
    x = pool(jnp.tanh(conv(x, params["conv2_w"], params["conv2_b"])))
    x = x.reshape(x.shape[0], -1)
    x = jnp.tanh(x @ params["fc1_w"] + params["fc1_b"])
    x = jnp.tanh(x @ params["fc2_w"] + params["fc2_b"])
    return jax.nn.softmax(x @ params["fc3_w"] + params["fc3_b"], axis=1)


def init_params(key):
    ks = jax.random.split(key, 10)

    def u(k, shape, fan_in):
        bound = 1.0 / jnp.sqrt(jnp.float32(fan_in))
        return jax.random.uniform(k, shape, jnp.float32, -bound, bound)

    return {
        "conv1_w": u(ks[0], (6, 1, 5, 5), 25),
        "conv1_b": u(ks[1], (6,), 25),
        "conv2_w": u(ks[2], (16, 6, 5, 5), 150),
        "conv2_b": u(ks[3], (16,), 150),
        "fc1_w": u(ks[4], (400, 120), 400),
        "fc1_b": u(ks[5], (120,), 400),
        "fc2_w": u(ks[6], (120, 84), 120),
        "fc2_b": u(ks[7], (84,), 120),
        "fc3_w": u(ks[8], (84, 10), 84),
        "fc3_b": u(ks[9], (10,), 84),
    }


if __name__ == "__main__":
    key = jax.random.PRNGKey(0)
    pkey, xkey = jax.random.split(key)
    params = init_params(pkey)
    # LeNet's fc1 (16*5*5) implies a 32x32 single-channel input; small batch demo.
    x = jax.random.normal(xkey, (2, 1, 32, 32), jnp.float32)

    out = jax.block_until_ready(jax.jit(lenet_forward)(params, x))
    ref = lenet_ref(params, x)

    assert out.shape == (2, 10)
    assert bool(jnp.all(jnp.isfinite(out)))
    assert bool(jnp.allclose(jnp.sum(out, axis=1), 1.0, atol=1e-4))
    # bf16 MXU operands with f32 accumulation -> small deviation from f32 ref.
    assert bool(jnp.allclose(out, ref, atol=5e-2)), float(jnp.max(jnp.abs(out - ref)))
    print("KERNEL_OK")
</pallas_src>

<mosaic_0001>
module attributes {stable_mosaic.version = 11 : i64} {
  func.func @_lenet_kernel(%arg0: i32, %arg1: memref<1x1x2944xf32, #tpu.memory_space<vmem>>, %arg2: memref<6x25xbf16, #tpu.memory_space<vmem>>, %arg3: memref<6x1xf32, #tpu.memory_space<vmem>>, %arg4: memref<16x200xbf16, #tpu.memory_space<vmem>>, %arg5: memref<16x1xf32, #tpu.memory_space<vmem>>, %arg6: memref<2x2048xbf16, #tpu.memory_space<vmem>>, %arg7: memref<32x2048xbf16, #tpu.memory_space<vmem>>, %arg8: memref<512x120xbf16, #tpu.memory_space<vmem>>, %arg9: memref<1x120xf32, #tpu.memory_space<vmem>>, %arg10: memref<120x84xbf16, #tpu.memory_space<vmem>>, %arg11: memref<1x84xf32, #tpu.memory_space<vmem>>, %arg12: memref<84x128xbf16, #tpu.memory_space<vmem>>, %arg13: memref<1x128xf32, #tpu.memory_space<vmem>>, %arg14: memref<1x2x128xf32, #tpu.memory_space<vmem>>, %arg15: memref<25x2688xf32, #tpu.memory_space<vmem>>, %arg16: memref<8x2560xf32, #tpu.memory_space<vmem>>, %arg17: memref<200x2176xf32, #tpu.memory_space<vmem>>, %arg18: memref<512x2048xbf16, #tpu.memory_space<vmem>>) attributes {dimension_semantics = [#tpu.dimension_semantics<parallel>], iteration_bounds = array<i64: 1>, scalar_prefetch = 0 : i64, scratch_operands = 4 : i64, tpu.core_type = #tpu.core_type<tc>, window_params = [{transform_indices = @transform_0, window_bounds = array<i64: 1, 1, 2944>}, {pipeline_mode = #tpu.pipeline_mode<synchronous>, transform_indices = @transform_1, window_bounds = array<i64: 6, 25>}, {pipeline_mode = #tpu.pipeline_mode<synchronous>, transform_indices = @transform_2, window_bounds = array<i64: 6, 1>}, {pipeline_mode = #tpu.pipeline_mode<synchronous>, transform_indices = @transform_3, window_bounds = array<i64: 16, 200>}, {pipeline_mode = #tpu.pipeline_mode<synchronous>, transform_indices = @transform_4, window_bounds = array<i64: 16, 1>}, {pipeline_mode = #tpu.pipeline_mode<synchronous>, transform_indices = @transform_5, window_bounds = array<i64: 2, 2048>}, {pipeline_mode = #tpu.pipeline_mode<synchronous>, transform_indices = @transform_6, window_bounds = array<i64: 32, 2048>}, {pipeline_mode = #tpu.pipeline_mode<synchronous>, transform_indices = @transform_7, window_bounds = array<i64: 512, 120>}, {pipeline_mode = #tpu.pipeline_mode<synchronous>, transform_indices = @transform_8, window_bounds = array<i64: 1, 120>}, {pipeline_mode = #tpu.pipeline_mode<synchronous>, transform_indices = @transform_9, window_bounds = array<i64: 120, 84>}, {pipeline_mode = #tpu.pipeline_mode<synchronous>, transform_indices = @transform_10, window_bounds = array<i64: 1, 84>}, {pipeline_mode = #tpu.pipeline_mode<synchronous>, transform_indices = @transform_11, window_bounds = array<i64: 84, 128>}, {pipeline_mode = #tpu.pipeline_mode<synchronous>, transform_indices = @transform_12, window_bounds = array<i64: 1, 128>}, {transform_indices = @transform_13, window_bounds = array<i64: 1, 2, 128>}]} {
    %c0 = arith.constant 0 : index
    %c0_0 = arith.constant 0 : index
    %c0_1 = arith.constant 0 : index
    %0 = vector.load %arg1[%c0, %c0_0, %c0_1] : memref<1x1x2944xf32, #tpu.memory_space<vmem>>, vector<1x1x2944xf32>
    %1 = vector.shape_cast %0 : vector<1x1x2944xf32> to vector<1x2944xf32>
    %2 = vector.extract_strided_slice %1 {offsets = [0, 0], sizes = [1, 2688], strides = [1, 1]} : vector<1x2944xf32> to vector<1x2688xf32>
    %c0_2 = arith.constant 0 : index
    %c0_3 = arith.constant 0 : index
    %3 = vector.load %arg15[%c0_2, %c0_3] : memref<25x2688xf32, #tpu.memory_space<vmem>>, vector<1x2688xf32>
    tpu.vector_store %arg15[%c0_2, %c0_3], %2 {strides = array<i32>} : memref<25x2688xf32, #tpu.memory_space<vmem>>, vector<1x2688xf32>,
    %4 = vector.extract_strided_slice %1 {offsets = [0, 1], sizes = [1, 2688], strides = [1, 1]} : vector<1x2944xf32> to vector<1x2688xf32>
    %c1 = arith.constant 1 : index
    %c0_4 = arith.constant 0 : index
    %5 = vector.load %arg15[%c1, %c0_4] : memref<25x2688xf32, #tpu.memory_space<vmem>>, vector<1x2688xf32>
    tpu.vector_store %arg15[%c1, %c0_4], %4 {strides = array<i32>} : memref<25x2688xf32, #tpu.memory_space<vmem>>, vector<1x2688xf32>,
    %6 = vector.extract_strided_slice %1 {offsets = [0, 2], sizes = [1, 2688], strides = [1, 1]} : vector<1x2944xf32> to vector<1x2688xf32>
    %c2 = arith.constant 2 : index
    %c0_5 = arith.constant 0 : index
    %7 = vector.load %arg15[%c2, %c0_5] : memref<25x2688xf32, #tpu.memory_space<vmem>>, vector<1x2688xf32>
    tpu.vector_store %arg15[%c2, %c0_5], %6 {strides = array<i32>} : memref<25x2688xf32, #tpu.memory_space<vmem>>, vector<1x2688xf32>,
    %8 = vector.extract_strided_slice %1 {offsets = [0, 3], sizes = [1, 2688], strides = [1, 1]} : vector<1x2944xf32> to vector<1x2688xf32>
    %c3 = arith.constant 3 : index
    %c0_6 = arith.constant 0 : index
    %9 = vector.load %arg15[%c3, %c0_6] : memref<25x2688xf32, #tpu.memory_space<vmem>>, vector<1x2688xf32>
    tpu.vector_store %arg15[%c3, %c0_6], %8 {strides = array<i32>} : memref<25x2688xf32, #tpu.memory_space<vmem>>, vector<1x2688xf32>,
    %10 = vector.extract_strided_slice %1 {offsets = [0, 4], sizes = [1, 2688], strides = [1, 1]} : vector<1x2944xf32> to vector<1x2688xf32>
    %c4 = arith.constant 4 : index
    %c0_7 = arith.constant 0 : index
    %11 = vector.load %arg15[%c4, %c0_7] : memref<25x2688xf32, #tpu.memory_space<vmem>>, vector<1x2688xf32>
    tpu.vector_store %arg15[%c4, %c0_7], %10 {strides = array<i32>} : memref<25x2688xf32, #tpu.memory_space<vmem>>, vector<1x2688xf32>,
    %12 = vector.extract_strided_slice %1 {offsets = [0, 32], sizes = [1, 2688], strides = [1, 1]} : vector<1x2944xf32> to vector<1x2688xf32>
    %c5 = arith.constant 5 : index
    %c0_8 = arith.constant 0 : index
    %13 = vector.load %arg15[%c5, %c0_8] : memref<25x2688xf32, #tpu.memory_space<vmem>>, vector<1x2688xf32>
    tpu.vector_store %arg15[%c5, %c0_8], %12 {strides = array<i32>} : memref<25x2688xf32, #tpu.memory_space<vmem>>, vector<1x2688xf32>,
    %14 = vector.extract_strided_slice %1 {offsets = [0, 33], sizes = [1, 2688], strides = [1, 1]} : vector<1x2944xf32> to vector<1x2688xf32>
    %c6 = arith.constant 6 : index
    %c0_9 = arith.constant 0 : index
    %15 = vector.load %arg15[%c6, %c0_9] : memref<25x2688xf32, #tpu.memory_space<vmem>>, vector<1x2688xf32>
    tpu.vector_store %arg15[%c6, %c0_9], %14 {strides = array<i32>} : memref<25x2688xf32, #tpu.memory_space<vmem>>, vector<1x2688xf32>,
    %16 = vector.extract_strided_slice %1 {offsets = [0, 34], sizes = [1, 2688], strides = [1, 1]} : vector<1x2944xf32> to vector<1x2688xf32>
    %c7 = arith.constant 7 : index
    %c0_10 = arith.constant 0 : index
    %17 = vector.load %arg15[%c7, %c0_10] : memref<25x2688xf32, #tpu.memory_space<vmem>>, vector<1x2688xf32>
    tpu.vector_store %arg15[%c7, %c0_10], %16 {strides = array<i32>} : memref<25x2688xf32, #tpu.memory_space<vmem>>, vector<1x2688xf32>,
    %18 = vector.extract_strided_slice %1 {offsets = [0, 35], sizes = [1, 2688], strides = [1, 1]} : vector<1x2944xf32> to vector<1x2688xf32>
    %c8 = arith.constant 8 : index
    %c0_11 = arith.constant 0 : index
    %19 = vector.load %arg15[%c8, %c0_11] : memref<25x2688xf32, #tpu.memory_space<vmem>>, vector<1x2688xf32>
    tpu.vector_store %arg15[%c8, %c0_11], %18 {strides = array<i32>} : memref<25x2688xf32, #tpu.memory_space<vmem>>, vector<1x2688xf32>,
    %20 = vector.extract_strided_slice %1 {offsets = [0, 36], sizes = [1, 2688], strides = [1, 1]} : vector<1x2944xf32> to vector<1x2688xf32>
    %c9 = arith.constant 9 : index
    %c0_12 = arith.constant 0 : index
    %21 = vector.load %arg15[%c9, %c0_12] : memref<25x2688xf32, #tpu.memory_space<vmem>>, vector<1x2688xf32>
    tpu.vector_store %arg15[%c9, %c0_12], %20 {strides = array<i32>} : memref<25x2688xf32, #tpu.memory_space<vmem>>, vector<1x2688xf32>,
    %22 = vector.extract_strided_slice %1 {offsets = [0, 64], sizes = [1, 2688], strides = [1, 1]} : vector<1x2944xf32> to vector<1x2688xf32>
    %c10 = arith.constant 10 : index
    %c0_13 = arith.constant 0 : index
    %23 = vector.load %arg15[%c10, %c0_13] : memref<25x2688xf32, #tpu.memory_space<vmem>>, vector<1x2688xf32>
    tpu.vector_store %arg15[%c10, %c0_13], %22 {strides = array<i32>} : memref<25x2688xf32, #tpu.memory_space<vmem>>, vector<1x2688xf32>,
    %24 = vector.extract_strided_slice %1 {offsets = [0, 65], sizes = [1, 2688], strides = [1, 1]} : vector<1x2944xf32> to vector<1x2688xf32>
    %c11 = arith.constant 11 : index
    %c0_14 = arith.constant 0 : index
    %25 = vector.load %arg15[%c11, %c0_14] : memref<25x2688xf32, #tpu.memory_space<vmem>>, vector<1x2688xf32>
    tpu.vector_store %arg15[%c11, %c0_14], %24 {strides = array<i32>} : memref<25x2688xf32, #tpu.memory_space<vmem>>, vector<1x2688xf32>,
    %26 = vector.extract_strided_slice %1 {offsets = [0, 66], sizes = [1, 2688], strides = [1, 1]} : vector<1x2944xf32> to vector<1x2688xf32>
    %c12 = arith.constant 12 : index
    %c0_15 = arith.constant 0 : index
    %27 = vector.load %arg15[%c12, %c0_15] : memref<25x2688xf32, #tpu.memory_space<vmem>>, vector<1x2688xf32>
    tpu.vector_store %arg15[%c12, %c0_15], %26 {strides = array<i32>} : memref<25x2688xf32, #tpu.memory_space<vmem>>, vector<1x2688xf32>,
    %28 = vector.extract_strided_slice %1 {offsets = [0, 67], sizes = [1, 2688], strides = [1, 1]} : vector<1x2944xf32> to vector<1x2688xf32>
    %c13 = arith.constant 13 : index
    %c0_16 = arith.constant 0 : index
    %29 = vector.load %arg15[%c13, %c0_16] : memref<25x2688xf32, #tpu.memory_space<vmem>>, vector<1x2688xf32>
    tpu.vector_store %arg15[%c13, %c0_16], %28 {strides = array<i32>} : memref<25x2688xf32, #tpu.memory_space<vmem>>, vector<1x2688xf32>,
    %30 = vector.extract_strided_slice %1 {offsets = [0, 68], sizes = [1, 2688], strides = [1, 1]} : vector<1x2944xf32> to vector<1x2688xf32>
    %c14 = arith.constant 14 : index
    %c0_17 = arith.constant 0 : index
    %31 = vector.load %arg15[%c14, %c0_17] : memref<25x2688xf32, #tpu.memory_space<vmem>>, vector<1x2688xf32>
    tpu.vector_store %arg15[%c14, %c0_17], %30 {strides = array<i32>} : memref<25x2688xf32, #tpu.memory_space<vmem>>, vector<1x2688xf32>,
    %32 = vector.extract_strided_slice %1 {offsets = [0, 96], sizes = [1, 2688], strides = [1, 1]} : vector<1x2944xf32> to vector<1x2688xf32>
    %c15 = arith.constant 15 : index
    %c0_18 = arith.constant 0 : index
    %33 = vector.load %arg15[%c15, %c0_18] : memref<25x2688xf32, #tpu.memory_space<vmem>>, vector<1x2688xf32>
    tpu.vector_store %arg15[%c15, %c0_18], %32 {strides = array<i32>} : memref<25x2688xf32, #tpu.memory_space<vmem>>, vector<1x2688xf32>,
    %34 = vector.extract_strided_slice %1 {offsets = [0, 97], sizes = [1, 2688], strides = [1, 1]} : vector<1x2944xf32> to vector<1x2688xf32>
    %c16 = arith.constant 16 : index
    %c0_19 = arith.constant 0 : index
    %35 = vector.load %arg15[%c16, %c0_19] : memref<25x2688xf32, #tpu.memory_space<vmem>>, vector<1x2688xf32>
    tpu.vector_store %arg15[%c16, %c0_19], %34 {strides = array<i32>} : memref<25x2688xf32, #tpu.memory_space<vmem>>, vector<1x2688xf32>,
    %36 = vector.extract_strided_slice %1 {offsets = [0, 98], sizes = [1, 2688], strides = [1, 1]} : vector<1x2944xf32> to vector<1x2688xf32>
    %c17 = arith.constant 17 : index
    %c0_20 = arith.constant 0 : index
    %37 = vector.load %arg15[%c17, %c0_20] : memref<25x2688xf32, #tpu.memory_space<vmem>>, vector<1x2688xf32>
    tpu.vector_store %arg15[%c17, %c0_20], %36 {strides = array<i32>} : memref<25x2688xf32, #tpu.memory_space<vmem>>, vector<1x2688xf32>,
    %38 = vector.extract_strided_slice %1 {offsets = [0, 99], sizes = [1, 2688], strides = [1, 1]} : vector<1x2944xf32> to vector<1x2688xf32>
    %c18 = arith.constant 18 : index
    %c0_21 = arith.constant 0 : index
    %39 = vector.load %arg15[%c18, %c0_21] : memref<25x2688xf32, #tpu.memory_space<vmem>>, vector<1x2688xf32>
    tpu.vector_store %arg15[%c18, %c0_21], %38 {strides = array<i32>} : memref<25x2688xf32, #tpu.memory_space<vmem>>, vector<1x2688xf32>,
    %40 = vector.extract_strided_slice %1 {offsets = [0, 100], sizes = [1, 2688], strides = [1, 1]} : vector<1x2944xf32> to vector<1x2688xf32>
    %c19 = arith.constant 19 : index
    %c0_22 = arith.constant 0 : index
    %41 = vector.load %arg15[%c19, %c0_22] : memref<25x2688xf32, #tpu.memory_space<vmem>>, vector<1x2688xf32>
    tpu.vector_store %arg15[%c19, %c0_22], %40 {strides = array<i32>} : memref<25x2688xf32, #tpu.memory_space<vmem>>, vector<1x2688xf32>,
    %42 = vector.extract_strided_slice %1 {offsets = [0, 128], sizes = [1, 2688], strides = [1, 1]} : vector<1x2944xf32> to vector<1x2688xf32>
    %c20 = arith.constant 20 : index
    %c0_23 = arith.constant 0 : index
    %43 = vector.load %arg15[%c20, %c0_23] : memref<25x2688xf32, #tpu.memory_space<vmem>>, vector<1x2688xf32>
    tpu.vector_store %arg15[%c20, %c0_23], %42 {strides = array<i32>} : memref<25x2688xf32, #tpu.memory_space<vmem>>, vector<1x2688xf32>,
    %44 = vector.extract_strided_slice %1 {offsets = [0, 129], sizes = [1, 2688], strides = [1, 1]} : vector<1x2944xf32> to vector<1x2688xf32>
    %c21 = arith.constant 21 : index
    %c0_24 = arith.constant 0 : index
    %45 = vector.load %arg15[%c21, %c0_24] : memref<25x2688xf32, #tpu.memory_space<vmem>>, vector<1x2688xf32>
    tpu.vector_store %arg15[%c21, %c0_24], %44 {strides = array<i32>} : memref<25x2688xf32, #tpu.memory_space<vmem>>, vector<1x2688xf32>,
    %46 = vector.extract_strided_slice %1 {offsets = [0, 130], sizes = [1, 2688], strides = [1, 1]} : vector<1x2944xf32> to vector<1x2688xf32>
    %c22 = arith.constant 22 : index
    %c0_25 = arith.constant 0 : index
    %47 = vector.load %arg15[%c22, %c0_25] : memref<25x2688xf32, #tpu.memory_space<vmem>>, vector<1x2688xf32>
    tpu.vector_store %arg15[%c22, %c0_25], %46 {strides = array<i32>} : memref<25x2688xf32, #tpu.memory_space<vmem>>, vector<1x2688xf32>,
    %48 = vector.extract_strided_slice %1 {offsets = [0, 131], sizes = [1, 2688], strides = [1, 1]} : vector<1x2944xf32> to vector<1x2688xf32>
    %c23 = arith.constant 23 : index
    %c0_26 = arith.constant 0 : index
    %49 = vector.load %arg15[%c23, %c0_26] : memref<25x2688xf32, #tpu.memory_space<vmem>>, vector<1x2688xf32>
    tpu.vector_store %arg15[%c23, %c0_26], %48 {strides = array<i32>} : memref<25x2688xf32, #tpu.memory_space<vmem>>, vector<1x2688xf32>,
    %50 = vector.extract_strided_slice %1 {offsets = [0, 132], sizes = [1, 2688], strides = [1, 1]} : vector<1x2944xf32> to vector<1x2688xf32>
    %c24 = arith.constant 24 : index
    %c0_27 = arith.constant 0 : index
    %51 = vector.load %arg15[%c24, %c0_27] : memref<25x2688xf32, #tpu.memory_space<vmem>>, vector<1x2688xf32>
    tpu.vector_store %arg15[%c24, %c0_27], %50 {strides = array<i32>} : memref<25x2688xf32, #tpu.memory_space<vmem>>, vector<1x2688xf32>,
    %c0_28 = arith.constant 0 : index
    %c0_29 = arith.constant 0 : index
    %52 = vector.load %arg2[%c0_28, %c0_29] : memref<6x25xbf16, #tpu.memory_space<vmem>>, vector<6x25xbf16>
    %c0_30 = arith.constant 0 : index
    %c0_31 = arith.constant 0 : index
    %53 = vector.load %arg15[%c0_30, %c0_31] : memref<25x2688xf32, #tpu.memory_space<vmem>>, vector<25x2688xf32>
    %54 = arith.truncf %53 : vector<25x2688xf32> to vector<25x2688xbf16>
    %cst = arith.constant dense<0.000000e+00> : vector<6x2688xf32>
    %55 = tpu.matmul %52, %54, %cst {dimension_numbers = #tpu.dot_dimension_numbers<[1], [0], [0], [1], [0, 0, 1, 1], [], []>} : vector<6x25xbf16>, vector<25x2688xbf16>, vector<6x2688xf32> -> vector<6x2688xf32>
    %c0_32 = arith.constant 0 : index
    %c0_33 = arith.constant 0 : index
    %56 = vector.load %arg3[%c0_32, %c0_33] : memref<6x1xf32, #tpu.memory_space<vmem>>, vector<6x1xf32>
    %57 = vector.broadcast %56 : vector<6x1xf32> to vector<6x2688xf32>
    %58 = arith.addf %55, %57 : vector<6x2688xf32>
    %59 = math.tanh %58 : vector<6x2688xf32>
    %60 = vector.extract_strided_slice %59 {offsets = [0, 0], sizes = [6, 2560], strides = [1, 1]} : vector<6x2688xf32> to vector<6x2560xf32>
    %61 = vector.extract_strided_slice %59 {offsets = [0, 1], sizes = [6, 2560], strides = [1, 1]} : vector<6x2688xf32> to vector<6x2560xf32>
    %62 = arith.maximumf %60, %61 : vector<6x2560xf32>
    %63 = vector.extract_strided_slice %59 {offsets = [0, 32], sizes = [6, 2560], strides = [1, 1]} : vector<6x2688xf32> to vector<6x2560xf32>
    %64 = vector.extract_strided_slice %59 {offsets = [0, 33], sizes = [6, 2560], strides = [1, 1]} : vector<6x2688xf32> to vector<6x2560xf32>
    %65 = arith.maximumf %63, %64 : vector<6x2560xf32>
    %66 = arith.maximumf %62, %65 : vector<6x2560xf32>
    %c0_34 = arith.constant 0 : index
    %c0_35 = arith.constant 0 : index
    %67 = vector.load %arg16[%c0_34, %c0_35] : memref<8x2560xf32, #tpu.memory_space<vmem>>, vector<6x2560xf32>
    tpu.vector_store %arg16[%c0_34, %c0_35], %66 {strides = array<i32>} : memref<8x2560xf32, #tpu.memory_space<vmem>>, vector<6x2560xf32>,
    %cst_36 = arith.constant 0.000000e+00 : f32
    %68 = vector.broadcast %cst_36 : f32 to vector<2x2560xf32>
    %c6_37 = arith.constant 6 : index
    %c0_38 = arith.constant 0 : index
    %69 = vector.load %arg16[%c6_37, %c0_38] : memref<8x2560xf32, #tpu.memory_space<vmem>>, vector<2x2560xf32>
    tpu.vector_store %arg16[%c6_37, %c0_38], %68 {strides = array<i32>} : memref<8x2560xf32, #tpu.memory_space<vmem>>, vector<2x2560xf32>,
    %c0_39 = arith.constant 0 : index
    %c0_40 = arith.constant 0 : index
    %70 = vector.load %arg16[%c0_39, %c0_40] : memref<8x2560xf32, #tpu.memory_space<vmem>>, vector<8x2176xf32>
    %c0_41 = arith.constant 0 : index
    %c0_42 = arith.constant 0 : index
    %71 = vector.load %arg17[%c0_41, %c0_42] : memref<200x2176xf32, #tpu.memory_space<vmem>>, vector<8x2176xf32>
    tpu.vector_store %arg17[%c0_41, %c0_42], %70 {strides = array<i32>} : memref<200x2176xf32, #tpu.memory_space<vmem>>, vector<8x2176xf32>,
    %c0_43 = arith.constant 0 : index
    %c2_44 = arith.constant 2 : index
    %72 = vector.load %arg16[%c0_43, %c2_44] : memref<8x2560xf32, #tpu.memory_space<vmem>>, vector<8x2176xf32>
    %c8_45 = arith.constant 8 : index
    %c0_46 = arith.constant 0 : index
    %73 = vector.load %arg17[%c8_45, %c0_46] : memref<200x2176xf32, #tpu.memory_space<vmem>>, vector<8x2176xf32>
    tpu.vector_store %arg17[%c8_45, %c0_46], %72 {strides = array<i32>} : memref<200x2176xf32, #tpu.memory_space<vmem>>, vector<8x2176xf32>,
    %c0_47 = arith.constant 0 : index
    %c4_48 = arith.constant 4 : index
    %74 = vector.load %arg16[%c0_47, %c4_48] : memref<8x2560xf32, #tpu.memory_space<vmem>>, vector<8x2176xf32>
    %c16_49 = arith.constant 16 : index
    %c0_50 = arith.constant 0 : index
    %75 = vector.load %arg17[%c16_49, %c0_50] : memref<200x2176xf32, #tpu.memory_space<vmem>>, vector<8x2176xf32>
    tpu.vector_store %arg17[%c16_49, %c0_50], %74 {strides = array<i32>} : memref<200x2176xf32, #tpu.memory_space<vmem>>, vector<8x2176xf32>,
    %c0_51 = arith.constant 0 : index
    %c6_52 = arith.constant 6 : index
    %76 = vector.load %arg16[%c0_51, %c6_52] : memref<8x2560xf32, #tpu.memory_space<vmem>>, vector<8x2176xf32>
    %c24_53 = arith.constant 24 : index
    %c0_54 = arith.constant 0 : index
    %77 = vector.load %arg17[%c24_53, %c0_54] : memref<200x2176xf32, #tpu.memory_space<vmem>>, vector<8x2176xf32>
    tpu.vector_store %arg17[%c24_53, %c0_54], %76 {strides = array<i32>} : memref<200x2176xf32, #tpu.memory_space<vmem>>, vector<8x2176xf32>,
    %c0_55 = arith.constant 0 : index
    %c8_56 = arith.constant 8 : index
    %78 = vector.load %arg16[%c0_55, %c8_56] : memref<8x2560xf32, #tpu.memory_space<vmem>>, vector<8x2176xf32>
    %c32 = arith.constant 32 : index
    %c0_57 = arith.constant 0 : index
    %79 = vector.load %arg17[%c32, %c0_57] : memref<200x2176xf32, #tpu.memory_space<vmem>>, vector<8x2176xf32>
    tpu.vector_store %arg17[%c32, %c0_57], %78 {strides = array<i32>} : memref<200x2176xf32, #tpu.memory_space<vmem>>, vector<8x2176xf32>,
    %c0_58 = arith.constant 0 : index
    %c64 = arith.constant 64 : index
    %80 = vector.load %arg16[%c0_58, %c64] : memref<8x2560xf32, #tpu.memory_space<vmem>>, vector<8x2176xf32>
    %c40 = arith.constant 40 : index
    %c0_59 = arith.constant 0 : index
    %81 = vector.load %arg17[%c40, %c0_59] : memref<200x2176xf32, #tpu.memory_space<vmem>>, vector<8x2176xf32>
    tpu.vector_store %arg17[%c40, %c0_59], %80 {strides = array<i32>} : memref<200x2176xf32, #tpu.memory_space<vmem>>, vector<8x2176xf32>,
    %c0_60 = arith.constant 0 : index
    %c66 = arith.constant 66 : index
    %82 = vector.load %arg16[%c0_60, %c66] : memref<8x2560xf32, #tpu.memory_space<vmem>>, vector<8x2176xf32>
    %c48 = arith.constant 48 : index
    %c0_61 = arith.constant 0 : index
    %83 = vector.load %arg17[%c48, %c0_61] : memref<200x2176xf32, #tpu.memory_space<vmem>>, vector<8x2176xf32>
    tpu.vector_store %arg17[%c48, %c0_61], %82 {strides = array<i32>} : memref<200x2176xf32, #tpu.memory_space<vmem>>, vector<8x2176xf32>,
    %c0_62 = arith.constant 0 : index
    %c68 = arith.constant 68 : index
    %84 = vector.load %arg16[%c0_62, %c68] : memref<8x2560xf32, #tpu.memory_space<vmem>>, vector<8x2176xf32>
    %c56 = arith.constant 56 : index
    %c0_63 = arith.constant 0 : index
    %85 = vector.load %arg17[%c56, %c0_63] : memref<200x2176xf32, #tpu.memory_space<vmem>>, vector<8x2176xf32>
    tpu.vector_store %arg17[%c56, %c0_63], %84 {strides = array<i32>} : memref<200x2176xf32, #tpu.memory_space<vmem>>, vector<8x2176xf32>,
    %c0_64 = arith.constant 0 : index
    %c70 = arith.constant 70 : index
    %86 = vector.load %arg16[%c0_64, %c70] : memref<8x2560xf32, #tpu.memory_space<vmem>>, vector<8x2176xf32>
    %c64_65 = arith.constant 64 : index
    %c0_66 = arith.constant 0 : index
    %87 = vector.load %arg17[%c64_65, %c0_66] : memref<200x2176xf32, #tpu.memory_space<vmem>>, vector<8x2176xf32>
    tpu.vector_store %arg17[%c64_65, %c0_66], %86 {strides = array<i32>} : memref<200x2176xf32, #tpu.memory_space<vmem>>, vector<8x2176xf32>,
    %c0_67 = arith.constant 0 : index
    %c72 = arith.constant 72 : index
    %88 = vector.load %arg16[%c0_67, %c72] : memref<8x2560xf32, #tpu.memory_space<vmem>>, vector<8x2176xf32>
    %c72_68 = arith.constant 72 : index
    %c0_69 = arith.constant 0 : index
    %89 = vector.load %arg17[%c72_68, %c0_69] : memref<200x2176xf32, #tpu.memory_space<vmem>>, vector<8x2176xf32>
    tpu.vector_store %arg17[%c72_68, %c0_69], %88 {strides = array<i32>} : memref<200x2176xf32, #tpu.memory_space<vmem>>, vector<8x2176xf32>,
    %c0_70 = arith.constant 0 : index
    %c128 = arith.constant 128 : index
    %90 = vector.load %arg16[%c0_70, %c128] : memref<8x2560xf32, #tpu.memory_space<vmem>>, vector<8x2176xf32>
    %c80 = arith.constant 80 : index
    %c0_71 = arith.constant 0 : index
    %91 = vector.load %arg17[%c80, %c0_71] : memref<200x2176xf32, #tpu.memory_space<vmem>>, vector<8x2176xf32>
    tpu.vector_store %arg17[%c80, %c0_71], %90 {strides = array<i32>} : memref<200x2176xf32, #tpu.memory_space<vmem>>, vector<8x2176xf32>,
    %c0_72 = arith.constant 0 : index
    %c130 = arith.constant 130 : index
    %92 = vector.load %arg16[%c0_72, %c130] : memref<8x2560xf32, #tpu.memory_space<vmem>>, vector<8x2176xf32>
    %c88 = arith.constant 88 : index
    %c0_73 = arith.constant 0 : index
    %93 = vector.load %arg17[%c88, %c0_73] : memref<200x2176xf32, #tpu.memory_space<vmem>>, vector<8x2176xf32>
    tpu.vector_store %arg17[%c88, %c0_73], %92 {strides = array<i32>} : memref<200x2176xf32, #tpu.memory_space<vmem>>, vector<8x2176xf32>,
    %c0_74 = arith.constant 0 : index
    %c132 = arith.constant 132 : index
    %94 = vector.load %arg16[%c0_74, %c132] : memref<8x2560xf32, #tpu.memory_space<vmem>>, vector<8x2176xf32>
    %c96 = arith.constant 96 : index
    %c0_75 = arith.constant 0 : index
    %95 = vector.load %arg17[%c96, %c0_75] : memref<200x2176xf32, #tpu.memory_space<vmem>>, vector<8x2176xf32>
    tpu.vector_store %arg17[%c96, %c0_75], %94 {strides = array<i32>} : memref<200x2176xf32, #tpu.memory_space<vmem>>, vector<8x2176xf32>,
    %c0_76 = arith.constant 0 : index
    %c134 = arith.constant 134 : index
    %96 = vector.load %arg16[%c0_76, %c134] : memref<8x2560xf32, #tpu.memory_space<vmem>>, vector<8x2176xf32>
    %c104 = arith.constant 104 : index
    %c0_77 = arith.constant 0 : index
    %97 = vector.load %arg17[%c104, %c0_77] : memref<200x2176xf32, #tpu.memory_space<vmem>>, vector<8x2176xf32>
    tpu.vector_store %arg17[%c104, %c0_77], %96 {strides = array<i32>} : memref<200x2176xf32, #tpu.memory_space<vmem>>, vector<8x2176xf32>,
    %c0_78 = arith.constant 0 : index
    %c136 = arith.constant 136 : index
    %98 = vector.load %arg16[%c0_78, %c136] : memref<8x2560xf32, #tpu.memory_space<vmem>>, vector<8x2176xf32>
    %c112 = arith.constant 112 : index
    %c0_79 = arith.constant 0 : index
    %99 = vector.load %arg17[%c112, %c0_79] : memref<200x2176xf32, #tpu.memory_space<vmem>>, vector<8x2176xf32>
    tpu.vector_store %arg17[%c112, %c0_79], %98 {strides = array<i32>} : memref<200x2176xf32, #tpu.memory_space<vmem>>, vector<8x2176xf32>,
    %c0_80 = arith.constant 0 : index
    %c192 = arith.constant 192 : index
    %100 = vector.load %arg16[%c0_80, %c192] : memref<8x2560xf32, #tpu.memory_space<vmem>>, vector<8x2176xf32>
    %c120 = arith.constant 120 : index
    %c0_81 = arith.constant 0 : index
    %101 = vector.load %arg17[%c120, %c0_81] : memref<200x2176xf32, #tpu.memory_space<vmem>>, vector<8x2176xf32>
    tpu.vector_store %arg17[%c120, %c0_81], %100 {strides = array<i32>} : memref<200x2176xf32, #tpu.memory_space<vmem>>, vector<8x2176xf32>,
    %c0_82 = arith.constant 0 : index
    %c194 = arith.constant 194 : index
    %102 = vector.load %arg16[%c0_82, %c194] : memref<8x2560xf32, #tpu.memory_space<vmem>>, vector<8x2176xf32>
    %c128_83 = arith.constant 128 : index
    %c0_84 = arith.constant 0 : index
    %103 = vector.load %arg17[%c128_83, %c0_84] : memref<200x2176xf32, #tpu.memory_space<vmem>>, vector<8x2176xf32>
    tpu.vector_store %arg17[%c128_83, %c0_84], %102 {strides = array<i32>} : memref<200x2176xf32, #tpu.memory_space<vmem>>, vector<8x2176xf32>,
    %c0_85 = arith.constant 0 : index
    %c196 = arith.constant 196 : index
    %104 = vector.load %arg16[%c0_85, %c196] : memref<8x2560xf32, #tpu.memory_space<vmem>>, vector<8x2176xf32>
    %c136_86 = arith.constant 136 : index
    %c0_87 = arith.constant 0 : index
    %105 = vector.load %arg17[%c136_86, %c0_87] : memref<200x2176xf32, #tpu.memory_space<vmem>>, vector<8x2176xf32>
    tpu.vector_store %arg17[%c136_86, %c0_87], %104 {strides = array<i32>} : memref<200x2176xf32, #tpu.memory_space<vmem>>, vector<8x2176xf32>,
    %c0_88 = arith.constant 0 : index
    %c198 = arith.constant 198 : index
    %106 = vector.load %arg16[%c0_88, %c198] : memref<8x2560xf32, #tpu.memory_space<vmem>>, vector<8x2176xf32>
    %c144 = arith.constant 144 : index
    %c0_89 = arith.constant 0 : index
    %107 = vector.load %arg17[%c144, %c0_89] : memref<200x2176xf32, #tpu.memory_space<vmem>>, vector<8x2176xf32>
    tpu.vector_store %arg17[%c144, %c0_89], %106 {strides = array<i32>} : memref<200x2176xf32, #tpu.memory_space<vmem>>, vector<8x2176xf32>,
    %c0_90 = arith.constant 0 : index
    %c200 = arith.constant 200 : index
    %108 = vector.load %arg16[%c0_90, %c200] : memref<8x2560xf32, #tpu.memory_space<vmem>>, vector<8x2176xf32>
    %c152 = arith.constant 152 : index
    %c0_91 = arith.constant 0 : index
    %109 = vector.load %arg17[%c152, %c0_91] : memref<200x2176xf32, #tpu.memory_space<vmem>>, vector<8x2176xf32>
    tpu.vector_store %arg17[%c152, %c0_91], %108 {strides = array<i32>} : memref<200x2176xf32, #tpu.memory_space<vmem>>, vector<8x2176xf32>,
    %c0_92 = arith.constant 0 : index
    %c256 = arith.constant 256 : index
    %110 = vector.load %arg16[%c0_92, %c256] : memref<8x2560xf32, #tpu.memory_space<vmem>>, vector<8x2176xf32>
    %c160 = arith.constant 160 : index
    %c0_93 = arith.constant 0 : index
    %111 = vector.load %arg17[%c160, %c0_93] : memref<200x2176xf32, #tpu.memory_space<vmem>>, vector<8x2176xf32>
    tpu.vector_store %arg17[%c160, %c0_93], %110 {strides = array<i32>} : memref<200x2176xf32, #tpu.memory_space<vmem>>, vector<8x2176xf32>,
    %c0_94 = arith.constant 0 : index
    %c258 = arith.constant 258 : index
    %112 = vector.load %arg16[%c0_94, %c258] : memref<8x2560xf32, #tpu.memory_space<vmem>>, vector<8x2176xf32>
    %c168 = arith.constant 168 : index
    %c0_95 = arith.constant 0 : index
    %113 = vector.load %arg17[%c168, %c0_95] : memref<200x2176xf32, #tpu.memory_space<vmem>>, vector<8x2176xf32>
    tpu.vector_store %arg17[%c168, %c0_95], %112 {strides = array<i32>} : memref<200x2176xf32, #tpu.memory_space<vmem>>, vector<8x2176xf32>,
    %c0_96 = arith.constant 0 : index
    %c260 = arith.constant 260 : index
    %114 = vector.load %arg16[%c0_96, %c260] : memref<8x2560xf32, #tpu.memory_space<vmem>>, vector<8x2176xf32>
    %c176 = arith.constant 176 : index
    %c0_97 = arith.constant 0 : index
    %115 = vector.load %arg17[%c176, %c0_97] : memref<200x2176xf32, #tpu.memory_space<vmem>>, vector<8x2176xf32>
    tpu.vector_store %arg17[%c176, %c0_97], %114 {strides = array<i32>} : memref<200x2176xf32, #tpu.memory_space<vmem>>, vector<8x2176xf32>,
    %c0_98 = arith.constant 0 : index
    %c262 = arith.constant 262 : index
    %116 = vector.load %arg16[%c0_98, %c262] : memref<8x2560xf32, #tpu.memory_space<vmem>>, vector<8x2176xf32>
    %c184 = arith.constant 184 : index
    %c0_99 = arith.constant 0 : index
    %117 = vector.load %arg17[%c184, %c0_99] : memref<200x2176xf32, #tpu.memory_space<vmem>>, vector<8x2176xf32>
    tpu.vector_store %arg17[%c184, %c0_99], %116 {strides = array<i32>} : memref<200x2176xf32, #tpu.memory_space<vmem>>, vector<8x2176xf32>,
    %c0_100 = arith.constant 0 : index
    %c264 = arith.constant 264 : index
    %118 = vector.load %arg16[%c0_100, %c264] : memref<8x2560xf32, #tpu.memory_space<vmem>>, vector<8x2176xf32>
    %c192_101 = arith.constant 192 : index
    %c0_102 = arith.constant 0 : index
    %119 = vector.load %arg17[%c192_101, %c0_102] : memref<200x2176xf32, #tpu.memory_space<vmem>>, vector<8x2176xf32>
    tpu.vector_store %arg17[%c192_101, %c0_102], %118 {strides = array<i32>} : memref<200x2176xf32, #tpu.memory_space<vmem>>, vector<8x2176xf32>,
    %c0_103 = arith.constant 0 : index
    %c0_104 = arith.constant 0 : index
    %120 = vector.load %arg4[%c0_103, %c0_104] : memref<16x200xbf16, #tpu.memory_space<vmem>>, vector<16x200xbf16>
    %c0_105 = arith.constant 0 : index
    %c0_106 = arith.constant 0 : index
    %121 = vector.load %arg17[%c0_105, %c0_106] : memref<200x2176xf32, #tpu.memory_space<vmem>>, vector<200x2176xf32>
    %122 = arith.truncf %121 : vector<200x2176xf32> to vector<200x2176xbf16>
    %cst_107 = arith.constant dense<0.000000e+00> : vector<16x2176xf32>
    %123 = tpu.matmul %120, %122, %cst_107 {dimension_numbers = #tpu.dot_dimension_numbers<[1], [0], [0], [1], [0, 0, 1, 1], [], []>} : vector<16x200xbf16>, vector<200x2176xbf16>, vector<16x2176xf32> -> vector<16x2176xf32>
    %c0_108 = arith.constant 0 : index
    %c0_109 = arith.constant 0 : index
    %124 = vector.load %arg5[%c0_108, %c0_109] : memref<16x1xf32, #tpu.memory_space<vmem>>, vector<16x1xf32>
    %125 = vector.broadcast %124 : vector<16x1xf32> to vector<16x2176xf32>
    %126 = arith.addf %123, %125 : vector<16x2176xf32>
    %127 = math.tanh %126 : vector<16x2176xf32>
    %128 = vector.extract_strided_slice %127 {offsets = [0, 0], sizes = [16, 2048], strides = [1, 1]} : vector<16x2176xf32> to vector<16x2048xf32>
    %129 = vector.extract_strided_slice %127 {offsets = [0, 2], sizes = [16, 2048], strides = [1, 1]} : vector<16x2176xf32> to vector<16x2048xf32>
    %130 = arith.maximumf %128, %129 : vector<16x2048xf32>
    %131 = vector.extract_strided_slice %127 {offsets = [0, 64], sizes = [16, 2048], strides = [1, 1]} : vector<16x2176xf32> to vector<16x2048xf32>
    %132 = vector.extract_strided_slice %127 {offsets = [0, 66], sizes = [16, 2048], strides = [1, 1]} : vector<16x2176xf32> to vector<16x2048xf32>
    %133 = arith.maximumf %131, %132 : vector<16x2048xf32>
    %134 = arith.maximumf %130, %133 : vector<16x2048xf32>
    %135 = arith.truncf %134 : vector<16x2048xf32> to vector<16x2048xbf16>
    %c0_110 = arith.constant 0 : index
    %c0_111 = arith.constant 0 : index
    %136 = vector.load %arg7[%c0_110, %c0_111] : memref<32x2048xbf16, #tpu.memory_space<vmem>>, vector<32x2048xbf16>
    %137 = vector.extract_strided_slice %135 {offsets = [0, 0], sizes = [1, 2048], strides = [1, 1]} : vector<16x2048xbf16> to vector<1x2048xbf16>
    %138 = vector.broadcast %137 : vector<1x2048xbf16> to vector<32x2048xbf16>
    %139 = arith.mulf %138, %136 : vector<32x2048xbf16>
    %c0_112 = arith.constant 0 : index
    %c0_113 = arith.constant 0 : index
    %140 = vector.load %arg18[%c0_112, %c0_113] : memref<512x2048xbf16, #tpu.memory_space<vmem>>, vector<32x2048xbf16>
    tpu.vector_store %arg18[%c0_112, %c0_113], %139 {strides = array<i32>} : memref<512x2048xbf16, #tpu.memory_space<vmem>>, vector<32x2048xbf16>,
    %141 = vector.extract_strided_slice %135 {offsets = [1, 0], sizes = [1, 2048], strides = [1, 1]} : vector<16x2048xbf16> to vector<1x2048xbf16>
    %142 = vector.broadcast %141 : vector<1x2048xbf16> to vector<32x2048xbf16>
    %143 = arith.mulf %142, %136 : vector<32x2048xbf16>
    %c32_114 = arith.constant 32 : index
    %c0_115 = arith.constant 0 : index
    %144 = vector.load %arg18[%c32_114, %c0_115] : memref<512x2048xbf16, #tpu.memory_space<vmem>>, vector<32x2048xbf16>
    tpu.vector_store %arg18[%c32_114, %c0_115], %143 {strides = array<i32>} : memref<512x2048xbf16, #tpu.memory_space<vmem>>, vector<32x2048xbf16>,
    %145 = vector.extract_strided_slice %135 {offsets = [2, 0], sizes = [1, 2048], strides = [1, 1]} : vector<16x2048xbf16> to vector<1x2048xbf16>
    %146 = vector.broadcast %145 : vector<1x2048xbf16> to vector<32x2048xbf16>
    %147 = arith.mulf %146, %136 : vector<32x2048xbf16>
    %c64_116 = arith.constant 64 : index
    %c0_117 = arith.constant 0 : index
    %148 = vector.load %arg18[%c64_116, %c0_117] : memref<512x2048xbf16, #tpu.memory_space<vmem>>, vector<32x2048xbf16>
    tpu.vector_store %arg18[%c64_116, %c0_117], %147 {strides = array<i32>} : memref<512x2048xbf16, #tpu.memory_space<vmem>>, vector<32x2048xbf16>,
    %149 = vector.extract_strided_slice %135 {offsets = [3, 0], sizes = [1, 2048], strides = [1, 1]} : vector<16x2048xbf16> to vector<1x2048xbf16>
    %150 = vector.broadcast %149 : vector<1x2048xbf16> to vector<32x2048xbf16>
    %151 = arith.mulf %150, %136 : vector<32x2048xbf16>
    %c96_118 = arith.constant 96 : index
    %c0_119 = arith.constant 0 : index
    %152 = vector.load %arg18[%c96_118, %c0_119] : memref<512x2048xbf16, #tpu.memory_space<vmem>>, vector<32x2048xbf16>
    tpu.vector_store %arg18[%c96_118, %c0_119], %151 {strides = array<i32>} : memref<512x2048xbf16, #tpu.memory_space<vmem>>, vector<32x2048xbf16>,
    %153 = vector.extract_strided_slice %135 {offsets = [4, 0], sizes = [1, 2048], strides = [1, 1]} : vector<16x2048xbf16> to vector<1x2048xbf16>
    %154 = vector.broadcast %153 : vector<1x2048xbf16> to vector<32x2048xbf16>
    %155 = arith.mulf %154, %136 : vector<32x2048xbf16>
    %c128_120 = arith.constant 128 : index
    %c0_121 = arith.constant 0 : index
    %156 = vector.load %arg18[%c128_120, %c0_121] : memref<512x2048xbf16, #tpu.memory_space<vmem>>, vector<32x2048xbf16>
    tpu.vector_store %arg18[%c128_120, %c0_121], %155 {strides = array<i32>} : memref<512x2048xbf16, #tpu.memory_space<vmem>>, vector<32x2048xbf16>,
    %157 = vector.extract_strided_slice %135 {offsets = [5, 0], sizes = [1, 2048], strides = [1, 1]} : vector<16x2048xbf16> to vector<1x2048xbf16>
    %158 = vector.broadcast %157 : vector<1x2048xbf16> to vector<32x2048xbf16>
    %159 = arith.mulf %158, %136 : vector<32x2048xbf16>
    %c160_122 = arith.constant 160 : index
    %c0_123 = arith.constant 0 : index
    %160 = vector.load %arg18[%c160_122, %c0_123] : memref<512x2048xbf16, #tpu.memory_space<vmem>>, vector<32x2048xbf16>
    tpu.vector_store %arg18[%c160_122, %c0_123], %159 {strides = array<i32>} : memref<512x2048xbf16, #tpu.memory_space<vmem>>, vector<32x2048xbf16>,
    %161 = vector.extract_strided_slice %135 {offsets = [6, 0], sizes = [1, 2048], strides = [1, 1]} : vector<16x2048xbf16> to vector<1x2048xbf16>
    %162 = vector.broadcast %161 : vector<1x2048xbf16> to vector<32x2048xbf16>
    %163 = arith.mulf %162, %136 : vector<32x2048xbf16>
    %c192_124 = arith.constant 192 : index
    %c0_125 = arith.constant 0 : index
    %164 = vector.load %arg18[%c192_124, %c0_125] : memref<512x2048xbf16, #tpu.memory_space<vmem>>, vector<32x2048xbf16>
    tpu.vector_store %arg18[%c192_124, %c0_125], %163 {strides = array<i32>} : memref<512x2048xbf16, #tpu.memory_space<vmem>>, vector<32x2048xbf16>,
    %165 = vector.extract_strided_slice %135 {offsets = [7, 0], sizes = [1, 2048], strides = [1, 1]} : vector<16x2048xbf16> to vector<1x2048xbf16>
    %166 = vector.broadcast %165 : vector<1x2048xbf16> to vector<32x2048xbf16>
    %167 = arith.mulf %166, %136 : vector<32x2048xbf16>
    %c224 = arith.constant 224 : index
    %c0_126 = arith.constant 0 : index
    %168 = vector.load %arg18[%c224, %c0_126] : memref<512x2048xbf16, #tpu.memory_space<vmem>>, vector<32x2048xbf16>
    tpu.vector_store %arg18[%c224, %c0_126], %167 {strides = array<i32>} : memref<512x2048xbf16, #tpu.memory_space<vmem>>, vector<32x2048xbf16>,
    %169 = vector.extract_strided_slice %135 {offsets = [8, 0], sizes = [1, 2048], strides = [1, 1]} : vector<16x2048xbf16> to vector<1x2048xbf16>
    %170 = vector.broadcast %169 : vector<1x2048xbf16> to vector<32x2048xbf16>
    %171 = arith.mulf %170, %136 : vector<32x2048xbf16>
    %c256_127 = arith.constant 256 : index
    %c0_128 = arith.constant 0 : index
    %172 = vector.load %arg18[%c256_127, %c0_128] : memref<512x2048xbf16, #tpu.memory_space<vmem>>, vector<32x2048xbf16>
    tpu.vector_store %arg18[%c256_127, %c0_128], %171 {strides = array<i32>} : memref<512x2048xbf16, #tpu.memory_space<vmem>>, vector<32x2048xbf16>,
    %173 = vector.extract_strided_slice %135 {offsets = [9, 0], sizes = [1, 2048], strides = [1, 1]} : vector<16x2048xbf16> to vector<1x2048xbf16>
    %174 = vector.broadcast %173 : vector<1x2048xbf16> to vector<32x2048xbf16>
    %175 = arith.mulf %174, %136 : vector<32x2048xbf16>
    %c288 = arith.constant 288 : index
    %c0_129 = arith.constant 0 : index
    %176 = vector.load %arg18[%c288, %c0_129] : memref<512x2048xbf16, #tpu.memory_space<vmem>>, vector<32x2048xbf16>
    tpu.vector_store %arg18[%c288, %c0_129], %175 {strides = array<i32>} : memref<512x2048xbf16, #tpu.memory_space<vmem>>, vector<32x2048xbf16>,
    %177 = vector.extract_strided_slice %135 {offsets = [10, 0], sizes = [1, 2048], strides = [1, 1]} : vector<16x2048xbf16> to vector<1x2048xbf16>
    %178 = vector.broadcast %177 : vector<1x2048xbf16> to vector<32x2048xbf16>
    %179 = arith.mulf %178, %136 : vector<32x2048xbf16>
    %c320 = arith.constant 320 : index
    %c0_130 = arith.constant 0 : index
    %180 = vector.load %arg18[%c320, %c0_130] : memref<512x2048xbf16, #tpu.memory_space<vmem>>, vector<32x2048xbf16>
    tpu.vector_store %arg18[%c320, %c0_130], %179 {strides = array<i32>} : memref<512x2048xbf16, #tpu.memory_space<vmem>>, vector<32x2048xbf16>,
    %181 = vector.extract_strided_slice %135 {offsets = [11, 0], sizes = [1, 2048], strides = [1, 1]} : vector<16x2048xbf16> to vector<1x2048xbf16>
    %182 = vector.broadcast %181 : vector<1x2048xbf16> to vector<32x2048xbf16>
    %183 = arith.mulf %182, %136 : vector<32x2048xbf16>
    %c352 = arith.constant 352 : index
    %c0_131 = arith.constant 0 : index
    %184 = vector.load %arg18[%c352, %c0_131] : memref<512x2048xbf16, #tpu.memory_space<vmem>>, vector<32x2048xbf16>
    tpu.vector_store %arg18[%c352, %c0_131], %183 {strides = array<i32>} : memref<512x2048xbf16, #tpu.memory_space<vmem>>, vector<32x2048xbf16>,
    %185 = vector.extract_strided_slice %135 {offsets = [12, 0], sizes = [1, 2048], strides = [1, 1]} : vector<16x2048xbf16> to vector<1x2048xbf16>
    %186 = vector.broadcast %185 : vector<1x2048xbf16> to vector<32x2048xbf16>
    %187 = arith.mulf %186, %136 : vector<32x2048xbf16>
    %c384 = arith.constant 384 : index
    %c0_132 = arith.constant 0 : index
    %188 = vector.load %arg18[%c384, %c0_132] : memref<512x2048xbf16, #tpu.memory_space<vmem>>, vector<32x2048xbf16>
    tpu.vector_store %arg18[%c384, %c0_132], %187 {strides = array<i32>} : memref<512x2048xbf16, #tpu.memory_space<vmem>>, vector<32x2048xbf16>,
    %189 = vector.extract_strided_slice %135 {offsets = [13, 0], sizes = [1, 2048], strides = [1, 1]} : vector<16x2048xbf16> to vector<1x2048xbf16>
    %190 = vector.broadcast %189 : vector<1x2048xbf16> to vector<32x2048xbf16>
    %191 = arith.mulf %190, %136 : vector<32x2048xbf16>
    %c416 = arith.constant 416 : index
    %c0_133 = arith.constant 0 : index
    %192 = vector.load %arg18[%c416, %c0_133] : memref<512x2048xbf16, #tpu.memory_space<vmem>>, vector<32x2048xbf16>
    tpu.vector_store %arg18[%c416, %c0_133], %191 {strides = array<i32>} : memref<512x2048xbf16, #tpu.memory_space<vmem>>, vector<32x2048xbf16>,
    %193 = vector.extract_strided_slice %135 {offsets = [14, 0], sizes = [1, 2048], strides = [1, 1]} : vector<16x2048xbf16> to vector<1x2048xbf16>
    %194 = vector.broadcast %193 : vector<1x2048xbf16> to vector<32x2048xbf16>
    %195 = arith.mulf %194, %136 : vector<32x2048xbf16>
    %c448 = arith.constant 448 : index
    %c0_134 = arith.constant 0 : index
    %196 = vector.load %arg18[%c448, %c0_134] : memref<512x2048xbf16, #tpu.memory_space<vmem>>, vector<32x2048xbf16>
    tpu.vector_store %arg18[%c448, %c0_134], %195 {strides = array<i32>} : memref<512x2048xbf16, #tpu.memory_space<vmem>>, vector<32x2048xbf16>,
    %197 = vector.extract_strided_slice %135 {offsets = [15, 0], sizes = [1, 2048], strides = [1, 1]} : vector<16x2048xbf16> to vector<1x2048xbf16>
    %198 = vector.broadcast %197 : vector<1x2048xbf16> to vector<32x2048xbf16>
    %199 = arith.mulf %198, %136 : vector<32x2048xbf16>
    %c480 = arith.constant 480 : index
    %c0_135 = arith.constant 0 : index
    %200 = vector.load %arg18[%c480, %c0_135] : memref<512x2048xbf16, #tpu.memory_space<vmem>>, vector<32x2048xbf16>
    tpu.vector_store %arg18[%c480, %c0_135], %199 {strides = array<i32>} : memref<512x2048xbf16, #tpu.memory_space<vmem>>, vector<32x2048xbf16>,
    %c0_136 = arith.constant 0 : index
    %c0_137 = arith.constant 0 : index
    %201 = vector.load %arg6[%c0_136, %c0_137] : memref<2x2048xbf16, #tpu.memory_space<vmem>>, vector<2x2048xbf16>
    %c0_138 = arith.constant 0 : index
    %c0_139 = arith.constant 0 : index
    %202 = vector.load %arg18[%c0_138, %c0_139] : memref<512x2048xbf16, #tpu.memory_space<vmem>>, vector<512x2048xbf16>
    %cst_140 = arith.constant dense<0.000000e+00> : vector<2x512xf32>
    %203 = tpu.matmul %201, %202, %cst_140 {dimension_numbers = #tpu.dot_dimension_numbers<[1], [1], [0], [0], [0, 0, 1, 0], [], []>} : vector<2x2048xbf16>, vector<512x2048xbf16>, vector<2x512xf32> -> vector<2x512xf32>
    %204 = arith.truncf %203 : vector<2x512xf32> to vector<2x512xbf16>
    %c0_141 = arith.constant 0 : index
    %c0_142 = arith.constant 0 : index
    %205 = vector.load %arg8[%c0_141, %c0_142] : memref<512x120xbf16, #tpu.memory_space<vmem>>, vector<512x120xbf16>
    %cst_143 = arith.constant dense<0.000000e+00> : vector<2x120xf32>
    %206 = tpu.matmul %204, %205, %cst_143 {dimension_numbers = #tpu.dot_dimension_numbers<[1], [0], [0], [1], [0, 0, 1, 1], [], []>} : vector<2x512xbf16>, vector<512x120xbf16>, vector<2x120xf32> -> vector<2x120xf32>
    %c0_144 = arith.constant 0 : index
    %c0_145 = arith.constant 0 : index
    %207 = vector.load %arg9[%c0_144, %c0_145] : memref<1x120xf32, #tpu.memory_space<vmem>>, vector<1x120xf32>
    %208 = vector.broadcast %207 : vector<1x120xf32> to vector<2x120xf32>
    %209 = arith.addf %206, %208 : vector<2x120xf32>
    %210 = math.tanh %209 : vector<2x120xf32>
    %211 = arith.truncf %210 : vector<2x120xf32> to vector<2x120xbf16>
    %c0_146 = arith.constant 0 : index
    %c0_147 = arith.constant 0 : index
    %212 = vector.load %arg10[%c0_146, %c0_147] : memref<120x84xbf16, #tpu.memory_space<vmem>>, vector<120x84xbf16>
    %cst_148 = arith.constant dense<0.000000e+00> : vector<2x84xf32>
    %213 = tpu.matmul %211, %212, %cst_148 {dimension_numbers = #tpu.dot_dimension_numbers<[1], [0], [0], [1], [0, 0, 1, 1], [], []>} : vector<2x120xbf16>, vector<120x84xbf16>, vector<2x84xf32> -> vector<2x84xf32>
    %c0_149 = arith.constant 0 : index
    %c0_150 = arith.constant 0 : index
    %214 = vector.load %arg11[%c0_149, %c0_150] : memref<1x84xf32, #tpu.memory_space<vmem>>, vector<1x84xf32>
    %215 = vector.broadcast %214 : vector<1x84xf32> to vector<2x84xf32>
    %216 = arith.addf %213, %215 : vector<2x84xf32>
    %217 = math.tanh %216 : vector<2x84xf32>
    %218 = arith.truncf %217 : vector<2x84xf32> to vector<2x84xbf16>
    %c0_151 = arith.constant 0 : index
    %c0_152 = arith.constant 0 : index
    %219 = vector.load %arg12[%c0_151, %c0_152] : memref<84x128xbf16, #tpu.memory_space<vmem>>, vector<84x128xbf16>
    %cst_153 = arith.constant dense<0.000000e+00> : vector<2x128xf32>
    %220 = tpu.matmul %218, %219, %cst_153 {dimension_numbers = #tpu.dot_dimension_numbers<[1], [0], [0], [1], [0, 0, 1, 1], [], []>} : vector<2x84xbf16>, vector<84x128xbf16>, vector<2x128xf32> -> vector<2x128xf32>
    %c0_154 = arith.constant 0 : index
    %c0_155 = arith.constant 0 : index
    %221 = vector.load %arg13[%c0_154, %c0_155] : memref<1x128xf32, #tpu.memory_space<vmem>>, vector<1x128xf32>
    %222 = vector.broadcast %221 : vector<1x128xf32> to vector<2x128xf32>
    %223 = arith.addf %220, %222 : vector<2x128xf32>
    %cst_156 = arith.constant dense<0xFF800000> : vector<2xf32>
    %224 = vector.multi_reduction <maximumf>, %223, %cst_156 [1] : vector<2x128xf32> to vector<2xf32>
    %225 = vector.shape_cast %224 : vector<2xf32> to vector<2x1xf32>
    %226 = vector.broadcast %225 : vector<2x1xf32> to vector<2x128xf32>
    %227 = arith.subf %223, %226 : vector<2x128xf32>
    %228 = math.exp %227 : vector<2x128xf32>
    %cst_157 = arith.constant dense<0.000000e+00> : vector<2xf32>
    %229 = vector.multi_reduction <add>, %228, %cst_157 [1] : vector<2x128xf32> to vector<2xf32>
    %230 = vector.shape_cast %229 : vector<2xf32> to vector<2x1xf32>
    %231 = vector.broadcast %230 : vector<2x1xf32> to vector<2x128xf32>
    %232 = arith.divf %228, %231 : vector<2x128xf32>
    %c0_158 = arith.constant 0 : index
    %c0_159 = arith.constant 0 : index
    %c0_160 = arith.constant 0 : index
    %233 = vector.load %arg14[%c0_158, %c0_159, %c0_160] : memref<1x2x128xf32, #tpu.memory_space<vmem>>, vector<1x2x128xf32>
    %234 = vector.shape_cast %233 : vector<1x2x128xf32> to vector<2x128xf32>
    %235 = vector.shape_cast %232 : vector<2x128xf32> to vector<1x2x128xf32>
    tpu.vector_store %arg14[%c0_158, %c0_159, %c0_160], %235 {strides = array<i32>} : memref<1x2x128xf32, #tpu.memory_space<vmem>>, vector<1x2x128xf32>,
    return
  }
  func.func @transform_0(%arg0: i32) -> (i32, i32, i32) {
    %c0_i32 = arith.constant 0 : i32
    %c0_i32_0 = arith.constant 0 : i32
    %c0_i32_1 = arith.constant 0 : i32
    return %arg0, %c0_i32, %c0_i32_0 : i32, i32, i32
  }
  func.func @transform_1(%arg0: i32) -> (i32, i32) {
    %c0_i32 = arith.constant 0 : i32
    %c0_i32_0 = arith.constant 0 : i32
    %c0_i32_1 = arith.constant 0 : i32
    return %c0_i32, %c0_i32_0 : i32, i32
  }
  func.func @transform_2(%arg0: i32) -> (i32, i32) {
    %c0_i32 = arith.constant 0 : i32
    %c0_i32_0 = arith.constant 0 : i32
    %c0_i32_1 = arith.constant 0 : i32
    return %c0_i32, %c0_i32_0 : i32, i32
  }
  func.func @transform_3(%arg0: i32) -> (i32, i32) {
    %c0_i32 = arith.constant 0 : i32
    %c0_i32_0 = arith.constant 0 : i32
    %c0_i32_1 = arith.constant 0 : i32
    return %c0_i32, %c0_i32_0 : i32, i32
  }
  func.func @transform_4(%arg0: i32) -> (i32, i32) {
    %c0_i32 = arith.constant 0 : i32
    %c0_i32_0 = arith.constant 0 : i32
    %c0_i32_1 = arith.constant 0 : i32
    return %c0_i32, %c0_i32_0 : i32, i32
  }
  func.func @transform_5(%arg0: i32) -> (i32, i32) {
    %c0_i32 = arith.constant 0 : i32
    %c0_i32_0 = arith.constant 0 : i32
    %c0_i32_1 = arith.constant 0 : i32
    return %c0_i32, %c0_i32_0 : i32, i32
  }
  func.func @transform_6(%arg0: i32) -> (i32, i32) {
    %c0_i32 = arith.constant 0 : i32
    %c0_i32_0 = arith.constant 0 : i32
    %c0_i32_1 = arith.constant 0 : i32
    return %c0_i32, %c0_i32_0 : i32, i32
  }
  func.func @transform_7(%arg0: i32) -> (i32, i32) {
    %c0_i32 = arith.constant 0 : i32
    %c0_i32_0 = arith.constant 0 : i32
    %c0_i32_1 = arith.constant 0 : i32
    return %c0_i32, %c0_i32_0 : i32, i32
  }
  func.func @transform_8(%arg0: i32) -> (i32, i32) {
    %c0_i32 = arith.constant 0 : i32
    %c0_i32_0 = arith.constant 0 : i32
    %c0_i32_1 = arith.constant 0 : i32
    return %c0_i32, %c0_i32_0 : i32, i32
  }
  func.func @transform_9(%arg0: i32) -> (i32, i32) {
    %c0_i32 = arith.constant 0 : i32
    %c0_i32_0 = arith.constant 0 : i32
    %c0_i32_1 = arith.constant 0 : i32
    return %c0_i32, %c0_i32_0 : i32, i32
  }
  func.func @transform_10(%arg0: i32) -> (i32, i32) {
    %c0_i32 = arith.constant 0 : i32
    %c0_i32_0 = arith.constant 0 : i32
    %c0_i32_1 = arith.constant 0 : i32
    return %c0_i32, %c0_i32_0 : i32, i32
  }
  func.func @transform_11(%arg0: i32) -> (i32, i32) {
    %c0_i32 = arith.constant 0 : i32
    %c0_i32_0 = arith.constant 0 : i32
    %c0_i32_1 = arith.constant 0 : i32
    return %c0_i32, %c0_i32_0 : i32, i32
  }
  func.func @transform_12(%arg0: i32) -> (i32, i32) {
    %c0_i32 = arith.constant 0 : i32
    %c0_i32_0 = arith.constant 0 : i32
    %c0_i32_1 = arith.constant 0 : i32
    return %c0_i32, %c0_i32_0 : i32, i32
  }
  func.func @transform_13(%arg0: i32) -> (i32, i32, i32) {
    %c0_i32 = arith.constant 0 : i32
    %c0_i32_0 = arith.constant 0 : i32
    %c0_i32_1 = arith.constant 0 : i32
    return %arg0, %c0_i32, %c0_i32_0 : i32, i32, i32
  }
}

</mosaic_0001>

<llo_original>
// kernel: lenet_forward.1
$region0: #{lenet_forward.1}
  #allocation0 [shape = 'u32[]', space=smem, size = 0x4, offset = 0x4, fixed_abs, tag = 'smem constant byte address 0x4 - core index']
  #allocation1 [shape = 'u32[144,128]{1,0:T(1,128)}', space=vmem, size = 0x12000, scoped, tag = 'internal scratch']
  #allocation2 [shape = 'f32[25,2688]{1,0:T(8,128)}', space=vmem, size = 0x54000, scoped, tag = 'scratch operand']
  #allocation3 [shape = 'f32[8,2560]{1,0:T(8,128)}', space=vmem, size = 0x14000, scoped, tag = 'scratch operand']
  #allocation4 [shape = 'f32[200,2176]{1,0:T(8,128)}', space=vmem, size = 0x1a9000, scoped, tag = 'scratch operand']
  #allocation5 [shape = 'bf16[512,2048]{1,0:T(16,128)(2,1)}', space=vmem, size = 0x200000, scoped, tag = 'scratch operand']
  %s0 = inlined_call_operand.vmem [shape: f32[1,1,2944], index: 0, kind: input, shape index: {}]
  %s1 = inlined_call_operand.vmem [shape: bf16[6,25], index: 1, kind: input, shape index: {}]
  %s2 = inlined_call_operand.vmem [shape: f32[6,1], index: 2, kind: input, shape index: {}]
  %s3 = inlined_call_operand.vmem [shape: bf16[16,200], index: 3, kind: input, shape index: {}]
  %s4 = inlined_call_operand.vmem [shape: f32[16,1], index: 4, kind: input, shape index: {}]
  %s5 = inlined_call_operand.vmem [shape: bf16[2,2048], index: 5, kind: input, shape index: {}]
  %s6 = inlined_call_operand.vmem [shape: bf16[32,2048], index: 6, kind: input, shape index: {}]
  %s7 = inlined_call_operand.vmem [shape: bf16[512,120], index: 7, kind: input, shape index: {}]
  %s8 = inlined_call_operand.vmem [shape: f32[1,120], index: 8, kind: input, shape index: {}]
  %s9 = inlined_call_operand.vmem [shape: bf16[120,84], index: 9, kind: input, shape index: {}]
  %s10 = inlined_call_operand.vmem [shape: f32[1,84], index: 10, kind: input, shape index: {}]
  %s11 = inlined_call_operand.vmem [shape: bf16[84,128], index: 11, kind: input, shape index: {}]
  %s12 = inlined_call_operand.vmem [shape: f32[1,128], index: 12, kind: input, shape index: {}]
  %s13 = inlined_call_operand.hbm [shape: f32[1,2,128], index: 13, kind: output, shape index: {}]
  %s14 = sld [smem:[#allocation0]]
  $region62: #{lenet_forward.1} parent=0
    _
  %s16 = ssub.s32 1, %s14
  %s17 = scalar_select 0, %s16, %s14
  $region1: #{lenet_forward.1} parent=0
    #allocation6 [shape = 'u8[1024]{0}', space=vmem, size = 0x400, scoped, tag = 'output window, operand 0, single buffered']
    #allocation7 [shape = 's32[1]{0}', space=sflag, size = 0x4, scoped, tag = 'scoped memory for lenet_forward.1']
    %18 = vsyncpa [#allocation7], 0
    // Predicated region
    $region2: #{lenet_forward.1} parent=1 // pred_check
      _
    $region3: #{lenet_forward.1} parent=1 // pred_check_branch
      %20 = sbr.rel (0) target = $region5
    $region4: #{lenet_forward.1} parent=1 // pred_region
      _
    $region5: #{lenet_forward.1} parent=1 // pred_fallthru
      _
    // Predicated region
    $region6: #{lenet_forward.1} parent=1 // pred_check
      _
    $region7: #{lenet_forward.1} parent=1 // pred_check_branch
      %22 = sbr.rel (0) target = $region9
    $region8: #{lenet_forward.1} parent=1 // pred_region
      _
    $region9: #{lenet_forward.1} parent=1 // pred_fallthru
      _
    // Predicated region
    $region10: #{lenet_forward.1} parent=1 // pred_check
      _
    $region11: #{lenet_forward.1} parent=1 // pred_check_branch
      %24 = sbr.rel (0) target = $region13
    $region12: #{lenet_forward.1} parent=1 // pred_region
      _
    $region13: #{lenet_forward.1} parent=1 // pred_fallthru
      _
    // Predicated region
    $region14: #{lenet_forward.1} parent=1 // pred_check
      _
    $region15: #{lenet_forward.1} parent=1 // pred_check_branch
      %26 = sbr.rel (0) target = $region17
    $region16: #{lenet_forward.1} parent=1 // pred_region
      _
    $region17: #{lenet_forward.1} parent=1 // pred_fallthru
      _
    // Predicated region
    $region18: #{lenet_forward.1} parent=1 // pred_check
      _
    $region19: #{lenet_forward.1} parent=1 // pred_check_branch
      %28 = sbr.rel (0) target = $region21
    $region20: #{lenet_forward.1} parent=1 // pred_region
      _
    $region21: #{lenet_forward.1} parent=1 // pred_fallthru
      _
    // Predicated region
    $region22: #{lenet_forward.1} parent=1 // pred_check
      _
    $region23: #{lenet_forward.1} parent=1 // pred_check_branch
      %30 = sbr.rel (0) target = $region25
    $region24: #{lenet_forward.1} parent=1 // pred_region
      _
    $region25: #{lenet_forward.1} parent=1 // pred_fallthru
      _
    // Predicated region
    $region26: #{lenet_forward.1} parent=1 // pred_check
      _
    $region27: #{lenet_forward.1} parent=1 // pred_check_branch
      %32 = sbr.rel (0) target = $region29
    $region28: #{lenet_forward.1} parent=1 // pred_region
      _
    $region29: #{lenet_forward.1} parent=1 // pred_fallthru
      _
    // Predicated region
    $region30: #{lenet_forward.1} parent=1 // pred_check
      _
    $region31: #{lenet_forward.1} parent=1 // pred_check_branch
      %34 = sbr.rel (0) target = $region33
    $region32: #{lenet_forward.1} parent=1 // pred_region
      _
    $region33: #{lenet_forward.1} parent=1 // pred_fallthru
      _
    // Predicated region
    $region34: #{lenet_forward.1} parent=1 // pred_check
      _
    $region35: #{lenet_forward.1} parent=1 // pred_check_branch
      %36 = sbr.rel (0) target = $region37
    $region36: #{lenet_forward.1} parent=1 // pred_region
      _
    $region37: #{lenet_forward.1} parent=1 // pred_fallthru
      _
    // Predicated region
    $region38: #{lenet_forward.1} parent=1 // pred_check
      _
    $region39: #{lenet_forward.1} parent=1 // pred_check_branch
      %38 = sbr.rel (0) target = $region41
    $region40: #{lenet_forward.1} parent=1 // pred_region
      _
    $region41: #{lenet_forward.1} parent=1 // pred_fallthru
      _
    // Predicated region
    $region42: #{lenet_forward.1} parent=1 // pred_check
      _
    $region43: #{lenet_forward.1} parent=1 // pred_check_branch
      %40 = sbr.rel (0) target = $region45
    $region44: #{lenet_forward.1} parent=1 // pred_region
      _
    $region45: #{lenet_forward.1} parent=1 // pred_fallthru
      _
    // Predicated region
    $region46: #{lenet_forward.1} parent=1 // pred_check
      _
    $region47: #{lenet_forward.1} parent=1 // pred_check_branch
      %42 = sbr.rel (0) target = $region49
    $region48: #{lenet_forward.1} parent=1 // pred_region
      _
    $region49: #{lenet_forward.1} parent=1 // pred_fallthru
      _
    // Predicated region
    $region50: #{lenet_forward.1} parent=1 // pred_check
      _
    $region51: #{lenet_forward.1} parent=1 // pred_check_branch
      %44 = sbr.rel (0) target = $region53
    $region52: #{lenet_forward.1} parent=1 // pred_region
      _
    $region53: #{lenet_forward.1} parent=1 // pred_fallthru
      _
    %v46 = vld [vmem:[%s0] sm:$0xff]
    %v47 = vld [vmem:[%s0 + $0x8] sm:$0xff]
    %v48 = vld [vmem:[%s0 + $0x10] sm:$0xff]
    %49 = vst [vmem:[#allocation2] ss:$8 sm:$0xf] %v46
    %50 = vst [vmem:[#allocation2] ss:$8 sm:$0xf0] %v46
    %s51 = scalar_lea.vmem [#allocation2], 64
    %52 = vst [vmem:[%s51] ss:$8 sm:$0xf] %v47
    %53 = vst [vmem:[%s51] ss:$8 sm:$0xf0] %v47
    %v54 = vlaneseq
    %vm55 = vcmp.ge.s32.totalorder %v54, 0
    %vm56 = vcmp.lt.s32.totalorder %v54, 640
    %vm57 = vmand %vm55, %vm56
    %s58 = scalar_lea.vmem [#allocation2], 128
    %59 = vst.msk [vmem:[%s58] ss:$8 sm:$0xf] %vm57, %v48
    %60 = vst.msk [vmem:[%s58] ss:$8 sm:$0x10] %vm57, %v48
    %64 = vrot.lane.b32.xlu0 %v46, 127
    %v65 = vpop.permute.xlu0 %64
    %66 = vrot.lane.b32.xlu0 %v47, 127
    %v67 = vpop.permute.xlu0 %66
    %68 = vrot.lane.b32.xlu0 %v48, 127
    %v69 = vpop.permute.xlu0 %68
    %v70 = vrot.slane %v65, 1
    %v71 = vrot.slane %v67, 1
    %v72 = vrot.slane %v69, 1
    %vm73 = vcmask 1046528
    %v74 = vsel %vm73, %v70, %v71
    %vm75 = vcmask 1039360
    %v76 = vsel %vm75, %v65, %v74
    %v77 = vsel %vm73, %v71, %v72
    %v78 = vsel %vm75, %v67, %v77
    %v79 = vsel %vm75, %v69, %v72
    %s83 = scalar_lea.vmem [#allocation2], 1
    %84 = vst [vmem:[%s83] ss:$8 sm:$0xf] %v76
    %85 = vst [vmem:[%s83] ss:$8 sm:$0xf0] %v76
    %s86 = scalar_lea.vmem [#allocation2], 65
    %87 = vst [vmem:[%s86] ss:$8 sm:$0xf] %v78
    %88 = vst [vmem:[%s86] ss:$8 sm:$0xf0] %v78
    %s89 = scalar_lea.vmem [#allocation2], 129
    %90 = vst.msk [vmem:[%s89] ss:$8 sm:$0xf] %vm57, %v79
    %91 = vst.msk [vmem:[%s89] ss:$8 sm:$0x10] %vm57, %v79
    %92 = vrot.lane.b32.xlu0 %v46, 126
    %v93 = vpop.permute.xlu0 %92
    %94 = vrot.lane.b32.xlu0 %v47, 126
    %v95 = vpop.permute.xlu0 %94
    %96 = vrot.lane.b32.xlu0 %v48, 126
    %v97 = vpop.permute.xlu0 %96
    %v98 = vrot.slane %v93, 1
    %v99 = vrot.slane %v95, 1
    %v100 = vrot.slane %v97, 1
    %v101 = vsel %vm73, %v98, %v99
    %vm102 = vcmask 1031168
    %v103 = vsel %vm102, %v93, %v101
    %v104 = vsel %vm73, %v99, %v100
    %v105 = vsel %vm102, %v95, %v104
    %v106 = vsel %vm102, %v97, %v100
    %s110 = scalar_lea.vmem [#allocation2], 2
    %111 = vst [vmem:[%s110] ss:$8 sm:$0xf] %v103
    %112 = vst [vmem:[%s110] ss:$8 sm:$0xf0] %v103
    %s113 = scalar_lea.vmem [#allocation2], 66
    %114 = vst [vmem:[%s113] ss:$8 sm:$0xf] %v105
    %115 = vst [vmem:[%s113] ss:$8 sm:$0xf0] %v105
    %s116 = scalar_lea.vmem [#allocation2], 130
    %117 = vst.msk [vmem:[%s116] ss:$8 sm:$0xf] %vm57, %v106
    %118 = vst.msk [vmem:[%s116] ss:$8 sm:$0x10] %vm57, %v106
    %119 = vrot.lane.b32.xlu0 %v46, 125
    %v120 = vpop.permute.xlu0 %119
    %121 = vrot.lane.b32.xlu0 %v47, 125
    %v122 = vpop.permute.xlu0 %121
    %123 = vrot.lane.b32.xlu0 %v48, 125
    %v124 = vpop.permute.xlu0 %123
    %v125 = vrot.slane %v120, 1
    %v126 = vrot.slane %v122, 1
    %v127 = vrot.slane %v124, 1
    %v128 = vsel %vm73, %v125, %v126
    %vm129 = vcmask 1022976
    %v130 = vsel %vm129, %v120, %v128
    %v131 = vsel %vm73, %v126, %v127
    %v132 = vsel %vm129, %v122, %v131
    %v133 = vsel %vm129, %v124, %v127
    %s137 = scalar_lea.vmem [#allocation2], 3
    %138 = vst [vmem:[%s137] ss:$8 sm:$0xf] %v130
    %139 = vst [vmem:[%s137] ss:$8 sm:$0xf0] %v130
    %s140 = scalar_lea.vmem [#allocation2], 67
    %141 = vst [vmem:[%s140] ss:$8 sm:$0xf] %v132
    %142 = vst [vmem:[%s140] ss:$8 sm:$0xf0] %v132
    %s143 = scalar_lea.vmem [#allocation2], 131
    %144 = vst.msk [vmem:[%s143] ss:$8 sm:$0xf] %vm57, %v133
    %145 = vst.msk [vmem:[%s143] ss:$8 sm:$0x10] %vm57, %v133
    %146 = vrot.lane.b32.xlu0 %v46, 124
    %v147 = vpop.permute.xlu0 %146
    %148 = vrot.lane.b32.xlu0 %v47, 124
    %v149 = vpop.permute.xlu0 %148
    %150 = vrot.lane.b32.xlu0 %v48, 124
    %v151 = vpop.permute.xlu0 %150
    %v152 = vrot.slane %v147, 1
    %v153 = vrot.slane %v149, 1
    %v154 = vrot.slane %v151, 1
    %v155 = vsel %vm73, %v152, %v153
    %vm156 = vcmask 1014784
    %v157 = vsel %vm156, %v147, %v155
    %v158 = vsel %vm73, %v153, %v154
    %v159 = vsel %vm156, %v149, %v158
    %v160 = vsel %vm156, %v151, %v154
    %s164 = scalar_lea.vmem [#allocation2], 4
    %165 = vst [vmem:[%s164] ss:$8 sm:$0xf] %v157
    %166 = vst [vmem:[%s164] ss:$8 sm:$0xf0] %v157
    %s167 = scalar_lea.vmem [#allocation2], 68
    %168 = vst [vmem:[%s167] ss:$8 sm:$0xf] %v159
    %169 = vst [vmem:[%s167] ss:$8 sm:$0xf0] %v159
    %s170 = scalar_lea.vmem [#allocation2], 132
    %171 = vst.msk [vmem:[%s170] ss:$8 sm:$0xf] %vm57, %v160
    %172 = vst.msk [vmem:[%s170] ss:$8 sm:$0x10] %vm57, %v160
    %173 = vrot.lane.b32.xlu0 %v46, 96
    %v174 = vpop.permute.xlu0 %173
    %175 = vrot.lane.b32.xlu0 %v47, 96
    %v176 = vpop.permute.xlu0 %175
    %177 = vrot.lane.b32.xlu0 %v48, 96
    %v178 = vpop.permute.xlu0 %177
    %v179 = vrot.slane %v174, 1
    %v180 = vrot.slane %v176, 1
    %v181 = vrot.slane %v178, 1
    %v182 = vsel %vm73, %v179, %v180
    %vm183 = vcmask 785408
    %v184 = vsel %vm183, %v174, %v182
    %v185 = vsel %vm73, %v180, %v181
    %v186 = vsel %vm183, %v176, %v185
    %v187 = vsel %vm183, %v178, %v181
    %s191 = scalar_lea.vmem [#allocation2], 5
    %192 = vst [vmem:[%s191] ss:$8 sm:$0xf] %v184
    %193 = vst [vmem:[%s191] ss:$8 sm:$0xf0] %v184
    %s194 = scalar_lea.vmem [#allocation2], 69
    %195 = vst [vmem:[%s194] ss:$8 sm:$0xf] %v186
    %196 = vst [vmem:[%s194] ss:$8 sm:$0xf0] %v186
    %s197 = scalar_lea.vmem [#allocation2], 133
    %198 = vst.msk [vmem:[%s197] ss:$8 sm:$0xf] %vm57, %v187
    %199 = vst.msk [vmem:[%s197] ss:$8 sm:$0x10] %vm57, %v187
    %200 = vrot.lane.b32.xlu0 %v46, 95
    %v201 = vpop.permute.xlu0 %200
    %202 = vrot.lane.b32.xlu0 %v47, 95
    %v203 = vpop.permute.xlu0 %202
    %204 = vrot.lane.b32.xlu0 %v48, 95
    %v205 = vpop.permute.xlu0 %204
    %v206 = vrot.slane %v201, 1
    %v207 = vrot.slane %v203, 1
    %v208 = vrot.slane %v205, 1
    %v209 = vsel %vm73, %v206, %v207
    %vm210 = vcmask 777216
    %v211 = vsel %vm210, %v201, %v209
    %v212 = vsel %vm73, %v207, %v208
    %v213 = vsel %vm210, %v203, %v212
    %v214 = vsel %vm210, %v205, %v208
    %s218 = scalar_lea.vmem [#allocation2], 6
    %219 = vst [vmem:[%s218] ss:$8 sm:$0xf] %v211
    %220 = vst [vmem:[%s218] ss:$8 sm:$0xf0] %v211
    %s221 = scalar_lea.vmem [#allocation2], 70
    %222 = vst [vmem:[%s221] ss:$8 sm:$0xf] %v213
    %223 = vst [vmem:[%s221] ss:$8 sm:$0xf0] %v213
    %s224 = scalar_lea.vmem [#allocation2], 134
    %225 = vst.msk [vmem:[%s224] ss:$8 sm:$0xf] %vm57, %v214
    %226 = vst.msk [vmem:[%s224] ss:$8 sm:$0x10] %vm57, %v214
    %227 = vrot.lane.b32.xlu0 %v46, 94
    %v228 = vpop.permute.xlu0 %227
    %229 = vrot.lane.b32.xlu0 %v47, 94
    %v230 = vpop.permute.xlu0 %229
    %231 = vrot.lane.b32.xlu0 %v48, 94
    %v232 = vpop.permute.xlu0 %231
    %v233 = vrot.slane %v228, 1
    %v234 = vrot.slane %v230, 1
    %v235 = vrot.slane %v232, 1
    %v236 = vsel %vm73, %v233, %v234
    %vm237 = vcmask 769024
    %v238 = vsel %vm237, %v228, %v236
    %v239 = vsel %vm73, %v234, %v235
    %v240 = vsel %vm237, %v230, %v239
    %v241 = vsel %vm237, %v232, %v235
    %s245 = scalar_lea.vmem [#allocation2], 7
    %246 = vst [vmem:[%s245] ss:$8 sm:$0xf] %v238
    %247 = vst [vmem:[%s245] ss:$8 sm:$0xf0] %v238
    %s248 = scalar_lea.vmem [#allocation2], 71
    %249 = vst [vmem:[%s248] ss:$8 sm:$0xf] %v240
    %250 = vst [vmem:[%s248] ss:$8 sm:$0xf0] %v240
    %s251 = scalar_lea.vmem [#allocation2], 135
    %252 = vst.msk [vmem:[%s251] ss:$8 sm:$0xf] %vm57, %v241
    %253 = vst.msk [vmem:[%s251] ss:$8 sm:$0x10] %vm57, %v241
    %254 = vrot.lane.b32.xlu0 %v46, 93
    %v255 = vpop.permute.xlu0 %254
    %256 = vrot.lane.b32.xlu0 %v47, 93
    %v257 = vpop.permute.xlu0 %256
    %258 = vrot.lane.b32.xlu0 %v48, 93
    %v259 = vpop.permute.xlu0 %258
    %v260 = vrot.slane %v255, 1
    %v261 = vrot.slane %v257, 1
    %v262 = vrot.slane %v259, 1
    %v263 = vsel %vm73, %v260, %v261
    %vm264 = vcmask 760832
    %v265 = vsel %vm264, %v255, %v263
    %v266 = vsel %vm73, %v261, %v262
    %v267 = vsel %vm264, %v257, %v266
    %v268 = vsel %vm264, %v259, %v262
    %s272 = scalar_lea.vmem [#allocation2], 168
    %273 = vst [vmem:[%s272] ss:$8 sm:$0xf] %v265
    %274 = vst [vmem:[%s272] ss:$8 sm:$0xf0] %v265
    %s275 = scalar_lea.vmem [#allocation2], 232
    %276 = vst [vmem:[%s275] ss:$8 sm:$0xf] %v267
    %277 = vst [vmem:[%s275] ss:$8 sm:$0xf0] %v267
    %s278 = scalar_lea.vmem [#allocation2], 296
    %279 = vst.msk [vmem:[%s278] ss:$8 sm:$0xf] %vm57, %v268
    %280 = vst.msk [vmem:[%s278] ss:$8 sm:$0x10] %vm57, %v268
    %281 = vrot.lane.b32.xlu0 %v46, 92
    %v282 = vpop.permute.xlu0 %281
    %283 = vrot.lane.b32.xlu0 %v47, 92
    %v284 = vpop.permute.xlu0 %283
    %285 = vrot.lane.b32.xlu0 %v48, 92
    %v286 = vpop.permute.xlu0 %285
    %v287 = vrot.slane %v282, 1
    %v288 = vrot.slane %v284, 1
    %v289 = vrot.slane %v286, 1
    %v290 = vsel %vm73, %v287, %v288
    %vm291 = vcmask 752640
    %v292 = vsel %vm291, %v282, %v290
    %v293 = vsel %vm73, %v288, %v289
    %v294 = vsel %vm291, %v284, %v293
    %v295 = vsel %vm291, %v286, %v289
    %s299 = scalar_lea.vmem [#allocation2], 169
    %300 = vst [vmem:[%s299] ss:$8 sm:$0xf] %v292
    %301 = vst [vmem:[%s299] ss:$8 sm:$0xf0] %v292
    %s302 = scalar_lea.vmem [#allocation2], 233
    %303 = vst [vmem:[%s302] ss:$8 sm:$0xf] %v294
    %304 = vst [vmem:[%s302] ss:$8 sm:$0xf0] %v294
    %s305 = scalar_lea.vmem [#allocation2], 297
    %306 = vst.msk [vmem:[%s305] ss:$8 sm:$0xf] %vm57, %v295
    %307 = vst.msk [vmem:[%s305] ss:$8 sm:$0x10] %vm57, %v295
    %308 = vrot.lane.b32.xlu0 %v46, 64
    %v309 = vpop.permute.xlu0 %308
    %310 = vrot.lane.b32.xlu0 %v47, 64
    %v311 = vpop.permute.xlu0 %310
    %312 = vrot.lane.b32.xlu0 %v48, 64
    %v313 = vpop.permute.xlu0 %312
    %v314 = vrot.slane %v309, 1
    %v315 = vrot.slane %v311, 1
    %v316 = vrot.slane %v313, 1
    %v317 = vsel %vm73, %v314, %v315
    %vm318 = vcmask 523264
    %v319 = vsel %vm318, %v309, %v317
    %v320 = vsel %vm73, %v315, %v316
    %v321 = vsel %vm318, %v311, %v320
    %v322 = vsel %vm318, %v313, %v316
    %s326 = scalar_lea.vmem [#allocation2], 170
    %327 = vst [vmem:[%s326] ss:$8 sm:$0xf] %v319
    %328 = vst [vmem:[%s326] ss:$8 sm:$0xf0] %v319
    %s329 = scalar_lea.vmem [#allocation2], 234
    %330 = vst [vmem:[%s329] ss:$8 sm:$0xf] %v321
    %331 = vst [vmem:[%s329] ss:$8 sm:$0xf0] %v321
    %s332 = scalar_lea.vmem [#allocation2], 298
    %333 = vst.msk [vmem:[%s332] ss:$8 sm:$0xf] %vm57, %v322
    %334 = vst.msk [vmem:[%s332] ss:$8 sm:$0x10] %vm57, %v322
    %335 = vrot.lane.b32.xlu0 %v46, 63
    %v336 = vpop.permute.xlu0 %335
    %337 = vrot.lane.b32.xlu0 %v47, 63
    %v338 = vpop.permute.xlu0 %337
    %339 = vrot.lane.b32.xlu0 %v48, 63
    %v340 = vpop.permute.xlu0 %339
    %v341 = vrot.slane %v336, 1
    %v342 = vrot.slane %v338, 1
    %v343 = vrot.slane %v340, 1
    %v344 = vsel %vm73, %v341, %v342
    %vm345 = vcmask 515072
    %v346 = vsel %vm345, %v336, %v344
    %v347 = vsel %vm73, %v342, %v343
    %v348 = vsel %vm345, %v338, %v347
    %v349 = vsel %vm345, %v340, %v343
    %s353 = scalar_lea.vmem [#allocation2], 171
    %354 = vst [vmem:[%s353] ss:$8 sm:$0xf] %v346
    %355 = vst [vmem:[%s353] ss:$8 sm:$0xf0] %v346
    %s356 = scalar_lea.vmem [#allocation2], 235
    %357 = vst [vmem:[%s356] ss:$8 sm:$0xf] %v348
    %358 = vst [vmem:[%s356] ss:$8 sm:$0xf0] %v348
    %s359 = scalar_lea.vmem [#allocation2], 299
    %360 = vst.msk [vmem:[%s359] ss:$8 sm:$0xf] %vm57, %v349
    %361 = vst.msk [vmem:[%s359] ss:$8 sm:$0x10] %vm57, %v349
    %362 = vrot.lane.b32.xlu0 %v46, 62
    %v363 = vpop.permute.xlu0 %362
    %364 = vrot.lane.b32.xlu0 %v47, 62
    %v365 = vpop.permute.xlu0 %364
    %366 = vrot.lane.b32.xlu0 %v48, 62
    %v367 = vpop.permute.xlu0 %366
    %v368 = vrot.slane %v363, 1
    %v369 = vrot.slane %v365, 1
    %v370 = vrot.slane %v367, 1
    %v371 = vsel %vm73, %v368, %v369
    %vm372 = vcmask 506880
    %v373 = vsel %vm372, %v363, %v371
    %v374 = vsel %vm73, %v369, %v370
    %v375 = vsel %vm372, %v365, %v374
    %v376 = vsel %vm372, %v367, %v370
    %s380 = scalar_lea.vmem [#allocation2], 172
    %381 = vst [vmem:[%s380] ss:$8 sm:$0xf] %v373
    %382 = vst [vmem:[%s380] ss:$8 sm:$0xf0] %v373
    %s383 = scalar_lea.vmem [#allocation2], 236
    %384 = vst [vmem:[%s383] ss:$8 sm:$0xf] %v375
    %385 = vst [vmem:[%s383] ss:$8 sm:$0xf0] %v375
    %s386 = scalar_lea.vmem [#allocation2], 300
    %387 = vst.msk [vmem:[%s386] ss:$8 sm:$0xf] %vm57, %v376
    %388 = vst.msk [vmem:[%s386] ss:$8 sm:$0x10] %vm57, %v376
    %389 = vrot.lane.b32.xlu0 %v46, 61
    %v390 = vpop.permute.xlu0 %389
    %391 = vrot.lane.b32.xlu0 %v47, 61
    %v392 = vpop.permute.xlu0 %391
    %393 = vrot.lane.b32.xlu0 %v48, 61
    %v394 = vpop.permute.xlu0 %393
    %v395 = vrot.slane %v390, 1
    %v396 = vrot.slane %v392, 1
    %v397 = vrot.slane %v394, 1
    %v398 = vsel %vm73, %v395, %v396
    %vm399 = vcmask 498688
    %v400 = vsel %vm399, %v390, %v398
    %v401 = vsel %vm73, %v396, %v397
    %v402 = vsel %vm399, %v392, %v401
    %v403 = vsel %vm399, %v394, %v397
    %s407 = scalar_lea.vmem [#allocation2], 173
    %408 = vst [vmem:[%s407] ss:$8 sm:$0xf] %v400
    %409 = vst [vmem:[%s407] ss:$8 sm:$0xf0] %v400
    %s410 = scalar_lea.vmem [#allocation2], 237
    %411 = vst [vmem:[%s410] ss:$8 sm:$0xf] %v402
    %412 = vst [vmem:[%s410] ss:$8 sm:$0xf0] %v402
    %s413 = scalar_lea.vmem [#allocation2], 301
    %414 = vst.msk [vmem:[%s413] ss:$8 sm:$0xf] %vm57, %v403
    %415 = vst.msk [vmem:[%s413] ss:$8 sm:$0x10] %vm57, %v403
    %416 = vrot.lane.b32.xlu0 %v46, 60
    %v417 = vpop.permute.xlu0 %416
    %418 = vrot.lane.b32.xlu0 %v47, 60
    %v419 = vpop.permute.xlu0 %418
    %420 = vrot.lane.b32.xlu0 %v48, 60
    %v421 = vpop.permute.xlu0 %420
    %v422 = vrot.slane %v417, 1
    %v423 = vrot.slane %v419, 1
    %v424 = vrot.slane %v421, 1
    %v425 = vsel %vm73, %v422, %v423
    %vm426 = vcmask 490496
    %v427 = vsel %vm426, %v417, %v425
    %v428 = vsel %vm73, %v423, %v424
    %v429 = vsel %vm426, %v419, %v428
    %v430 = vsel %vm426, %v421, %v424
    %s434 = scalar_lea.vmem [#allocation2], 174
    %435 = vst [vmem:[%s434] ss:$8 sm:$0xf] %v427
    %436 = vst [vmem:[%s434] ss:$8 sm:$0xf0] %v427
    %s437 = scalar_lea.vmem [#allocation2], 238
    %438 = vst [vmem:[%s437] ss:$8 sm:$0xf] %v429
    %439 = vst [vmem:[%s437] ss:$8 sm:$0xf0] %v429
    %s440 = scalar_lea.vmem [#allocation2], 302
    %441 = vst.msk [vmem:[%s440] ss:$8 sm:$0xf] %vm57, %v430
    %442 = vst.msk [vmem:[%s440] ss:$8 sm:$0x10] %vm57, %v430
    %443 = vrot.lane.b32.xlu0 %v46, 32
    %v444 = vpop.permute.xlu0 %443
    %445 = vrot.lane.b32.xlu0 %v47, 32
    %v446 = vpop.permute.xlu0 %445
    %447 = vrot.lane.b32.xlu0 %v48, 32
    %v448 = vpop.permute.xlu0 %447
    %v449 = vrot.slane %v444, 1
    %v450 = vrot.slane %v446, 1
    %v451 = vrot.slane %v448, 1
    %v452 = vsel %vm73, %v449, %v450
    %vm453 = vcmask 261120
    %v454 = vsel %vm453, %v444, %v452
    %v455 = vsel %vm73, %v450, %v451
    %v456 = vsel %vm453, %v446, %v455
    %v457 = vsel %vm453, %v448, %v451
    %s461 = scalar_lea.vmem [#allocation2], 175
    %462 = vst [vmem:[%s461] ss:$8 sm:$0xf] %v454
    %463 = vst [vmem:[%s461] ss:$8 sm:$0xf0] %v454
    %s464 = scalar_lea.vmem [#allocation2], 239
    %465 = vst [vmem:[%s464] ss:$8 sm:$0xf] %v456
    %466 = vst [vmem:[%s464] ss:$8 sm:$0xf0] %v456
    %s467 = scalar_lea.vmem [#allocation2], 303
    %468 = vst.msk [vmem:[%s467] ss:$8 sm:$0xf] %vm57, %v457
    %469 = vst.msk [vmem:[%s467] ss:$8 sm:$0x10] %vm57, %v457
    %470 = vrot.lane.b32.xlu0 %v46, 31
    %v471 = vpop.permute.xlu0 %470
    %472 = vrot.lane.b32.xlu0 %v47, 31
    %v473 = vpop.permute.xlu0 %472
    %474 = vrot.lane.b32.xlu0 %v48, 31
    %v475 = vpop.permute.xlu0 %474
    %v476 = vrot.slane %v471, 1
    %v477 = vrot.slane %v473, 1
    %v478 = vrot.slane %v475, 1
    %v479 = vsel %vm73, %v476, %v477
    %vm480 = vcmask 252928
    %v481 = vsel %vm480, %v471, %v479
    %v482 = vsel %vm73, %v477, %v478
    %v483 = vsel %vm480, %v473, %v482
    %v484 = vsel %vm480, %v475, %v478
    %s488 = scalar_lea.vmem [#allocation2], 336
    %489 = vst [vmem:[%s488] ss:$8 sm:$0xf] %v481
    %490 = vst [vmem:[%s488] ss:$8 sm:$0xf0] %v481
    %s491 = scalar_lea.vmem [#allocation2], 400
    %492 = vst [vmem:[%s491] ss:$8 sm:$0xf] %v483
    %493 = vst [vmem:[%s491] ss:$8 sm:$0xf0] %v483
    %s494 = scalar_lea.vmem [#allocation2], 464
    %495 = vst.msk [vmem:[%s494] ss:$8 sm:$0xf] %vm57, %v484
    %496 = vst.msk [vmem:[%s494] ss:$8 sm:$0x10] %vm57, %v484
    %497 = vrot.lane.b32.xlu0 %v46, 30
    %v498 = vpop.permute.xlu0 %497
    %499 = vrot.lane.b32.xlu0 %v47, 30
    %v500 = vpop.permute.xlu0 %499
    %501 = vrot.lane.b32.xlu0 %v48, 30
    %v502 = vpop.permute.xlu0 %501
    %v503 = vrot.slane %v498, 1
    %v504 = vrot.slane %v500, 1
    %v505 = vrot.slane %v502, 1
    %v506 = vsel %vm73, %v503, %v504
    %vm507 = vcmask 244736
    %v508 = vsel %vm507, %v498, %v506
    %v509 = vsel %vm73, %v504, %v505
    %v510 = vsel %vm507, %v500, %v509
    %v511 = vsel %vm507, %v502, %v505
    %s515 = scalar_lea.vmem [#allocation2], 337
    %516 = vst [vmem:[%s515] ss:$8 sm:$0xf] %v508
    %517 = vst [vmem:[%s515] ss:$8 sm:$0xf0] %v508
    %s518 = scalar_lea.vmem [#allocation2], 401
    %519 = vst [vmem:[%s518] ss:$8 sm:$0xf] %v510
    %520 = vst [vmem:[%s518] ss:$8 sm:$0xf0] %v510
    %s521 = scalar_lea.vmem [#allocation2], 465
    %522 = vst.msk [vmem:[%s521] ss:$8 sm:$0xf] %vm57, %v511
    %523 = vst.msk [vmem:[%s521] ss:$8 sm:$0x10] %vm57, %v511
    %524 = vrot.lane.b32.xlu0 %v46, 29
    %v525 = vpop.permute.xlu0 %524
    %526 = vrot.lane.b32.xlu0 %v47, 29
    %v527 = vpop.permute.xlu0 %526
    %528 = vrot.lane.b32.xlu0 %v48, 29
    %v529 = vpop.permute.xlu0 %528
    %v530 = vrot.slane %v525, 1
    %v531 = vrot.slane %v527, 1
    %v532 = vrot.slane %v529, 1
    %v533 = vsel %vm73, %v530, %v531
    %vm534 = vcmask 236544
    %v535 = vsel %vm534, %v525, %v533
    %v536 = vsel %vm73, %v531, %v532
    %v537 = vsel %vm534, %v527, %v536
    %v538 = vsel %vm534, %v529, %v532
    %s542 = scalar_lea.vmem [#allocation2], 338
    %543 = vst [vmem:[%s542] ss:$8 sm:$0xf] %v535
    %544 = vst [vmem:[%s542] ss:$8 sm:$0xf0] %v535
    %s545 = scalar_lea.vmem [#allocation2], 402
    %546 = vst [vmem:[%s545] ss:$8 sm:$0xf] %v537
    %547 = vst [vmem:[%s545] ss:$8 sm:$0xf0] %v537
    %s548 = scalar_lea.vmem [#allocation2], 466
    %549 = vst.msk [vmem:[%s548] ss:$8 sm:$0xf] %vm57, %v538
    %550 = vst.msk [vmem:[%s548] ss:$8 sm:$0x10] %vm57, %v538
    %551 = vrot.lane.b32.xlu0 %v46, 28
    %v552 = vpop.permute.xlu0 %551
    %553 = vrot.lane.b32.xlu0 %v47, 28
    %v554 = vpop.permute.xlu0 %553
    %555 = vrot.lane.b32.xlu0 %v48, 28
    %v556 = vpop.permute.xlu0 %555
    %v557 = vrot.slane %v552, 1
    %v558 = vrot.slane %v554, 1
    %v559 = vrot.slane %v556, 1
    %v560 = vsel %vm73, %v557, %v558
    %vm561 = vcmask 228352
    %v562 = vsel %vm561, %v552, %v560
    %v563 = vsel %vm73, %v558, %v559
    %v564 = vsel %vm561, %v554, %v563
    %v565 = vsel %vm561, %v556, %v559
    %s569 = scalar_lea.vmem [#allocation2], 339
    %570 = vst [vmem:[%s569] ss:$8 sm:$0xf] %v562
    %571 = vst [vmem:[%s569] ss:$8 sm:$0xf0] %v562
    %s572 = scalar_lea.vmem [#allocation2], 403
    %573 = vst [vmem:[%s572] ss:$8 sm:$0xf] %v564
    %574 = vst [vmem:[%s572] ss:$8 sm:$0xf0] %v564
    %s575 = scalar_lea.vmem [#allocation2], 467
    %576 = vst.msk [vmem:[%s575] ss:$8 sm:$0xf] %vm57, %v565
    %577 = vst.msk [vmem:[%s575] ss:$8 sm:$0x10] %vm57, %v565
    %v578 = vrot.slane %v46, 1
    %v579 = vrot.slane %v47, 1
    %v580 = vrot.slane %v48, 1
    %v581 = vsel %vm73, %v578, %v579
    %v582 = vsel %vm73, %v579, %v580
    %s586 = scalar_lea.vmem [#allocation2], 340
    %587 = vst [vmem:[%s586] ss:$8 sm:$0xf] %v581
    %588 = vst [vmem:[%s586] ss:$8 sm:$0xf0] %v581
    %s589 = scalar_lea.vmem [#allocation2], 404
    %590 = vst [vmem:[%s589] ss:$8 sm:$0xf] %v582
    %591 = vst [vmem:[%s589] ss:$8 sm:$0xf0] %v582
    %s592 = scalar_lea.vmem [#allocation2], 468
    %593 = vst.msk [vmem:[%s592] ss:$8 sm:$0xf] %vm57, %v580
    %594 = vst.msk [vmem:[%s592] ss:$8 sm:$0x10] %vm57, %v580
    %v595 = vrot.slane %v65, 2
    %v596 = vrot.slane %v67, 2
    %v597 = vrot.slane %v69, 2
    %vm598 = vcmask 1045504
    %v599 = vsel %vm598, %v595, %v596
    %v600 = vsel %vm75, %v74, %v599
    %v601 = vsel %vm598, %v596, %v597
    %v602 = vsel %vm75, %v77, %v601
    %v603 = vsel %vm75, %v72, %v597
    %s607 = scalar_lea.vmem [#allocation2], 341
    %608 = vst [vmem:[%s607] ss:$8 sm:$0xf] %v600
    %609 = vst [vmem:[%s607] ss:$8 sm:$0xf0] %v600
    %s610 = scalar_lea.vmem [#allocation2], 405
    %611 = vst [vmem:[%s610] ss:$8 sm:$0xf] %v602
    %612 = vst [vmem:[%s610] ss:$8 sm:$0xf0] %v602
    %s613 = scalar_lea.vmem [#allocation2], 469
    %614 = vst.msk [vmem:[%s613] ss:$8 sm:$0xf] %vm57, %v603
    %615 = vst.msk [vmem:[%s613] ss:$8 sm:$0x10] %vm57, %v603
    %v616 = vrot.slane %v93, 2
    %v617 = vrot.slane %v95, 2
    %v618 = vrot.slane %v97, 2
    %v619 = vsel %vm598, %v616, %v617
    %v620 = vsel %vm102, %v101, %v619
    %v621 = vsel %vm598, %v617, %v618
    %v622 = vsel %vm102, %v104, %v621
    %v623 = vsel %vm102, %v100, %v618
    %s627 = scalar_lea.vmem [#allocation2], 342
    %628 = vst [vmem:[%s627] ss:$8 sm:$0xf] %v620
    %629 = vst [vmem:[%s627] ss:$8 sm:$0xf0] %v620
    %s630 = scalar_lea.vmem [#allocation2], 406
    %631 = vst [vmem:[%s630] ss:$8 sm:$0xf] %v622
    %632 = vst [vmem:[%s630] ss:$8 sm:$0xf0] %v622
    %s633 = scalar_lea.vmem [#allocation2], 470
    %634 = vst.msk [vmem:[%s633] ss:$8 sm:$0xf] %vm57, %v623
    %635 = vst.msk [vmem:[%s633] ss:$8 sm:$0x10] %vm57, %v623
    %v636 = vrot.slane %v120, 2
    %v637 = vrot.slane %v122, 2
    %v638 = vrot.slane %v124, 2
    %v639 = vsel %vm598, %v636, %v637
    %v640 = vsel %vm129, %v128, %v639
    %v641 = vsel %vm598, %v637, %v638
    %v642 = vsel %vm129, %v131, %v641
    %v643 = vsel %vm129, %v127, %v638
    %s647 = scalar_lea.vmem [#allocation2], 343
    %648 = vst [vmem:[%s647] ss:$8 sm:$0xf] %v640
    %649 = vst [vmem:[%s647] ss:$8 sm:$0xf0] %v640
    %s650 = scalar_lea.vmem [#allocation2], 407
    %651 = vst [vmem:[%s650] ss:$8 sm:$0xf] %v642
    %652 = vst [vmem:[%s650] ss:$8 sm:$0xf0] %v642
    %s653 = scalar_lea.vmem [#allocation2], 471
    %654 = vst.msk [vmem:[%s653] ss:$8 sm:$0xf] %vm57, %v643
    %655 = vst.msk [vmem:[%s653] ss:$8 sm:$0x10] %vm57, %v643
    %v656 = vrot.slane %v147, 2
    %v657 = vrot.slane %v149, 2
    %v658 = vrot.slane %v151, 2
    %v659 = vsel %vm598, %v656, %v657
    %v660 = vsel %vm156, %v155, %v659
    %v661 = vsel %vm598, %v657, %v658
    %v662 = vsel %vm156, %v158, %v661
    %v663 = vsel %vm156, %v154, %v658
    %s667 = scalar_lea.vmem [#allocation2], 504
    %668 = vst [vmem:[%s667] ss:$8 sm:$0xf] %v660
    %669 = vst [vmem:[%s667] ss:$8 sm:$0xf0] %v660
    %s670 = scalar_lea.vmem [#allocation2], 568
    %671 = vst [vmem:[%s670] ss:$8 sm:$0xf] %v662
    %672 = vst [vmem:[%s670] ss:$8 sm:$0xf0] %v662
    %s673 = scalar_lea.vmem [#allocation2], 632
    %674 = vst.msk [vmem:[%s673] ss:$8 sm:$0xf] %vm57, %v663
    %675 = vst.msk [vmem:[%s673] ss:$8 sm:$0x10] %vm57, %v663
    %v676 = vld [vmem:[%s1] sm:$0x7]
    %v677 = vld [vmem:[#allocation2] sm:$0xff]
    %v678 = vld [vmem:[#allocation2 + $0x8] sm:$0xff]
    %v679 = vld [vmem:[#allocation2 + $0x10] sm:$0xff]
    %v680 = vld [vmem:[#allocation2 + $0x18] sm:$0xff]
    %v681 = vld [vmem:[#allocation2 + $0x20] sm:$0xff]
    %v682 = vld [vmem:[#allocation2 + $0x28] sm:$0xff]
    %v683 = vld [vmem:[#allocation2 + $0x30] sm:$0xff]
    %v684 = vld [vmem:[#allocation2 + $0x38] sm:$0xff]
    %v685 = vld [vmem:[#allocation2 + $0x40] sm:$0xff]
    %v686 = vld [vmem:[#allocation2 + $0x48] sm:$0xff]
    %v687 = vld [vmem:[#allocation2 + $0x50] sm:$0xff]
    %v688 = vld [vmem:[#allocation2 + $0x58] sm:$0xff]
    %v689 = vld [vmem:[#allocation2 + $0x60] sm:$0xff]
    %v690 = vld [vmem:[#allocation2 + $0x68] sm:$0xff]
    %v691 = vld [vmem:[#allocation2 + $0x70] sm:$0xff]
    %v692 = vld [vmem:[#allocation2 + $0x78] sm:$0xff]
    %v693 = vld [vmem:[#allocation2 + $0x80] sm:$0xff]
    %v694 = vld [vmem:[#allocation2 + $0x88] sm:$0xff]
    %v695 = vld [vmem:[#allocation2 + $0x90] sm:$0xff]
    %v696 = vld [vmem:[#allocation2 + $0x98] sm:$0xff]
    %v697 = vld [vmem:[#allocation2 + $0xa0] sm:$0xff]
    %v698 = vld [vmem:[#allocation2 + $0xa8] sm:$0xff]
    %v699 = vld [vmem:[#allocation2 + $0xb0] sm:$0xff]
    %v700 = vld [vmem:[#allocation2 + $0xb8] sm:$0xff]
    %v701 = vld [vmem:[#allocation2 + $0xc0] sm:$0xff]
    %v702 = vld [vmem:[#allocation2 + $0xc8] sm:$0xff]
    %v703 = vld [vmem:[#allocation2 + $0xd0] sm:$0xff]
    %v704 = vld [vmem:[#allocation2 + $0xd8] sm:$0xff]
    %v705 = vld [vmem:[#allocation2 + $0xe0] sm:$0xff]
    %v706 = vld [vmem:[#allocation2 + $0xe8] sm:$0xff]
    %v707 = vld [vmem:[#allocation2 + $0xf0] sm:$0xff]
    %v708 = vld [vmem:[#allocation2 + $0xf8] sm:$0xff]
    %v709 = vld [vmem:[#allocation2 + $0x100] sm:$0xff]
    %v710 = vld [vmem:[#allocation2 + $0x108] sm:$0xff]
    %v711 = vld [vmem:[#allocation2 + $0x110] sm:$0xff]
    %v712 = vld [vmem:[#allocation2 + $0x118] sm:$0xff]
    %v713 = vld [vmem:[#allocation2 + $0x120] sm:$0xff]
    %v714 = vld [vmem:[#allocation2 + $0x128] sm:$0xff]
    %v715 = vld [vmem:[#allocation2 + $0x130] sm:$0xff]
    %v716 = vld [vmem:[#allocation2 + $0x138] sm:$0xff]
    %v717 = vld [vmem:[#allocation2 + $0x140] sm:$0xff]
    %v718 = vld [vmem:[#allocation2 + $0x148] sm:$0xff]
    %v719 = vld [vmem:[#allocation2 + $0x150] sm:$0xff]
    %v720 = vld [vmem:[#allocation2 + $0x158] sm:$0xff]
    %v721 = vld [vmem:[#allocation2 + $0x160] sm:$0xff]
    %v722 = vld [vmem:[#allocation2 + $0x168] sm:$0xff]
    %v723 = vld [vmem:[#allocation2 + $0x170] sm:$0xff]
    %v724 = vld [vmem:[#allocation2 + $0x178] sm:$0xff]
    %v725 = vld [vmem:[#allocation2 + $0x180] sm:$0xff]
    %v726 = vld [vmem:[#allocation2 + $0x188] sm:$0xff]
    %v727 = vld [vmem:[#allocation2 + $0x190] sm:$0xff]
    %v728 = vld [vmem:[#allocation2 + $0x198] sm:$0xff]
    %v729 = vld [vmem:[#allocation2 + $0x1a0] sm:$0xff]
    %v730 = vld [vmem:[#allocation2 + $0x1a8] sm:$0xff]
    %v731 = vld [vmem:[#allocation2 + $0x1b0] sm:$0xff]
    %v732 = vld [vmem:[#allocation2 + $0x1b8] sm:$0xff]
    %v733 = vld [vmem:[#allocation2 + $0x1c0] sm:$0xff]
    %v734 = vld [vmem:[#allocation2 + $0x1c8] sm:$0xff]
    %v735 = vld [vmem:[#allocation2 + $0x1d0] sm:$0xff]
    %v736 = vld [vmem:[#allocation2 + $0x1d8] sm:$0xff]
    %v737 = vld [vmem:[#allocation2 + $0x1e0] sm:$0xff]
    %v738 = vld [vmem:[#allocation2 + $0x1e8] sm:$0xff]
    %v739 = vld [vmem:[#allocation2 + $0x1f0] sm:$0xff]
    %v740 = vld [vmem:[#allocation2 + $0x1f8] sm:$0x1]
    %v741 = vld [vmem:[#allocation2 + $0x200] sm:$0x1]
    %v742 = vld [vmem:[#allocation2 + $0x208] sm:$0x1]
    %v743 = vld [vmem:[#allocation2 + $0x210] sm:$0x1]
    %v744 = vld [vmem:[#allocation2 + $0x218] sm:$0x1]
    %v745 = vld [vmem:[#allocation2 + $0x220] sm:$0x1]
    %v746 = vld [vmem:[#allocation2 + $0x228] sm:$0x1]
    %v747 = vld [vmem:[#allocation2 + $0x230] sm:$0x1]
    %v748 = vld [vmem:[#allocation2 + $0x238] sm:$0x1]
    %v749 = vld [vmem:[#allocation2 + $0x240] sm:$0x1]
    %v750 = vld [vmem:[#allocation2 + $0x248] sm:$0x1]
    %v751 = vld [vmem:[#allocation2 + $0x250] sm:$0x1]
    %v752 = vld [vmem:[#allocation2 + $0x258] sm:$0x1]
    %v753 = vld [vmem:[#allocation2 + $0x260] sm:$0x1]
    %v754 = vld [vmem:[#allocation2 + $0x268] sm:$0x1]
    %v755 = vld [vmem:[#allocation2 + $0x270] sm:$0x1]
    %v756 = vld [vmem:[#allocation2 + $0x278] sm:$0x1]
    %v757 = vld [vmem:[#allocation2 + $0x280] sm:$0x1]
    %v758 = vld [vmem:[#allocation2 + $0x288] sm:$0x1]
    %v759 = vld [vmem:[#allocation2 + $0x290] sm:$0x1]
    %v760 = vld [vmem:[#allocation2 + $0x298] sm:$0x1]
    %v761 = vpack.c.bf16 %v698, %v677
    %v762 = vpack.c.bf16 %v699, %v678
    %v763 = vpack.c.bf16 %v700, %v679
    %v764 = vpack.c.bf16 %v701, %v680
    %v765 = vpack.c.bf16 %v702, %v681
    %v766 = vpack.c.bf16 %v703, %v682
    %v767 = vpack.c.bf16 %v704, %v683
    %v768 = vpack.c.bf16 %v705, %v684
    %v769 = vpack.c.bf16 %v706, %v685
    %v770 = vpack.c.bf16 %v707, %v686
    %v771 = vpack.c.bf16 %v708, %v687
    %v772 = vpack.c.bf16 %v709, %v688
    %v773 = vpack.c.bf16 %v710, %v689
    %v774 = vpack.c.bf16 %v711, %v690
    %v775 = vpack.c.bf16 %v712, %v691
    %v776 = vpack.c.bf16 %v713, %v692
    %v777 = vpack.c.bf16 %v714, %v693
    %v778 = vpack.c.bf16 %v715, %v694
    %v779 = vpack.c.bf16 %v716, %v695
    %v780 = vpack.c.bf16 %v717, %v696
    %v781 = vpack.c.bf16 %v718, %v697
    %v782 = vpack.c.bf16 %v740, %v719
    %v783 = vpack.c.bf16 %v741, %v720
    %v784 = vpack.c.bf16 %v742, %v721
    %v785 = vpack.c.bf16 %v743, %v722
    %v786 = vpack.c.bf16 %v744, %v723
    %v787 = vpack.c.bf16 %v745, %v724
    %v788 = vpack.c.bf16 %v746, %v725
    %v789 = vpack.c.bf16 %v747, %v726
    %v790 = vpack.c.bf16 %v748, %v727
    %v791 = vpack.c.bf16 %v749, %v728
    %v792 = vpack.c.bf16 %v750, %v729
    %v793 = vpack.c.bf16 %v751, %v730
    %v794 = vpack.c.bf16 %v752, %v731
    %v795 = vpack.c.bf16 %v753, %v732
    %v796 = vpack.c.bf16 %v754, %v733
    %v797 = vpack.c.bf16 %v755, %v734
    %v798 = vpack.c.bf16 %v756, %v735
    %v799 = vpack.c.bf16 %v757, %v736
    %v800 = vpack.c.bf16 %v758, %v737
    %v801 = vpack.c.bf16 %v759, %v738
    %v802 = vpack.c.bf16 %v760, %v739
    %v803 = vld [vmem:[%s2] sm:$0x3f]
    %805 = vset.pattern.permute.xlu0 0
    %806 = vperm.xlu0 %805, %v803
    %v807 = vpop.permute.xlu0 %806
    %vm809 = vcmask 203776
    %v811 = vsel %vm809, %v676, 0
    %vm813 = vcmask 1043456
    %vm814 = vcmask 1044480
    %v815 = vsel %vm813, 4294967295, 65535
    %v816 = vsel %vm814, %v815, 0
    %v818 = vand.u32 %v782, %v816
    %v821 = vand.u32 %v783, %v816
    %v824 = vand.u32 %v784, %v816
    %v827 = vand.u32 %v785, %v816
    %v830 = vand.u32 %v786, %v816
    %v833 = vand.u32 %v787, %v816
    %v836 = vand.u32 %v788, %v816
    %v839 = vand.u32 %v789, %v816
    %v842 = vand.u32 %v790, %v816
    %v845 = vand.u32 %v791, %v816
    %v848 = vand.u32 %v792, %v816
    %v851 = vand.u32 %v793, %v816
    %v854 = vand.u32 %v794, %v816
    %v857 = vand.u32 %v795, %v816
    %v860 = vand.u32 %v796, %v816
    %v863 = vand.u32 %v797, %v816
    %v866 = vand.u32 %v798, %v816
    %v869 = vand.u32 %v799, %v816
    %v872 = vand.u32 %v800, %v816
    %v875 = vand.u32 %v801, %v816
    %v878 = vand.u32 %v802, %v816
    %880 = vmatprep.subr.bf16.mxu0 %v762
    %881 = vmatpush1.bf16.msra.mxu0 %v761
    %882 = vmatprep.subr.bf16.mxu0 %v821
    %883 = vmatpush1.bf16.msra.mxu0 %v818
    %884 = vmatprep.subr.bf16.mxu0 0
    %885 = vmatpush1.bf16.msra.mxu0 0
    %886 = vmatprep.subr.bf16.mxu0 0
    %887 = vmatpush1.bf16.msra.mxu0 0
    %888 = vmatprep.subr.bf16.mxu0 0
    %889 = vmatpush1.bf16.msra.mxu0 0
    %890 = vmatprep.subr.bf16.mxu0 0
    %891 = vmatpush1.bf16.msra.mxu0 0
    %892 = vmatprep.subr.bf16.mxu0 0
    %893 = vmatpush1.bf16.msra.mxu0 0
    %894 = vmatprep.subr.bf16.mxu0 0
    %895 = vmatpush1.bf16.msra.mxu0 0
    %896 = vmatprep.subr.bf16.mxu0 0
    %897 = vmatpush1.bf16.msra.mxu0 0
    %898 = vmatprep.subr.bf16.mxu0 0
    %899 = vmatpush1.bf16.msra.mxu0 0
    %900 = vmatprep.subr.bf16.mxu0 0
    %901 = vmatpush1.bf16.msra.mxu0 0
    %902 = vmatprep.subr.bf16.mxu0 0
    %903 = vmatpush1.bf16.msra.mxu0 0
    %904 = vmatprep.subr.bf16.mxu0 0
    %905 = vmatpush1.bf16.msra.mxu0 0
    %906 = vmatprep.subr.bf16.mxu0 0
    %907 = vmatpush1.bf16.msra.mxu0 0
    %908 = vmatprep.subr.bf16.mxu0 0
    %909 = vmatpush1.bf16.msra.mxu0 0
    %910 = vmatprep.subr.bf16.mxu0 0
    %911 = vmatpush1.bf16.msra.mxu0 0
    %912 = vmatprep.mubr.bf16.mxu0 0
    %913 = vmatmul.mubr.bf16.gmra.mrb[0].mxu0 %v811
    %v914 = vpop.f32.mrb[0].mxu0
    %v915 = vadd.f32 %v807, %v914
    %v916 = vpop.f32.mrb[0].mxu0
    %v917 = vadd.f32 %v807, %v916
    %v918 = vpop.f32.mrb[0].mxu0
    %v919 = vpop.f32.mrb[0].mxu0
    %920 = vdwg.mxu0
    %921 = vmatprep.subr.bf16.mxu0 %v764
    %922 = vmatpush1.bf16.msra.mxu0 %v763
    %923 = vmatprep.subr.bf16.mxu0 %v827
    %924 = vmatpush1.bf16.msra.mxu0 %v824
    %925 = vmatprep.subr.bf16.mxu0 0
    %926 = vmatpush1.bf16.msra.mxu0 0
    %927 = vmatprep.subr.bf16.mxu0 0
    %928 = vmatpush1.bf16.msra.mxu0 0
    %929 = vmatprep.subr.bf16.mxu0 0
    %930 = vmatpush1.bf16.msra.mxu0 0
    %931 = vmatprep.subr.bf16.mxu0 0
    %932 = vmatpush1.bf16.msra.mxu0 0
    %933 = vmatprep.subr.bf16.mxu0 0
    %934 = vmatpush1.bf16.msra.mxu0 0
    %935 = vmatprep.subr.bf16.mxu0 0
    %936 = vmatpush1.bf16.msra.mxu0 0
    %937 = vmatprep.subr.bf16.mxu0 0
    %938 = vmatpush1.bf16.msra.mxu0 0
    %939 = vmatprep.subr.bf16.mxu0 0
    %940 = vmatpush1.bf16.msra.mxu0 0
    %941 = vmatprep.subr.bf16.mxu0 0
    %942 = vmatpush1.bf16.msra.mxu0 0
    %943 = vmatprep.subr.bf16.mxu0 0
    %944 = vmatpush1.bf16.msra.mxu0 0
    %945 = vmatprep.subr.bf16.mxu0 0
    %946 = vmatpush1.bf16.msra.mxu0 0
    %947 = vmatprep.subr.bf16.mxu0 0
    %948 = vmatpush1.bf16.msra.mxu0 0
    %949 = vmatprep.subr.bf16.mxu0 0
    %950 = vmatpush1.bf16.msra.mxu0 0
    %951 = vmatprep.subr.bf16.mxu0 0
    %952 = vmatpush1.bf16.msra.mxu0 0
    %953 = vmatprep.mubr.bf16.mxu0 0
    %954 = vmatmul.mubr.bf16.gmra.mrb[0].mxu0 %v811
    %v955 = vpop.f32.mrb[0].mxu0
    %v956 = vadd.f32 %v807, %v955
    %v957 = vpop.f32.mrb[0].mxu0
    %v958 = vadd.f32 %v807, %v957
    %v959 = vpop.f32.mrb[0].mxu0
    %v960 = vpop.f32.mrb[0].mxu0
    %961 = vdwg.mxu0
    %962 = vmatprep.subr.bf16.mxu0 %v766
    %963 = vmatpush1.bf16.msra.mxu0 %v765
    %964 = vmatprep.subr.bf16.mxu0 %v833
    %965 = vmatpush1.bf16.msra.mxu0 %v830
    %966 = vmatprep.subr.bf16.mxu0 0
    %967 = vmatpush1.bf16.msra.mxu0 0
    %968 = vmatprep.subr.bf16.mxu0 0
    %969 = vmatpush1.bf16.msra.mxu0 0
    %970 = vmatprep.subr.bf16.mxu0 0
    %971 = vmatpush1.bf16.msra.mxu0 0
    %972 = vmatprep.subr.bf16.mxu0 0
    %973 = vmatpush1.bf16.msra.mxu0 0
    %974 = vmatprep.subr.bf16.mxu0 0
    %975 = vmatpush1.bf16.msra.mxu0 0
    %976 = vmatprep.subr.bf16.mxu0 0
    %977 = vmatpush1.bf16.msra.mxu0 0
    %978 = vmatprep.subr.bf16.mxu0 0
    %979 = vmatpush1.bf16.msra.mxu0 0
    %980 = vmatprep.subr.bf16.mxu0 0
    %981 = vmatpush1.bf16.msra.mxu0 0
    %982 = vmatprep.subr.bf16.mxu0 0
    %983 = vmatpush1.bf16.msra.mxu0 0
    %984 = vmatprep.subr.bf16.mxu0 0
    %985 = vmatpush1.bf16.msra.mxu0 0
    %986 = vmatprep.subr.bf16.mxu0 0
    %987 = vmatpush1.bf16.msra.mxu0 0
    %988 = vmatprep.subr.bf16.mxu0 0
    %989 = vmatpush1.bf16.msra.mxu0 0
    %990 = vmatprep.subr.bf16.mxu0 0
    %991 = vmatpush1.bf16.msra.mxu0 0
    %992 = vmatprep.subr.bf16.mxu0 0
    %993 = vmatpush1.bf16.msra.mxu0 0
    %994 = vmatprep.mubr.bf16.mxu0 0
    %995 = vmatmul.mubr.bf16.gmra.mrb[0].mxu0 %v811
    %v996 = vpop.f32.mrb[0].mxu0
    %v997 = vadd.f32 %v807, %v996
    %v998 = vpop.f32.mrb[0].mxu0
    %v999 = vadd.f32 %v807, %v998
    %v1000 = vpop.f32.mrb[0].mxu0
    %v1001 = vpop.f32.mrb[0].mxu0
    %1002 = vdwg.mxu0
    %1003 = vmatprep.subr.bf16.mxu0 %v768
    %1004 = vmatpush1.bf16.msra.mxu0 %v767
    %1005 = vmatprep.subr.bf16.mxu0 %v839
    %1006 = vmatpush1.bf16.msra.mxu0 %v836
    %1007 = vmatprep.subr.bf16.mxu0 0
    %1008 = vmatpush1.bf16.msra.mxu0 0
    %1009 = vmatprep.subr.bf16.mxu0 0
    %1010 = vmatpush1.bf16.msra.mxu0 0
    %1011 = vmatprep.subr.bf16.mxu0 0
    %1012 = vmatpush1.bf16.msra.mxu0 0
    %1013 = vmatprep.subr.bf16.mxu0 0
    %1014 = vmatpush1.bf16.msra.mxu0 0
    %1015 = vmatprep.subr.bf16.mxu0 0
    %1016 = vmatpush1.bf16.msra.mxu0 0
    %1017 = vmatprep.subr.bf16.mxu0 0
    %1018 = vmatpush1.bf16.msra.mxu0 0
    %1019 = vmatprep.subr.bf16.mxu0 0
    %1020 = vmatpush1.bf16.msra.mxu0 0
    %1021 = vmatprep.subr.bf16.mxu0 0
    %1022 = vmatpush1.bf16.msra.mxu0 0
    %1023 = vmatprep.subr.bf16.mxu0 0
    %1024 = vmatpush1.bf16.msra.mxu0 0
    %1025 = vmatprep.subr.bf16.mxu0 0
    %1026 = vmatpush1.bf16.msra.mxu0 0
    %1027 = vmatprep.subr.bf16.mxu0 0
    %1028 = vmatpush1.bf16.msra.mxu0 0
    %1029 = vmatprep.subr.bf16.mxu0 0
    %1030 = vmatpush1.bf16.msra.mxu0 0
    %1031 = vmatprep.subr.bf16.mxu0 0
    %1032 = vmatpush1.bf16.msra.mxu0 0
    %1033 = vmatprep.subr.bf16.mxu0 0
    %1034 = vmatpush1.bf16.msra.mxu0 0
    %1035 = vmatprep.mubr.bf16.mxu0 0
    %1036 = vmatmul.mubr.bf16.gmra.mrb[0].mxu0 %v811
    %v1037 = vpop.f32.mrb[0].mxu0
    %v1038 = vadd.f32 %v807, %v1037
    %v1039 = vpop.f32.mrb[0].mxu0
    %v1040 = vadd.f32 %v807, %v1039
    %v1041 = vpop.f32.mrb[0].mxu0
    %v1042 = vpop.f32.mrb[0].mxu0
    %1043 = vdwg.mxu0
    %1044 = vmatprep.subr.bf16.mxu0 %v770
    %1045 = vmatpush1.bf16.msra.mxu0 %v769
    %1046 = vmatprep.subr.bf16.mxu0 %v845
    %1047 = vmatpush1.bf16.msra.mxu0 %v842
    %1048 = vmatprep.subr.bf16.mxu0 0
    %1049 = vmatpush1.bf16.msra.mxu0 0
    %1050 = vmatprep.subr.bf16.mxu0 0
    %1051 = vmatpush1.bf16.msra.mxu0 0
    %1052 = vmatprep.subr.bf16.mxu0 0
    %1053 = vmatpush1.bf16.msra.mxu0 0
    %1054 = vmatprep.subr.bf16.mxu0 0
    %1055 = vmatpush1.bf16.msra.mxu0 0
    %1056 = vmatprep.subr.bf16.mxu0 0
    %1057 = vmatpush1.bf16.msra.mxu0 0
    %1058 = vmatprep.subr.bf16.mxu0 0
    %1059 = vmatpush1.bf16.msra.mxu0 0
    %1060 = vmatprep.subr.bf16.mxu0 0
    %1061 = vmatpush1.bf16.msra.mxu0 0
    %1062 = vmatprep.subr.bf16.mxu0 0
    %1063 = vmatpush1.bf16.msra.mxu0 0
    %1064 = vmatprep.subr.bf16.mxu0 0
    %1065 = vmatpush1.bf16.msra.mxu0 0
    %1066 = vmatprep.subr.bf16.mxu0 0
    %1067 = vmatpush1.bf16.msra.mxu0 0
    %1068 = vmatprep.subr.bf16.mxu0 0
    %1069 = vmatpush1.bf16.msra.mxu0 0
    %1070 = vmatprep.subr.bf16.mxu0 0
    %1071 = vmatpush1.bf16.msra.mxu0 0
    %1072 = vmatprep.subr.bf16.mxu0 0
    %1073 = vmatpush1.bf16.msra.mxu0 0
    %1074 = vmatprep.subr.bf16.mxu0 0
    %1075 = vmatpush1.bf16.msra.mxu0 0
    %1076 = vmatprep.mubr.bf16.mxu0 0
    %1077 = vmatmul.mubr.bf16.gmra.mrb[0].mxu0 %v811
    %v1078 = vpop.f32.mrb[0].mxu0
    %v1079 = vadd.f32 %v807, %v1078
    %v1080 = vpop.f32.mrb[0].mxu0
    %v1081 = vadd.f32 %v807, %v1080
    %v1082 = vpop.f32.mrb[0].mxu0
    %v1083 = vpop.f32.mrb[0].mxu0
    %1084 = vdwg.mxu0
    %1085 = vmatprep.subr.bf16.mxu0 %v772
    %1086 = vmatpush1.bf16.msra.mxu0 %v771
    %1087 = vmatprep.subr.bf16.mxu0 %v851
    %1088 = vmatpush1.bf16.msra.mxu0 %v848
    %1089 = vmatprep.subr.bf16.mxu0 0
    %1090 = vmatpush1.bf16.msra.mxu0 0
    %1091 = vmatprep.subr.bf16.mxu0 0
    %1092 = vmatpush1.bf16.msra.mxu0 0
    %1093 = vmatprep.subr.bf16.mxu0 0
    %1094 = vmatpush1.bf16.msra.mxu0 0
    %1095 = vmatprep.subr.bf16.mxu0 0
    %1096 = vmatpush1.bf16.msra.mxu0 0
    %1097 = vmatprep.subr.bf16.mxu0 0
    %1098 = vmatpush1.bf16.msra.mxu0 0
    %1099 = vmatprep.subr.bf16.mxu0 0
    %1100 = vmatpush1.bf16.msra.mxu0 0
    %1101 = vmatprep.subr.bf16.mxu0 0
    %1102 = vmatpush1.bf16.msra.mxu0 0
    %1103 = vmatprep.subr.bf16.mxu0 0
    %1104 = vmatpush1.bf16.msra.mxu0 0
    %1105 = vmatprep.subr.bf16.mxu0 0
    %1106 = vmatpush1.bf16.msra.mxu0 0
    %1107 = vmatprep.subr.bf16.mxu0 0
    %1108 = vmatpush1.bf16.msra.mxu0 0
    %1109 = vmatprep.subr.bf16.mxu0 0
    %1110 = vmatpush1.bf16.msra.mxu0 0
    %1111 = vmatprep.subr.bf16.mxu0 0
    %1112 = vmatpush1.bf16.msra.mxu0 0
    %1113 = vmatprep.subr.bf16.mxu0 0
    %1114 = vmatpush1.bf16.msra.mxu0 0
    %1115 = vmatprep.subr.bf16.mxu0 0
    %1116 = vmatpush1.bf16.msra.mxu0 0
    %1117 = vmatprep.mubr.bf16.mxu0 0
    %1118 = vmatmul.mubr.bf16.gmra.mrb[0].mxu0 %v811
    %v1119 = vpop.f32.mrb[0].mxu0
    %v1120 = vadd.f32 %v807, %v1119
    %v1121 = vpop.f32.mrb[0].mxu0
    %v1122 = vadd.f32 %v807, %v1121
    %v1123 = vpop.f32.mrb[0].mxu0
    %v1124 = vpop.f32.mrb[0].mxu0
    %1125 = vdwg.mxu0
    %1126 = vmatprep.subr.bf16.mxu0 %v774
    %1127 = vmatpush1.bf16.msra.mxu0 %v773
    %1128 = vmatprep.subr.bf16.mxu0 %v857
    %1129 = vmatpush1.bf16.msra.mxu0 %v854
    %1130 = vmatprep.subr.bf16.mxu0 0
    %1131 = vmatpush1.bf16.msra.mxu0 0
    %1132 = vmatprep.subr.bf16.mxu0 0
    %1133 = vmatpush1.bf16.msra.mxu0 0
    %1134 = vmatprep.subr.bf16.mxu0 0
    %1135 = vmatpush1.bf16.msra.mxu0 0
    %1136 = vmatprep.subr.bf16.mxu0 0
    %1137 = vmatpush1.bf16.msra.mxu0 0
    %1138 = vmatprep.subr.bf16.mxu0 0
    %1139 = vmatpush1.bf16.msra.mxu0 0
    %1140 = vmatprep.subr.bf16.mxu0 0
    %1141 = vmatpush1.bf16.msra.mxu0 0
    %1142 = vmatprep.subr.bf16.mxu0 0
    %1143 = vmatpush1.bf16.msra.mxu0 0
    %1144 = vmatprep.subr.bf16.mxu0 0
    %1145 = vmatpush1.bf16.msra.mxu0 0
    %1146 = vmatprep.subr.bf16.mxu0 0
    %1147 = vmatpush1.bf16.msra.mxu0 0
    %1148 = vmatprep.subr.bf16.mxu0 0
    %1149 = vmatpush1.bf16.msra.mxu0 0
    %1150 = vmatprep.subr.bf16.mxu0 0
    %1151 = vmatpush1.bf16.msra.mxu0 0
    %1152 = vmatprep.subr.bf16.mxu0 0
    %1153 = vmatpush1.bf16.msra.mxu0 0
    %1154 = vmatprep.subr.bf16.mxu0 0
    %1155 = vmatpush1.bf16.msra.mxu0 0
    %1156 = vmatprep.subr.bf16.mxu0 0
    %1157 = vmatpush1.bf16.msra.mxu0 0
    %1158 = vmatprep.mubr.bf16.mxu0 0
    %1159 = vmatmul.mubr.bf16.gmra.mrb[0].mxu0 %v811
    %v1160 = vpop.f32.mrb[0].mxu0
    %v1161 = vadd.f32 %v807, %v1160
    %v1162 = vpop.f32.mrb[0].mxu0
    %v1163 = vadd.f32 %v807, %v1162
    %v1164 = vpop.f32.mrb[0].mxu0
    %v1165 = vpop.f32.mrb[0].mxu0
    %1166 = vdwg.mxu0
    %1167 = vmatprep.subr.bf16.mxu0 %v776
    %1168 = vmatpush1.bf16.msra.mxu0 %v775
    %1169 = vmatprep.subr.bf16.mxu0 %v863
    %1170 = vmatpush1.bf16.msra.mxu0 %v860
    %1171 = vmatprep.subr.bf16.mxu0 0
    %1172 = vmatpush1.bf16.msra.mxu0 0
    %1173 = vmatprep.subr.bf16.mxu0 0
    %1174 = vmatpush1.bf16.msra.mxu0 0
    %1175 = vmatprep.subr.bf16.mxu0 0
    %1176 = vmatpush1.bf16.msra.mxu0 0
    %1177 = vmatprep.subr.bf16.mxu0 0
    %1178 = vmatpush1.bf16.msra.mxu0 0
    %1179 = vmatprep.subr.bf16.mxu0 0
    %1180 = vmatpush1.bf16.msra.mxu0 0
    %1181 = vmatprep.subr.bf16.mxu0 0
    %1182 = vmatpush1.bf16.msra.mxu0 0
    %1183 = vmatprep.subr.bf16.mxu0 0
    %1184 = vmatpush1.bf16.msra.mxu0 0
    %1185 = vmatprep.subr.bf16.mxu0 0
    %1186 = vmatpush1.bf16.msra.mxu0 0
    %1187 = vmatprep.subr.bf16.mxu0 0
    %1188 = vmatpush1.bf16.msra.mxu0 0
    %1189 = vmatprep.subr.bf16.mxu0 0
    %1190 = vmatpush1.bf16.msra.mxu0 0
    %1191 = vmatprep.subr.bf16.mxu0 0
    %1192 = vmatpush1.bf16.msra.mxu0 0
    %1193 = vmatprep.subr.bf16.mxu0 0
    %1194 = vmatpush1.bf16.msra.mxu0 0
    %1195 = vmatprep.subr.bf16.mxu0 0
    %1196 = vmatpush1.bf16.msra.mxu0 0
    %1197 = vmatprep.subr.bf16.mxu0 0
    %1198 = vmatpush1.bf16.msra.mxu0 0
    %1199 = vmatprep.mubr.bf16.mxu0 0
    %1200 = vmatmul.mubr.bf16.gmra.mrb[0].mxu0 %v811
    %v1201 = vpop.f32.mrb[0].mxu0
    %v1202 = vadd.f32 %v807, %v1201
    %v1203 = vpop.f32.mrb[0].mxu0
    %v1204 = vadd.f32 %v807, %v1203
    %v1205 = vpop.f32.mrb[0].mxu0
    %v1206 = vpop.f32.mrb[0].mxu0
    %1207 = vdwg.mxu0
    %1208 = vmatprep.subr.bf16.mxu0 %v778
    %1209 = vmatpush1.bf16.msra.mxu0 %v777
    %1210 = vmatprep.subr.bf16.mxu0 %v869
    %1211 = vmatpush1.bf16.msra.mxu0 %v866
    %1212 = vmatprep.subr.bf16.mxu0 0
    %1213 = vmatpush1.bf16.msra.mxu0 0
    %1214 = vmatprep.subr.bf16.mxu0 0
    %1215 = vmatpush1.bf16.msra.mxu0 0
    %1216 = vmatprep.subr.bf16.mxu0 0
    %1217 = vmatpush1.bf16.msra.mxu0 0
    %1218 = vmatprep.subr.bf16.mxu0 0
    %1219 = vmatpush1.bf16.msra.mxu0 0
    %1220 = vmatprep.subr.bf16.mxu0 0
    %1221 = vmatpush1.bf16.msra.mxu0 0
    %1222 = vmatprep.subr.bf16.mxu0 0
    %1223 = vmatpush1.bf16.msra.mxu0 0
    %1224 = vmatprep.subr.bf16.mxu0 0
    %1225 = vmatpush1.bf16.msra.mxu0 0
    %1226 = vmatprep.subr.bf16.mxu0 0
    %1227 = vmatpush1.bf16.msra.mxu0 0
    %1228 = vmatprep.subr.bf16.mxu0 0
    %1229 = vmatpush1.bf16.msra.mxu0 0
    %1230 = vmatprep.subr.bf16.mxu0 0
    %1231 = vmatpush1.bf16.msra.mxu0 0
    %1232 = vmatprep.subr.bf16.mxu0 0
    %1233 = vmatpush1.bf16.msra.mxu0 0
    %1234 = vmatprep.subr.bf16.mxu0 0
    %1235 = vmatpush1.bf16.msra.mxu0 0
    %1236 = vmatprep.subr.bf16.mxu0 0
    %1237 = vmatpush1.bf16.msra.mxu0 0
    %1238 = vmatprep.subr.bf16.mxu0 0
    %1239 = vmatpush1.bf16.msra.mxu0 0
    %1240 = vmatprep.mubr.bf16.mxu0 0
    %1241 = vmatmul.mubr.bf16.gmra.mrb[0].mxu0 %v811
    %v1242 = vpop.f32.mrb[0].mxu0
    %v1243 = vadd.f32 %v807, %v1242
    %v1244 = vpop.f32.mrb[0].mxu0
    %v1245 = vadd.f32 %v807, %v1244
    %v1246 = vpop.f32.mrb[0].mxu0
    %v1247 = vpop.f32.mrb[0].mxu0
    %1248 = vdwg.mxu0
    %1249 = vmatprep.subr.bf16.mxu0 %v780
    %1250 = vmatpush1.bf16.msra.mxu0 %v779
    %1251 = vmatprep.subr.bf16.mxu0 %v875
    %1252 = vmatpush1.bf16.msra.mxu0 %v872
    %1253 = vmatprep.subr.bf16.mxu0 0
    %1254 = vmatpush1.bf16.msra.mxu0 0
    %1255 = vmatprep.subr.bf16.mxu0 0
    %1256 = vmatpush1.bf16.msra.mxu0 0
    %1257 = vmatprep.subr.bf16.mxu0 0
    %1258 = vmatpush1.bf16.msra.mxu0 0
    %1259 = vmatprep.subr.bf16.mxu0 0
    %1260 = vmatpush1.bf16.msra.mxu0 0
    %1261 = vmatprep.subr.bf16.mxu0 0
    %1262 = vmatpush1.bf16.msra.mxu0 0
    %1263 = vmatprep.subr.bf16.mxu0 0
    %1264 = vmatpush1.bf16.msra.mxu0 0
    %1265 = vmatprep.subr.bf16.mxu0 0
    %1266 = vmatpush1.bf16.msra.mxu0 0
    %1267 = vmatprep.subr.bf16.mxu0 0
    %1268 = vmatpush1.bf16.msra.mxu0 0
    %1269 = vmatprep.subr.bf16.mxu0 0
    %1270 = vmatpush1.bf16.msra.mxu0 0
    %1271 = vmatprep.subr.bf16.mxu0 0
    %1272 = vmatpush1.bf16.msra.mxu0 0
    %1273 = vmatprep.subr.bf16.mxu0 0
    %1274 = vmatpush1.bf16.msra.mxu0 0
    %1275 = vmatprep.subr.bf16.mxu0 0
    %1276 = vmatpush1.bf16.msra.mxu0 0
    %1277 = vmatprep.subr.bf16.mxu0 0
    %1278 = vmatpush1.bf16.msra.mxu0 0
    %1279 = vmatprep.subr.bf16.mxu0 0
    %1280 = vmatpush1.bf16.msra.mxu0 0
    %1281 = vmatprep.mubr.bf16.mxu0 0
    %1282 = vmatmul.mubr.bf16.gmra.mrb[0].mxu0 %v811
    %v1283 = vpop.f32.mrb[0].mxu0
    %v1284 = vadd.f32 %v807, %v1283
    %v1285 = vpop.f32.mrb[0].mxu0
    %v1286 = vadd.f32 %v807, %v1285
    %v1287 = vpop.f32.mrb[0].mxu0
    %v1288 = vpop.f32.mrb[0].mxu0
    %1289 = vdwg.mxu0
    %1290 = vmatprep.subr.bf16.mxu0 0
    %1291 = vmatpush1.bf16.msra.mxu0 %v781
    %1292 = vmatprep.subr.bf16.mxu0 0
    %1293 = vmatpush1.bf16.msra.mxu0 %v878
    %1294 = vmatprep.subr.bf16.mxu0 0
    %1295 = vmatpush1.bf16.msra.mxu0 0
    %1296 = vmatprep.subr.bf16.mxu0 0
    %1297 = vmatpush1.bf16.msra.mxu0 0
    %1298 = vmatprep.subr.bf16.mxu0 0
    %1299 = vmatpush1.bf16.msra.mxu0 0
    %1300 = vmatprep.subr.bf16.mxu0 0
    %1301 = vmatpush1.bf16.msra.mxu0 0
    %1302 = vmatprep.subr.bf16.mxu0 0
    %1303 = vmatpush1.bf16.msra.mxu0 0
    %1304 = vmatprep.subr.bf16.mxu0 0
    %1305 = vmatpush1.bf16.msra.mxu0 0
    %1306 = vmatprep.subr.bf16.mxu0 0
    %1307 = vmatpush1.bf16.msra.mxu0 0
    %1308 = vmatprep.subr.bf16.mxu0 0
    %1309 = vmatpush1.bf16.msra.mxu0 0
    %1310 = vmatprep.subr.bf16.mxu0 0
    %1311 = vmatpush1.bf16.msra.mxu0 0
    %1312 = vmatprep.subr.bf16.mxu0 0
    %1313 = vmatpush1.bf16.msra.mxu0 0
    %1314 = vmatprep.subr.bf16.mxu0 0
    %1315 = vmatpush1.bf16.msra.mxu0 0
    %1316 = vmatprep.subr.bf16.mxu0 0
    %1317 = vmatpush1.bf16.msra.mxu0 0
    %1318 = vmatprep.subr.bf16.mxu0 0
    %1319 = vmatpush1.bf16.msra.mxu0 0
    %1320 = vmatprep.subr.bf16.mxu0 0
    %1321 = vmatpush1.bf16.msra.mxu0 0
    %1322 = vmatprep.mubr.bf16.mxu0 0
    %1323 = vmatmul.mubr.bf16.gmra.mrb[0].mxu0 %v811
    %v1324 = vpop.f32.mrb[0].mxu0
    %v1325 = vadd.f32 %v807, %v1324
    %v1326 = vpop.f32.mrb[0].mxu0
    %v1327 = vpop.f32.mrb[0].mxu0
    %v1328 = vpop.f32.mrb[0].mxu0
    %1329 = vdwg.mxu0
    %v1330 = vtanh.pop %v915
    %v1331 = vtanh.pop %v917
    %v1332 = vtanh.pop %v956
    %v1333 = vtanh.pop %v958
    %v1334 = vtanh.pop %v997
    %v1335 = vtanh.pop %v999
    %v1336 = vtanh.pop %v1038
    %v1337 = vtanh.pop %v1040
    %v1338 = vtanh.pop %v1079
    %v1339 = vtanh.pop %v1081
    %v1340 = vtanh.pop %v1120
    %v1341 = vtanh.pop %v1122
    %v1342 = vtanh.pop %v1161
    %v1343 = vtanh.pop %v1163
    %v1344 = vtanh.pop %v1202
    %v1345 = vtanh.pop %v1204
    %v1346 = vtanh.pop %v1243
    %v1347 = vtanh.pop %v1245
    %v1348 = vtanh.pop %v1284
    %v1349 = vtanh.pop %v1286
    %v1350 = vtanh.pop %v1325
    %1372 = vrot.lane.b32.xlu0 %v1330, 127
    %v1373 = vpop.permute.xlu0 %1372
    %1374 = vrot.lane.b32.xlu0 %v1331, 127
    %v1375 = vpop.permute.xlu0 %1374
    %1376 = vrot.lane.b32.xlu0 %v1332, 127
    %v1377 = vpop.permute.xlu0 %1376
    %1378 = vrot.lane.b32.xlu0 %v1333, 127
    %v1379 = vpop.permute.xlu0 %1378
    %1380 = vrot.lane.b32.xlu0 %v1334, 127
    %v1381 = vpop.permute.xlu0 %1380
    %1382 = vrot.lane.b32.xlu0 %v1335, 127
    %v1383 = vpop.permute.xlu0 %1382
    %1384 = vrot.lane.b32.xlu0 %v1336, 127
    %v1385 = vpop.permute.xlu0 %1384
    %1386 = vrot.lane.b32.xlu0 %v1337, 127
    %v1387 = vpop.permute.xlu0 %1386
    %1388 = vrot.lane.b32.xlu0 %v1338, 127
    %v1389 = vpop.permute.xlu0 %1388
    %1390 = vrot.lane.b32.xlu0 %v1339, 127
    %v1391 = vpop.permute.xlu0 %1390
    %1392 = vrot.lane.b32.xlu0 %v1340, 127
    %v1393 = vpop.permute.xlu0 %1392
    %1394 = vrot.lane.b32.xlu0 %v1341, 127
    %v1395 = vpop.permute.xlu0 %1394
    %1396 = vrot.lane.b32.xlu0 %v1342, 127
    %v1397 = vpop.permute.xlu0 %1396
    %1398 = vrot.lane.b32.xlu0 %v1343, 127
    %v1399 = vpop.permute.xlu0 %1398
    %1400 = vrot.lane.b32.xlu0 %v1344, 127
    %v1401 = vpop.permute.xlu0 %1400
    %1402 = vrot.lane.b32.xlu0 %v1345, 127
    %v1403 = vpop.permute.xlu0 %1402
    %1404 = vrot.lane.b32.xlu0 %v1346, 127
    %v1405 = vpop.permute.xlu0 %1404
    %1406 = vrot.lane.b32.xlu0 %v1347, 127
    %v1407 = vpop.permute.xlu0 %1406
    %1408 = vrot.lane.b32.xlu0 %v1348, 127
    %v1409 = vpop.permute.xlu0 %1408
    %1410 = vrot.lane.b32.xlu0 %v1349, 127
    %v1411 = vpop.permute.xlu0 %1410
    %1412 = vrot.lane.b32.xlu0 %v1350, 127
    %v1413 = vpop.permute.xlu0 %1412
    %v1414 = vsel %vm75, %v1373, %v1375
    %v1415 = vsel %vm75, %v1375, %v1377
    %v1416 = vsel %vm75, %v1377, %v1379
    %v1417 = vsel %vm75, %v1379, %v1381
    %v1418 = vsel %vm75, %v1381, %v1383
    %v1419 = vsel %vm75, %v1383, %v1385
    %v1420 = vsel %vm75, %v1385, %v1387
    %v1421 = vsel %vm75, %v1387, %v1389
    %v1422 = vsel %vm75, %v1389, %v1391
    %v1423 = vsel %vm75, %v1391, %v1393
    %v1424 = vsel %vm75, %v1393, %v1395
    %v1425 = vsel %vm75, %v1395, %v1397
    %v1426 = vsel %vm75, %v1397, %v1399
    %v1427 = vsel %vm75, %v1399, %v1401
    %v1428 = vsel %vm75, %v1401, %v1403
    %v1429 = vsel %vm75, %v1403, %v1405
    %v1430 = vsel %vm75, %v1405, %v1407
    %v1431 = vsel %vm75, %v1407, %v1409
    %v1432 = vsel %vm75, %v1409, %v1411
    %v1433 = vsel %vm75, %v1411, %v1413
    %v1454 = vmax.f32 %v1330, %v1414
    %v1455 = vmax.f32 %v1331, %v1415
    %v1456 = vmax.f32 %v1332, %v1416
    %v1457 = vmax.f32 %v1333, %v1417
    %v1458 = vmax.f32 %v1334, %v1418
    %v1459 = vmax.f32 %v1335, %v1419
    %v1460 = vmax.f32 %v1336, %v1420
    %v1461 = vmax.f32 %v1337, %v1421
    %v1462 = vmax.f32 %v1338, %v1422
    %v1463 = vmax.f32 %v1339, %v1423
    %v1464 = vmax.f32 %v1340, %v1424
    %v1465 = vmax.f32 %v1341, %v1425
    %v1466 = vmax.f32 %v1342, %v1426
    %v1467 = vmax.f32 %v1343, %v1427
    %v1468 = vmax.f32 %v1344, %v1428
    %v1469 = vmax.f32 %v1345, %v1429
    %v1470 = vmax.f32 %v1346, %v1430
    %v1471 = vmax.f32 %v1347, %v1431
    %v1472 = vmax.f32 %v1348, %v1432
    %v1473 = vmax.f32 %v1349, %v1433
    %v1475 = vmax.f32 %v1350, %v1413
    %1497 = vrot.lane.b32.xlu0 %v1454, 96
    %v1498 = vpop.permute.xlu0 %1497
    %1499 = vrot.lane.b32.xlu0 %v1455, 96
    %v1500 = vpop.permute.xlu0 %1499
    %1501 = vrot.lane.b32.xlu0 %v1456, 96
    %v1502 = vpop.permute.xlu0 %1501
    %1503 = vrot.lane.b32.xlu0 %v1457, 96
    %v1504 = vpop.permute.xlu0 %1503
    %1505 = vrot.lane.b32.xlu0 %v1458, 96
    %v1506 = vpop.permute.xlu0 %1505
    %1507 = vrot.lane.b32.xlu0 %v1459, 96
    %v1508 = vpop.permute.xlu0 %1507
    %1509 = vrot.lane.b32.xlu0 %v1460, 96
    %v1510 = vpop.permute.xlu0 %1509
    %1511 = vrot.lane.b32.xlu0 %v1461, 96
    %v1512 = vpop.permute.xlu0 %1511
    %1513 = vrot.lane.b32.xlu0 %v1462, 96
    %v1514 = vpop.permute.xlu0 %1513
    %1515 = vrot.lane.b32.xlu0 %v1463, 96
    %v1516 = vpop.permute.xlu0 %1515
    %1517 = vrot.lane.b32.xlu0 %v1464, 96
    %v1518 = vpop.permute.xlu0 %1517
    %1519 = vrot.lane.b32.xlu0 %v1465, 96
    %v1520 = vpop.permute.xlu0 %1519
    %1521 = vrot.lane.b32.xlu0 %v1466, 96
    %v1522 = vpop.permute.xlu0 %1521
    %1523 = vrot.lane.b32.xlu0 %v1467, 96
    %v1524 = vpop.permute.xlu0 %1523
    %1525 = vrot.lane.b32.xlu0 %v1468, 96
    %v1526 = vpop.permute.xlu0 %1525
    %1527 = vrot.lane.b32.xlu0 %v1469, 96
    %v1528 = vpop.permute.xlu0 %1527
    %1529 = vrot.lane.b32.xlu0 %v1470, 96
    %v1530 = vpop.permute.xlu0 %1529
    %1531 = vrot.lane.b32.xlu0 %v1471, 96
    %v1532 = vpop.permute.xlu0 %1531
    %1533 = vrot.lane.b32.xlu0 %v1472, 96
    %v1534 = vpop.permute.xlu0 %1533
    %1535 = vrot.lane.b32.xlu0 %v1473, 96
    %v1536 = vpop.permute.xlu0 %1535
    %1537 = vrot.lane.b32.xlu0 %v1475, 96
    %v1538 = vpop.permute.xlu0 %1537
    %v1539 = vsel %vm183, %v1498, %v1500
    %v1540 = vsel %vm183, %v1500, %v1502
    %v1541 = vsel %vm183, %v1502, %v1504
    %v1542 = vsel %vm183, %v1504, %v1506
    %v1543 = vsel %vm183, %v1506, %v1508
    %v1544 = vsel %vm183, %v1508, %v1510
    %v1545 = vsel %vm183, %v1510, %v1512
    %v1546 = vsel %vm183, %v1512, %v1514
    %v1547 = vsel %vm183, %v1514, %v1516
    %v1548 = vsel %vm183, %v1516, %v1518
    %v1549 = vsel %vm183, %v1518, %v1520
    %v1550 = vsel %vm183, %v1520, %v1522
    %v1551 = vsel %vm183, %v1522, %v1524
    %v1552 = vsel %vm183, %v1524, %v1526
    %v1553 = vsel %vm183, %v1526, %v1528
    %v1554 = vsel %vm183, %v1528, %v1530
    %v1555 = vsel %vm183, %v1530, %v1532
    %v1556 = vsel %vm183, %v1532, %v1534
    %v1557 = vsel %vm183, %v1534, %v1536
    %v1558 = vsel %vm183, %v1536, %v1538
    %v1579 = vmax.f32 %v1454, %v1539
    %v1580 = vmax.f32 %v1455, %v1540
    %v1581 = vmax.f32 %v1456, %v1541
    %v1582 = vmax.f32 %v1457, %v1542
    %v1583 = vmax.f32 %v1458, %v1543
    %v1584 = vmax.f32 %v1459, %v1544
    %v1585 = vmax.f32 %v1460, %v1545
    %v1586 = vmax.f32 %v1461, %v1546
    %v1587 = vmax.f32 %v1462, %v1547
    %v1588 = vmax.f32 %v1463, %v1548
    %v1589 = vmax.f32 %v1464, %v1549
    %v1590 = vmax.f32 %v1465, %v1550
    %v1591 = vmax.f32 %v1466, %v1551
    %v1592 = vmax.f32 %v1467, %v1552
    %v1593 = vmax.f32 %v1468, %v1553
    %v1594 = vmax.f32 %v1469, %v1554
    %v1595 = vmax.f32 %v1470, %v1555
    %v1596 = vmax.f32 %v1471, %v1556
    %v1597 = vmax.f32 %v1472, %v1557
    %v1598 = vmax.f32 %v1473, %v1558
    %1599 = vst [vmem:[#allocation3] sm:$0x3f] %v1579
    %1600 = vst [vmem:[#allocation3 + $0x8] sm:$0x3f] %v1580
    %1601 = vst [vmem:[#allocation3 + $0x10] sm:$0x3f] %v1581
    %1602 = vst [vmem:[#allocation3 + $0x18] sm:$0x3f] %v1582
    %1603 = vst [vmem:[#allocation3 + $0x20] sm:$0x3f] %v1583
    %1604 = vst [vmem:[#allocation3 + $0x28] sm:$0x3f] %v1584
    %1605 = vst [vmem:[#allocation3 + $0x30] sm:$0x3f] %v1585
    %1606 = vst [vmem:[#allocation3 + $0x38] sm:$0x3f] %v1586
    %1607 = vst [vmem:[#allocation3 + $0x40] sm:$0x3f] %v1587
    %1608 = vst [vmem:[#allocation3 + $0x48] sm:$0x3f] %v1588
    %1609 = vst [vmem:[#allocation3 + $0x50] sm:$0x3f] %v1589
    %1610 = vst [vmem:[#allocation3 + $0x58] sm:$0x3f] %v1590
    %1611 = vst [vmem:[#allocation3 + $0x60] sm:$0x3f] %v1591
    %1612 = vst [vmem:[#allocation3 + $0x68] sm:$0x3f] %v1592
    %1613 = vst [vmem:[#allocation3 + $0x70] sm:$0x3f] %v1593
    %1614 = vst [vmem:[#allocation3 + $0x78] sm:$0x3f] %v1594
    %1615 = vst [vmem:[#allocation3 + $0x80] sm:$0x3f] %v1595
    %1616 = vst [vmem:[#allocation3 + $0x88] sm:$0x3f] %v1596
    %1617 = vst [vmem:[#allocation3 + $0x90] sm:$0x3f] %v1597
    %1618 = vst [vmem:[#allocation3 + $0x98] sm:$0x3f] %v1598
    %1619 = vst [vmem:[#allocation3] sm:$0xc0] 0.0
    %1620 = vst [vmem:[#allocation3 + $0x8] sm:$0xc0] 0.0
    %1621 = vst [vmem:[#allocation3 + $0x10] sm:$0xc0] 0.0
    %1622 = vst [vmem:[#allocation3 + $0x18] sm:$0xc0] 0.0
    %1623 = vst [vmem:[#allocation3 + $0x20] sm:$0xc0] 0.0
    %1624 = vst [vmem:[#allocation3 + $0x28] sm:$0xc0] 0.0
    %1625 = vst [vmem:[#allocation3 + $0x30] sm:$0xc0] 0.0
    %1626 = vst [vmem:[#allocation3 + $0x38] sm:$0xc0] 0.0
    %1627 = vst [vmem:[#allocation3 + $0x40] sm:$0xc0] 0.0
    %1628 = vst [vmem:[#allocation3 + $0x48] sm:$0xc0] 0.0
    %1629 = vst [vmem:[#allocation3 + $0x50] sm:$0xc0] 0.0
    %1630 = vst [vmem:[#allocation3 + $0x58] sm:$0xc0] 0.0
    %1631 = vst [vmem:[#allocation3 + $0x60] sm:$0xc0] 0.0
    %1632 = vst [vmem:[#allocation3 + $0x68] sm:$0xc0] 0.0
    %1633 = vst [vmem:[#allocation3 + $0x70] sm:$0xc0] 0.0
    %1634 = vst [vmem:[#allocation3 + $0x78] sm:$0xc0] 0.0
    %1635 = vst [vmem:[#allocation3 + $0x80] sm:$0xc0] 0.0
    %1636 = vst [vmem:[#allocation3 + $0x88] sm:$0xc0] 0.0
    %1637 = vst [vmem:[#allocation3 + $0x90] sm:$0xc0] 0.0
    %1638 = vst [vmem:[#allocation3 + $0x98] sm:$0xc0] 0.0
    %v1639 = vld [vmem:[#allocation3] sm:$0xff]
    %v1640 = vld [vmem:[#allocation3 + $0x8] sm:$0xff]
    %v1641 = vld [vmem:[#allocation3 + $0x10] sm:$0xff]
    %v1642 = vld [vmem:[#allocation3 + $0x18] sm:$0xff]
    %v1643 = vld [vmem:[#allocation3 + $0x20] sm:$0xff]
    %v1644 = vld [vmem:[#allocation3 + $0x28] sm:$0xff]
    %v1645 = vld [vmem:[#allocation3 + $0x30] sm:$0xff]
    %v1646 = vld [vmem:[#allocation3 + $0x38] sm:$0xff]
    %v1647 = vld [vmem:[#allocation3 + $0x40] sm:$0xff]
    %v1648 = vld [vmem:[#allocation3 + $0x48] sm:$0xff]
    %v1649 = vld [vmem:[#allocation3 + $0x50] sm:$0xff]
    %v1650 = vld [vmem:[#allocation3 + $0x58] sm:$0xff]
    %v1651 = vld [vmem:[#allocation3 + $0x60] sm:$0xff]
    %v1652 = vld [vmem:[#allocation3 + $0x68] sm:$0xff]
    %v1653 = vld [vmem:[#allocation3 + $0x70] sm:$0xff]
    %v1654 = vld [vmem:[#allocation3 + $0x78] sm:$0xff]
    %v1655 = vld [vmem:[#allocation3 + $0x80] sm:$0xff]
    %1656 = vst [vmem:[#allocation4] sm:$0xff] %v1639
    %1657 = vst [vmem:[#allocation4 + $0x8] sm:$0xff] %v1640
    %1658 = vst [vmem:[#allocation4 + $0x10] sm:$0xff] %v1641
    %1659 = vst [vmem:[#allocation4 + $0x18] sm:$0xff] %v1642
    %1660 = vst [vmem:[#allocation4 + $0x20] sm:$0xff] %v1643
    %1661 = vst [vmem:[#allocation4 + $0x28] sm:$0xff] %v1644
    %1662 = vst [vmem:[#allocation4 + $0x30] sm:$0xff] %v1645
    %1663 = vst [vmem:[#allocation4 + $0x38] sm:$0xff] %v1646
    %1664 = vst [vmem:[#allocation4 + $0x40] sm:$0xff] %v1647
    %1665 = vst [vmem:[#allocation4 + $0x48] sm:$0xff] %v1648
    %1666 = vst [vmem:[#allocation4 + $0x50] sm:$0xff] %v1649
    %1667 = vst [vmem:[#allocation4 + $0x58] sm:$0xff] %v1650
    %1668 = vst [vmem:[#allocation4 + $0x60] sm:$0xff] %v1651
    %1669 = vst [vmem:[#allocation4 + $0x68] sm:$0xff] %v1652
    %1670 = vst [vmem:[#allocation4 + $0x70] sm:$0xff] %v1653
    %1671 = vst [vmem:[#allocation4 + $0x78] sm:$0xff] %v1654
    %1672 = vst [vmem:[#allocation4 + $0x80] sm:$0xff] %v1655
    %v1673 = vld [vmem:[#allocation3] sm:$0xff]
    %v1674 = vld [vmem:[#allocation3 + $0x8] sm:$0xff]
    %v1675 = vld [vmem:[#allocation3 + $0x10] sm:$0xff]
    %v1676 = vld [vmem:[#allocation3 + $0x18] sm:$0xff]
    %v1677 = vld [vmem:[#allocation3 + $0x20] sm:$0xff]
    %v1678 = vld [vmem:[#allocation3 + $0x28] sm:$0xff]
    %v1679 = vld [vmem:[#allocation3 + $0x30] sm:$0xff]
    %v1680 = vld [vmem:[#allocation3 + $0x38] sm:$0xff]
    %v1681 = vld [vmem:[#allocation3 + $0x40] sm:$0xff]
    %v1682 = vld [vmem:[#allocation3 + $0x48] sm:$0xff]
    %v1683 = vld [vmem:[#allocation3 + $0x50] sm:$0xff]
    %v1684 = vld [vmem:[#allocation3 + $0x58] sm:$0xff]
    %v1685 = vld [vmem:[#allocation3 + $0x60] sm:$0xff]
    %v1686 = vld [vmem:[#allocation3 + $0x68] sm:$0xff]
    %v1687 = vld [vmem:[#allocation3 + $0x70] sm:$0xff]
    %v1688 = vld [vmem:[#allocation3 + $0x78] sm:$0xff]
    %v1689 = vld [vmem:[#allocation3 + $0x80] sm:$0xff]
    %v1690 = vld [vmem:[#allocation3 + $0x88] sm:$0xff]
    %1709 = vrot.lane.b32.xlu0 %v1673, 126
    %v1710 = vpop.permute.xlu0 %1709
    %1711 = vrot.lane.b32.xlu0 %v1674, 126
    %v1712 = vpop.permute.xlu0 %1711
    %1713 = vrot.lane.b32.xlu0 %v1675, 126
    %v1714 = vpop.permute.xlu0 %1713
    %1715 = vrot.lane.b32.xlu0 %v1676, 126
    %v1716 = vpop.permute.xlu0 %1715
    %1717 = vrot.lane.b32.xlu0 %v1677, 126
    %v1718 = vpop.permute.xlu0 %1717
    %1719 = vrot.lane.b32.xlu0 %v1678, 126
    %v1720 = vpop.permute.xlu0 %1719
    %1721 = vrot.lane.b32.xlu0 %v1679, 126
    %v1722 = vpop.permute.xlu0 %1721
    %1723 = vrot.lane.b32.xlu0 %v1680, 126
    %v1724 = vpop.permute.xlu0 %1723
    %1725 = vrot.lane.b32.xlu0 %v1681, 126
    %v1726 = vpop.permute.xlu0 %1725
    %1727 = vrot.lane.b32.xlu0 %v1682, 126
    %v1728 = vpop.permute.xlu0 %1727
    %1729 = vrot.lane.b32.xlu0 %v1683, 126
    %v1730 = vpop.permute.xlu0 %1729
    %1731 = vrot.lane.b32.xlu0 %v1684, 126
    %v1732 = vpop.permute.xlu0 %1731
    %1733 = vrot.lane.b32.xlu0 %v1685, 126
    %v1734 = vpop.permute.xlu0 %1733
    %1735 = vrot.lane.b32.xlu0 %v1686, 126
    %v1736 = vpop.permute.xlu0 %1735
    %1737 = vrot.lane.b32.xlu0 %v1687, 126
    %v1738 = vpop.permute.xlu0 %1737
    %1739 = vrot.lane.b32.xlu0 %v1688, 126
    %v1740 = vpop.permute.xlu0 %1739
    %1741 = vrot.lane.b32.xlu0 %v1689, 126
    %v1742 = vpop.permute.xlu0 %1741
    %1743 = vrot.lane.b32.xlu0 %v1690, 126
    %v1744 = vpop.permute.xlu0 %1743
    %v1745 = vsel %vm102, %v1710, %v1712
    %v1746 = vsel %vm102, %v1712, %v1714
    %v1747 = vsel %vm102, %v1714, %v1716
    %v1748 = vsel %vm102, %v1716, %v1718
    %v1749 = vsel %vm102, %v1718, %v1720
    %v1750 = vsel %vm102, %v1720, %v1722
    %v1751 = vsel %vm102, %v1722, %v1724
    %v1752 = vsel %vm102, %v1724, %v1726
    %v1753 = vsel %vm102, %v1726, %v1728
    %v1754 = vsel %vm102, %v1728, %v1730
    %v1755 = vsel %vm102, %v1730, %v1732
    %v1756 = vsel %vm102, %v1732, %v1734
    %v1757 = vsel %vm102, %v1734, %v1736
    %v1758 = vsel %vm102, %v1736, %v1738
    %v1759 = vsel %vm102, %v1738, %v1740
    %v1760 = vsel %vm102, %v1740, %v1742
    %v1761 = vsel %vm102, %v1742, %v1744
    %1779 = vst [vmem:[#allocation4 + $0x88] sm:$0xff] %v1745
    %1780 = vst [vmem:[#allocation4 + $0x90] sm:$0xff] %v1746
    %1781 = vst [vmem:[#allocation4 + $0x98] sm:$0xff] %v1747
    %1782 = vst [vmem:[#allocation4 + $0xa0] sm:$0xff] %v1748
    %1783 = vst [vmem:[#allocation4 + $0xa8] sm:$0xff] %v1749
    %1784 = vst [vmem:[#allocation4 + $0xb0] sm:$0xff] %v1750
    %1785 = vst [vmem:[#allocation4 + $0xb8] sm:$0xff] %v1751
    %1786 = vst [vmem:[#allocation4 + $0xc0] sm:$0xff] %v1752
    %1787 = vst [vmem:[#allocation4 + $0xc8] sm:$0xff] %v1753
    %1788 = vst [vmem:[#allocation4 + $0xd0] sm:$0xff] %v1754
    %1789 = vst [vmem:[#allocation4 + $0xd8] sm:$0xff] %v1755
    %1790 = vst [vmem:[#allocation4 + $0xe0] sm:$0xff] %v1756
    %1791 = vst [vmem:[#allocation4 + $0xe8] sm:$0xff] %v1757
    %1792 = vst [vmem:[#allocation4 + $0xf0] sm:$0xff] %v1758
    %1793 = vst [vmem:[#allocation4 + $0xf8] sm:$0xff] %v1759
    %1794 = vst [vmem:[#allocation4 + $0x100] sm:$0xff] %v1760
    %1795 = vst [vmem:[#allocation4 + $0x108] sm:$0xff] %v1761
    %v1796 = vld [vmem:[#allocation3] sm:$0xff]
    %v1797 = vld [vmem:[#allocation3 + $0x8] sm:$0xff]
    %v1798 = vld [vmem:[#allocation3 + $0x10] sm:$0xff]
    %v1799 = vld [vmem:[#allocation3 + $0x18] sm:$0xff]
    %v1800 = vld [vmem:[#allocation3 + $0x20] sm:$0xff]
    %v1801 = vld [vmem:[#allocation3 + $0x28] sm:$0xff]
    %v1802 = vld [vmem:[#allocation3 + $0x30] sm:$0xff]
    %v1803 = vld [vmem:[#allocation3 + $0x38] sm:$0xff]
    %v1804 = vld [vmem:[#allocation3 + $0x40] sm:$0xff]
    %v1805 = vld [vmem:[#allocation3 + $0x48] sm:$0xff]
    %v1806 = vld [vmem:[#allocation3 + $0x50] sm:$0xff]
    %v1807 = vld [vmem:[#allocation3 + $0x58] sm:$0xff]
    %v1808 = vld [vmem:[#allocation3 + $0x60] sm:$0xff]
    %v1809 = vld [vmem:[#allocation3 + $0x68] sm:$0xff]
    %v1810 = vld [vmem:[#allocation3 + $0x70] sm:$0xff]
    %v1811 = vld [vmem:[#allocation3 + $0x78] sm:$0xff]
    %v1812 = vld [vmem:[#allocation3 + $0x80] sm:$0xff]
    %v1813 = vld [vmem:[#allocation3 + $0x88] sm:$0xff]
    %1832 = vrot.lane.b32.xlu0 %v1796, 124
    %v1833 = vpop.permute.xlu0 %1832
    %1834 = vrot.lane.b32.xlu0 %v1797, 124
    %v1835 = vpop.permute.xlu0 %1834
    %1836 = vrot.lane.b32.xlu0 %v1798, 124
    %v1837 = vpop.permute.xlu0 %1836
    %1838 = vrot.lane.b32.xlu0 %v1799, 124
    %v1839 = vpop.permute.xlu0 %1838
    %1840 = vrot.lane.b32.xlu0 %v1800, 124
    %v1841 = vpop.permute.xlu0 %1840
    %1842 = vrot.lane.b32.xlu0 %v1801, 124
    %v1843 = vpop.permute.xlu0 %1842
    %1844 = vrot.lane.b32.xlu0 %v1802, 124
    %v1845 = vpop.permute.xlu0 %1844
    %1846 = vrot.lane.b32.xlu0 %v1803, 124
    %v1847 = vpop.permute.xlu0 %1846
    %1848 = vrot.lane.b32.xlu0 %v1804, 124
    %v1849 = vpop.permute.xlu0 %1848
    %1850 = vrot.lane.b32.xlu0 %v1805, 124
    %v1851 = vpop.permute.xlu0 %1850
    %1852 = vrot.lane.b32.xlu0 %v1806, 124
    %v1853 = vpop.permute.xlu0 %1852
    %1854 = vrot.lane.b32.xlu0 %v1807, 124
    %v1855 = vpop.permute.xlu0 %1854
    %1856 = vrot.lane.b32.xlu0 %v1808, 124
    %v1857 = vpop.permute.xlu0 %1856
    %1858 = vrot.lane.b32.xlu0 %v1809, 124
    %v1859 = vpop.permute.xlu0 %1858
    %1860 = vrot.lane.b32.xlu0 %v1810, 124
    %v1861 = vpop.permute.xlu0 %1860
    %1862 = vrot.lane.b32.xlu0 %v1811, 124
    %v1863 = vpop.permute.xlu0 %1862
    %1864 = vrot.lane.b32.xlu0 %v1812, 124
    %v1865 = vpop.permute.xlu0 %1864
    %1866 = vrot.lane.b32.xlu0 %v1813, 124
    %v1867 = vpop.permute.xlu0 %1866
    %v1868 = vsel %vm156, %v1833, %v1835
    %v1869 = vsel %vm156, %v1835, %v1837
    %v1870 = vsel %vm156, %v1837, %v1839
    %v1871 = vsel %vm156, %v1839, %v1841
    %v1872 = vsel %vm156, %v1841, %v1843
    %v1873 = vsel %vm156, %v1843, %v1845
    %v1874 = vsel %vm156, %v1845, %v1847
    %v1875 = vsel %vm156, %v1847, %v1849
    %v1876 = vsel %vm156, %v1849, %v1851
    %v1877 = vsel %vm156, %v1851, %v1853
    %v1878 = vsel %vm156, %v1853, %v1855
    %v1879 = vsel %vm156, %v1855, %v1857
    %v1880 = vsel %vm156, %v1857, %v1859
    %v1881 = vsel %vm156, %v1859, %v1861
    %v1882 = vsel %vm156, %v1861, %v1863
    %v1883 = vsel %vm156, %v1863, %v1865
    %v1884 = vsel %vm156, %v1865, %v1867
    %1902 = vst [vmem:[#allocation4 + $0x110] sm:$0xff] %v1868
    %1903 = vst [vmem:[#allocation4 + $0x118] sm:$0xff] %v1869
    %1904 = vst [vmem:[#allocation4 + $0x120] sm:$0xff] %v1870
    %1905 = vst [vmem:[#allocation4 + $0x128] sm:$0xff] %v1871
    %1906 = vst [vmem:[#allocation4 + $0x130] sm:$0xff] %v1872
    %1907 = vst [vmem:[#allocation4 + $0x138] sm:$0xff] %v1873
    %1908 = vst [vmem:[#allocation4 + $0x140] sm:$0xff] %v1874
    %1909 = vst [vmem:[#allocation4 + $0x148] sm:$0xff] %v1875
    %1910 = vst [vmem:[#allocation4 + $0x150] sm:$0xff] %v1876
    %1911 = vst [vmem:[#allocation4 + $0x158] sm:$0xff] %v1877
    %1912 = vst [vmem:[#allocation4 + $0x160] sm:$0xff] %v1878
    %1913 = vst [vmem:[#allocation4 + $0x168] sm:$0xff] %v1879
    %1914 = vst [vmem:[#allocation4 + $0x170] sm:$0xff] %v1880
    %1915 = vst [vmem:[#allocation4 + $0x178] sm:$0xff] %v1881
    %1916 = vst [vmem:[#allocation4 + $0x180] sm:$0xff] %v1882
    %1917 = vst [vmem:[#allocation4 + $0x188] sm:$0xff] %v1883
    %1918 = vst [vmem:[#allocation4 + $0x190] sm:$0xff] %v1884
    %v1919 = vld [vmem:[#allocation3] sm:$0xff]
    %v1920 = vld [vmem:[#allocation3 + $0x8] sm:$0xff]
    %v1921 = vld [vmem:[#allocation3 + $0x10] sm:$0xff]
    %v1922 = vld [vmem:[#allocation3 + $0x18] sm:$0xff]
    %v1923 = vld [vmem:[#allocation3 + $0x20] sm:$0xff]
    %v1924 = vld [vmem:[#allocation3 + $0x28] sm:$0xff]
    %v1925 = vld [vmem:[#allocation3 + $0x30] sm:$0xff]
    %v1926 = vld [vmem:[#allocation3 + $0x38] sm:$0xff]
    %v1927 = vld [vmem:[#allocation3 + $0x40] sm:$0xff]
    %v1928 = vld [vmem:[#allocation3 + $0x48] sm:$0xff]
    %v1929 = vld [vmem:[#allocation3 + $0x50] sm:$0xff]
    %v1930 = vld [vmem:[#allocation3 + $0x58] sm:$0xff]
    %v1931 = vld [vmem:[#allocation3 + $0x60] sm:$0xff]
    %v1932 = vld [vmem:[#allocation3 + $0x68] sm:$0xff]
    %v1933 = vld [vmem:[#allocation3 + $0x70] sm:$0xff]
    %v1934 = vld [vmem:[#allocation3 + $0x78] sm:$0xff]
    %v1935 = vld [vmem:[#allocation3 + $0x80] sm:$0xff]
    %v1936 = vld [vmem:[#allocation3 + $0x88] sm:$0xff]
    %1955 = vrot.lane.b32.xlu0 %v1919, 122
    %v1956 = vpop.permute.xlu0 %1955
    %1957 = vrot.lane.b32.xlu0 %v1920, 122
    %v1958 = vpop.permute.xlu0 %1957
    %1959 = vrot.lane.b32.xlu0 %v1921, 122
    %v1960 = vpop.permute.xlu0 %1959
    %1961 = vrot.lane.b32.xlu0 %v1922, 122
    %v1962 = vpop.permute.xlu0 %1961
    %1963 = vrot.lane.b32.xlu0 %v1923, 122
    %v1964 = vpop.permute.xlu0 %1963
    %1965 = vrot.lane.b32.xlu0 %v1924, 122
    %v1966 = vpop.permute.xlu0 %1965
    %1967 = vrot.lane.b32.xlu0 %v1925, 122
    %v1968 = vpop.permute.xlu0 %1967
    %1969 = vrot.lane.b32.xlu0 %v1926, 122
    %v1970 = vpop.permute.xlu0 %1969
    %1971 = vrot.lane.b32.xlu0 %v1927, 122
    %v1972 = vpop.permute.xlu0 %1971
    %1973 = vrot.lane.b32.xlu0 %v1928, 122
    %v1974 = vpop.permute.xlu0 %1973
    %1975 = vrot.lane.b32.xlu0 %v1929, 122
    %v1976 = vpop.permute.xlu0 %1975
    %1977 = vrot.lane.b32.xlu0 %v1930, 122
    %v1978 = vpop.permute.xlu0 %1977
    %1979 = vrot.lane.b32.xlu0 %v1931, 122
    %v1980 = vpop.permute.xlu0 %1979
    %1981 = vrot.lane.b32.xlu0 %v1932, 122
    %v1982 = vpop.permute.xlu0 %1981
    %1983 = vrot.lane.b32.xlu0 %v1933, 122
    %v1984 = vpop.permute.xlu0 %1983
    %1985 = vrot.lane.b32.xlu0 %v1934, 122
    %v1986 = vpop.permute.xlu0 %1985
    %1987 = vrot.lane.b32.xlu0 %v1935, 122
    %v1988 = vpop.permute.xlu0 %1987
    %1989 = vrot.lane.b32.xlu0 %v1936, 122
    %v1990 = vpop.permute.xlu0 %1989
    %vm1991 = vcmask 998400
    %v1992 = vsel %vm1991, %v1956, %v1958
    %v1993 = vsel %vm1991, %v1958, %v1960
    %v1994 = vsel %vm1991, %v1960, %v1962
    %v1995 = vsel %vm1991, %v1962, %v1964
    %v1996 = vsel %vm1991, %v1964, %v1966
    %v1997 = vsel %vm1991, %v1966, %v1968
    %v1998 = vsel %vm1991, %v1968, %v1970
    %v1999 = vsel %vm1991, %v1970, %v1972
    %v2000 = vsel %vm1991, %v1972, %v1974
    %v2001 = vsel %vm1991, %v1974, %v1976
    %v2002 = vsel %vm1991, %v1976, %v1978
    %v2003 = vsel %vm1991, %v1978, %v1980
    %v2004 = vsel %vm1991, %v1980, %v1982
    %v2005 = vsel %vm1991, %v1982, %v1984
    %v2006 = vsel %vm1991, %v1984, %v1986
    %v2007 = vsel %vm1991, %v1986, %v1988
    %v2008 = vsel %vm1991, %v1988, %v1990
    %2026 = vst [vmem:[#allocation4 + $0x198] sm:$0xff] %v1992
    %2027 = vst [vmem:[#allocation4 + $0x1a0] sm:$0xff] %v1993
    %2028 = vst [vmem:[#allocation4 + $0x1a8] sm:$0xff] %v1994
    %2029 = vst [vmem:[#allocation4 + $0x1b0] sm:$0xff] %v1995
    %2030 = vst [vmem:[#allocation4 + $0x1b8] sm:$0xff] %v1996
    %2031 = vst [vmem:[#allocation4 + $0x1c0] sm:$0xff] %v1997
    %2032 = vst [vmem:[#allocation4 + $0x1c8] sm:$0xff] %v1998
    %2033 = vst [vmem:[#allocation4 + $0x1d0] sm:$0xff] %v1999
    %2034 = vst [vmem:[#allocation4 + $0x1d8] sm:$0xff] %v2000
    %2035 = vst [vmem:[#allocation4 + $0x1e0] sm:$0xff] %v2001
    %2036 = vst [vmem:[#allocation4 + $0x1e8] sm:$0xff] %v2002
    %2037 = vst [vmem:[#allocation4 + $0x1f0] sm:$0xff] %v2003
    %2038 = vst [vmem:[#allocation4 + $0x1f8] sm:$0xff] %v2004
    %2039 = vst [vmem:[#allocation4 + $0x200] sm:$0xff] %v2005
    %2040 = vst [vmem:[#allocation4 + $0x208] sm:$0xff] %v2006
    %2041 = vst [vmem:[#allocation4 + $0x210] sm:$0xff] %v2007
    %2042 = vst [vmem:[#allocation4 + $0x218] sm:$0xff] %v2008
    %v2043 = vld [vmem:[#allocation3] sm:$0xff]
    %v2044 = vld [vmem:[#allocation3 + $0x8] sm:$0xff]
    %v2045 = vld [vmem:[#allocation3 + $0x10] sm:$0xff]
    %v2046 = vld [vmem:[#allocation3 + $0x18] sm:$0xff]
    %v2047 = vld [vmem:[#allocation3 + $0x20] sm:$0xff]
    %v2048 = vld [vmem:[#allocation3 + $0x28] sm:$0xff]
    %v2049 = vld [vmem:[#allocation3 + $0x30] sm:$0xff]
    %v2050 = vld [vmem:[#allocation3 + $0x38] sm:$0xff]
    %v2051 = vld [vmem:[#allocation3 + $0x40] sm:$0xff]
    %v2052 = vld [vmem:[#allocation3 + $0x48] sm:$0xff]
    %v2053 = vld [vmem:[#allocation3 + $0x50] sm:$0xff]
    %v2054 = vld [vmem:[#allocation3 + $0x58] sm:$0xff]
    %v2055 = vld [vmem:[#allocation3 + $0x60] sm:$0xff]
    %v2056 = vld [vmem:[#allocation3 + $0x68] sm:$0xff]
    %v2057 = vld [vmem:[#allocation3 + $0x70] sm:$0xff]
    %v2058 = vld [vmem:[#allocation3 + $0x78] sm:$0xff]
    %v2059 = vld [vmem:[#allocation3 + $0x80] sm:$0xff]
    %v2060 = vld [vmem:[#allocation3 + $0x88] sm:$0xff]
    %2079 = vrot.lane.b32.xlu0 %v2043, 120
    %v2080 = vpop.permute.xlu0 %2079
    %2081 = vrot.lane.b32.xlu0 %v2044, 120
    %v2082 = vpop.permute.xlu0 %2081
    %2083 = vrot.lane.b32.xlu0 %v2045, 120
    %v2084 = vpop.permute.xlu0 %2083
    %2085 = vrot.lane.b32.xlu0 %v2046, 120
    %v2086 = vpop.permute.xlu0 %2085
    %2087 = vrot.lane.b32.xlu0 %v2047, 120
    %v2088 = vpop.permute.xlu0 %2087
    %2089 = vrot.lane.b32.xlu0 %v2048, 120
    %v2090 = vpop.permute.xlu0 %2089
    %2091 = vrot.lane.b32.xlu0 %v2049, 120
    %v2092 = vpop.permute.xlu0 %2091
    %2093 = vrot.lane.b32.xlu0 %v2050, 120
    %v2094 = vpop.permute.xlu0 %2093
    %2095 = vrot.lane.b32.xlu0 %v2051, 120
    %v2096 = vpop.permute.xlu0 %2095
    %2097 = vrot.lane.b32.xlu0 %v2052, 120
    %v2098 = vpop.permute.xlu0 %2097
    %2099 = vrot.lane.b32.xlu0 %v2053, 120
    %v2100 = vpop.permute.xlu0 %2099
    %2101 = vrot.lane.b32.xlu0 %v2054, 120
    %v2102 = vpop.permute.xlu0 %2101
    %2103 = vrot.lane.b32.xlu0 %v2055, 120
    %v2104 = vpop.permute.xlu0 %2103
    %2105 = vrot.lane.b32.xlu0 %v2056, 120
    %v2106 = vpop.permute.xlu0 %2105
    %2107 = vrot.lane.b32.xlu0 %v2057, 120
    %v2108 = vpop.permute.xlu0 %2107
    %2109 = vrot.lane.b32.xlu0 %v2058, 120
    %v2110 = vpop.permute.xlu0 %2109
    %2111 = vrot.lane.b32.xlu0 %v2059, 120
    %v2112 = vpop.permute.xlu0 %2111
    %2113 = vrot.lane.b32.xlu0 %v2060, 120
    %v2114 = vpop.permute.xlu0 %2113
    %vm2115 = vcmask 982016
    %v2116 = vsel %vm2115, %v2080, %v2082
    %v2117 = vsel %vm2115, %v2082, %v2084
    %v2118 = vsel %vm2115, %v2084, %v2086
    %v2119 = vsel %vm2115, %v2086, %v2088
    %v2120 = vsel %vm2115, %v2088, %v2090
    %v2121 = vsel %vm2115, %v2090, %v2092
    %v2122 = vsel %vm2115, %v2092, %v2094
    %v2123 = vsel %vm2115, %v2094, %v2096
    %v2124 = vsel %vm2115, %v2096, %v2098
    %v2125 = vsel %vm2115, %v2098, %v2100
    %v2126 = vsel %vm2115, %v2100, %v2102
    %v2127 = vsel %vm2115, %v2102, %v2104
    %v2128 = vsel %vm2115, %v2104, %v2106
    %v2129 = vsel %vm2115, %v2106, %v2108
    %v2130 = vsel %vm2115, %v2108, %v2110
    %v2131 = vsel %vm2115, %v2110, %v2112
    %v2132 = vsel %vm2115, %v2112, %v2114
    %2150 = vst [vmem:[#allocation4 + $0x220] sm:$0xff] %v2116
    %2151 = vst [vmem:[#allocation4 + $0x228] sm:$0xff] %v2117
    %2152 = vst [vmem:[#allocation4 + $0x230] sm:$0xff] %v2118
    %2153 = vst [vmem:[#allocation4 + $0x238] sm:$0xff] %v2119
    %2154 = vst [vmem:[#allocation4 + $0x240] sm:$0xff] %v2120
    %2155 = vst [vmem:[#allocation4 + $0x248] sm:$0xff] %v2121
    %2156 = vst [vmem:[#allocation4 + $0x250] sm:$0xff] %v2122
    %2157 = vst [vmem:[#allocation4 + $0x258] sm:$0xff] %v2123
    %2158 = vst [vmem:[#allocation4 + $0x260] sm:$0xff] %v2124
    %2159 = vst [vmem:[#allocation4 + $0x268] sm:$0xff] %v2125
    %2160 = vst [vmem:[#allocation4 + $0x270] sm:$0xff] %v2126
    %2161 = vst [vmem:[#allocation4 + $0x278] sm:$0xff] %v2127
    %2162 = vst [vmem:[#allocation4 + $0x280] sm:$0xff] %v2128
    %2163 = vst [vmem:[#allocation4 + $0x288] sm:$0xff] %v2129
    %2164 = vst [vmem:[#allocation4 + $0x290] sm:$0xff] %v2130
    %2165 = vst [vmem:[#allocation4 + $0x298] sm:$0xff] %v2131
    %2166 = vst [vmem:[#allocation4 + $0x2a0] sm:$0xff] %v2132
    %v2167 = vld [vmem:[#allocation3] sm:$0xff]
    %v2168 = vld [vmem:[#allocation3 + $0x8] sm:$0xff]
    %v2169 = vld [vmem:[#allocation3 + $0x10] sm:$0xff]
    %v2170 = vld [vmem:[#allocation3 + $0x18] sm:$0xff]
    %v2171 = vld [vmem:[#allocation3 + $0x20] sm:$0xff]
    %v2172 = vld [vmem:[#allocation3 + $0x28] sm:$0xff]
    %v2173 = vld [vmem:[#allocation3 + $0x30] sm:$0xff]
    %v2174 = vld [vmem:[#allocation3 + $0x38] sm:$0xff]
    %v2175 = vld [vmem:[#allocation3 + $0x40] sm:$0xff]
    %v2176 = vld [vmem:[#allocation3 + $0x48] sm:$0xff]
    %v2177 = vld [vmem:[#allocation3 + $0x50] sm:$0xff]
    %v2178 = vld [vmem:[#allocation3 + $0x58] sm:$0xff]
    %v2179 = vld [vmem:[#allocation3 + $0x60] sm:$0xff]
    %v2180 = vld [vmem:[#allocation3 + $0x68] sm:$0xff]
    %v2181 = vld [vmem:[#allocation3 + $0x70] sm:$0xff]
    %v2182 = vld [vmem:[#allocation3 + $0x78] sm:$0xff]
    %v2183 = vld [vmem:[#allocation3 + $0x80] sm:$0xff]
    %v2184 = vld [vmem:[#allocation3 + $0x88] sm:$0xff]
    %2203 = vrot.lane.b32.xlu0 %v2167, 64
    %v2204 = vpop.permute.xlu0 %2203
    %2205 = vrot.lane.b32.xlu0 %v2168, 64
    %v2206 = vpop.permute.xlu0 %2205
    %2207 = vrot.lane.b32.xlu0 %v2169, 64
    %v2208 = vpop.permute.xlu0 %2207
    %2209 = vrot.lane.b32.xlu0 %v2170, 64
    %v2210 = vpop.permute.xlu0 %2209
    %2211 = vrot.lane.b32.xlu0 %v2171, 64
    %v2212 = vpop.permute.xlu0 %2211
    %2213 = vrot.lane.b32.xlu0 %v2172, 64
    %v2214 = vpop.permute.xlu0 %2213
    %2215 = vrot.lane.b32.xlu0 %v2173, 64
    %v2216 = vpop.permute.xlu0 %2215
    %2217 = vrot.lane.b32.xlu0 %v2174, 64
    %v2218 = vpop.permute.xlu0 %2217
    %2219 = vrot.lane.b32.xlu0 %v2175, 64
    %v2220 = vpop.permute.xlu0 %2219
    %2221 = vrot.lane.b32.xlu0 %v2176, 64
    %v2222 = vpop.permute.xlu0 %2221
    %2223 = vrot.lane.b32.xlu0 %v2177, 64
    %v2224 = vpop.permute.xlu0 %2223
    %2225 = vrot.lane.b32.xlu0 %v2178, 64
    %v2226 = vpop.permute.xlu0 %2225
    %2227 = vrot.lane.b32.xlu0 %v2179, 64
    %v2228 = vpop.permute.xlu0 %2227
    %2229 = vrot.lane.b32.xlu0 %v2180, 64
    %v2230 = vpop.permute.xlu0 %2229
    %2231 = vrot.lane.b32.xlu0 %v2181, 64
    %v2232 = vpop.permute.xlu0 %2231
    %2233 = vrot.lane.b32.xlu0 %v2182, 64
    %v2234 = vpop.permute.xlu0 %2233
    %2235 = vrot.lane.b32.xlu0 %v2183, 64
    %v2236 = vpop.permute.xlu0 %2235
    %2237 = vrot.lane.b32.xlu0 %v2184, 64
    %v2238 = vpop.permute.xlu0 %2237
    %v2239 = vsel %vm318, %v2204, %v2206
    %v2240 = vsel %vm318, %v2206, %v2208
    %v2241 = vsel %vm318, %v2208, %v2210
    %v2242 = vsel %vm318, %v2210, %v2212
    %v2243 = vsel %vm318, %v2212, %v2214
    %v2244 = vsel %vm318, %v2214, %v2216
    %v2245 = vsel %vm318, %v2216, %v2218
    %v2246 = vsel %vm318, %v2218, %v2220
    %v2247 = vsel %vm318, %v2220, %v2222
    %v2248 = vsel %vm318, %v2222, %v2224
    %v2249 = vsel %vm318, %v2224, %v2226
    %v2250 = vsel %vm318, %v2226, %v2228
    %v2251 = vsel %vm318, %v2228, %v2230
    %v2252 = vsel %vm318, %v2230, %v2232
    %v2253 = vsel %vm318, %v2232, %v2234
    %v2254 = vsel %vm318, %v2234, %v2236
    %v2255 = vsel %vm318, %v2236, %v2238
    %2273 = vst [vmem:[#allocation4 + $0x2a8] sm:$0xff] %v2239
    %2274 = vst [vmem:[#allocation4 + $0x2b0] sm:$0xff] %v2240
    %2275 = vst [vmem:[#allocation4 + $0x2b8] sm:$0xff] %v2241
    %2276 = vst [vmem:[#allocation4 + $0x2c0] sm:$0xff] %v2242
    %2277 = vst [vmem:[#allocation4 + $0x2c8] sm:$0xff] %v2243
    %2278 = vst [vmem:[#allocation4 + $0x2d0] sm:$0xff] %v2244
    %2279 = vst [vmem:[#allocation4 + $0x2d8] sm:$0xff] %v2245
    %2280 = vst [vmem:[#allocation4 + $0x2e0] sm:$0xff] %v2246
    %2281 = vst [vmem:[#allocation4 + $0x2e8] sm:$0xff] %v2247
    %2282 = vst [vmem:[#allocation4 + $0x2f0] sm:$0xff] %v2248
    %2283 = vst [vmem:[#allocation4 + $0x2f8] sm:$0xff] %v2249
    %2284 = vst [vmem:[#allocation4 + $0x300] sm:$0xff] %v2250
    %2285 = vst [vmem:[#allocation4 + $0x308] sm:$0xff] %v2251
    %2286 = vst [vmem:[#allocation4 + $0x310] sm:$0xff] %v2252
    %2287 = vst [vmem:[#allocation4 + $0x318] sm:$0xff] %v2253
    %2288 = vst [vmem:[#allocation4 + $0x320] sm:$0xff] %v2254
    %2289 = vst [vmem:[#allocation4 + $0x328] sm:$0xff] %v2255
    %v2290 = vld [vmem:[#allocation3] sm:$0xff]
    %v2291 = vld [vmem:[#allocation3 + $0x8] sm:$0xff]
    %v2292 = vld [vmem:[#allocation3 + $0x10] sm:$0xff]
    %v2293 = vld [vmem:[#allocation3 + $0x18] sm:$0xff]
    %v2294 = vld [vmem:[#allocation3 + $0x20] sm:$0xff]
    %v2295 = vld [vmem:[#allocation3 + $0x28] sm:$0xff]
    %v2296 = vld [vmem:[#allocation3 + $0x30] sm:$0xff]
    %v2297 = vld [vmem:[#allocation3 + $0x38] sm:$0xff]
    %v2298 = vld [vmem:[#allocation3 + $0x40] sm:$0xff]
    %v2299 = vld [vmem:[#allocation3 + $0x48] sm:$0xff]
    %v2300 = vld [vmem:[#allocation3 + $0x50] sm:$0xff]
    %v2301 = vld [vmem:[#allocation3 + $0x58] sm:$0xff]
    %v2302 = vld [vmem:[#allocation3 + $0x60] sm:$0xff]
    %v2303 = vld [vmem:[#allocation3 + $0x68] sm:$0xff]
    %v2304 = vld [vmem:[#allocation3 + $0x70] sm:$0xff]
    %v2305 = vld [vmem:[#allocation3 + $0x78] sm:$0xff]
    %v2306 = vld [vmem:[#allocation3 + $0x80] sm:$0xff]
    %v2307 = vld [vmem:[#allocation3 + $0x88] sm:$0xff]
    %2326 = vrot.lane.b32.xlu0 %v2290, 62
    %v2327 = vpop.permute.xlu0 %2326
    %2328 = vrot.lane.b32.xlu0 %v2291, 62
    %v2329 = vpop.permute.xlu0 %2328
    %2330 = vrot.lane.b32.xlu0 %v2292, 62
    %v2331 = vpop.permute.xlu0 %2330
    %2332 = vrot.lane.b32.xlu0 %v2293, 62
    %v2333 = vpop.permute.xlu0 %2332
    %2334 = vrot.lane.b32.xlu0 %v2294, 62
    %v2335 = vpop.permute.xlu0 %2334
    %2336 = vrot.lane.b32.xlu0 %v2295, 62
    %v2337 = vpop.permute.xlu0 %2336
    %2338 = vrot.lane.b32.xlu0 %v2296, 62
    %v2339 = vpop.permute.xlu0 %2338
    %2340 = vrot.lane.b32.xlu0 %v2297, 62
    %v2341 = vpop.permute.xlu0 %2340
    %2342 = vrot.lane.b32.xlu0 %v2298, 62
    %v2343 = vpop.permute.xlu0 %2342
    %2344 = vrot.lane.b32.xlu0 %v2299, 62
    %v2345 = vpop.permute.xlu0 %2344
    %2346 = vrot.lane.b32.xlu0 %v2300, 62
    %v2347 = vpop.permute.xlu0 %2346
    %2348 = vrot.lane.b32.xlu0 %v2301, 62
    %v2349 = vpop.permute.xlu0 %2348
    %2350 = vrot.lane.b32.xlu0 %v2302, 62
    %v2351 = vpop.permute.xlu0 %2350
    %2352 = vrot.lane.b32.xlu0 %v2303, 62
    %v2353 = vpop.permute.xlu0 %2352
    %2354 = vrot.lane.b32.xlu0 %v2304, 62
    %v2355 = vpop.permute.xlu0 %2354
    %2356 = vrot.lane.b32.xlu0 %v2305, 62
    %v2357 = vpop.permute.xlu0 %2356
    %2358 = vrot.lane.b32.xlu0 %v2306, 62
    %v2359 = vpop.permute.xlu0 %2358
    %2360 = vrot.lane.b32.xlu0 %v2307, 62
    %v2361 = vpop.permute.xlu0 %2360
    %v2362 = vsel %vm372, %v2327, %v2329
    %v2363 = vsel %vm372, %v2329, %v2331
    %v2364 = vsel %vm372, %v2331, %v2333
    %v2365 = vsel %vm372, %v2333, %v2335
    %v2366 = vsel %vm372, %v2335, %v2337
    %v2367 = vsel %vm372, %v2337, %v2339
    %v2368 = vsel %vm372, %v2339, %v2341
    %v2369 = vsel %vm372, %v2341, %v2343
    %v2370 = vsel %vm372, %v2343, %v2345
    %v2371 = vsel %vm372, %v2345, %v2347
    %v2372 = vsel %vm372, %v2347, %v2349
    %v2373 = vsel %vm372, %v2349, %v2351
    %v2374 = vsel %vm372, %v2351, %v2353
    %v2375 = vsel %vm372, %v2353, %v2355
    %v2376 = vsel %vm372, %v2355, %v2357
    %v2377 = vsel %vm372, %v2357, %v2359
    %v2378 = vsel %vm372, %v2359, %v2361
    %2396 = vst [vmem:[#allocation4 + $0x330] sm:$0xff] %v2362
    %2397 = vst [vmem:[#allocation4 + $0x338] sm:$0xff] %v2363
    %2398 = vst [vmem:[#allocation4 + $0x340] sm:$0xff] %v2364
    %2399 = vst [vmem:[#allocation4 + $0x348] sm:$0xff] %v2365
    %2400 = vst [vmem:[#allocation4 + $0x350] sm:$0xff] %v2366
    %2401 = vst [vmem:[#allocation4 + $0x358] sm:$0xff] %v2367
    %2402 = vst [vmem:[#allocation4 + $0x360] sm:$0xff] %v2368
    %2403 = vst [vmem:[#allocation4 + $0x368] sm:$0xff] %v2369
    %2404 = vst [vmem:[#allocation4 + $0x370] sm:$0xff] %v2370
    %2405 = vst [vmem:[#allocation4 + $0x378] sm:$0xff] %v2371
    %2406 = vst [vmem:[#allocation4 + $0x380] sm:$0xff] %v2372
    %2407 = vst [vmem:[#allocation4 + $0x388] sm:$0xff] %v2373
    %2408 = vst [vmem:[#allocation4 + $0x390] sm:$0xff] %v2374
    %2409 = vst [vmem:[#allocation4 + $0x398] sm:$0xff] %v2375
    %2410 = vst [vmem:[#allocation4 + $0x3a0] sm:$0xff] %v2376
    %2411 = vst [vmem:[#allocation4 + $0x3a8] sm:$0xff] %v2377
    %2412 = vst [vmem:[#allocation4 + $0x3b0] sm:$0xff] %v2378
    %v2413 = vld [vmem:[#allocation3] sm:$0xff]
    %v2414 = vld [vmem:[#allocation3 + $0x8] sm:$0xff]
    %v2415 = vld [vmem:[#allocation3 + $0x10] sm:$0xff]
    %v2416 = vld [vmem:[#allocation3 + $0x18] sm:$0xff]
    %v2417 = vld [vmem:[#allocation3 + $0x20] sm:$0xff]
    %v2418 = vld [vmem:[#allocation3 + $0x28] sm:$0xff]
    %v2419 = vld [vmem:[#allocation3 + $0x30] sm:$0xff]
    %v2420 = vld [vmem:[#allocation3 + $0x38] sm:$0xff]
    %v2421 = vld [vmem:[#allocation3 + $0x40] sm:$0xff]
    %v2422 = vld [vmem:[#allocation3 + $0x48] sm:$0xff]
    %v2423 = vld [vmem:[#allocation3 + $0x50] sm:$0xff]
    %v2424 = vld [vmem:[#allocation3 + $0x58] sm:$0xff]
    %v2425 = vld [vmem:[#allocation3 + $0x60] sm:$0xff]
    %v2426 = vld [vmem:[#allocation3 + $0x68] sm:$0xff]
    %v2427 = vld [vmem:[#allocation3 + $0x70] sm:$0xff]
    %v2428 = vld [vmem:[#allocation3 + $0x78] sm:$0xff]
    %v2429 = vld [vmem:[#allocation3 + $0x80] sm:$0xff]
    %v2430 = vld [vmem:[#allocation3 + $0x88] sm:$0xff]
    %2449 = vrot.lane.b32.xlu0 %v2413, 60
    %v2450 = vpop.permute.xlu0 %2449
    %2451 = vrot.lane.b32.xlu0 %v2414, 60
    %v2452 = vpop.permute.xlu0 %2451
    %2453 = vrot.lane.b32.xlu0 %v2415, 60
    %v2454 = vpop.permute.xlu0 %2453
    %2455 = vrot.lane.b32.xlu0 %v2416, 60
    %v2456 = vpop.permute.xlu0 %2455
    %2457 = vrot.lane.b32.xlu0 %v2417, 60
    %v2458 = vpop.permute.xlu0 %2457
    %2459 = vrot.lane.b32.xlu0 %v2418, 60
    %v2460 = vpop.permute.xlu0 %2459
    %2461 = vrot.lane.b32.xlu0 %v2419, 60
    %v2462 = vpop.permute.xlu0 %2461
    %2463 = vrot.lane.b32.xlu0 %v2420, 60
    %v2464 = vpop.permute.xlu0 %2463
    %2465 = vrot.lane.b32.xlu0 %v2421, 60
    %v2466 = vpop.permute.xlu0 %2465
    %2467 = vrot.lane.b32.xlu0 %v2422, 60
    %v2468 = vpop.permute.xlu0 %2467
    %2469 = vrot.lane.b32.xlu0 %v2423, 60
    %v2470 = vpop.permute.xlu0 %2469
    %2471 = vrot.lane.b32.xlu0 %v2424, 60
    %v2472 = vpop.permute.xlu0 %2471
    %2473 = vrot.lane.b32.xlu0 %v2425, 60
    %v2474 = vpop.permute.xlu0 %2473
    %2475 = vrot.lane.b32.xlu0 %v2426, 60
    %v2476 = vpop.permute.xlu0 %2475
    %2477 = vrot.lane.b32.xlu0 %v2427, 60
    %v2478 = vpop.permute.xlu0 %2477
    %2479 = vrot.lane.b32.xlu0 %v2428, 60
    %v2480 = vpop.permute.xlu0 %2479
    %2481 = vrot.lane.b32.xlu0 %v2429, 60
    %v2482 = vpop.permute.xlu0 %2481
    %2483 = vrot.lane.b32.xlu0 %v2430, 60
    %v2484 = vpop.permute.xlu0 %2483
    %v2485 = vsel %vm426, %v2450, %v2452
    %v2486 = vsel %vm426, %v2452, %v2454
    %v2487 = vsel %vm426, %v2454, %v2456
    %v2488 = vsel %vm426, %v2456, %v2458
    %v2489 = vsel %vm426, %v2458, %v2460
    %v2490 = vsel %vm426, %v2460, %v2462
    %v2491 = vsel %vm426, %v2462, %v2464
    %v2492 = vsel %vm426, %v2464, %v2466
    %v2493 = vsel %vm426, %v2466, %v2468
    %v2494 = vsel %vm426, %v2468, %v2470
    %v2495 = vsel %vm426, %v2470, %v2472
    %v2496 = vsel %vm426, %v2472, %v2474
    %v2497 = vsel %vm426, %v2474, %v2476
    %v2498 = vsel %vm426, %v2476, %v2478
    %v2499 = vsel %vm426, %v2478, %v2480
    %v2500 = vsel %vm426, %v2480, %v2482
    %v2501 = vsel %vm426, %v2482, %v2484
    %2519 = vst [vmem:[#allocation4 + $0x3b8] sm:$0xff] %v2485
    %2520 = vst [vmem:[#allocation4 + $0x3c0] sm:$0xff] %v2486
    %2521 = vst [vmem:[#allocation4 + $0x3c8] sm:$0xff] %v2487
    %2522 = vst [vmem:[#allocation4 + $0x3d0] sm:$0xff] %v2488
    %2523 = vst [vmem:[#allocation4 + $0x3d8] sm:$0xff] %v2489
    %2524 = vst [vmem:[#allocation4 + $0x3e0] sm:$0xff] %v2490
    %2525 = vst [vmem:[#allocation4 + $0x3e8] sm:$0xff] %v2491
    %2526 = vst [vmem:[#allocation4 + $0x3f0] sm:$0xff] %v2492
    %2527 = vst [vmem:[#allocation4 + $0x3f8] sm:$0xff] %v2493
    %2528 = vst [vmem:[#allocation4 + $0x400] sm:$0xff] %v2494
    %2529 = vst [vmem:[#allocation4 + $0x408] sm:$0xff] %v2495
    %2530 = vst [vmem:[#allocation4 + $0x410] sm:$0xff] %v2496
    %2531 = vst [vmem:[#allocation4 + $0x418] sm:$0xff] %v2497
    %2532 = vst [vmem:[#allocation4 + $0x420] sm:$0xff] %v2498
    %2533 = vst [vmem:[#allocation4 + $0x428] sm:$0xff] %v2499
    %2534 = vst [vmem:[#allocation4 + $0x430] sm:$0xff] %v2500
    %2535 = vst [vmem:[#allocation4 + $0x438] sm:$0xff] %v2501
    %v2536 = vld [vmem:[#allocation3] sm:$0xff]
    %v2537 = vld [vmem:[#allocation3 + $0x8] sm:$0xff]
    %v2538 = vld [vmem:[#allocation3 + $0x10] sm:$0xff]
    %v2539 = vld [vmem:[#allocation3 + $0x18] sm:$0xff]
    %v2540 = vld [vmem:[#allocation3 + $0x20] sm:$0xff]
    %v2541 = vld [vmem:[#allocation3 + $0x28] sm:$0xff]
    %v2542 = vld [vmem:[#allocation3 + $0x30] sm:$0xff]
    %v2543 = vld [vmem:[#allocation3 + $0x38] sm:$0xff]
    %v2544 = vld [vmem:[#allocation3 + $0x40] sm:$0xff]
    %v2545 = vld [vmem:[#allocation3 + $0x48] sm:$0xff]
    %v2546 = vld [vmem:[#allocation3 + $0x50] sm:$0xff]
    %v2547 = vld [vmem:[#allocation3 + $0x58] sm:$0xff]
    %v2548 = vld [vmem:[#allocation3 + $0x60] sm:$0xff]
    %v2549 = vld [vmem:[#allocation3 + $0x68] sm:$0xff]
    %v2550 = vld [vmem:[#allocation3 + $0x70] sm:$0xff]
    %v2551 = vld [vmem:[#allocation3 + $0x78] sm:$0xff]
    %v2552 = vld [vmem:[#allocation3 + $0x80] sm:$0xff]
    %v2553 = vld [vmem:[#allocation3 + $0x88] sm:$0xff]
    %2572 = vrot.lane.b32.xlu0 %v2536, 58
    %v2573 = vpop.permute.xlu0 %2572
    %2574 = vrot.lane.b32.xlu0 %v2537, 58
    %v2575 = vpop.permute.xlu0 %2574
    %2576 = vrot.lane.b32.xlu0 %v2538, 58
    %v2577 = vpop.permute.xlu0 %2576
    %2578 = vrot.lane.b32.xlu0 %v2539, 58
    %v2579 = vpop.permute.xlu0 %2578
    %2580 = vrot.lane.b32.xlu0 %v2540, 58
    %v2581 = vpop.permute.xlu0 %2580
    %2582 = vrot.lane.b32.xlu0 %v2541, 58
    %v2583 = vpop.permute.xlu0 %2582
    %2584 = vrot.lane.b32.xlu0 %v2542, 58
    %v2585 = vpop.permute.xlu0 %2584
    %2586 = vrot.lane.b32.xlu0 %v2543, 58
    %v2587 = vpop.permute.xlu0 %2586
    %2588 = vrot.lane.b32.xlu0 %v2544, 58
    %v2589 = vpop.permute.xlu0 %2588
    %2590 = vrot.lane.b32.xlu0 %v2545, 58
    %v2591 = vpop.permute.xlu0 %2590
    %2592 = vrot.lane.b32.xlu0 %v2546, 58
    %v2593 = vpop.permute.xlu0 %2592
    %2594 = vrot.lane.b32.xlu0 %v2547, 58
    %v2595 = vpop.permute.xlu0 %2594
    %2596 = vrot.lane.b32.xlu0 %v2548, 58
    %v2597 = vpop.permute.xlu0 %2596
    %2598 = vrot.lane.b32.xlu0 %v2549, 58
    %v2599 = vpop.permute.xlu0 %2598
    %2600 = vrot.lane.b32.xlu0 %v2550, 58
    %v2601 = vpop.permute.xlu0 %2600
    %2602 = vrot.lane.b32.xlu0 %v2551, 58
    %v2603 = vpop.permute.xlu0 %2602
    %2604 = vrot.lane.b32.xlu0 %v2552, 58
    %v2605 = vpop.permute.xlu0 %2604
    %2606 = vrot.lane.b32.xlu0 %v2553, 58
    %v2607 = vpop.permute.xlu0 %2606
    %vm2608 = vcmask 474112
    %v2609 = vsel %vm2608, %v2573, %v2575
    %v2610 = vsel %vm2608, %v2575, %v2577
    %v2611 = vsel %vm2608, %v2577, %v2579
    %v2612 = vsel %vm2608, %v2579, %v2581
    %v2613 = vsel %vm2608, %v2581, %v2583
    %v2614 = vsel %vm2608, %v2583, %v2585
    %v2615 = vsel %vm2608, %v2585, %v2587
    %v2616 = vsel %vm2608, %v2587, %v2589
    %v2617 = vsel %vm2608, %v2589, %v2591
    %v2618 = vsel %vm2608, %v2591, %v2593
    %v2619 = vsel %vm2608, %v2593, %v2595
    %v2620 = vsel %vm2608, %v2595, %v2597
    %v2621 = vsel %vm2608, %v2597, %v2599
    %v2622 = vsel %vm2608, %v2599, %v2601
    %v2623 = vsel %vm2608, %v2601, %v2603
    %v2624 = vsel %vm2608, %v2603, %v2605
    %v2625 = vsel %vm2608, %v2605, %v2607
    %2643 = vst [vmem:[#allocation4 + $0x440] sm:$0xff] %v2609
    %2644 = vst [vmem:[#allocation4 + $0x448] sm:$0xff] %v2610
    %2645 = vst [vmem:[#allocation4 + $0x450] sm:$0xff] %v2611
    %2646 = vst [vmem:[#allocation4 + $0x458] sm:$0xff] %v2612
    %2647 = vst [vmem:[#allocation4 + $0x460] sm:$0xff] %v2613
    %2648 = vst [vmem:[#allocation4 + $0x468] sm:$0xff] %v2614
    %2649 = vst [vmem:[#allocation4 + $0x470] sm:$0xff] %v2615
    %2650 = vst [vmem:[#allocation4 + $0x478] sm:$0xff] %v2616
    %2651 = vst [vmem:[#allocation4 + $0x480] sm:$0xff] %v2617
    %2652 = vst [vmem:[#allocation4 + $0x488] sm:$0xff] %v2618
    %2653 = vst [vmem:[#allocation4 + $0x490] sm:$0xff] %v2619
    %2654 = vst [vmem:[#allocation4 + $0x498] sm:$0xff] %v2620
    %2655 = vst [vmem:[#allocation4 + $0x4a0] sm:$0xff] %v2621
    %2656 = vst [vmem:[#allocation4 + $0x4a8] sm:$0xff] %v2622
    %2657 = vst [vmem:[#allocation4 + $0x4b0] sm:$0xff] %v2623
    %2658 = vst [vmem:[#allocation4 + $0x4b8] sm:$0xff] %v2624
    %2659 = vst [vmem:[#allocation4 + $0x4c0] sm:$0xff] %v2625
    %v2660 = vld [vmem:[#allocation3] sm:$0xff]
    %v2661 = vld [vmem:[#allocation3 + $0x8] sm:$0xff]
    %v2662 = vld [vmem:[#allocation3 + $0x10] sm:$0xff]
    %v2663 = vld [vmem:[#allocation3 + $0x18] sm:$0xff]
    %v2664 = vld [vmem:[#allocation3 + $0x20] sm:$0xff]
    %v2665 = vld [vmem:[#allocation3 + $0x28] sm:$0xff]
    %v2666 = vld [vmem:[#allocation3 + $0x30] sm:$0xff]
    %v2667 = vld [vmem:[#allocation3 + $0x38] sm:$0xff]
    %v2668 = vld [vmem:[#allocation3 + $0x40] sm:$0xff]
    %v2669 = vld [vmem:[#allocation3 + $0x48] sm:$0xff]
    %v2670 = vld [vmem:[#allocation3 + $0x50] sm:$0xff]
    %v2671 = vld [vmem:[#allocation3 + $0x58] sm:$0xff]
    %v2672 = vld [vmem:[#allocation3 + $0x60] sm:$0xff]
    %v2673 = vld [vmem:[#allocation3 + $0x68] sm:$0xff]
    %v2674 = vld [vmem:[#allocation3 + $0x70] sm:$0xff]
    %v2675 = vld [vmem:[#allocation3 + $0x78] sm:$0xff]
    %v2676 = vld [vmem:[#allocation3 + $0x80] sm:$0xff]
    %v2677 = vld [vmem:[#allocation3 + $0x88] sm:$0xff]
    %2696 = vrot.lane.b32.xlu0 %v2660, 56
    %v2697 = vpop.permute.xlu0 %2696
    %2698 = vrot.lane.b32.xlu0 %v2661, 56
    %v2699 = vpop.permute.xlu0 %2698
    %2700 = vrot.lane.b32.xlu0 %v2662, 56
    %v2701 = vpop.permute.xlu0 %2700
    %2702 = vrot.lane.b32.xlu0 %v2663, 56
    %v2703 = vpop.permute.xlu0 %2702
    %2704 = vrot.lane.b32.xlu0 %v2664, 56
    %v2705 = vpop.permute.xlu0 %2704
    %2706 = vrot.lane.b32.xlu0 %v2665, 56
    %v2707 = vpop.permute.xlu0 %2706
    %2708 = vrot.lane.b32.xlu0 %v2666, 56
    %v2709 = vpop.permute.xlu0 %2708
    %2710 = vrot.lane.b32.xlu0 %v2667, 56
    %v2711 = vpop.permute.xlu0 %2710
    %2712 = vrot.lane.b32.xlu0 %v2668, 56
    %v2713 = vpop.permute.xlu0 %2712
    %2714 = vrot.lane.b32.xlu0 %v2669, 56
    %v2715 = vpop.permute.xlu0 %2714
    %2716 = vrot.lane.b32.xlu0 %v2670, 56
    %v2717 = vpop.permute.xlu0 %2716
    %2718 = vrot.lane.b32.xlu0 %v2671, 56
    %v2719 = vpop.permute.xlu0 %2718
    %2720 = vrot.lane.b32.xlu0 %v2672, 56
    %v2721 = vpop.permute.xlu0 %2720
    %2722 = vrot.lane.b32.xlu0 %v2673, 56
    %v2723 = vpop.permute.xlu0 %2722
    %2724 = vrot.lane.b32.xlu0 %v2674, 56
    %v2725 = vpop.permute.xlu0 %2724
    %2726 = vrot.lane.b32.xlu0 %v2675, 56
    %v2727 = vpop.permute.xlu0 %2726
    %2728 = vrot.lane.b32.xlu0 %v2676, 56
    %v2729 = vpop.permute.xlu0 %2728
    %2730 = vrot.lane.b32.xlu0 %v2677, 56
    %v2731 = vpop.permute.xlu0 %2730
    %vm2732 = vcmask 457728
    %v2733 = vsel %vm2732, %v2697, %v2699
    %v2734 = vsel %vm2732, %v2699, %v2701
    %v2735 = vsel %vm2732, %v2701, %v2703
    %v2736 = vsel %vm2732, %v2703, %v2705
    %v2737 = vsel %vm2732, %v2705, %v2707
    %v2738 = vsel %vm2732, %v2707, %v2709
    %v2739 = vsel %vm2732, %v2709, %v2711
    %v2740 = vsel %vm2732, %v2711, %v2713
    %v2741 = vsel %vm2732, %v2713, %v2715
    %v2742 = vsel %vm2732, %v2715, %v2717
    %v2743 = vsel %vm2732, %v2717, %v2719
    %v2744 = vsel %vm2732, %v2719, %v2721
    %v2745 = vsel %vm2732, %v2721, %v2723
    %v2746 = vsel %vm2732, %v2723, %v2725
    %v2747 = vsel %vm2732, %v2725, %v2727
    %v2748 = vsel %vm2732, %v2727, %v2729
    %v2749 = vsel %vm2732, %v2729, %v2731
    %2767 = vst [vmem:[#allocation4 + $0x4c8] sm:$0xff] %v2733
    %2768 = vst [vmem:[#allocation4 + $0x4d0] sm:$0xff] %v2734
    %2769 = vst [vmem:[#allocation4 + $0x4d8] sm:$0xff] %v2735
    %2770 = vst [vmem:[#allocation4 + $0x4e0] sm:$0xff] %v2736
    %2771 = vst [vmem:[#allocation4 + $0x4e8] sm:$0xff] %v2737
    %2772 = vst [vmem:[#allocation4 + $0x4f0] sm:$0xff] %v2738
    %2773 = vst [vmem:[#allocation4 + $0x4f8] sm:$0xff] %v2739
    %2774 = vst [vmem:[#allocation4 + $0x500] sm:$0xff] %v2740
    %2775 = vst [vmem:[#allocation4 + $0x508] sm:$0xff] %v2741
    %2776 = vst [vmem:[#allocation4 + $0x510] sm:$0xff] %v2742
    %2777 = vst [vmem:[#allocation4 + $0x518] sm:$0xff] %v2743
    %2778 = vst [vmem:[#allocation4 + $0x520] sm:$0xff] %v2744
    %2779 = vst [vmem:[#allocation4 + $0x528] sm:$0xff] %v2745
    %2780 = vst [vmem:[#allocation4 + $0x530] sm:$0xff] %v2746
    %2781 = vst [vmem:[#allocation4 + $0x538] sm:$0xff] %v2747
    %2782 = vst [vmem:[#allocation4 + $0x540] sm:$0xff] %v2748
    %2783 = vst [vmem:[#allocation4 + $0x548] sm:$0xff] %v2749
    %v2784 = vld [vmem:[#allocation3 + $0x8] sm:$0xff]
    %v2785 = vld [vmem:[#allocation3 + $0x10] sm:$0xff]
    %v2786 = vld [vmem:[#allocation3 + $0x18] sm:$0xff]
    %v2787 = vld [vmem:[#allocation3 + $0x20] sm:$0xff]
    %v2788 = vld [vmem:[#allocation3 + $0x28] sm:$0xff]
    %v2789 = vld [vmem:[#allocation3 + $0x30] sm:$0xff]
    %v2790 = vld [vmem:[#allocation3 + $0x38] sm:$0xff]
    %v2791 = vld [vmem:[#allocation3 + $0x40] sm:$0xff]
    %v2792 = vld [vmem:[#allocation3 + $0x48] sm:$0xff]
    %v2793 = vld [vmem:[#allocation3 + $0x50] sm:$0xff]
    %v2794 = vld [vmem:[#allocation3 + $0x58] sm:$0xff]
    %v2795 = vld [vmem:[#allocation3 + $0x60] sm:$0xff]
    %v2796 = vld [vmem:[#allocation3 + $0x68] sm:$0xff]
    %v2797 = vld [vmem:[#allocation3 + $0x70] sm:$0xff]
    %v2798 = vld [vmem:[#allocation3 + $0x78] sm:$0xff]
    %v2799 = vld [vmem:[#allocation3 + $0x80] sm:$0xff]
    %v2800 = vld [vmem:[#allocation3 + $0x88] sm:$0xff]
    %2801 = vst [vmem:[#allocation4 + $0x550] sm:$0xff] %v2784
    %2802 = vst [vmem:[#allocation4 + $0x558] sm:$0xff] %v2785
    %2803 = vst [vmem:[#allocation4 + $0x560] sm:$0xff] %v2786
    %2804 = vst [vmem:[#allocation4 + $0x568] sm:$0xff] %v2787
    %2805 = vst [vmem:[#allocation4 + $0x570] sm:$0xff] %v2788
    %2806 = vst [vmem:[#allocation4 + $0x578] sm:$0xff] %v2789
    %2807 = vst [vmem:[#allocation4 + $0x580] sm:$0xff] %v2790
    %2808 = vst [vmem:[#allocation4 + $0x588] sm:$0xff] %v2791
    %2809 = vst [vmem:[#allocation4 + $0x590] sm:$0xff] %v2792
    %2810 = vst [vmem:[#allocation4 + $0x598] sm:$0xff] %v2793
    %2811 = vst [vmem:[#allocation4 + $0x5a0] sm:$0xff] %v2794
    %2812 = vst [vmem:[#allocation4 + $0x5a8] sm:$0xff] %v2795
    %2813 = vst [vmem:[#allocation4 + $0x5b0] sm:$0xff] %v2796
    %2814 = vst [vmem:[#allocation4 + $0x5b8] sm:$0xff] %v2797
    %2815 = vst [vmem:[#allocation4 + $0x5c0] sm:$0xff] %v2798
    %2816 = vst [vmem:[#allocation4 + $0x5c8] sm:$0xff] %v2799
    %2817 = vst [vmem:[#allocation4 + $0x5d0] sm:$0xff] %v2800
    %v2818 = vld [vmem:[#allocation3 + $0x8] sm:$0xff]
    %v2819 = vld [vmem:[#allocation3 + $0x10] sm:$0xff]
    %v2820 = vld [vmem:[#allocation3 + $0x18] sm:$0xff]
    %v2821 = vld [vmem:[#allocation3 + $0x20] sm:$0xff]
    %v2822 = vld [vmem:[#allocation3 + $0x28] sm:$0xff]
    %v2823 = vld [vmem:[#allocation3 + $0x30] sm:$0xff]
    %v2824 = vld [vmem:[#allocation3 + $0x38] sm:$0xff]
    %v2825 = vld [vmem:[#allocation3 + $0x40] sm:$0xff]
    %v2826 = vld [vmem:[#allocation3 + $0x48] sm:$0xff]
    %v2827 = vld [vmem:[#allocation3 + $0x50] sm:$0xff]
    %v2828 = vld [vmem:[#allocation3 + $0x58] sm:$0xff]
    %v2829 = vld [vmem:[#allocation3 + $0x60] sm:$0xff]
    %v2830 = vld [vmem:[#allocation3 + $0x68] sm:$0xff]
    %v2831 = vld [vmem:[#allocation3 + $0x70] sm:$0xff]
    %v2832 = vld [vmem:[#allocation3 + $0x78] sm:$0xff]
    %v2833 = vld [vmem:[#allocation3 + $0x80] sm:$0xff]
    %v2834 = vld [vmem:[#allocation3 + $0x88] sm:$0xff]
    %v2835 = vld [vmem:[#allocation3 + $0x90] sm:$0xff]
    %2854 = vrot.lane.b32.xlu0 %v2818, 126
    %v2855 = vpop.permute.xlu0 %2854
    %2856 = vrot.lane.b32.xlu0 %v2819, 126
    %v2857 = vpop.permute.xlu0 %2856
    %2858 = vrot.lane.b32.xlu0 %v2820, 126
    %v2859 = vpop.permute.xlu0 %2858
    %2860 = vrot.lane.b32.xlu0 %v2821, 126
    %v2861 = vpop.permute.xlu0 %2860
    %2862 = vrot.lane.b32.xlu0 %v2822, 126
    %v2863 = vpop.permute.xlu0 %2862
    %2864 = vrot.lane.b32.xlu0 %v2823, 126
    %v2865 = vpop.permute.xlu0 %2864
    %2866 = vrot.lane.b32.xlu0 %v2824, 126
    %v2867 = vpop.permute.xlu0 %2866
    %2868 = vrot.lane.b32.xlu0 %v2825, 126
    %v2869 = vpop.permute.xlu0 %2868
    %2870 = vrot.lane.b32.xlu0 %v2826, 126
    %v2871 = vpop.permute.xlu0 %2870
    %2872 = vrot.lane.b32.xlu0 %v2827, 126
    %v2873 = vpop.permute.xlu0 %2872
    %2874 = vrot.lane.b32.xlu0 %v2828, 126
    %v2875 = vpop.permute.xlu0 %2874
    %2876 = vrot.lane.b32.xlu0 %v2829, 126
    %v2877 = vpop.permute.xlu0 %2876
    %2878 = vrot.lane.b32.xlu0 %v2830, 126
    %v2879 = vpop.permute.xlu0 %2878
    %2880 = vrot.lane.b32.xlu0 %v2831, 126
    %v2881 = vpop.permute.xlu0 %2880
    %2882 = vrot.lane.b32.xlu0 %v2832, 126
    %v2883 = vpop.permute.xlu0 %2882
    %2884 = vrot.lane.b32.xlu0 %v2833, 126
    %v2885 = vpop.permute.xlu0 %2884
    %2886 = vrot.lane.b32.xlu0 %v2834, 126
    %v2887 = vpop.permute.xlu0 %2886
    %2888 = vrot.lane.b32.xlu0 %v2835, 126
    %v2889 = vpop.permute.xlu0 %2888
    %v2890 = vsel %vm102, %v2855, %v2857
    %v2891 = vsel %vm102, %v2857, %v2859
    %v2892 = vsel %vm102, %v2859, %v2861
    %v2893 = vsel %vm102, %v2861, %v2863
    %v2894 = vsel %vm102, %v2863, %v2865
    %v2895 = vsel %vm102, %v2865, %v2867
    %v2896 = vsel %vm102, %v2867, %v2869
    %v2897 = vsel %vm102, %v2869, %v2871
    %v2898 = vsel %vm102, %v2871, %v2873
    %v2899 = vsel %vm102, %v2873, %v2875
    %v2900 = vsel %vm102, %v2875, %v2877
    %v2901 = vsel %vm102, %v2877, %v2879
    %v2902 = vsel %vm102, %v2879, %v2881
    %v2903 = vsel %vm102, %v2881, %v2883
    %v2904 = vsel %vm102, %v2883, %v2885
    %v2905 = vsel %vm102, %v2885, %v2887
    %v2906 = vsel %vm102, %v2887, %v2889
    %2924 = vst [vmem:[#allocation4 + $0x5d8] sm:$0xff] %v2890
    %2925 = vst [vmem:[#allocation4 + $0x5e0] sm:$0xff] %v2891
    %2926 = vst [vmem:[#allocation4 + $0x5e8] sm:$0xff] %v2892
    %2927 = vst [vmem:[#allocation4 + $0x5f0] sm:$0xff] %v2893
    %2928 = vst [vmem:[#allocation4 + $0x5f8] sm:$0xff] %v2894
    %2929 = vst [vmem:[#allocation4 + $0x600] sm:$0xff] %v2895
    %2930 = vst [vmem:[#allocation4 + $0x608] sm:$0xff] %v2896
    %2931 = vst [vmem:[#allocation4 + $0x610] sm:$0xff] %v2897
    %2932 = vst [vmem:[#allocation4 + $0x618] sm:$0xff] %v2898
    %2933 = vst [vmem:[#allocation4 + $0x620] sm:$0xff] %v2899
    %2934 = vst [vmem:[#allocation4 + $0x628] sm:$0xff] %v2900
    %2935 = vst [vmem:[#allocation4 + $0x630] sm:$0xff] %v2901
    %2936 = vst [vmem:[#allocation4 + $0x638] sm:$0xff] %v2902
    %2937 = vst [vmem:[#allocation4 + $0x640] sm:$0xff] %v2903
    %2938 = vst [vmem:[#allocation4 + $0x648] sm:$0xff] %v2904
    %2939 = vst [vmem:[#allocation4 + $0x650] sm:$0xff] %v2905
    %2940 = vst [vmem:[#allocation4 + $0x658] sm:$0xff] %v2906
    %v2941 = vld [vmem:[#allocation3 + $0x8] sm:$0xff]
    %v2942 = vld [vmem:[#allocation3 + $0x10] sm:$0xff]
    %v2943 = vld [vmem:[#allocation3 + $0x18] sm:$0xff]
    %v2944 = vld [vmem:[#allocation3 + $0x20] sm:$0xff]
    %v2945 = vld [vmem:[#allocation3 + $0x28] sm:$0xff]
    %v2946 = vld [vmem:[#allocation3 + $0x30] sm:$0xff]
    %v2947 = vld [vmem:[#allocation3 + $0x38] sm:$0xff]
    %v2948 = vld [vmem:[#allocation3 + $0x40] sm:$0xff]
    %v2949 = vld [vmem:[#allocation3 + $0x48] sm:$0xff]
    %v2950 = vld [vmem:[#allocation3 + $0x50] sm:$0xff]
    %v2951 = vld [vmem:[#allocation3 + $0x58] sm:$0xff]
    %v2952 = vld [vmem:[#allocation3 + $0x60] sm:$0xff]
    %v2953 = vld [vmem:[#allocation3 + $0x68] sm:$0xff]
    %v2954 = vld [vmem:[#allocation3 + $0x70] sm:$0xff]
    %v2955 = vld [vmem:[#allocation3 + $0x78] sm:$0xff]
    %v2956 = vld [vmem:[#allocation3 + $0x80] sm:$0xff]
    %v2957 = vld [vmem:[#allocation3 + $0x88] sm:$0xff]
    %v2958 = vld [vmem:[#allocation3 + $0x90] sm:$0xff]
    %2977 = vrot.lane.b32.xlu0 %v2941, 124
    %v2978 = vpop.permute.xlu0 %2977
    %2979 = vrot.lane.b32.xlu0 %v2942, 124
    %v2980 = vpop.permute.xlu0 %2979
    %2981 = vrot.lane.b32.xlu0 %v2943, 124
    %v2982 = vpop.permute.xlu0 %2981
    %2983 = vrot.lane.b32.xlu0 %v2944, 124
    %v2984 = vpop.permute.xlu0 %2983
    %2985 = vrot.lane.b32.xlu0 %v2945, 124
    %v2986 = vpop.permute.xlu0 %2985
    %2987 = vrot.lane.b32.xlu0 %v2946, 124
    %v2988 = vpop.permute.xlu0 %2987
    %2989 = vrot.lane.b32.xlu0 %v2947, 124
    %v2990 = vpop.permute.xlu0 %2989
    %2991 = vrot.lane.b32.xlu0 %v2948, 124
    %v2992 = vpop.permute.xlu0 %2991
    %2993 = vrot.lane.b32.xlu0 %v2949, 124
    %v2994 = vpop.permute.xlu0 %2993
    %2995 = vrot.lane.b32.xlu0 %v2950, 124
    %v2996 = vpop.permute.xlu0 %2995
    %2997 = vrot.lane.b32.xlu0 %v2951, 124
    %v2998 = vpop.permute.xlu0 %2997
    %2999 = vrot.lane.b32.xlu0 %v2952, 124
    %v3000 = vpop.permute.xlu0 %2999
    %3001 = vrot.lane.b32.xlu0 %v2953, 124
    %v3002 = vpop.permute.xlu0 %3001
    %3003 = vrot.lane.b32.xlu0 %v2954, 124
    %v3004 = vpop.permute.xlu0 %3003
    %3005 = vrot.lane.b32.xlu0 %v2955, 124
    %v3006 = vpop.permute.xlu0 %3005
    %3007 = vrot.lane.b32.xlu0 %v2956, 124
    %v3008 = vpop.permute.xlu0 %3007
    %3009 = vrot.lane.b32.xlu0 %v2957, 124
    %v3010 = vpop.permute.xlu0 %3009
    %3011 = vrot.lane.b32.xlu0 %v2958, 124
    %v3012 = vpop.permute.xlu0 %3011
    %v3013 = vsel %vm156, %v2978, %v2980
    %v3014 = vsel %vm156, %v2980, %v2982
    %v3015 = vsel %vm156, %v2982, %v2984
    %v3016 = vsel %vm156, %v2984, %v2986
    %v3017 = vsel %vm156, %v2986, %v2988
    %v3018 = vsel %vm156, %v2988, %v2990
    %v3019 = vsel %vm156, %v2990, %v2992
    %v3020 = vsel %vm156, %v2992, %v2994
    %v3021 = vsel %vm156, %v2994, %v2996
    %v3022 = vsel %vm156, %v2996, %v2998
    %v3023 = vsel %vm156, %v2998, %v3000
    %v3024 = vsel %vm156, %v3000, %v3002
    %v3025 = vsel %vm156, %v3002, %v3004
    %v3026 = vsel %vm156, %v3004, %v3006
    %v3027 = vsel %vm156, %v3006, %v3008
    %v3028 = vsel %vm156, %v3008, %v3010
    %v3029 = vsel %vm156, %v3010, %v3012
    %3047 = vst [vmem:[#allocation4 + $0x660] sm:$0xff] %v3013
    %3048 = vst [vmem:[#allocation4 + $0x668] sm:$0xff] %v3014
    %3049 = vst [vmem:[#allocation4 + $0x670] sm:$0xff] %v3015
    %3050 = vst [vmem:[#allocation4 + $0x678] sm:$0xff] %v3016
    %3051 = vst [vmem:[#allocation4 + $0x680] sm:$0xff] %v3017
    %3052 = vst [vmem:[#allocation4 + $0x688] sm:$0xff] %v3018
    %3053 = vst [vmem:[#allocation4 + $0x690] sm:$0xff] %v3019
    %3054 = vst [vmem:[#allocation4 + $0x698] sm:$0xff] %v3020
    %3055 = vst [vmem:[#allocation4 + $0x6a0] sm:$0xff] %v3021
    %3056 = vst [vmem:[#allocation4 + $0x6a8] sm:$0xff] %v3022
    %3057 = vst [vmem:[#allocation4 + $0x6b0] sm:$0xff] %v3023
    %3058 = vst [vmem:[#allocation4 + $0x6b8] sm:$0xff] %v3024
    %3059 = vst [vmem:[#allocation4 + $0x6c0] sm:$0xff] %v3025
    %3060 = vst [vmem:[#allocation4 + $0x6c8] sm:$0xff] %v3026
    %3061 = vst [vmem:[#allocation4 + $0x6d0] sm:$0xff] %v3027
    %3062 = vst [vmem:[#allocation4 + $0x6d8] sm:$0xff] %v3028
    %3063 = vst [vmem:[#allocation4 + $0x6e0] sm:$0xff] %v3029
    %v3064 = vld [vmem:[#allocation3 + $0x8] sm:$0xff]
    %v3065 = vld [vmem:[#allocation3 + $0x10] sm:$0xff]
    %v3066 = vld [vmem:[#allocation3 + $0x18] sm:$0xff]
    %v3067 = vld [vmem:[#allocation3 + $0x20] sm:$0xff]
    %v3068 = vld [vmem:[#allocation3 + $0x28] sm:$0xff]
    %v3069 = vld [vmem:[#allocation3 + $0x30] sm:$0xff]
    %v3070 = vld [vmem:[#allocation3 + $0x38] sm:$0xff]
    %v3071 = vld [vmem:[#allocation3 + $0x40] sm:$0xff]
    %v3072 = vld [vmem:[#allocation3 + $0x48] sm:$0xff]
    %v3073 = vld [vmem:[#allocation3 + $0x50] sm:$0xff]
    %v3074 = vld [vmem:[#allocation3 + $0x58] sm:$0xff]
    %v3075 = vld [vmem:[#allocation3 + $0x60] sm:$0xff]
    %v3076 = vld [vmem:[#allocation3 + $0x68] sm:$0xff]
    %v3077 = vld [vmem:[#allocation3 + $0x70] sm:$0xff]
    %v3078 = vld [vmem:[#allocation3 + $0x78] sm:$0xff]
    %v3079 = vld [vmem:[#allocation3 + $0x80] sm:$0xff]
    %v3080 = vld [vmem:[#allocation3 + $0x88] sm:$0xff]
    %v3081 = vld [vmem:[#allocation3 + $0x90] sm:$0xff]
    %3100 = vrot.lane.b32.xlu0 %v3064, 122
    %v3101 = vpop.permute.xlu0 %3100
    %3102 = vrot.lane.b32.xlu0 %v3065, 122
    %v3103 = vpop.permute.xlu0 %3102
    %3104 = vrot.lane.b32.xlu0 %v3066, 122
    %v3105 = vpop.permute.xlu0 %3104
    %3106 = vrot.lane.b32.xlu0 %v3067, 122
    %v3107 = vpop.permute.xlu0 %3106
    %3108 = vrot.lane.b32.xlu0 %v3068, 122
    %v3109 = vpop.permute.xlu0 %3108
    %3110 = vrot.lane.b32.xlu0 %v3069, 122
    %v3111 = vpop.permute.xlu0 %3110
    %3112 = vrot.lane.b32.xlu0 %v3070, 122
    %v3113 = vpop.permute.xlu0 %3112
    %3114 = vrot.lane.b32.xlu0 %v3071, 122
    %v3115 = vpop.permute.xlu0 %3114
    %3116 = vrot.lane.b32.xlu0 %v3072, 122
    %v3117 = vpop.permute.xlu0 %3116
    %3118 = vrot.lane.b32.xlu0 %v3073, 122
    %v3119 = vpop.permute.xlu0 %3118
    %3120 = vrot.lane.b32.xlu0 %v3074, 122
    %v3121 = vpop.permute.xlu0 %3120
    %3122 = vrot.lane.b32.xlu0 %v3075, 122
    %v3123 = vpop.permute.xlu0 %3122
    %3124 = vrot.lane.b32.xlu0 %v3076, 122
    %v3125 = vpop.permute.xlu0 %3124
    %3126 = vrot.lane.b32.xlu0 %v3077, 122
    %v3127 = vpop.permute.xlu0 %3126
    %3128 = vrot.lane.b32.xlu0 %v3078, 122
    %v3129 = vpop.permute.xlu0 %3128
    %3130 = vrot.lane.b32.xlu0 %v3079, 122
    %v3131 = vpop.permute.xlu0 %3130
    %3132 = vrot.lane.b32.xlu0 %v3080, 122
    %v3133 = vpop.permute.xlu0 %3132
    %3134 = vrot.lane.b32.xlu0 %v3081, 122
    %v3135 = vpop.permute.xlu0 %3134
    %v3136 = vsel %vm1991, %v3101, %v3103
    %v3137 = vsel %vm1991, %v3103, %v3105
    %v3138 = vsel %vm1991, %v3105, %v3107
    %v3139 = vsel %vm1991, %v3107, %v3109
    %v3140 = vsel %vm1991, %v3109, %v3111
    %v3141 = vsel %vm1991, %v3111, %v3113
    %v3142 = vsel %vm1991, %v3113, %v3115
    %v3143 = vsel %vm1991, %v3115, %v3117
    %v3144 = vsel %vm1991, %v3117, %v3119
    %v3145 = vsel %vm1991, %v3119, %v3121
    %v3146 = vsel %vm1991, %v3121, %v3123
    %v3147 = vsel %vm1991, %v3123, %v3125
    %v3148 = vsel %vm1991, %v3125, %v3127
    %v3149 = vsel %vm1991, %v3127, %v3129
    %v3150 = vsel %vm1991, %v3129, %v3131
    %v3151 = vsel %vm1991, %v3131, %v3133
    %v3152 = vsel %vm1991, %v3133, %v3135
    %3170 = vst [vmem:[#allocation4 + $0x6e8] sm:$0xff] %v3136
    %3171 = vst [vmem:[#allocation4 + $0x6f0] sm:$0xff] %v3137
    %3172 = vst [vmem:[#allocation4 + $0x6f8] sm:$0xff] %v3138
    %3173 = vst [vmem:[#allocation4 + $0x700] sm:$0xff] %v3139
    %3174 = vst [vmem:[#allocation4 + $0x708] sm:$0xff] %v3140
    %3175 = vst [vmem:[#allocation4 + $0x710] sm:$0xff] %v3141
    %3176 = vst [vmem:[#allocation4 + $0x718] sm:$0xff] %v3142
    %3177 = vst [vmem:[#allocation4 + $0x720] sm:$0xff] %v3143
    %3178 = vst [vmem:[#allocation4 + $0x728] sm:$0xff] %v3144
    %3179 = vst [vmem:[#allocation4 + $0x730] sm:$0xff] %v3145
    %3180 = vst [vmem:[#allocation4 + $0x738] sm:$0xff] %v3146
    %3181 = vst [vmem:[#allocation4 + $0x740] sm:$0xff] %v3147
    %3182 = vst [vmem:[#allocation4 + $0x748] sm:$0xff] %v3148
    %3183 = vst [vmem:[#allocation4 + $0x750] sm:$0xff] %v3149
    %3184 = vst [vmem:[#allocation4 + $0x758] sm:$0xff] %v3150
    %3185 = vst [vmem:[#allocation4 + $0x760] sm:$0xff] %v3151
    %3186 = vst [vmem:[#allocation4 + $0x768] sm:$0xff] %v3152
    %v3187 = vld [vmem:[#allocation3 + $0x8] sm:$0xff]
    %v3188 = vld [vmem:[#allocation3 + $0x10] sm:$0xff]
    %v3189 = vld [vmem:[#allocation3 + $0x18] sm:$0xff]
    %v3190 = vld [vmem:[#allocation3 + $0x20] sm:$0xff]
    %v3191 = vld [vmem:[#allocation3 + $0x28] sm:$0xff]
    %v3192 = vld [vmem:[#allocation3 + $0x30] sm:$0xff]
    %v3193 = vld [vmem:[#allocation3 + $0x38] sm:$0xff]
    %v3194 = vld [vmem:[#allocation3 + $0x40] sm:$0xff]
    %v3195 = vld [vmem:[#allocation3 + $0x48] sm:$0xff]
    %v3196 = vld [vmem:[#allocation3 + $0x50] sm:$0xff]
    %v3197 = vld [vmem:[#allocation3 + $0x58] sm:$0xff]
    %v3198 = vld [vmem:[#allocation3 + $0x60] sm:$0xff]
    %v3199 = vld [vmem:[#allocation3 + $0x68] sm:$0xff]
    %v3200 = vld [vmem:[#allocation3 + $0x70] sm:$0xff]
    %v3201 = vld [vmem:[#allocation3 + $0x78] sm:$0xff]
    %v3202 = vld [vmem:[#allocation3 + $0x80] sm:$0xff]
    %v3203 = vld [vmem:[#allocation3 + $0x88] sm:$0xff]
    %v3204 = vld [vmem:[#allocation3 + $0x90] sm:$0xff]
    %3223 = vrot.lane.b32.xlu0 %v3187, 120
    %v3224 = vpop.permute.xlu0 %3223
    %3225 = vrot.lane.b32.xlu0 %v3188, 120
    %v3226 = vpop.permute.xlu0 %3225
    %3227 = vrot.lane.b32.xlu0 %v3189, 120
    %v3228 = vpop.permute.xlu0 %3227
    %3229 = vrot.lane.b32.xlu0 %v3190, 120
    %v3230 = vpop.permute.xlu0 %3229
    %3231 = vrot.lane.b32.xlu0 %v3191, 120
    %v3232 = vpop.permute.xlu0 %3231
    %3233 = vrot.lane.b32.xlu0 %v3192, 120
    %v3234 = vpop.permute.xlu0 %3233
    %3235 = vrot.lane.b32.xlu0 %v3193, 120
    %v3236 = vpop.permute.xlu0 %3235
    %3237 = vrot.lane.b32.xlu0 %v3194, 120
    %v3238 = vpop.permute.xlu0 %3237
    %3239 = vrot.lane.b32.xlu0 %v3195, 120
    %v3240 = vpop.permute.xlu0 %3239
    %3241 = vrot.lane.b32.xlu0 %v3196, 120
    %v3242 = vpop.permute.xlu0 %3241
    %3243 = vrot.lane.b32.xlu0 %v3197, 120
    %v3244 = vpop.permute.xlu0 %3243
    %3245 = vrot.lane.b32.xlu0 %v3198, 120
    %v3246 = vpop.permute.xlu0 %3245
    %3247 = vrot.lane.b32.xlu0 %v3199, 120
    %v3248 = vpop.permute.xlu0 %3247
    %3249 = vrot.lane.b32.xlu0 %v3200, 120
    %v3250 = vpop.permute.xlu0 %3249
    %3251 = vrot.lane.b32.xlu0 %v3201, 120
    %v3252 = vpop.permute.xlu0 %3251
    %3253 = vrot.lane.b32.xlu0 %v3202, 120
    %v3254 = vpop.permute.xlu0 %3253
    %3255 = vrot.lane.b32.xlu0 %v3203, 120
    %v3256 = vpop.permute.xlu0 %3255
    %3257 = vrot.lane.b32.xlu0 %v3204, 120
    %v3258 = vpop.permute.xlu0 %3257
    %v3259 = vsel %vm2115, %v3224, %v3226
    %v3260 = vsel %vm2115, %v3226, %v3228
    %v3261 = vsel %vm2115, %v3228, %v3230
    %v3262 = vsel %vm2115, %v3230, %v3232
    %v3263 = vsel %vm2115, %v3232, %v3234
    %v3264 = vsel %vm2115, %v3234, %v3236
    %v3265 = vsel %vm2115, %v3236, %v3238
    %v3266 = vsel %vm2115, %v3238, %v3240
    %v3267 = vsel %vm2115, %v3240, %v3242
    %v3268 = vsel %vm2115, %v3242, %v3244
    %v3269 = vsel %vm2115, %v3244, %v3246
    %v3270 = vsel %vm2115, %v3246, %v3248
    %v3271 = vsel %vm2115, %v3248, %v3250
    %v3272 = vsel %vm2115, %v3250, %v3252
    %v3273 = vsel %vm2115, %v3252, %v3254
    %v3274 = vsel %vm2115, %v3254, %v3256
    %v3275 = vsel %vm2115, %v3256, %v3258
    %3293 = vst [vmem:[#allocation4 + $0x770] sm:$0xff] %v3259
    %3294 = vst [vmem:[#allocation4 + $0x778] sm:$0xff] %v3260
    %3295 = vst [vmem:[#allocation4 + $0x780] sm:$0xff] %v3261
    %3296 = vst [vmem:[#allocation4 + $0x788] sm:$0xff] %v3262
    %3297 = vst [vmem:[#allocation4 + $0x790] sm:$0xff] %v3263
    %3298 = vst [vmem:[#allocation4 + $0x798] sm:$0xff] %v3264
    %3299 = vst [vmem:[#allocation4 + $0x7a0] sm:$0xff] %v3265
    %3300 = vst [vmem:[#allocation4 + $0x7a8] sm:$0xff] %v3266
    %3301 = vst [vmem:[#allocation4 + $0x7b0] sm:$0xff] %v3267
    %3302 = vst [vmem:[#allocation4 + $0x7b8] sm:$0xff] %v3268
    %3303 = vst [vmem:[#allocation4 + $0x7c0] sm:$0xff] %v3269
    %3304 = vst [vmem:[#allocation4 + $0x7c8] sm:$0xff] %v3270
    %3305 = vst [vmem:[#allocation4 + $0x7d0] sm:$0xff] %v3271
    %3306 = vst [vmem:[#allocation4 + $0x7d8] sm:$0xff] %v3272
    %3307 = vst [vmem:[#allocation4 + $0x7e0] sm:$0xff] %v3273
    %3308 = vst [vmem:[#allocation4 + $0x7e8] sm:$0xff] %v3274
    %3309 = vst [vmem:[#allocation4 + $0x7f0] sm:$0xff] %v3275
    %v3310 = vld [vmem:[#allocation3 + $0x8] sm:$0xff]
    %v3311 = vld [vmem:[#allocation3 + $0x10] sm:$0xff]
    %v3312 = vld [vmem:[#allocation3 + $0x18] sm:$0xff]
    %v3313 = vld [vmem:[#allocation3 + $0x20] sm:$0xff]
    %v3314 = vld [vmem:[#allocation3 + $0x28] sm:$0xff]
    %v3315 = vld [vmem:[#allocation3 + $0x30] sm:$0xff]
    %v3316 = vld [vmem:[#allocation3 + $0x38] sm:$0xff]
    %v3317 = vld [vmem:[#allocation3 + $0x40] sm:$0xff]
    %v3318 = vld [vmem:[#allocation3 + $0x48] sm:$0xff]
    %v3319 = vld [vmem:[#allocation3 + $0x50] sm:$0xff]
    %v3320 = vld [vmem:[#allocation3 + $0x58] sm:$0xff]
    %v3321 = vld [vmem:[#allocation3 + $0x60] sm:$0xff]
    %v3322 = vld [vmem:[#allocation3 + $0x68] sm:$0xff]
    %v3323 = vld [vmem:[#allocation3 + $0x70] sm:$0xff]
    %v3324 = vld [vmem:[#allocation3 + $0x78] sm:$0xff]
    %v3325 = vld [vmem:[#allocation3 + $0x80] sm:$0xff]
    %v3326 = vld [vmem:[#allocation3 + $0x88] sm:$0xff]
    %v3327 = vld [vmem:[#allocation3 + $0x90] sm:$0xff]
    %3346 = vrot.lane.b32.xlu0 %v3310, 64
    %v3347 = vpop.permute.xlu0 %3346
    %3348 = vrot.lane.b32.xlu0 %v3311, 64
    %v3349 = vpop.permute.xlu0 %3348
    %3350 = vrot.lane.b32.xlu0 %v3312, 64
    %v3351 = vpop.permute.xlu0 %3350
    %3352 = vrot.lane.b32.xlu0 %v3313, 64
    %v3353 = vpop.permute.xlu0 %3352
    %3354 = vrot.lane.b32.xlu0 %v3314, 64
    %v3355 = vpop.permute.xlu0 %3354
    %3356 = vrot.lane.b32.xlu0 %v3315, 64
    %v3357 = vpop.permute.xlu0 %3356
    %3358 = vrot.lane.b32.xlu0 %v3316, 64
    %v3359 = vpop.permute.xlu0 %3358
    %3360 = vrot.lane.b32.xlu0 %v3317, 64
    %v3361 = vpop.permute.xlu0 %3360
    %3362 = vrot.lane.b32.xlu0 %v3318, 64
    %v3363 = vpop.permute.xlu0 %3362
    %3364 = vrot.lane.b32.xlu0 %v3319, 64
    %v3365 = vpop.permute.xlu0 %3364
    %3366 = vrot.lane.b32.xlu0 %v3320, 64
    %v3367 = vpop.permute.xlu0 %3366
    %3368 = vrot.lane.b32.xlu0 %v3321, 64
    %v3369 = vpop.permute.xlu0 %3368
    %3370 = vrot.lane.b32.xlu0 %v3322, 64
    %v3371 = vpop.permute.xlu0 %3370
    %3372 = vrot.lane.b32.xlu0 %v3323, 64
    %v3373 = vpop.permute.xlu0 %3372
    %3374 = vrot.lane.b32.xlu0 %v3324, 64
    %v3375 = vpop.permute.xlu0 %3374
    %3376 = vrot.lane.b32.xlu0 %v3325, 64
    %v3377 = vpop.permute.xlu0 %3376
    %3378 = vrot.lane.b32.xlu0 %v3326, 64
    %v3379 = vpop.permute.xlu0 %3378
    %3380 = vrot.lane.b32.xlu0 %v3327, 64
    %v3381 = vpop.permute.xlu0 %3380
    %v3382 = vsel %vm318, %v3347, %v3349
    %v3383 = vsel %vm318, %v3349, %v3351
    %v3384 = vsel %vm318, %v3351, %v3353
    %v3385 = vsel %vm318, %v3353, %v3355
    %v3386 = vsel %vm318, %v3355, %v3357
    %v3387 = vsel %vm318, %v3357, %v3359
    %v3388 = vsel %vm318, %v3359, %v3361
    %v3389 = vsel %vm318, %v3361, %v3363
    %v3390 = vsel %vm318, %v3363, %v3365
    %v3391 = vsel %vm318, %v3365, %v3367
    %v3392 = vsel %vm318, %v3367, %v3369
    %v3393 = vsel %vm318, %v3369, %v3371
    %v3394 = vsel %vm318, %v3371, %v3373
    %v3395 = vsel %vm318, %v3373, %v3375
    %v3396 = vsel %vm318, %v3375, %v3377
    %v3397 = vsel %vm318, %v3377, %v3379
    %v3398 = vsel %vm318, %v3379, %v3381
    %3416 = vst [vmem:[#allocation4 + $0x7f8] sm:$0xff] %v3382
    %3417 = vst [vmem:[#allocation4 + $0x800] sm:$0xff] %v3383
    %3418 = vst [vmem:[#allocation4 + $0x808] sm:$0xff] %v3384
    %3419 = vst [vmem:[#allocation4 + $0x810] sm:$0xff] %v3385
    %3420 = vst [vmem:[#allocation4 + $0x818] sm:$0xff] %v3386
    %3421 = vst [vmem:[#allocation4 + $0x820] sm:$0xff] %v3387
    %3422 = vst [vmem:[#allocation4 + $0x828] sm:$0xff] %v3388
    %3423 = vst [vmem:[#allocation4 + $0x830] sm:$0xff] %v3389
    %3424 = vst [vmem:[#allocation4 + $0x838] sm:$0xff] %v3390
    %3425 = vst [vmem:[#allocation4 + $0x840] sm:$0xff] %v3391
    %3426 = vst [vmem:[#allocation4 + $0x848] sm:$0xff] %v3392
    %3427 = vst [vmem:[#allocation4 + $0x850] sm:$0xff] %v3393
    %3428 = vst [vmem:[#allocation4 + $0x858] sm:$0xff] %v3394
    %3429 = vst [vmem:[#allocation4 + $0x860] sm:$0xff] %v3395
    %3430 = vst [vmem:[#allocation4 + $0x868] sm:$0xff] %v3396
    %3431 = vst [vmem:[#allocation4 + $0x870] sm:$0xff] %v3397
    %3432 = vst [vmem:[#allocation4 + $0x878] sm:$0xff] %v3398
    %v3433 = vld [vmem:[#allocation3 + $0x8] sm:$0xff]
    %v3434 = vld [vmem:[#allocation3 + $0x10] sm:$0xff]
    %v3435 = vld [vmem:[#allocation3 + $0x18] sm:$0xff]
    %v3436 = vld [vmem:[#allocation3 + $0x20] sm:$0xff]
    %v3437 = vld [vmem:[#allocation3 + $0x28] sm:$0xff]
    %v3438 = vld [vmem:[#allocation3 + $0x30] sm:$0xff]
    %v3439 = vld [vmem:[#allocation3 + $0x38] sm:$0xff]
    %v3440 = vld [vmem:[#allocation3 + $0x40] sm:$0xff]
    %v3441 = vld [vmem:[#allocation3 + $0x48] sm:$0xff]
    %v3442 = vld [vmem:[#allocation3 + $0x50] sm:$0xff]
    %v3443 = vld [vmem:[#allocation3 + $0x58] sm:$0xff]
    %v3444 = vld [vmem:[#allocation3 + $0x60] sm:$0xff]
    %v3445 = vld [vmem:[#allocation3 + $0x68] sm:$0xff]
    %v3446 = vld [vmem:[#allocation3 + $0x70] sm:$0xff]
    %v3447 = vld [vmem:[#allocation3 + $0x78] sm:$0xff]
    %v3448 = vld [vmem:[#allocation3 + $0x80] sm:$0xff]
    %v3449 = vld [vmem:[#allocation3 + $0x88] sm:$0xff]
    %v3450 = vld [vmem:[#allocation3 + $0x90] sm:$0xff]
    %3469 = vrot.lane.b32.xlu0 %v3433, 62
    %v3470 = vpop.permute.xlu0 %3469
    %3471 = vrot.lane.b32.xlu0 %v3434, 62
    %v3472 = vpop.permute.xlu0 %3471
    %3473 = vrot.lane.b32.xlu0 %v3435, 62
    %v3474 = vpop.permute.xlu0 %3473
    %3475 = vrot.lane.b32.xlu0 %v3436, 62
    %v3476 = vpop.permute.xlu0 %3475
    %3477 = vrot.lane.b32.xlu0 %v3437, 62
    %v3478 = vpop.permute.xlu0 %3477
    %3479 = vrot.lane.b32.xlu0 %v3438, 62
    %v3480 = vpop.permute.xlu0 %3479
    %3481 = vrot.lane.b32.xlu0 %v3439, 62
    %v3482 = vpop.permute.xlu0 %3481
    %3483 = vrot.lane.b32.xlu0 %v3440, 62
    %v3484 = vpop.permute.xlu0 %3483
    %3485 = vrot.lane.b32.xlu0 %v3441, 62
    %v3486 = vpop.permute.xlu0 %3485
    %3487 = vrot.lane.b32.xlu0 %v3442, 62
    %v3488 = vpop.permute.xlu0 %3487
    %3489 = vrot.lane.b32.xlu0 %v3443, 62
    %v3490 = vpop.permute.xlu0 %3489
    %3491 = vrot.lane.b32.xlu0 %v3444, 62
    %v3492 = vpop.permute.xlu0 %3491
    %3493 = vrot.lane.b32.xlu0 %v3445, 62
    %v3494 = vpop.permute.xlu0 %3493
    %3495 = vrot.lane.b32.xlu0 %v3446, 62
    %v3496 = vpop.permute.xlu0 %3495
    %3497 = vrot.lane.b32.xlu0 %v3447, 62
    %v3498 = vpop.permute.xlu0 %3497
    %3499 = vrot.lane.b32.xlu0 %v3448, 62
    %v3500 = vpop.permute.xlu0 %3499
    %3501 = vrot.lane.b32.xlu0 %v3449, 62
    %v3502 = vpop.permute.xlu0 %3501
    %3503 = vrot.lane.b32.xlu0 %v3450, 62
    %v3504 = vpop.permute.xlu0 %3503
    %v3505 = vsel %vm372, %v3470, %v3472
    %v3506 = vsel %vm372, %v3472, %v3474
    %v3507 = vsel %vm372, %v3474, %v3476
    %v3508 = vsel %vm372, %v3476, %v3478
    %v3509 = vsel %vm372, %v3478, %v3480
    %v3510 = vsel %vm372, %v3480, %v3482
    %v3511 = vsel %vm372, %v3482, %v3484
    %v3512 = vsel %vm372, %v3484, %v3486
    %v3513 = vsel %vm372, %v3486, %v3488
    %v3514 = vsel %vm372, %v3488, %v3490
    %v3515 = vsel %vm372, %v3490, %v3492
    %v3516 = vsel %vm372, %v3492, %v3494
    %v3517 = vsel %vm372, %v3494, %v3496
    %v3518 = vsel %vm372, %v3496, %v3498
    %v3519 = vsel %vm372, %v3498, %v3500
    %v3520 = vsel %vm372, %v3500, %v3502
    %v3521 = vsel %vm372, %v3502, %v3504
    %3539 = vst [vmem:[#allocation4 + $0x880] sm:$0xff] %v3505
    %3540 = vst [vmem:[#allocation4 + $0x888] sm:$0xff] %v3506
    %3541 = vst [vmem:[#allocation4 + $0x890] sm:$0xff] %v3507
    %3542 = vst [vmem:[#allocation4 + $0x898] sm:$0xff] %v3508
    %3543 = vst [vmem:[#allocation4 + $0x8a0] sm:$0xff] %v3509
    %3544 = vst [vmem:[#allocation4 + $0x8a8] sm:$0xff] %v3510
    %3545 = vst [vmem:[#allocation4 + $0x8b0] sm:$0xff] %v3511
    %3546 = vst [vmem:[#allocation4 + $0x8b8] sm:$0xff] %v3512
    %3547 = vst [vmem:[#allocation4 + $0x8c0] sm:$0xff] %v3513
    %3548 = vst [vmem:[#allocation4 + $0x8c8] sm:$0xff] %v3514
    %3549 = vst [vmem:[#allocation4 + $0x8d0] sm:$0xff] %v3515
    %3550 = vst [vmem:[#allocation4 + $0x8d8] sm:$0xff] %v3516
    %3551 = vst [vmem:[#allocation4 + $0x8e0] sm:$0xff] %v3517
    %3552 = vst [vmem:[#allocation4 + $0x8e8] sm:$0xff] %v3518
    %3553 = vst [vmem:[#allocation4 + $0x8f0] sm:$0xff] %v3519
    %3554 = vst [vmem:[#allocation4 + $0x8f8] sm:$0xff] %v3520
    %3555 = vst [vmem:[#allocation4 + $0x900] sm:$0xff] %v3521
    %v3556 = vld [vmem:[#allocation3 + $0x8] sm:$0xff]
    %v3557 = vld [vmem:[#allocation3 + $0x10] sm:$0xff]
    %v3558 = vld [vmem:[#allocation3 + $0x18] sm:$0xff]
    %v3559 = vld [vmem:[#allocation3 + $0x20] sm:$0xff]
    %v3560 = vld [vmem:[#allocation3 + $0x28] sm:$0xff]
    %v3561 = vld [vmem:[#allocation3 + $0x30] sm:$0xff]
    %v3562 = vld [vmem:[#allocation3 + $0x38] sm:$0xff]
    %v3563 = vld [vmem:[#allocation3 + $0x40] sm:$0xff]
    %v3564 = vld [vmem:[#allocation3 + $0x48] sm:$0xff]
    %v3565 = vld [vmem:[#allocation3 + $0x50] sm:$0xff]
    %v3566 = vld [vmem:[#allocation3 + $0x58] sm:$0xff]
    %v3567 = vld [vmem:[#allocation3 + $0x60] sm:$0xff]
    %v3568 = vld [vmem:[#allocation3 + $0x68] sm:$0xff]
    %v3569 = vld [vmem:[#allocation3 + $0x70] sm:$0xff]
    %v3570 = vld [vmem:[#allocation3 + $0x78] sm:$0xff]
    %v3571 = vld [vmem:[#allocation3 + $0x80] sm:$0xff]
    %v3572 = vld [vmem:[#allocation3 + $0x88] sm:$0xff]
    %v3573 = vld [vmem:[#allocation3 + $0x90] sm:$0xff]
    %3592 = vrot.lane.b32.xlu0 %v3556, 60
    %v3593 = vpop.permute.xlu0 %3592
    %3594 = vrot.lane.b32.xlu0 %v3557, 60
    %v3595 = vpop.permute.xlu0 %3594
    %3596 = vrot.lane.b32.xlu0 %v3558, 60
    %v3597 = vpop.permute.xlu0 %3596
    %3598 = vrot.lane.b32.xlu0 %v3559, 60
    %v3599 = vpop.permute.xlu0 %3598
    %3600 = vrot.lane.b32.xlu0 %v3560, 60
    %v3601 = vpop.permute.xlu0 %3600
    %3602 = vrot.lane.b32.xlu0 %v3561, 60
    %v3603 = vpop.permute.xlu0 %3602
    %3604 = vrot.lane.b32.xlu0 %v3562, 60
    %v3605 = vpop.permute.xlu0 %3604
    %3606 = vrot.lane.b32.xlu0 %v3563, 60
    %v3607 = vpop.permute.xlu0 %3606
    %3608 = vrot.lane.b32.xlu0 %v3564, 60
    %v3609 = vpop.permute.xlu0 %3608
    %3610 = vrot.lane.b32.xlu0 %v3565, 60
    %v3611 = vpop.permute.xlu0 %3610
    %3612 = vrot.lane.b32.xlu0 %v3566, 60
    %v3613 = vpop.permute.xlu0 %3612
    %3614 = vrot.lane.b32.xlu0 %v3567, 60
    %v3615 = vpop.permute.xlu0 %3614
    %3616 = vrot.lane.b32.xlu0 %v3568, 60
    %v3617 = vpop.permute.xlu0 %3616
    %3618 = vrot.lane.b32.xlu0 %v3569, 60
    %v3619 = vpop.permute.xlu0 %3618
    %3620 = vrot.lane.b32.xlu0 %v3570, 60
    %v3621 = vpop.permute.xlu0 %3620
    %3622 = vrot.lane.b32.xlu0 %v3571, 60
    %v3623 = vpop.permute.xlu0 %3622
    %3624 = vrot.lane.b32.xlu0 %v3572, 60
    %v3625 = vpop.permute.xlu0 %3624
    %3626 = vrot.lane.b32.xlu0 %v3573, 60
    %v3627 = vpop.permute.xlu0 %3626
    %v3628 = vsel %vm426, %v3593, %v3595
    %v3629 = vsel %vm426, %v3595, %v3597
    %v3630 = vsel %vm426, %v3597, %v3599
    %v3631 = vsel %vm426, %v3599, %v3601
    %v3632 = vsel %vm426, %v3601, %v3603
    %v3633 = vsel %vm426, %v3603, %v3605
    %v3634 = vsel %vm426, %v3605, %v3607
    %v3635 = vsel %vm426, %v3607, %v3609
    %v3636 = vsel %vm426, %v3609, %v3611
    %v3637 = vsel %vm426, %v3611, %v3613
    %v3638 = vsel %vm426, %v3613, %v3615
    %v3639 = vsel %vm426, %v3615, %v3617
    %v3640 = vsel %vm426, %v3617, %v3619
    %v3641 = vsel %vm426, %v3619, %v3621
    %v3642 = vsel %vm426, %v3621, %v3623
    %v3643 = vsel %vm426, %v3623, %v3625
    %v3644 = vsel %vm426, %v3625, %v3627
    %3662 = vst [vmem:[#allocation4 + $0x908] sm:$0xff] %v3628
    %3663 = vst [vmem:[#allocation4 + $0x910] sm:$0xff] %v3629
    %3664 = vst [vmem:[#allocation4 + $0x918] sm:$0xff] %v3630
    %3665 = vst [vmem:[#allocation4 + $0x920] sm:$0xff] %v3631
    %3666 = vst [vmem:[#allocation4 + $0x928] sm:$0xff] %v3632
    %3667 = vst [vmem:[#allocation4 + $0x930] sm:$0xff] %v3633
    %3668 = vst [vmem:[#allocation4 + $0x938] sm:$0xff] %v3634
    %3669 = vst [vmem:[#allocation4 + $0x940] sm:$0xff] %v3635
    %3670 = vst [vmem:[#allocation4 + $0x948] sm:$0xff] %v3636
    %3671 = vst [vmem:[#allocation4 + $0x950] sm:$0xff] %v3637
    %3672 = vst [vmem:[#allocation4 + $0x958] sm:$0xff] %v3638
    %3673 = vst [vmem:[#allocation4 + $0x960] sm:$0xff] %v3639
    %3674 = vst [vmem:[#allocation4 + $0x968] sm:$0xff] %v3640
    %3675 = vst [vmem:[#allocation4 + $0x970] sm:$0xff] %v3641
    %3676 = vst [vmem:[#allocation4 + $0x978] sm:$0xff] %v3642
    %3677 = vst [vmem:[#allocation4 + $0x980] sm:$0xff] %v3643
    %3678 = vst [vmem:[#allocation4 + $0x988] sm:$0xff] %v3644
    %v3679 = vld [vmem:[#allocation3 + $0x8] sm:$0xff]
    %v3680 = vld [vmem:[#allocation3 + $0x10] sm:$0xff]
    %v3681 = vld [vmem:[#allocation3 + $0x18] sm:$0xff]
    %v3682 = vld [vmem:[#allocation3 + $0x20] sm:$0xff]
    %v3683 = vld [vmem:[#allocation3 + $0x28] sm:$0xff]
    %v3684 = vld [vmem:[#allocation3 + $0x30] sm:$0xff]
    %v3685 = vld [vmem:[#allocation3 + $0x38] sm:$0xff]
    %v3686 = vld [vmem:[#allocation3 + $0x40] sm:$0xff]
    %v3687 = vld [vmem:[#allocation3 + $0x48] sm:$0xff]
    %v3688 = vld [vmem:[#allocation3 + $0x50] sm:$0xff]
    %v3689 = vld [vmem:[#allocation3 + $0x58] sm:$0xff]
    %v3690 = vld [vmem:[#allocation3 + $0x60] sm:$0xff]
    %v3691 = vld [vmem:[#allocation3 + $0x68] sm:$0xff]
    %v3692 = vld [vmem:[#allocation3 + $0x70] sm:$0xff]
    %v3693 = vld [vmem:[#allocation3 + $0x78] sm:$0xff]
    %v3694 = vld [vmem:[#allocation3 + $0x80] sm:$0xff]
    %v3695 = vld [vmem:[#allocation3 + $0x88] sm:$0xff]
    %v3696 = vld [vmem:[#allocation3 + $0x90] sm:$0xff]
    %3715 = vrot.lane.b32.xlu0 %v3679, 58
    %v3716 = vpop.permute.xlu0 %3715
    %3717 = vrot.lane.b32.xlu0 %v3680, 58
    %v3718 = vpop.permute.xlu0 %3717
    %3719 = vrot.lane.b32.xlu0 %v3681, 58
    %v3720 = vpop.permute.xlu0 %3719
    %3721 = vrot.lane.b32.xlu0 %v3682, 58
    %v3722 = vpop.permute.xlu0 %3721
    %3723 = vrot.lane.b32.xlu0 %v3683, 58
    %v3724 = vpop.permute.xlu0 %3723
    %3725 = vrot.lane.b32.xlu0 %v3684, 58
    %v3726 = vpop.permute.xlu0 %3725
    %3727 = vrot.lane.b32.xlu0 %v3685, 58
    %v3728 = vpop.permute.xlu0 %3727
    %3729 = vrot.lane.b32.xlu0 %v3686, 58
    %v3730 = vpop.permute.xlu0 %3729
    %3731 = vrot.lane.b32.xlu0 %v3687, 58
    %v3732 = vpop.permute.xlu0 %3731
    %3733 = vrot.lane.b32.xlu0 %v3688, 58
    %v3734 = vpop.permute.xlu0 %3733
    %3735 = vrot.lane.b32.xlu0 %v3689, 58
    %v3736 = vpop.permute.xlu0 %3735
    %3737 = vrot.lane.b32.xlu0 %v3690, 58
    %v3738 = vpop.permute.xlu0 %3737
    %3739 = vrot.lane.b32.xlu0 %v3691, 58
    %v3740 = vpop.permute.xlu0 %3739
    %3741 = vrot.lane.b32.xlu0 %v3692, 58
    %v3742 = vpop.permute.xlu0 %3741
    %3743 = vrot.lane.b32.xlu0 %v3693, 58
    %v3744 = vpop.permute.xlu0 %3743
    %3745 = vrot.lane.b32.xlu0 %v3694, 58
    %v3746 = vpop.permute.xlu0 %3745
    %3747 = vrot.lane.b32.xlu0 %v3695, 58
    %v3748 = vpop.permute.xlu0 %3747
    %3749 = vrot.lane.b32.xlu0 %v3696, 58
    %v3750 = vpop.permute.xlu0 %3749
    %v3751 = vsel %vm2608, %v3716, %v3718
    %v3752 = vsel %vm2608, %v3718, %v3720
    %v3753 = vsel %vm2608, %v3720, %v3722
    %v3754 = vsel %vm2608, %v3722, %v3724
    %v3755 = vsel %vm2608, %v3724, %v3726
    %v3756 = vsel %vm2608, %v3726, %v3728
    %v3757 = vsel %vm2608, %v3728, %v3730
    %v3758 = vsel %vm2608, %v3730, %v3732
    %v3759 = vsel %vm2608, %v3732, %v3734
    %v3760 = vsel %vm2608, %v3734, %v3736
    %v3761 = vsel %vm2608, %v3736, %v3738
    %v3762 = vsel %vm2608, %v3738, %v3740
    %v3763 = vsel %vm2608, %v3740, %v3742
    %v3764 = vsel %vm2608, %v3742, %v3744
    %v3765 = vsel %vm2608, %v3744, %v3746
    %v3766 = vsel %vm2608, %v3746, %v3748
    %v3767 = vsel %vm2608, %v3748, %v3750
    %3785 = vst [vmem:[#allocation4 + $0x990] sm:$0xff] %v3751
    %3786 = vst [vmem:[#allocation4 + $0x998] sm:$0xff] %v3752
    %3787 = vst [vmem:[#allocation4 + $0x9a0] sm:$0xff] %v3753
    %3788 = vst [vmem:[#allocation4 + $0x9a8] sm:$0xff] %v3754
    %3789 = vst [vmem:[#allocation4 + $0x9b0] sm:$0xff] %v3755
    %3790 = vst [vmem:[#allocation4 + $0x9b8] sm:$0xff] %v3756
    %3791 = vst [vmem:[#allocation4 + $0x9c0] sm:$0xff] %v3757
    %3792 = vst [vmem:[#allocation4 + $0x9c8] sm:$0xff] %v3758
    %3793 = vst [vmem:[#allocation4 + $0x9d0] sm:$0xff] %v3759
    %3794 = vst [vmem:[#allocation4 + $0x9d8] sm:$0xff] %v3760
    %3795 = vst [vmem:[#allocation4 + $0x9e0] sm:$0xff] %v3761
    %3796 = vst [vmem:[#allocation4 + $0x9e8] sm:$0xff] %v3762
    %3797 = vst [vmem:[#allocation4 + $0x9f0] sm:$0xff] %v3763
    %3798 = vst [vmem:[#allocation4 + $0x9f8] sm:$0xff] %v3764
    %3799 = vst [vmem:[#allocation4 + $0xa00] sm:$0xff] %v3765
    %3800 = vst [vmem:[#allocation4 + $0xa08] sm:$0xff] %v3766
    %3801 = vst [vmem:[#allocation4 + $0xa10] sm:$0xff] %v3767
    %v3802 = vld [vmem:[#allocation3 + $0x8] sm:$0xff]
    %v3803 = vld [vmem:[#allocation3 + $0x10] sm:$0xff]
    %v3804 = vld [vmem:[#allocation3 + $0x18] sm:$0xff]
    %v3805 = vld [vmem:[#allocation3 + $0x20] sm:$0xff]
    %v3806 = vld [vmem:[#allocation3 + $0x28] sm:$0xff]
    %v3807 = vld [vmem:[#allocation3 + $0x30] sm:$0xff]
    %v3808 = vld [vmem:[#allocation3 + $0x38] sm:$0xff]
    %v3809 = vld [vmem:[#allocation3 + $0x40] sm:$0xff]
    %v3810 = vld [vmem:[#allocation3 + $0x48] sm:$0xff]
    %v3811 = vld [vmem:[#allocation3 + $0x50] sm:$0xff]
    %v3812 = vld [vmem:[#allocation3 + $0x58] sm:$0xff]
    %v3813 = vld [vmem:[#allocation3 + $0x60] sm:$0xff]
    %v3814 = vld [vmem:[#allocation3 + $0x68] sm:$0xff]
    %v3815 = vld [vmem:[#allocation3 + $0x70] sm:$0xff]
    %v3816 = vld [vmem:[#allocation3 + $0x78] sm:$0xff]
    %v3817 = vld [vmem:[#allocation3 + $0x80] sm:$0xff]
    %v3818 = vld [vmem:[#allocation3 + $0x88] sm:$0xff]
    %v3819 = vld [vmem:[#allocation3 + $0x90] sm:$0xff]
    %3838 = vrot.lane.b32.xlu0 %v3802, 56
    %v3839 = vpop.permute.xlu0 %3838
    %3840 = vrot.lane.b32.xlu0 %v3803, 56
    %v3841 = vpop.permute.xlu0 %3840
    %3842 = vrot.lane.b32.xlu0 %v3804, 56
    %v3843 = vpop.permute.xlu0 %3842
    %3844 = vrot.lane.b32.xlu0 %v3805, 56
    %v3845 = vpop.permute.xlu0 %3844
    %3846 = vrot.lane.b32.xlu0 %v3806, 56
    %v3847 = vpop.permute.xlu0 %3846
    %3848 = vrot.lane.b32.xlu0 %v3807, 56
    %v3849 = vpop.permute.xlu0 %3848
    %3850 = vrot.lane.b32.xlu0 %v3808, 56
    %v3851 = vpop.permute.xlu0 %3850
    %3852 = vrot.lane.b32.xlu0 %v3809, 56
    %v3853 = vpop.permute.xlu0 %3852
    %3854 = vrot.lane.b32.xlu0 %v3810, 56
    %v3855 = vpop.permute.xlu0 %3854
    %3856 = vrot.lane.b32.xlu0 %v3811, 56
    %v3857 = vpop.permute.xlu0 %3856
    %3858 = vrot.lane.b32.xlu0 %v3812, 56
    %v3859 = vpop.permute.xlu0 %3858
    %3860 = vrot.lane.b32.xlu0 %v3813, 56
    %v3861 = vpop.permute.xlu0 %3860
    %3862 = vrot.lane.b32.xlu0 %v3814, 56
    %v3863 = vpop.permute.xlu0 %3862
    %3864 = vrot.lane.b32.xlu0 %v3815, 56
    %v3865 = vpop.permute.xlu0 %3864
    %3866 = vrot.lane.b32.xlu0 %v3816, 56
    %v3867 = vpop.permute.xlu0 %3866
    %3868 = vrot.lane.b32.xlu0 %v3817, 56
    %v3869 = vpop.permute.xlu0 %3868
    %3870 = vrot.lane.b32.xlu0 %v3818, 56
    %v3871 = vpop.permute.xlu0 %3870
    %3872 = vrot.lane.b32.xlu0 %v3819, 56
    %v3873 = vpop.permute.xlu0 %3872
    %v3874 = vsel %vm2732, %v3839, %v3841
    %v3875 = vsel %vm2732, %v3841, %v3843
    %v3876 = vsel %vm2732, %v3843, %v3845
    %v3877 = vsel %vm2732, %v3845, %v3847
    %v3878 = vsel %vm2732, %v3847, %v3849
    %v3879 = vsel %vm2732, %v3849, %v3851
    %v3880 = vsel %vm2732, %v3851, %v3853
    %v3881 = vsel %vm2732, %v3853, %v3855
    %v3882 = vsel %vm2732, %v3855, %v3857
    %v3883 = vsel %vm2732, %v3857, %v3859
    %v3884 = vsel %vm2732, %v3859, %v3861
    %v3885 = vsel %vm2732, %v3861, %v3863
    %v3886 = vsel %vm2732, %v3863, %v3865
    %v3887 = vsel %vm2732, %v3865, %v3867
    %v3888 = vsel %vm2732, %v3867, %v3869
    %v3889 = vsel %vm2732, %v3869, %v3871
    %v3890 = vsel %vm2732, %v3871, %v3873
    %3908 = vst [vmem:[#allocation4 + $0xa18] sm:$0xff] %v3874
    %3909 = vst [vmem:[#allocation4 + $0xa20] sm:$0xff] %v3875
    %3910 = vst [vmem:[#allocation4 + $0xa28] sm:$0xff] %v3876
    %3911 = vst [vmem:[#allocation4 + $0xa30] sm:$0xff] %v3877
    %3912 = vst [vmem:[#allocation4 + $0xa38] sm:$0xff] %v3878
    %3913 = vst [vmem:[#allocation4 + $0xa40] sm:$0xff] %v3879
    %3914 = vst [vmem:[#allocation4 + $0xa48] sm:$0xff] %v3880
    %3915 = vst [vmem:[#allocation4 + $0xa50] sm:$0xff] %v3881
    %3916 = vst [vmem:[#allocation4 + $0xa58] sm:$0xff] %v3882
    %3917 = vst [vmem:[#allocation4 + $0xa60] sm:$0xff] %v3883
    %3918 = vst [vmem:[#allocation4 + $0xa68] sm:$0xff] %v3884
    %3919 = vst [vmem:[#allocation4 + $0xa70] sm:$0xff] %v3885
    %3920 = vst [vmem:[#allocation4 + $0xa78] sm:$0xff] %v3886
    %3921 = vst [vmem:[#allocation4 + $0xa80] sm:$0xff] %v3887
    %3922 = vst [vmem:[#allocation4 + $0xa88] sm:$0xff] %v3888
    %3923 = vst [vmem:[#allocation4 + $0xa90] sm:$0xff] %v3889
    %3924 = vst [vmem:[#allocation4 + $0xa98] sm:$0xff] %v3890
    %v3925 = vld [vmem:[#allocation3 + $0x10] sm:$0xff]
    %v3926 = vld [vmem:[#allocation3 + $0x18] sm:$0xff]
    %v3927 = vld [vmem:[#allocation3 + $0x20] sm:$0xff]
    %v3928 = vld [vmem:[#allocation3 + $0x28] sm:$0xff]
    %v3929 = vld [vmem:[#allocation3 + $0x30] sm:$0xff]
    %v3930 = vld [vmem:[#allocation3 + $0x38] sm:$0xff]
    %v3931 = vld [vmem:[#allocation3 + $0x40] sm:$0xff]
    %v3932 = vld [vmem:[#allocation3 + $0x48] sm:$0xff]
    %v3933 = vld [vmem:[#allocation3 + $0x50] sm:$0xff]
    %v3934 = vld [vmem:[#allocation3 + $0x58] sm:$0xff]
    %v3935 = vld [vmem:[#allocation3 + $0x60] sm:$0xff]
    %v3936 = vld [vmem:[#allocation3 + $0x68] sm:$0xff]
    %v3937 = vld [vmem:[#allocation3 + $0x70] sm:$0xff]
    %v3938 = vld [vmem:[#allocation3 + $0x78] sm:$0xff]
    %v3939 = vld [vmem:[#allocation3 + $0x80] sm:$0xff]
    %v3940 = vld [vmem:[#allocation3 + $0x88] sm:$0xff]
    %v3941 = vld [vmem:[#allocation3 + $0x90] sm:$0xff]
    %3942 = vst [vmem:[#allocation4 + $0xaa0] sm:$0xff] %v3925
    %3943 = vst [vmem:[#allocation4 + $0xaa8] sm:$0xff] %v3926
    %3944 = vst [vmem:[#allocation4 + $0xab0] sm:$0xff] %v3927
    %3945 = vst [vmem:[#allocation4 + $0xab8] sm:$0xff] %v3928
    %3946 = vst [vmem:[#allocation4 + $0xac0] sm:$0xff] %v3929
    %3947 = vst [vmem:[#allocation4 + $0xac8] sm:$0xff] %v3930
    %3948 = vst [vmem:[#allocation4 + $0xad0] sm:$0xff] %v3931
    %3949 = vst [vmem:[#allocation4 + $0xad8] sm:$0xff] %v3932
    %3950 = vst [vmem:[#allocation4 + $0xae0] sm:$0xff] %v3933
    %3951 = vst [vmem:[#allocation4 + $0xae8] sm:$0xff] %v3934
    %3952 = vst [vmem:[#allocation4 + $0xaf0] sm:$0xff] %v3935
    %3953 = vst [vmem:[#allocation4 + $0xaf8] sm:$0xff] %v3936
    %3954 = vst [vmem:[#allocation4 + $0xb00] sm:$0xff] %v3937
    %3955 = vst [vmem:[#allocation4 + $0xb08] sm:$0xff] %v3938
    %3956 = vst [vmem:[#allocation4 + $0xb10] sm:$0xff] %v3939
    %3957 = vst [vmem:[#allocation4 + $0xb18] sm:$0xff] %v3940
    %3958 = vst [vmem:[#allocation4 + $0xb20] sm:$0xff] %v3941
    %v3959 = vld [vmem:[#allocation3 + $0x10] sm:$0xff]
    %v3960 = vld [vmem:[#allocation3 + $0x18] sm:$0xff]
    %v3961 = vld [vmem:[#allocation3 + $0x20] sm:$0xff]
    %v3962 = vld [vmem:[#allocation3 + $0x28] sm:$0xff]
    %v3963 = vld [vmem:[#allocation3 + $0x30] sm:$0xff]
    %v3964 = vld [vmem:[#allocation3 + $0x38] sm:$0xff]
    %v3965 = vld [vmem:[#allocation3 + $0x40] sm:$0xff]
    %v3966 = vld [vmem:[#allocation3 + $0x48] sm:$0xff]
    %v3967 = vld [vmem:[#allocation3 + $0x50] sm:$0xff]
    %v3968 = vld [vmem:[#allocation3 + $0x58] sm:$0xff]
    %v3969 = vld [vmem:[#allocation3 + $0x60] sm:$0xff]
    %v3970 = vld [vmem:[#allocation3 + $0x68] sm:$0xff]
    %v3971 = vld [vmem:[#allocation3 + $0x70] sm:$0xff]
    %v3972 = vld [vmem:[#allocation3 + $0x78] sm:$0xff]
    %v3973 = vld [vmem:[#allocation3 + $0x80] sm:$0xff]
    %v3974 = vld [vmem:[#allocation3 + $0x88] sm:$0xff]
    %v3975 = vld [vmem:[#allocation3 + $0x90] sm:$0xff]
    %v3976 = vld [vmem:[#allocation3 + $0x98] sm:$0xff]
    %3995 = vrot.lane.b32.xlu0 %v3959, 126
    %v3996 = vpop.permute.xlu0 %3995
    %3997 = vrot.lane.b32.xlu0 %v3960, 126
    %v3998 = vpop.permute.xlu0 %3997
    %3999 = vrot.lane.b32.xlu0 %v3961, 126
    %v4000 = vpop.permute.xlu0 %3999
    %4001 = vrot.lane.b32.xlu0 %v3962, 126
    %v4002 = vpop.permute.xlu0 %4001
    %4003 = vrot.lane.b32.xlu0 %v3963, 126
    %v4004 = vpop.permute.xlu0 %4003
    %4005 = vrot.lane.b32.xlu0 %v3964, 126
    %v4006 = vpop.permute.xlu0 %4005
    %4007 = vrot.lane.b32.xlu0 %v3965, 126
    %v4008 = vpop.permute.xlu0 %4007
    %4009 = vrot.lane.b32.xlu0 %v3966, 126
    %v4010 = vpop.permute.xlu0 %4009
    %4011 = vrot.lane.b32.xlu0 %v3967, 126
    %v4012 = vpop.permute.xlu0 %4011
    %4013 = vrot.lane.b32.xlu0 %v3968, 126
    %v4014 = vpop.permute.xlu0 %4013
    %4015 = vrot.lane.b32.xlu0 %v3969, 126
    %v4016 = vpop.permute.xlu0 %4015
    %4017 = vrot.lane.b32.xlu0 %v3970, 126
    %v4018 = vpop.permute.xlu0 %4017
    %4019 = vrot.lane.b32.xlu0 %v3971, 126
    %v4020 = vpop.permute.xlu0 %4019
    %4021 = vrot.lane.b32.xlu0 %v3972, 126
    %v4022 = vpop.permute.xlu0 %4021
    %4023 = vrot.lane.b32.xlu0 %v3973, 126
    %v4024 = vpop.permute.xlu0 %4023
    %4025 = vrot.lane.b32.xlu0 %v3974, 126
    %v4026 = vpop.permute.xlu0 %4025
    %4027 = vrot.lane.b32.xlu0 %v3975, 126
    %v4028 = vpop.permute.xlu0 %4027
    %4029 = vrot.lane.b32.xlu0 %v3976, 126
    %v4030 = vpop.permute.xlu0 %4029
    %v4031 = vsel %vm102, %v3996, %v3998
    %v4032 = vsel %vm102, %v3998, %v4000
    %v4033 = vsel %vm102, %v4000, %v4002
    %v4034 = vsel %vm102, %v4002, %v4004
    %v4035 = vsel %vm102, %v4004, %v4006
    %v4036 = vsel %vm102, %v4006, %v4008
    %v4037 = vsel %vm102, %v4008, %v4010
    %v4038 = vsel %vm102, %v4010, %v4012
    %v4039 = vsel %vm102, %v4012, %v4014
    %v4040 = vsel %vm102, %v4014, %v4016
    %v4041 = vsel %vm102, %v4016, %v4018
    %v4042 = vsel %vm102, %v4018, %v4020
    %v4043 = vsel %vm102, %v4020, %v4022
    %v4044 = vsel %vm102, %v4022, %v4024
    %v4045 = vsel %vm102, %v4024, %v4026
    %v4046 = vsel %vm102, %v4026, %v4028
    %v4047 = vsel %vm102, %v4028, %v4030
    %4065 = vst [vmem:[#allocation4 + $0xb28] sm:$0xff] %v4031
    %4066 = vst [vmem:[#allocation4 + $0xb30] sm:$0xff] %v4032
    %4067 = vst [vmem:[#allocation4 + $0xb38] sm:$0xff] %v4033
    %4068 = vst [vmem:[#allocation4 + $0xb40] sm:$0xff] %v4034
    %4069 = vst [vmem:[#allocation4 + $0xb48] sm:$0xff] %v4035
    %4070 = vst [vmem:[#allocation4 + $0xb50] sm:$0xff] %v4036
    %4071 = vst [vmem:[#allocation4 + $0xb58] sm:$0xff] %v4037
    %4072 = vst [vmem:[#allocation4 + $0xb60] sm:$0xff] %v4038
    %4073 = vst [vmem:[#allocation4 + $0xb68] sm:$0xff] %v4039
    %4074 = vst [vmem:[#allocation4 + $0xb70] sm:$0xff] %v4040
    %4075 = vst [vmem:[#allocation4 + $0xb78] sm:$0xff] %v4041
    %4076 = vst [vmem:[#allocation4 + $0xb80] sm:$0xff] %v4042
    %4077 = vst [vmem:[#allocation4 + $0xb88] sm:$0xff] %v4043
    %4078 = vst [vmem:[#allocation4 + $0xb90] sm:$0xff] %v4044
    %4079 = vst [vmem:[#allocation4 + $0xb98] sm:$0xff] %v4045
    %4080 = vst [vmem:[#allocation4 + $0xba0] sm:$0xff] %v4046
    %4081 = vst [vmem:[#allocation4 + $0xba8] sm:$0xff] %v4047
    %v4082 = vld [vmem:[#allocation3 + $0x10] sm:$0xff]
    %v4083 = vld [vmem:[#allocation3 + $0x18] sm:$0xff]
    %v4084 = vld [vmem:[#allocation3 + $0x20] sm:$0xff]
    %v4085 = vld [vmem:[#allocation3 + $0x28] sm:$0xff]
    %v4086 = vld [vmem:[#allocation3 + $0x30] sm:$0xff]
    %v4087 = vld [vmem:[#allocation3 + $0x38] sm:$0xff]
    %v4088 = vld [vmem:[#allocation3 + $0x40] sm:$0xff]
    %v4089 = vld [vmem:[#allocation3 + $0x48] sm:$0xff]
    %v4090 = vld [vmem:[#allocation3 + $0x50] sm:$0xff]
    %v4091 = vld [vmem:[#allocation3 + $0x58] sm:$0xff]
    %v4092 = vld [vmem:[#allocation3 + $0x60] sm:$0xff]
    %v4093 = vld [vmem:[#allocation3 + $0x68] sm:$0xff]
    %v4094 = vld [vmem:[#allocation3 + $0x70] sm:$0xff]
    %v4095 = vld [vmem:[#allocation3 + $0x78] sm:$0xff]
    %v4096 = vld [vmem:[#allocation3 + $0x80] sm:$0xff]
    %v4097 = vld [vmem:[#allocation3 + $0x88] sm:$0xff]
    %v4098 = vld [vmem:[#allocation3 + $0x90] sm:$0xff]
    %v4099 = vld [vmem:[#allocation3 + $0x98] sm:$0xff]
    %4118 = vrot.lane.b32.xlu0 %v4082, 124
    %v4119 = vpop.permute.xlu0 %4118
    %4120 = vrot.lane.b32.xlu0 %v4083, 124
    %v4121 = vpop.permute.xlu0 %4120
    %4122 = vrot.lane.b32.xlu0 %v4084, 124
    %v4123 = vpop.permute.xlu0 %4122
    %4124 = vrot.lane.b32.xlu0 %v4085, 124
    %v4125 = vpop.permute.xlu0 %4124
    %4126 = vrot.lane.b32.xlu0 %v4086, 124
    %v4127 = vpop.permute.xlu0 %4126
    %4128 = vrot.lane.b32.xlu0 %v4087, 124
    %v4129 = vpop.permute.xlu0 %4128
    %4130 = vrot.lane.b32.xlu0 %v4088, 124
    %v4131 = vpop.permute.xlu0 %4130
    %4132 = vrot.lane.b32.xlu0 %v4089, 124
    %v4133 = vpop.permute.xlu0 %4132
    %4134 = vrot.lane.b32.xlu0 %v4090, 124
    %v4135 = vpop.permute.xlu0 %4134
    %4136 = vrot.lane.b32.xlu0 %v4091, 124
    %v4137 = vpop.permute.xlu0 %4136
    %4138 = vrot.lane.b32.xlu0 %v4092, 124
    %v4139 = vpop.permute.xlu0 %4138
    %4140 = vrot.lane.b32.xlu0 %v4093, 124
    %v4141 = vpop.permute.xlu0 %4140
    %4142 = vrot.lane.b32.xlu0 %v4094, 124
    %v4143 = vpop.permute.xlu0 %4142
    %4144 = vrot.lane.b32.xlu0 %v4095, 124
    %v4145 = vpop.permute.xlu0 %4144
    %4146 = vrot.lane.b32.xlu0 %v4096, 124
    %v4147 = vpop.permute.xlu0 %4146
    %4148 = vrot.lane.b32.xlu0 %v4097, 124
    %v4149 = vpop.permute.xlu0 %4148
    %4150 = vrot.lane.b32.xlu0 %v4098, 124
    %v4151 = vpop.permute.xlu0 %4150
    %4152 = vrot.lane.b32.xlu0 %v4099, 124
    %v4153 = vpop.permute.xlu0 %4152
    %v4154 = vsel %vm156, %v4119, %v4121
    %v4155 = vsel %vm156, %v4121, %v4123
    %v4156 = vsel %vm156, %v4123, %v4125
    %v4157 = vsel %vm156, %v4125, %v4127
    %v4158 = vsel %vm156, %v4127, %v4129
    %v4159 = vsel %vm156, %v4129, %v4131
    %v4160 = vsel %vm156, %v4131, %v4133
    %v4161 = vsel %vm156, %v4133, %v4135
    %v4162 = vsel %vm156, %v4135, %v4137
    %v4163 = vsel %vm156, %v4137, %v4139
    %v4164 = vsel %vm156, %v4139, %v4141
    %v4165 = vsel %vm156, %v4141, %v4143
    %v4166 = vsel %vm156, %v4143, %v4145
    %v4167 = vsel %vm156, %v4145, %v4147
    %v4168 = vsel %vm156, %v4147, %v4149
    %v4169 = vsel %vm156, %v4149, %v4151
    %v4170 = vsel %vm156, %v4151, %v4153
    %4188 = vst [vmem:[#allocation4 + $0xbb0] sm:$0xff] %v4154
    %4189 = vst [vmem:[#allocation4 + $0xbb8] sm:$0xff] %v4155
    %4190 = vst [vmem:[#allocation4 + $0xbc0] sm:$0xff] %v4156
    %4191 = vst [vmem:[#allocation4 + $0xbc8] sm:$0xff] %v4157
    %4192 = vst [vmem:[#allocation4 + $0xbd0] sm:$0xff] %v4158
    %4193 = vst [vmem:[#allocation4 + $0xbd8] sm:$0xff] %v4159
    %4194 = vst [vmem:[#allocation4 + $0xbe0] sm:$0xff] %v4160
    %4195 = vst [vmem:[#allocation4 + $0xbe8] sm:$0xff] %v4161
    %4196 = vst [vmem:[#allocation4 + $0xbf0] sm:$0xff] %v4162
    %4197 = vst [vmem:[#allocation4 + $0xbf8] sm:$0xff] %v4163
    %4198 = vst [vmem:[#allocation4 + $0xc00] sm:$0xff] %v4164
    %4199 = vst [vmem:[#allocation4 + $0xc08] sm:$0xff] %v4165
    %4200 = vst [vmem:[#allocation4 + $0xc10] sm:$0xff] %v4166
    %4201 = vst [vmem:[#allocation4 + $0xc18] sm:$0xff] %v4167
    %4202 = vst [vmem:[#allocation4 + $0xc20] sm:$0xff] %v4168
    %4203 = vst [vmem:[#allocation4 + $0xc28] sm:$0xff] %v4169
    %4204 = vst [vmem:[#allocation4 + $0xc30] sm:$0xff] %v4170
    %v4205 = vld [vmem:[#allocation3 + $0x10] sm:$0xff]
    %v4206 = vld [vmem:[#allocation3 + $0x18] sm:$0xff]
    %v4207 = vld [vmem:[#allocation3 + $0x20] sm:$0xff]
    %v4208 = vld [vmem:[#allocation3 + $0x28] sm:$0xff]
    %v4209 = vld [vmem:[#allocation3 + $0x30] sm:$0xff]
    %v4210 = vld [vmem:[#allocation3 + $0x38] sm:$0xff]
    %v4211 = vld [vmem:[#allocation3 + $0x40] sm:$0xff]
    %v4212 = vld [vmem:[#allocation3 + $0x48] sm:$0xff]
    %v4213 = vld [vmem:[#allocation3 + $0x50] sm:$0xff]
    %v4214 = vld [vmem:[#allocation3 + $0x58] sm:$0xff]
    %v4215 = vld [vmem:[#allocation3 + $0x60] sm:$0xff]
    %v4216 = vld [vmem:[#allocation3 + $0x68] sm:$0xff]
    %v4217 = vld [vmem:[#allocation3 + $0x70] sm:$0xff]
    %v4218 = vld [vmem:[#allocation3 + $0x78] sm:$0xff]
    %v4219 = vld [vmem:[#allocation3 + $0x80] sm:$0xff]
    %v4220 = vld [vmem:[#allocation3 + $0x88] sm:$0xff]
    %v4221 = vld [vmem:[#allocation3 + $0x90] sm:$0xff]
    %v4222 = vld [vmem:[#allocation3 + $0x98] sm:$0xff]
    %4241 = vrot.lane.b32.xlu0 %v4205, 122
    %v4242 = vpop.permute.xlu0 %4241
    %4243 = vrot.lane.b32.xlu0 %v4206, 122
    %v4244 = vpop.permute.xlu0 %4243
    %4245 = vrot.lane.b32.xlu0 %v4207, 122
    %v4246 = vpop.permute.xlu0 %4245
    %4247 = vrot.lane.b32.xlu0 %v4208, 122
    %v4248 = vpop.permute.xlu0 %4247
    %4249 = vrot.lane.b32.xlu0 %v4209, 122
    %v4250 = vpop.permute.xlu0 %4249
    %4251 = vrot.lane.b32.xlu0 %v4210, 122
    %v4252 = vpop.permute.xlu0 %4251
    %4253 = vrot.lane.b32.xlu0 %v4211, 122
    %v4254 = vpop.permute.xlu0 %4253
    %4255 = vrot.lane.b32.xlu0 %v4212, 122
    %v4256 = vpop.permute.xlu0 %4255
    %4257 = vrot.lane.b32.xlu0 %v4213, 122
    %v4258 = vpop.permute.xlu0 %4257
    %4259 = vrot.lane.b32.xlu0 %v4214, 122
    %v4260 = vpop.permute.xlu0 %4259
    %4261 = vrot.lane.b32.xlu0 %v4215, 122
    %v4262 = vpop.permute.xlu0 %4261
    %4263 = vrot.lane.b32.xlu0 %v4216, 122
    %v4264 = vpop.permute.xlu0 %4263
    %4265 = vrot.lane.b32.xlu0 %v4217, 122
    %v4266 = vpop.permute.xlu0 %4265
    %4267 = vrot.lane.b32.xlu0 %v4218, 122
    %v4268 = vpop.permute.xlu0 %4267
    %4269 = vrot.lane.b32.xlu0 %v4219, 122
    %v4270 = vpop.permute.xlu0 %4269
    %4271 = vrot.lane.b32.xlu0 %v4220, 122
    %v4272 = vpop.permute.xlu0 %4271
    %4273 = vrot.lane.b32.xlu0 %v4221, 122
    %v4274 = vpop.permute.xlu0 %4273
    %4275 = vrot.lane.b32.xlu0 %v4222, 122
    %v4276 = vpop.permute.xlu0 %4275
    %v4277 = vsel %vm1991, %v4242, %v4244
    %v4278 = vsel %vm1991, %v4244, %v4246
    %v4279 = vsel %vm1991, %v4246, %v4248
    %v4280 = vsel %vm1991, %v4248, %v4250
    %v4281 = vsel %vm1991, %v4250, %v4252
    %v4282 = vsel %vm1991, %v4252, %v4254
    %v4283 = vsel %vm1991, %v4254, %v4256
    %v4284 = vsel %vm1991, %v4256, %v4258
    %v4285 = vsel %vm1991, %v4258, %v4260
    %v4286 = vsel %vm1991, %v4260, %v4262
    %v4287 = vsel %vm1991, %v4262, %v4264
    %v4288 = vsel %vm1991, %v4264, %v4266
    %v4289 = vsel %vm1991, %v4266, %v4268
    %v4290 = vsel %vm1991, %v4268, %v4270
    %v4291 = vsel %vm1991, %v4270, %v4272
    %v4292 = vsel %vm1991, %v4272, %v4274
    %v4293 = vsel %vm1991, %v4274, %v4276
    %4311 = vst [vmem:[#allocation4 + $0xc38] sm:$0xff] %v4277
    %4312 = vst [vmem:[#allocation4 + $0xc40] sm:$0xff] %v4278
    %4313 = vst [vmem:[#allocation4 + $0xc48] sm:$0xff] %v4279
    %4314 = vst [vmem:[#allocation4 + $0xc50] sm:$0xff] %v4280
    %4315 = vst [vmem:[#allocation4 + $0xc58] sm:$0xff] %v4281
    %4316 = vst [vmem:[#allocation4 + $0xc60] sm:$0xff] %v4282
    %4317 = vst [vmem:[#allocation4 + $0xc68] sm:$0xff] %v4283
    %4318 = vst [vmem:[#allocation4 + $0xc70] sm:$0xff] %v4284
    %4319 = vst [vmem:[#allocation4 + $0xc78] sm:$0xff] %v4285
    %4320 = vst [vmem:[#allocation4 + $0xc80] sm:$0xff] %v4286
    %4321 = vst [vmem:[#allocation4 + $0xc88] sm:$0xff] %v4287
    %4322 = vst [vmem:[#allocation4 + $0xc90] sm:$0xff] %v4288
    %4323 = vst [vmem:[#allocation4 + $0xc98] sm:$0xff] %v4289
    %4324 = vst [vmem:[#allocation4 + $0xca0] sm:$0xff] %v4290
    %4325 = vst [vmem:[#allocation4 + $0xca8] sm:$0xff] %v4291
    %4326 = vst [vmem:[#allocation4 + $0xcb0] sm:$0xff] %v4292
    %4327 = vst [vmem:[#allocation4 + $0xcb8] sm:$0xff] %v4293
    %v4328 = vld [vmem:[#allocation3 + $0x10] sm:$0xff]
    %v4329 = vld [vmem:[#allocation3 + $0x18] sm:$0xff]
    %v4330 = vld [vmem:[#allocation3 + $0x20] sm:$0xff]
    %v4331 = vld [vmem:[#allocation3 + $0x28] sm:$0xff]
    %v4332 = vld [vmem:[#allocation3 + $0x30] sm:$0xff]
    %v4333 = vld [vmem:[#allocation3 + $0x38] sm:$0xff]
    %v4334 = vld [vmem:[#allocation3 + $0x40] sm:$0xff]
    %v4335 = vld [vmem:[#allocation3 + $0x48] sm:$0xff]
    %v4336 = vld [vmem:[#allocation3 + $0x50] sm:$0xff]
    %v4337 = vld [vmem:[#allocation3 + $0x58] sm:$0xff]
    %v4338 = vld [vmem:[#allocation3 + $0x60] sm:$0xff]
    %v4339 = vld [vmem:[#allocation3 + $0x68] sm:$0xff]
    %v4340 = vld [vmem:[#allocation3 + $0x70] sm:$0xff]
    %v4341 = vld [vmem:[#allocation3 + $0x78] sm:$0xff]
    %v4342 = vld [vmem:[#allocation3 + $0x80] sm:$0xff]
    %v4343 = vld [vmem:[#allocation3 + $0x88] sm:$0xff]
    %v4344 = vld [vmem:[#allocation3 + $0x90] sm:$0xff]
    %v4345 = vld [vmem:[#allocation3 + $0x98] sm:$0xff]
    %4364 = vrot.lane.b32.xlu0 %v4328, 120
    %v4365 = vpop.permute.xlu0 %4364
    %4366 = vrot.lane.b32.xlu0 %v4329, 120
    %v4367 = vpop.permute.xlu0 %4366
    %4368 = vrot.lane.b32.xlu0 %v4330, 120
    %v4369 = vpop.permute.xlu0 %4368
    %4370 = vrot.lane.b32.xlu0 %v4331, 120
    %v4371 = vpop.permute.xlu0 %4370
    %4372 = vrot.lane.b32.xlu0 %v4332, 120
    %v4373 = vpop.permute.xlu0 %4372
    %4374 = vrot.lane.b32.xlu0 %v4333, 120
    %v4375 = vpop.permute.xlu0 %4374
    %4376 = vrot.lane.b32.xlu0 %v4334, 120
    %v4377 = vpop.permute.xlu0 %4376
    %4378 = vrot.lane.b32.xlu0 %v4335, 120
    %v4379 = vpop.permute.xlu0 %4378
    %4380 = vrot.lane.b32.xlu0 %v4336, 120
    %v4381 = vpop.permute.xlu0 %4380
    %4382 = vrot.lane.b32.xlu0 %v4337, 120
    %v4383 = vpop.permute.xlu0 %4382
    %4384 = vrot.lane.b32.xlu0 %v4338, 120
    %v4385 = vpop.permute.xlu0 %4384
    %4386 = vrot.lane.b32.xlu0 %v4339, 120
    %v4387 = vpop.permute.xlu0 %4386
    %4388 = vrot.lane.b32.xlu0 %v4340, 120
    %v4389 = vpop.permute.xlu0 %4388
    %4390 = vrot.lane.b32.xlu0 %v4341, 120
    %v4391 = vpop.permute.xlu0 %4390
    %4392 = vrot.lane.b32.xlu0 %v4342, 120
    %v4393 = vpop.permute.xlu0 %4392
    %4394 = vrot.lane.b32.xlu0 %v4343, 120
    %v4395 = vpop.permute.xlu0 %4394
    %4396 = vrot.lane.b32.xlu0 %v4344, 120
    %v4397 = vpop.permute.xlu0 %4396
    %4398 = vrot.lane.b32.xlu0 %v4345, 120
    %v4399 = vpop.permute.xlu0 %4398
    %v4400 = vsel %vm2115, %v4365, %v4367
    %v4401 = vsel %vm2115, %v4367, %v4369
    %v4402 = vsel %vm2115, %v4369, %v4371
    %v4403 = vsel %vm2115, %v4371, %v4373
    %v4404 = vsel %vm2115, %v4373, %v4375
    %v4405 = vsel %vm2115, %v4375, %v4377
    %v4406 = vsel %vm2115, %v4377, %v4379
    %v4407 = vsel %vm2115, %v4379, %v4381
    %v4408 = vsel %vm2115, %v4381, %v4383
    %v4409 = vsel %vm2115, %v4383, %v4385
    %v4410 = vsel %vm2115, %v4385, %v4387
    %v4411 = vsel %vm2115, %v4387, %v4389
    %v4412 = vsel %vm2115, %v4389, %v4391
    %v4413 = vsel %vm2115, %v4391, %v4393
    %v4414 = vsel %vm2115, %v4393, %v4395
    %v4415 = vsel %vm2115, %v4395, %v4397
    %v4416 = vsel %vm2115, %v4397, %v4399
    %4434 = vst [vmem:[#allocation4 + $0xcc0] sm:$0xff] %v4400
    %4435 = vst [vmem:[#allocation4 + $0xcc8] sm:$0xff] %v4401
    %4436 = vst [vmem:[#allocation4 + $0xcd0] sm:$0xff] %v4402
    %4437 = vst [vmem:[#allocation4 + $0xcd8] sm:$0xff] %v4403
    %4438 = vst [vmem:[#allocation4 + $0xce0] sm:$0xff] %v4404
    %4439 = vst [vmem:[#allocation4 + $0xce8] sm:$0xff] %v4405
    %4440 = vst [vmem:[#allocation4 + $0xcf0] sm:$0xff] %v4406
    %4441 = vst [vmem:[#allocation4 + $0xcf8] sm:$0xff] %v4407
    %4442 = vst [vmem:[#allocation4 + $0xd00] sm:$0xff] %v4408
    %4443 = vst [vmem:[#allocation4 + $0xd08] sm:$0xff] %v4409
    %4444 = vst [vmem:[#allocation4 + $0xd10] sm:$0xff] %v4410
    %4445 = vst [vmem:[#allocation4 + $0xd18] sm:$0xff] %v4411
    %4446 = vst [vmem:[#allocation4 + $0xd20] sm:$0xff] %v4412
    %4447 = vst [vmem:[#allocation4 + $0xd28] sm:$0xff] %v4413
    %4448 = vst [vmem:[#allocation4 + $0xd30] sm:$0xff] %v4414
    %4449 = vst [vmem:[#allocation4 + $0xd38] sm:$0xff] %v4415
    %4450 = vst [vmem:[#allocation4 + $0xd40] sm:$0xff] %v4416
    %v4451 = vld [vmem:[%s3] sm:$0xff]
    %v4452 = vld [vmem:[%s3 + $0x8] sm:$0xff]
    %v4453 = vld [vmem:[#allocation4] sm:$0xff]
    %v4454 = vld [vmem:[#allocation4 + $0x8] sm:$0xff]
    %v4455 = vld [vmem:[#allocation4 + $0x10] sm:$0xff]
    %v4456 = vld [vmem:[#allocation4 + $0x18] sm:$0xff]
    %v4457 = vld [vmem:[#allocation4 + $0x20] sm:$0xff]
    %v4458 = vld [vmem:[#allocation4 + $0x28] sm:$0xff]
    %v4459 = vld [vmem:[#allocation4 + $0x30] sm:$0xff]
    %v4460 = vld [vmem:[#allocation4 + $0x38] sm:$0xff]
    %v4461 = vld [vmem:[#allocation4 + $0x40] sm:$0xff]
    %v4462 = vld [vmem:[#allocation4 + $0x48] sm:$0xff]
    %v4463 = vld [vmem:[#allocation4 + $0x50] sm:$0xff]
    %v4464 = vld [vmem:[#allocation4 + $0x58] sm:$0xff]
    %v4465 = vld [vmem:[#allocation4 + $0x60] sm:$0xff]
    %v4466 = vld [vmem:[#allocation4 + $0x68] sm:$0xff]
    %v4467 = vld [vmem:[#allocation4 + $0x70] sm:$0xff]
    %v4468 = vld [vmem:[#allocation4 + $0x78] sm:$0xff]
    %v4469 = vld [vmem:[#allocation4 + $0x80] sm:$0xff]
    %v4470 = vld [vmem:[#allocation4 + $0x88] sm:$0xff]
    %v4471 = vld [vmem:[#allocation4 + $0x90] sm:$0xff]
    %v4472 = vld [vmem:[#allocation4 + $0x98] sm:$0xff]
    %v4473 = vld [vmem:[#allocation4 + $0xa0] sm:$0xff]
    %v4474 = vld [vmem:[#allocation4 + $0xa8] sm:$0xff]
    %v4475 = vld [vmem:[#allocation4 + $0xb0] sm:$0xff]
    %v4476 = vld [vmem:[#allocation4 + $0xb8] sm:$0xff]
    %v4477 = vld [vmem:[#allocation4 + $0xc0] sm:$0xff]
    %v4478 = vld [vmem:[#allocation4 + $0xc8] sm:$0xff]
    %v4479 = vld [vmem:[#allocation4 + $0xd0] sm:$0xff]
    %v4480 = vld [vmem:[#allocation4 + $0xd8] sm:$0xff]
    %v4481 = vld [vmem:[#allocation4 + $0xe0] sm:$0xff]
    %v4482 = vld [vmem:[#allocation4 + $0xe8] sm:$0xff]
    %v4483 = vld [vmem:[#allocation4 + $0xf0] sm:$0xff]
    %v4484 = vld [vmem:[#allocation4 + $0xf8] sm:$0xff]
    %v4485 = vld [vmem:[#allocation4 + $0x100] sm:$0xff]
    %v4486 = vld [vmem:[#allocation4 + $0x108] sm:$0xff]
    %v4487 = vld [vmem:[#allocation4 + $0x110] sm:$0xff]
    %v4488 = vld [vmem:[#allocation4 + $0x118] sm:$0xff]
    %v4489 = vld [vmem:[#allocation4 + $0x120] sm:$0xff]
    %v4490 = vld [vmem:[#allocation4 + $0x128] sm:$0xff]
    %v4491 = vld [vmem:[#allocation4 + $0x130] sm:$0xff]
    %v4492 = vld [vmem:[#allocation4 + $0x138] sm:$0xff]
    %v4493 = vld [vmem:[#allocation4 + $0x140] sm:$0xff]
    %v4494 = vld [vmem:[#allocation4 + $0x148] sm:$0xff]
    %v4495 = vld [vmem:[#allocation4 + $0x150] sm:$0xff]
    %v4496 = vld [vmem:[#allocation4 + $0x158] sm:$0xff]
    %v4497 = vld [vmem:[#allocation4 + $0x160] sm:$0xff]
    %v4498 = vld [vmem:[#allocation4 + $0x168] sm:$0xff]
    %v4499 = vld [vmem:[#allocation4 + $0x170] sm:$0xff]
    %v4500 = vld [vmem:[#allocation4 + $0x178] sm:$0xff]
    %v4501 = vld [vmem:[#allocation4 + $0x180] sm:$0xff]
    %v4502 = vld [vmem:[#allocation4 + $0x188] sm:$0xff]
    %v4503 = vld [vmem:[#allocation4 + $0x190] sm:$0xff]
    %v4504 = vld [vmem:[#allocation4 + $0x198] sm:$0xff]
    %v4505 = vld [vmem:[#allocation4 + $0x1a0] sm:$0xff]
    %v4506 = vld [vmem:[#allocation4 + $0x1a8] sm:$0xff]
    %v4507 = vld [vmem:[#allocation4 + $0x1b0] sm:$0xff]
    %v4508 = vld [vmem:[#allocation4 + $0x1b8] sm:$0xff]
    %v4509 = vld [vmem:[#allocation4 + $0x1c0] sm:$0xff]
    %v4510 = vld [vmem:[#allocation4 + $0x1c8] sm:$0xff]
    %v4511 = vld [vmem:[#allocation4 + $0x1d0] sm:$0xff]
    %v4512 = vld [vmem:[#allocation4 + $0x1d8] sm:$0xff]
    %v4513 = vld [vmem:[#allocation4 + $0x1e0] sm:$0xff]
    %v4514 = vld [vmem:[#allocation4 + $0x1e8] sm:$0xff]
    %v4515 = vld [vmem:[#allocation4 + $0x1f0] sm:$0xff]
    %v4516 = vld [vmem:[#allocation4 + $0x1f8] sm:$0xff]
    %v4517 = vld [vmem:[#allocation4 + $0x200] sm:$0xff]
    %v4518 = vld [vmem:[#allocation4 + $0x208] sm:$0xff]
    %v4519 = vld [vmem:[#allocation4 + $0x210] sm:$0xff]
    %v4520 = vld [vmem:[#allocation4 + $0x218] sm:$0xff]
    %v4521 = vld [vmem:[#allocation4 + $0x220] sm:$0xff]
    %v4522 = vld [vmem:[#allocation4 + $0x228] sm:$0xff]
    %v4523 = vld [vmem:[#allocation4 + $0x230] sm:$0xff]
    %v4524 = vld [vmem:[#allocation4 + $0x238] sm:$0xff]
    %v4525 = vld [vmem:[#allocation4 + $0x240] sm:$0xff]
    %v4526 = vld [vmem:[#allocation4 + $0x248] sm:$0xff]
    %v4527 = vld [vmem:[#allocation4 + $0x250] sm:$0xff]
    %v4528 = vld [vmem:[#allocation4 + $0x258] sm:$0xff]
    %v4529 = vld [vmem:[#allocation4 + $0x260] sm:$0xff]
    %v4530 = vld [vmem:[#allocation4 + $0x268] sm:$0xff]
    %v4531 = vld [vmem:[#allocation4 + $0x270] sm:$0xff]
    %v4532 = vld [vmem:[#allocation4 + $0x278] sm:$0xff]
    %v4533 = vld [vmem:[#allocation4 + $0x280] sm:$0xff]
    %v4534 = vld [vmem:[#allocation4 + $0x288] sm:$0xff]
    %v4535 = vld [vmem:[#allocation4 + $0x290] sm:$0xff]
    %v4536 = vld [vmem:[#allocation4 + $0x298] sm:$0xff]
    %v4537 = vld [vmem:[#allocation4 + $0x2a0] sm:$0xff]
    %v4538 = vld [vmem:[#allocation4 + $0x2a8] sm:$0xff]
    %v4539 = vld [vmem:[#allocation4 + $0x2b0] sm:$0xff]
    %v4540 = vld [vmem:[#allocation4 + $0x2b8] sm:$0xff]
    %v4541 = vld [vmem:[#allocation4 + $0x2c0] sm:$0xff]
    %v4542 = vld [vmem:[#allocation4 + $0x2c8] sm:$0xff]
    %v4543 = vld [vmem:[#allocation4 + $0x2d0] sm:$0xff]
    %v4544 = vld [vmem:[#allocation4 + $0x2d8] sm:$0xff]
    %v4545 = vld [vmem:[#allocation4 + $0x2e0] sm:$0xff]
    %v4546 = vld [vmem:[#allocation4 + $0x2e8] sm:$0xff]
    %v4547 = vld [vmem:[#allocation4 + $0x2f0] sm:$0xff]
    %v4548 = vld [vmem:[#allocation4 + $0x2f8] sm:$0xff]
    %v4549 = vld [vmem:[#allocation4 + $0x300] sm:$0xff]
    %v4550 = vld [vmem:[#allocation4 + $0x308] sm:$0xff]
    %v4551 = vld [vmem:[#allocation4 + $0x310] sm:$0xff]
    %v4552 = vld [vmem:[#allocation4 + $0x318] sm:$0xff]
    %v4553 = vld [vmem:[#allocation4 + $0x320] sm:$0xff]
    %v4554 = vld [vmem:[#allocation4 + $0x328] sm:$0xff]
    %v4555 = vld [vmem:[#allocation4 + $0x330] sm:$0xff]
    %v4556 = vld [vmem:[#allocation4 + $0x338] sm:$0xff]
    %v4557 = vld [vmem:[#allocation4 + $0x340] sm:$0xff]
    %v4558 = vld [vmem:[#allocation4 + $0x348] sm:$0xff]
    %v4559 = vld [vmem:[#allocation4 + $0x350] sm:$0xff]
    %v4560 = vld [vmem:[#allocation4 + $0x358] sm:$0xff]
    %v4561 = vld [vmem:[#allocation4 + $0x360] sm:$0xff]
    %v4562 = vld [vmem:[#allocation4 + $0x368] sm:$0xff]
    %v4563 = vld [vmem:[#allocation4 + $0x370] sm:$0xff]
    %v4564 = vld [vmem:[#allocation4 + $0x378] sm:$0xff]
    %v4565 = vld [vmem:[#allocation4 + $0x380] sm:$0xff]
    %v4566 = vld [vmem:[#allocation4 + $0x388] sm:$0xff]
    %v4567 = vld [vmem:[#allocation4 + $0x390] sm:$0xff]
    %v4568 = vld [vmem:[#allocation4 + $0x398] sm:$0xff]
    %v4569 = vld [vmem:[#allocation4 + $0x3a0] sm:$0xff]
    %v4570 = vld [vmem:[#allocation4 + $0x3a8] sm:$0xff]
    %v4571 = vld [vmem:[#allocation4 + $0x3b0] sm:$0xff]
    %v4572 = vld [vmem:[#allocation4 + $0x3b8] sm:$0xff]
    %v4573 = vld [vmem:[#allocation4 + $0x3c0] sm:$0xff]
    %v4574 = vld [vmem:[#allocation4 + $0x3c8] sm:$0xff]
    %v4575 = vld [vmem:[#allocation4 + $0x3d0] sm:$0xff]
    %v4576 = vld [vmem:[#allocation4 + $0x3d8] sm:$0xff]
    %v4577 = vld [vmem:[#allocation4 + $0x3e0] sm:$0xff]
    %v4578 = vld [vmem:[#allocation4 + $0x3e8] sm:$0xff]
    %v4579 = vld [vmem:[#allocation4 + $0x3f0] sm:$0xff]
    %v4580 = vld [vmem:[#allocation4 + $0x3f8] sm:$0xff]
    %v4581 = vld [vmem:[#allocation4 + $0x400] sm:$0xff]
    %v4582 = vld [vmem:[#allocation4 + $0x408] sm:$0xff]
    %v4583 = vld [vmem:[#allocation4 + $0x410] sm:$0xff]
    %v4584 = vld [vmem:[#allocation4 + $0x418] sm:$0xff]
    %v4585 = vld [vmem:[#allocation4 + $0x420] sm:$0xff]
    %v4586 = vld [vmem:[#allocation4 + $0x428] sm:$0xff]
    %v4587 = vld [vmem:[#allocation4 + $0x430] sm:$0xff]
    %v4588 = vld [vmem:[#allocation4 + $0x438] sm:$0xff]
    %v4589 = vld [vmem:[#allocation4 + $0x440] sm:$0xff]
    %v4590 = vld [vmem:[#allocation4 + $0x448] sm:$0xff]
    %v4591 = vld [vmem:[#allocation4 + $0x450] sm:$0xff]
    %v4592 = vld [vmem:[#allocation4 + $0x458] sm:$0xff]
    %v4593 = vld [vmem:[#allocation4 + $0x460] sm:$0xff]
    %v4594 = vld [vmem:[#allocation4 + $0x468] sm:$0xff]
    %v4595 = vld [vmem:[#allocation4 + $0x470] sm:$0xff]
    %v4596 = vld [vmem:[#allocation4 + $0x478] sm:$0xff]
    %v4597 = vld [vmem:[#allocation4 + $0x480] sm:$0xff]
    %v4598 = vld [vmem:[#allocation4 + $0x488] sm:$0xff]
    %v4599 = vld [vmem:[#allocation4 + $0x490] sm:$0xff]
    %v4600 = vld [vmem:[#allocation4 + $0x498] sm:$0xff]
    %v4601 = vld [vmem:[#allocation4 + $0x4a0] sm:$0xff]
    %v4602 = vld [vmem:[#allocation4 + $0x4a8] sm:$0xff]
    %v4603 = vld [vmem:[#allocation4 + $0x4b0] sm:$0xff]
    %v4604 = vld [vmem:[#allocation4 + $0x4b8] sm:$0xff]
    %v4605 = vld [vmem:[#allocation4 + $0x4c0] sm:$0xff]
    %v4606 = vld [vmem:[#allocation4 + $0x4c8] sm:$0xff]
    %v4607 = vld [vmem:[#allocation4 + $0x4d0] sm:$0xff]
    %v4608 = vld [vmem:[#allocation4 + $0x4d8] sm:$0xff]
    %v4609 = vld [vmem:[#allocation4 + $0x4e0] sm:$0xff]
    %v4610 = vld [vmem:[#allocation4 + $0x4e8] sm:$0xff]
    %v4611 = vld [vmem:[#allocation4 + $0x4f0] sm:$0xff]
    %v4612 = vld [vmem:[#allocation4 + $0x4f8] sm:$0xff]
    %v4613 = vld [vmem:[#allocation4 + $0x500] sm:$0xff]
    %v4614 = vld [vmem:[#allocation4 + $0x508] sm:$0xff]
    %v4615 = vld [vmem:[#allocation4 + $0x510] sm:$0xff]
    %v4616 = vld [vmem:[#allocation4 + $0x518] sm:$0xff]
    %v4617 = vld [vmem:[#allocation4 + $0x520] sm:$0xff]
    %v4618 = vld [vmem:[#allocation4 + $0x528] sm:$0xff]
    %v4619 = vld [vmem:[#allocation4 + $0x530] sm:$0xff]
    %v4620 = vld [vmem:[#allocation4 + $0x538] sm:$0xff]
    %v4621 = vld [vmem:[#allocation4 + $0x540] sm:$0xff]
    %v4622 = vld [vmem:[#allocation4 + $0x548] sm:$0xff]
    %v4623 = vld [vmem:[#allocation4 + $0x550] sm:$0xff]
    %v4624 = vld [vmem:[#allocation4 + $0x558] sm:$0xff]
    %v4625 = vld [vmem:[#allocation4 + $0x560] sm:$0xff]
    %v4626 = vld [vmem:[#allocation4 + $0x568] sm:$0xff]
    %v4627 = vld [vmem:[#allocation4 + $0x570] sm:$0xff]
    %v4628 = vld [vmem:[#allocation4 + $0x578] sm:$0xff]
    %v4629 = vld [vmem:[#allocation4 + $0x580] sm:$0xff]
    %v4630 = vld [vmem:[#allocation4 + $0x588] sm:$0xff]
    %v4631 = vld [vmem:[#allocation4 + $0x590] sm:$0xff]
    %v4632 = vld [vmem:[#allocation4 + $0x598] sm:$0xff]
    %v4633 = vld [vmem:[#allocation4 + $0x5a0] sm:$0xff]
    %v4634 = vld [vmem:[#allocation4 + $0x5a8] sm:$0xff]
    %v4635 = vld [vmem:[#allocation4 + $0x5b0] sm:$0xff]
    %v4636 = vld [vmem:[#allocation4 + $0x5b8] sm:$0xff]
    %v4637 = vld [vmem:[#allocation4 + $0x5c0] sm:$0xff]
    %v4638 = vld [vmem:[#allocation4 + $0x5c8] sm:$0xff]
    %v4639 = vld [vmem:[#allocation4 + $0x5d0] sm:$0xff]
    %v4640 = vld [vmem:[#allocation4 + $0x5d8] sm:$0xff]
    %v4641 = vld [vmem:[#allocation4 + $0x5e0] sm:$0xff]
    %v4642 = vld [vmem:[#allocation4 + $0x5e8] sm:$0xff]
    %v4643 = vld [vmem:[#allocation4 + $0x5f0] sm:$0xff]
    %v4644 = vld [vmem:[#allocation4 + $0x5f8] sm:$0xff]
    %v4645 = vld [vmem:[#allocation4 + $0x600] sm:$0xff]
    %v4646 = vld [vmem:[#allocation4 + $0x608] sm:$0xff]
    %v4647 = vld [vmem:[#allocation4 + $0x610] sm:$0xff]
    %v4648 = vld [vmem:[#allocation4 + $0x618] sm:$0xff]
    %v4649 = vld [vmem:[#allocation4 + $0x620] sm:$0xff]
    %v4650 = vld [vmem:[#allocation4 + $0x628] sm:$0xff]
    %v4651 = vld [vmem:[#allocation4 + $0x630] sm:$0xff]
    %v4652 = vld [vmem:[#allocation4 + $0x638] sm:$0xff]
    %v4653 = vld [vmem:[#allocation4 + $0x640] sm:$0xff]
    %v4654 = vld [vmem:[#allocation4 + $0x648] sm:$0xff]
    %v4655 = vld [vmem:[#allocation4 + $0x650] sm:$0xff]
    %v4656 = vld [vmem:[#allocation4 + $0x658] sm:$0xff]
    %v4657 = vld [vmem:[#allocation4 + $0x660] sm:$0xff]
    %v4658 = vld [vmem:[#allocation4 + $0x668] sm:$0xff]
    %v4659 = vld [vmem:[#allocation4 + $0x670] sm:$0xff]
    %v4660 = vld [vmem:[#allocation4 + $0x678] sm:$0xff]
    %v4661 = vld [vmem:[#allocation4 + $0x680] sm:$0xff]
    %v4662 = vld [vmem:[#allocation4 + $0x688] sm:$0xff]
    %v4663 = vld [vmem:[#allocation4 + $0x690] sm:$0xff]
    %v4664 = vld [vmem:[#allocation4 + $0x698] sm:$0xff]
    %v4665 = vld [vmem:[#allocation4 + $0x6a0] sm:$0xff]
    %v4666 = vld [vmem:[#allocation4 + $0x6a8] sm:$0xff]
    %v4667 = vld [vmem:[#allocation4 + $0x6b0] sm:$0xff]
    %v4668 = vld [vmem:[#allocation4 + $0x6b8] sm:$0xff]
    %v4669 = vld [vmem:[#allocation4 + $0x6c0] sm:$0xff]
    %v4670 = vld [vmem:[#allocation4 + $0x6c8] sm:$0xff]
    %v4671 = vld [vmem:[#allocation4 + $0x6d0] sm:$0xff]
    %v4672 = vld [vmem:[#allocation4 + $0x6d8] sm:$0xff]
    %v4673 = vld [vmem:[#allocation4 + $0x6e0] sm:$0xff]
    %v4674 = vld [vmem:[#allocation4 + $0x6e8] sm:$0xff]
    %v4675 = vld [vmem:[#allocation4 + $0x6f0] sm:$0xff]
    %v4676 = vld [vmem:[#allocation4 + $0x6f8] sm:$0xff]
    %v4677 = vld [vmem:[#allocation4 + $0x700] sm:$0xff]
    %v4678 = vld [vmem:[#allocation4 + $0x708] sm:$0xff]
    %v4679 = vld [vmem:[#allocation4 + $0x710] sm:$0xff]
    %v4680 = vld [vmem:[#allocation4 + $0x718] sm:$0xff]
    %v4681 = vld [vmem:[#allocation4 + $0x720] sm:$0xff]
    %v4682 = vld [vmem:[#allocation4 + $0x728] sm:$0xff]
    %v4683 = vld [vmem:[#allocation4 + $0x730] sm:$0xff]
    %v4684 = vld [vmem:[#allocation4 + $0x738] sm:$0xff]
    %v4685 = vld [vmem:[#allocation4 + $0x740] sm:$0xff]
    %v4686 = vld [vmem:[#allocation4 + $0x748] sm:$0xff]
    %v4687 = vld [vmem:[#allocation4 + $0x750] sm:$0xff]
    %v4688 = vld [vmem:[#allocation4 + $0x758] sm:$0xff]
    %v4689 = vld [vmem:[#allocation4 + $0x760] sm:$0xff]
    %v4690 = vld [vmem:[#allocation4 + $0x768] sm:$0xff]
    %v4691 = vld [vmem:[#allocation4 + $0x770] sm:$0xff]
    %v4692 = vld [vmem:[#allocation4 + $0x778] sm:$0xff]
    %v4693 = vld [vmem:[#allocation4 + $0x780] sm:$0xff]
    %v4694 = vld [vmem:[#allocation4 + $0x788] sm:$0xff]
    %v4695 = vld [vmem:[#allocation4 + $0x790] sm:$0xff]
    %v4696 = vld [vmem:[#allocation4 + $0x798] sm:$0xff]
    %v4697 = vld [vmem:[#allocation4 + $0x7a0] sm:$0xff]
    %v4698 = vld [vmem:[#allocation4 + $0x7a8] sm:$0xff]
    %v4699 = vld [vmem:[#allocation4 + $0x7b0] sm:$0xff]
    %v4700 = vld [vmem:[#allocation4 + $0x7b8] sm:$0xff]
    %v4701 = vld [vmem:[#allocation4 + $0x7c0] sm:$0xff]
    %v4702 = vld [vmem:[#allocation4 + $0x7c8] sm:$0xff]
    %v4703 = vld [vmem:[#allocation4 + $0x7d0] sm:$0xff]
    %v4704 = vld [vmem:[#allocation4 + $0x7d8] sm:$0xff]
    %v4705 = vld [vmem:[#allocation4 + $0x7e0] sm:$0xff]
    %v4706 = vld [vmem:[#allocation4 + $0x7e8] sm:$0xff]
    %v4707 = vld [vmem:[#allocation4 + $0x7f0] sm:$0xff]
    %v4708 = vld [vmem:[#allocation4 + $0x7f8] sm:$0xff]
    %v4709 = vld [vmem:[#allocation4 + $0x800] sm:$0xff]
    %v4710 = vld [vmem:[#allocation4 + $0x808] sm:$0xff]
    %v4711 = vld [vmem:[#allocation4 + $0x810] sm:$0xff]
    %v4712 = vld [vmem:[#allocation4 + $0x818] sm:$0xff]
    %v4713 = vld [vmem:[#allocation4 + $0x820] sm:$0xff]
    %v4714 = vld [vmem:[#allocation4 + $0x828] sm:$0xff]
    %v4715 = vld [vmem:[#allocation4 + $0x830] sm:$0xff]
    %v4716 = vld [vmem:[#allocation4 + $0x838] sm:$0xff]
    %v4717 = vld [vmem:[#allocation4 + $0x840] sm:$0xff]
    %v4718 = vld [vmem:[#allocation4 + $0x848] sm:$0xff]
    %v4719 = vld [vmem:[#allocation4 + $0x850] sm:$0xff]
    %v4720 = vld [vmem:[#allocation4 + $0x858] sm:$0xff]
    %v4721 = vld [vmem:[#allocation4 + $0x860] sm:$0xff]
    %v4722 = vld [vmem:[#allocation4 + $0x868] sm:$0xff]
    %v4723 = vld [vmem:[#allocation4 + $0x870] sm:$0xff]
    %v4724 = vld [vmem:[#allocation4 + $0x878] sm:$0xff]
    %v4725 = vld [vmem:[#allocation4 + $0x880] sm:$0xff]
    %v4726 = vld [vmem:[#allocation4 + $0x888] sm:$0xff]
    %v4727 = vld [vmem:[#allocation4 + $0x890] sm:$0xff]
    %v4728 = vld [vmem:[#allocation4 + $0x898] sm:$0xff]
    %v4729 = vld [vmem:[#allocation4 + $0x8a0] sm:$0xff]
    %v4730 = vld [vmem:[#allocation4 + $0x8a8] sm:$0xff]
    %v4731 = vld [vmem:[#allocation4 + $0x8b0] sm:$0xff]
    %v4732 = vld [vmem:[#allocation4 + $0x8b8] sm:$0xff]
    %v4733 = vld [vmem:[#allocation4 + $0x8c0] sm:$0xff]
    %v4734 = vld [vmem:[#allocation4 + $0x8c8] sm:$0xff]
    %v4735 = vld [vmem:[#allocation4 + $0x8d0] sm:$0xff]
    %v4736 = vld [vmem:[#allocation4 + $0x8d8] sm:$0xff]
    %v4737 = vld [vmem:[#allocation4 + $0x8e0] sm:$0xff]
    %v4738 = vld [vmem:[#allocation4 + $0x8e8] sm:$0xff]
    %v4739 = vld [vmem:[#allocation4 + $0x8f0] sm:$0xff]
    %v4740 = vld [vmem:[#allocation4 + $0x8f8] sm:$0xff]
    %v4741 = vld [vmem:[#allocation4 + $0x900] sm:$0xff]
    %v4742 = vld [vmem:[#allocation4 + $0x908] sm:$0xff]
    %v4743 = vld [vmem:[#allocation4 + $0x910] sm:$0xff]
    %v4744 = vld [vmem:[#allocation4 + $0x918] sm:$0xff]
    %v4745 = vld [vmem:[#allocation4 + $0x920] sm:$0xff]
    %v4746 = vld [vmem:[#allocation4 + $0x928] sm:$0xff]
    %v4747 = vld [vmem:[#allocation4 + $0x930] sm:$0xff]
    %v4748 = vld [vmem:[#allocation4 + $0x938] sm:$0xff]
    %v4749 = vld [vmem:[#allocation4 + $0x940] sm:$0xff]
    %v4750 = vld [vmem:[#allocation4 + $0x948] sm:$0xff]
    %v4751 = vld [vmem:[#allocation4 + $0x950] sm:$0xff]
    %v4752 = vld [vmem:[#allocation4 + $0x958] sm:$0xff]
    %v4753 = vld [vmem:[#allocation4 + $0x960] sm:$0xff]
    %v4754 = vld [vmem:[#allocation4 + $0x968] sm:$0xff]
    %v4755 = vld [vmem:[#allocation4 + $0x970] sm:$0xff]
    %v4756 = vld [vmem:[#allocation4 + $0x978] sm:$0xff]
    %v4757 = vld [vmem:[#allocation4 + $0x980] sm:$0xff]
    %v4758 = vld [vmem:[#allocation4 + $0x988] sm:$0xff]
    %v4759 = vld [vmem:[#allocation4 + $0x990] sm:$0xff]
    %v4760 = vld [vmem:[#allocation4 + $0x998] sm:$0xff]
    %v4761 = vld [vmem:[#allocation4 + $0x9a0] sm:$0xff]
    %v4762 = vld [vmem:[#allocation4 + $0x9a8] sm:$0xff]
    %v4763 = vld [vmem:[#allocation4 + $0x9b0] sm:$0xff]
    %v4764 = vld [vmem:[#allocation4 + $0x9b8] sm:$0xff]
    %v4765 = vld [vmem:[#allocation4 + $0x9c0] sm:$0xff]
    %v4766 = vld [vmem:[#allocation4 + $0x9c8] sm:$0xff]
    %v4767 = vld [vmem:[#allocation4 + $0x9d0] sm:$0xff]
    %v4768 = vld [vmem:[#allocation4 + $0x9d8] sm:$0xff]
    %v4769 = vld [vmem:[#allocation4 + $0x9e0] sm:$0xff]
    %v4770 = vld [vmem:[#allocation4 + $0x9e8] sm:$0xff]
    %v4771 = vld [vmem:[#allocation4 + $0x9f0] sm:$0xff]
    %v4772 = vld [vmem:[#allocation4 + $0x9f8] sm:$0xff]
    %v4773 = vld [vmem:[#allocation4 + $0xa00] sm:$0xff]
    %v4774 = vld [vmem:[#allocation4 + $0xa08] sm:$0xff]
    %v4775 = vld [vmem:[#allocation4 + $0xa10] sm:$0xff]
    %v4776 = vld [vmem:[#allocation4 + $0xa18] sm:$0xff]
    %v4777 = vld [vmem:[#allocation4 + $0xa20] sm:$0xff]
    %v4778 = vld [vmem:[#allocation4 + $0xa28] sm:$0xff]
    %v4779 = vld [vmem:[#allocation4 + $0xa30] sm:$0xff]
    %v4780 = vld [vmem:[#allocation4 + $0xa38] sm:$0xff]
    %v4781 = vld [vmem:[#allocation4 + $0xa40] sm:$0xff]
    %v4782 = vld [vmem:[#allocation4 + $0xa48] sm:$0xff]
    %v4783 = vld [vmem:[#allocation4 + $0xa50] sm:$0xff]
    %v4784 = vld [vmem:[#allocation4 + $0xa58] sm:$0xff]
    %v4785 = vld [vmem:[#allocation4 + $0xa60] sm:$0xff]
    %v4786 = vld [vmem:[#allocation4 + $0xa68] sm:$0xff]
    %v4787 = vld [vmem:[#allocation4 + $0xa70] sm:$0xff]
    %v4788 = vld [vmem:[#allocation4 + $0xa78] sm:$0xff]
    %v4789 = vld [vmem:[#allocation4 + $0xa80] sm:$0xff]
    %v4790 = vld [vmem:[#allocation4 + $0xa88] sm:$0xff]
    %v4791 = vld [vmem:[#allocation4 + $0xa90] sm:$0xff]
    %v4792 = vld [vmem:[#allocation4 + $0xa98] sm:$0xff]
    %v4793 = vld [vmem:[#allocation4 + $0xaa0] sm:$0xff]
    %v4794 = vld [vmem:[#allocation4 + $0xaa8] sm:$0xff]
    %v4795 = vld [vmem:[#allocation4 + $0xab0] sm:$0xff]
    %v4796 = vld [vmem:[#allocation4 + $0xab8] sm:$0xff]
    %v4797 = vld [vmem:[#allocation4 + $0xac0] sm:$0xff]
    %v4798 = vld [vmem:[#allocation4 + $0xac8] sm:$0xff]
    %v4799 = vld [vmem:[#allocation4 + $0xad0] sm:$0xff]
    %v4800 = vld [vmem:[#allocation4 + $0xad8] sm:$0xff]
    %v4801 = vld [vmem:[#allocation4 + $0xae0] sm:$0xff]
    %v4802 = vld [vmem:[#allocation4 + $0xae8] sm:$0xff]
    %v4803 = vld [vmem:[#allocation4 + $0xaf0] sm:$0xff]
    %v4804 = vld [vmem:[#allocation4 + $0xaf8] sm:$0xff]
    %v4805 = vld [vmem:[#allocation4 + $0xb00] sm:$0xff]
    %v4806 = vld [vmem:[#allocation4 + $0xb08] sm:$0xff]
    %v4807 = vld [vmem:[#allocation4 + $0xb10] sm:$0xff]
    %v4808 = vld [vmem:[#allocation4 + $0xb18] sm:$0xff]
    %v4809 = vld [vmem:[#allocation4 + $0xb20] sm:$0xff]
    %v4810 = vld [vmem:[#allocation4 + $0xb28] sm:$0xff]
    %v4811 = vld [vmem:[#allocation4 + $0xb30] sm:$0xff]
    %v4812 = vld [vmem:[#allocation4 + $0xb38] sm:$0xff]
    %v4813 = vld [vmem:[#allocation4 + $0xb40] sm:$0xff]
    %v4814 = vld [vmem:[#allocation4 + $0xb48] sm:$0xff]
    %v4815 = vld [vmem:[#allocation4 + $0xb50] sm:$0xff]
    %v4816 = vld [vmem:[#allocation4 + $0xb58] sm:$0xff]
    %v4817 = vld [vmem:[#allocation4 + $0xb60] sm:$0xff]
    %v4818 = vld [vmem:[#allocation4 + $0xb68] sm:$0xff]
    %v4819 = vld [vmem:[#allocation4 + $0xb70] sm:$0xff]
    %v4820 = vld [vmem:[#allocation4 + $0xb78] sm:$0xff]
    %v4821 = vld [vmem:[#allocation4 + $0xb80] sm:$0xff]
    %v4822 = vld [vmem:[#allocation4 + $0xb88] sm:$0xff]
    %v4823 = vld [vmem:[#allocation4 + $0xb90] sm:$0xff]
    %v4824 = vld [vmem:[#allocation4 + $0xb98] sm:$0xff]
    %v4825 = vld [vmem:[#allocation4 + $0xba0] sm:$0xff]
    %v4826 = vld [vmem:[#allocation4 + $0xba8] sm:$0xff]
    %v4827 = vld [vmem:[#allocation4 + $0xbb0] sm:$0xff]
    %v4828 = vld [vmem:[#allocation4 + $0xbb8] sm:$0xff]
    %v4829 = vld [vmem:[#allocation4 + $0xbc0] sm:$0xff]
    %v4830 = vld [vmem:[#allocation4 + $0xbc8] sm:$0xff]
    %v4831 = vld [vmem:[#allocation4 + $0xbd0] sm:$0xff]
    %v4832 = vld [vmem:[#allocation4 + $0xbd8] sm:$0xff]
    %v4833 = vld [vmem:[#allocation4 + $0xbe0] sm:$0xff]
    %v4834 = vld [vmem:[#allocation4 + $0xbe8] sm:$0xff]
    %v4835 = vld [vmem:[#allocation4 + $0xbf0] sm:$0xff]
    %v4836 = vld [vmem:[#allocation4 + $0xbf8] sm:$0xff]
    %v4837 = vld [vmem:[#allocation4 + $0xc00] sm:$0xff]
    %v4838 = vld [vmem:[#allocation4 + $0xc08] sm:$0xff]
    %v4839 = vld [vmem:[#allocation4 + $0xc10] sm:$0xff]
    %v4840 = vld [vmem:[#allocation4 + $0xc18] sm:$0xff]
    %v4841 = vld [vmem:[#allocation4 + $0xc20] sm:$0xff]
    %v4842 = vld [vmem:[#allocation4 + $0xc28] sm:$0xff]
    %v4843 = vld [vmem:[#allocation4 + $0xc30] sm:$0xff]
    %v4844 = vld [vmem:[#allocation4 + $0xc38] sm:$0xff]
    %v4845 = vld [vmem:[#allocation4 + $0xc40] sm:$0xff]
    %v4846 = vld [vmem:[#allocation4 + $0xc48] sm:$0xff]
    %v4847 = vld [vmem:[#allocation4 + $0xc50] sm:$0xff]
    %v4848 = vld [vmem:[#allocation4 + $0xc58] sm:$0xff]
    %v4849 = vld [vmem:[#allocation4 + $0xc60] sm:$0xff]
    %v4850 = vld [vmem:[#allocation4 + $0xc68] sm:$0xff]
    %v4851 = vld [vmem:[#allocation4 + $0xc70] sm:$0xff]
    %v4852 = vld [vmem:[#allocation4 + $0xc78] sm:$0xff]
    %v4853 = vld [vmem:[#allocation4 + $0xc80] sm:$0xff]
    %v4854 = vld [vmem:[#allocation4 + $0xc88] sm:$0xff]
    %v4855 = vld [vmem:[#allocation4 + $0xc90] sm:$0xff]
    %v4856 = vld [vmem:[#allocation4 + $0xc98] sm:$0xff]
    %v4857 = vld [vmem:[#allocation4 + $0xca0] sm:$0xff]
    %v4858 = vld [vmem:[#allocation4 + $0xca8] sm:$0xff]
    %v4859 = vld [vmem:[#allocation4 + $0xcb0] sm:$0xff]
    %v4860 = vld [vmem:[#allocation4 + $0xcb8] sm:$0xff]
    %v4861 = vld [vmem:[#allocation4 + $0xcc0] sm:$0xff]
    %v4862 = vld [vmem:[#allocation4 + $0xcc8] sm:$0xff]
    %v4863 = vld [vmem:[#allocation4 + $0xcd0] sm:$0xff]
    %v4864 = vld [vmem:[#allocation4 + $0xcd8] sm:$0xff]
    %v4865 = vld [vmem:[#allocation4 + $0xce0] sm:$0xff]
    %v4866 = vld [vmem:[#allocation4 + $0xce8] sm:$0xff]
    %v4867 = vld [vmem:[#allocation4 + $0xcf0] sm:$0xff]
    %v4868 = vld [vmem:[#allocation4 + $0xcf8] sm:$0xff]
    %v4869 = vld [vmem:[#allocation4 + $0xd00] sm:$0xff]
    %v4870 = vld [vmem:[#allocation4 + $0xd08] sm:$0xff]
    %v4871 = vld [vmem:[#allocation4 + $0xd10] sm:$0xff]
    %v4872 = vld [vmem:[#allocation4 + $0xd18] sm:$0xff]
    %v4873 = vld [vmem:[#allocation4 + $0xd20] sm:$0xff]
    %v4874 = vld [vmem:[#allocation4 + $0xd28] sm:$0xff]
    %v4875 = vld [vmem:[#allocation4 + $0xd30] sm:$0xff]
    %v4876 = vld [vmem:[#allocation4 + $0xd38] sm:$0xff]
    %v4877 = vld [vmem:[#allocation4 + $0xd40] sm:$0xff]
    %v4878 = vpack.c.bf16 %v4470, %v4453
    %v4879 = vpack.c.bf16 %v4471, %v4454
    %v4880 = vpack.c.bf16 %v4472, %v4455
    %v4881 = vpack.c.bf16 %v4473, %v4456
    %v4882 = vpack.c.bf16 %v4474, %v4457
    %v4883 = vpack.c.bf16 %v4475, %v4458
    %v4884 = vpack.c.bf16 %v4476, %v4459
    %v4885 = vpack.c.bf16 %v4477, %v4460
    %v4886 = vpack.c.bf16 %v4478, %v4461
    %v4887 = vpack.c.bf16 %v4479, %v4462
    %v4888 = vpack.c.bf16 %v4480, %v4463
    %v4889 = vpack.c.bf16 %v4481, %v4464
    %v4890 = vpack.c.bf16 %v4482, %v4465
    %v4891 = vpack.c.bf16 %v4483, %v4466
    %v4892 = vpack.c.bf16 %v4484, %v4467
    %v4893 = vpack.c.bf16 %v4485, %v4468
    %v4894 = vpack.c.bf16 %v4486, %v4469
    %v4895 = vpack.c.bf16 %v4504, %v4487
    %v4896 = vpack.c.bf16 %v4505, %v4488
    %v4897 = vpack.c.bf16 %v4506, %v4489
    %v4898 = vpack.c.bf16 %v4507, %v4490
    %v4899 = vpack.c.bf16 %v4508, %v4491
    %v4900 = vpack.c.bf16 %v4509, %v4492
    %v4901 = vpack.c.bf16 %v4510, %v4493
    %v4902 = vpack.c.bf16 %v4511, %v4494
    %v4903 = vpack.c.bf16 %v4512, %v4495
    %v4904 = vpack.c.bf16 %v4513, %v4496
    %v4905 = vpack.c.bf16 %v4514, %v4497
    %v4906 = vpack.c.bf16 %v4515, %v4498
    %v4907 = vpack.c.bf16 %v4516, %v4499
    %v4908 = vpack.c.bf16 %v4517, %v4500
    %v4909 = vpack.c.bf16 %v4518, %v4501
    %v4910 = vpack.c.bf16 %v4519, %v4502
    %v4911 = vpack.c.bf16 %v4520, %v4503
    %v4912 = vpack.c.bf16 %v4538, %v4521
    %v4913 = vpack.c.bf16 %v4539, %v4522
    %v4914 = vpack.c.bf16 %v4540, %v4523
    %v4915 = vpack.c.bf16 %v4541, %v4524
    %v4916 = vpack.c.bf16 %v4542, %v4525
    %v4917 = vpack.c.bf16 %v4543, %v4526
    %v4918 = vpack.c.bf16 %v4544, %v4527
    %v4919 = vpack.c.bf16 %v4545, %v4528
    %v4920 = vpack.c.bf16 %v4546, %v4529
    %v4921 = vpack.c.bf16 %v4547, %v4530
    %v4922 = vpack.c.bf16 %v4548, %v4531
    %v4923 = vpack.c.bf16 %v4549, %v4532
    %v4924 = vpack.c.bf16 %v4550, %v4533
    %v4925 = vpack.c.bf16 %v4551, %v4534
    %v4926 = vpack.c.bf16 %v4552, %v4535
    %v4927 = vpack.c.bf16 %v4553, %v4536
    %v4928 = vpack.c.bf16 %v4554, %v4537
    %v4929 = vpack.c.bf16 %v4572, %v4555
    %v4930 = vpack.c.bf16 %v4573, %v4556
    %v4931 = vpack.c.bf16 %v4574, %v4557
    %v4932 = vpack.c.bf16 %v4575, %v4558
    %v4933 = vpack.c.bf16 %v4576, %v4559
    %v4934 = vpack.c.bf16 %v4577, %v4560
    %v4935 = vpack.c.bf16 %v4578, %v4561
    %v4936 = vpack.c.bf16 %v4579, %v4562
    %v4937 = vpack.c.bf16 %v4580, %v4563
    %v4938 = vpack.c.bf16 %v4581, %v4564
    %v4939 = vpack.c.bf16 %v4582, %v4565
    %v4940 = vpack.c.bf16 %v4583, %v4566
    %v4941 = vpack.c.bf16 %v4584, %v4567
    %v4942 = vpack.c.bf16 %v4585, %v4568
    %v4943 = vpack.c.bf16 %v4586, %v4569
    %v4944 = vpack.c.bf16 %v4587, %v4570
    %v4945 = vpack.c.bf16 %v4588, %v4571
    %v4946 = vpack.c.bf16 %v4606, %v4589
    %v4947 = vpack.c.bf16 %v4607, %v4590
    %v4948 = vpack.c.bf16 %v4608, %v4591
    %v4949 = vpack.c.bf16 %v4609, %v4592
    %v4950 = vpack.c.bf16 %v4610, %v4593
    %v4951 = vpack.c.bf16 %v4611, %v4594
    %v4952 = vpack.c.bf16 %v4612, %v4595
    %v4953 = vpack.c.bf16 %v4613, %v4596
    %v4954 = vpack.c.bf16 %v4614, %v4597
    %v4955 = vpack.c.bf16 %v4615, %v4598
    %v4956 = vpack.c.bf16 %v4616, %v4599
    %v4957 = vpack.c.bf16 %v4617, %v4600
    %v4958 = vpack.c.bf16 %v4618, %v4601
    %v4959 = vpack.c.bf16 %v4619, %v4602
    %v4960 = vpack.c.bf16 %v4620, %v4603
    %v4961 = vpack.c.bf16 %v4621, %v4604
    %v4962 = vpack.c.bf16 %v4622, %v4605
    %v4963 = vpack.c.bf16 %v4640, %v4623
    %v4964 = vpack.c.bf16 %v4641, %v4624
    %v4965 = vpack.c.bf16 %v4642, %v4625
    %v4966 = vpack.c.bf16 %v4643, %v4626
    %v4967 = vpack.c.bf16 %v4644, %v4627
    %v4968 = vpack.c.bf16 %v4645, %v4628
    %v4969 = vpack.c.bf16 %v4646, %v4629
    %v4970 = vpack.c.bf16 %v4647, %v4630
    %v4971 = vpack.c.bf16 %v4648, %v4631
    %v4972 = vpack.c.bf16 %v4649, %v4632
    %v4973 = vpack.c.bf16 %v4650, %v4633
    %v4974 = vpack.c.bf16 %v4651, %v4634
    %v4975 = vpack.c.bf16 %v4652, %v4635
    %v4976 = vpack.c.bf16 %v4653, %v4636
    %v4977 = vpack.c.bf16 %v4654, %v4637
    %v4978 = vpack.c.bf16 %v4655, %v4638
    %v4979 = vpack.c.bf16 %v4656, %v4639
    %v4980 = vpack.c.bf16 %v4674, %v4657
    %v4981 = vpack.c.bf16 %v4675, %v4658
    %v4982 = vpack.c.bf16 %v4676, %v4659
    %v4983 = vpack.c.bf16 %v4677, %v4660
    %v4984 = vpack.c.bf16 %v4678, %v4661
    %v4985 = vpack.c.bf16 %v4679, %v4662
    %v4986 = vpack.c.bf16 %v4680, %v4663
    %v4987 = vpack.c.bf16 %v4681, %v4664
    %v4988 = vpack.c.bf16 %v4682, %v4665
    %v4989 = vpack.c.bf16 %v4683, %v4666
    %v4990 = vpack.c.bf16 %v4684, %v4667
    %v4991 = vpack.c.bf16 %v4685, %v4668
    %v4992 = vpack.c.bf16 %v4686, %v4669
    %v4993 = vpack.c.bf16 %v4687, %v4670
    %v4994 = vpack.c.bf16 %v4688, %v4671
    %v4995 = vpack.c.bf16 %v4689, %v4672
    %v4996 = vpack.c.bf16 %v4690, %v4673
    %v4997 = vpack.c.bf16 %v4708, %v4691
    %v4998 = vpack.c.bf16 %v4709, %v4692
    %v4999 = vpack.c.bf16 %v4710, %v4693
    %v5000 = vpack.c.bf16 %v4711, %v4694
    %v5001 = vpack.c.bf16 %v4712, %v4695
    %v5002 = vpack.c.bf16 %v4713, %v4696
    %v5003 = vpack.c.bf16 %v4714, %v4697
    %v5004 = vpack.c.bf16 %v4715, %v4698
    %v5005 = vpack.c.bf16 %v4716, %v4699
    %v5006 = vpack.c.bf16 %v4717, %v4700
    %v5007 = vpack.c.bf16 %v4718, %v4701
    %v5008 = vpack.c.bf16 %v4719, %v4702
    %v5009 = vpack.c.bf16 %v4720, %v4703
    %v5010 = vpack.c.bf16 %v4721, %v4704
    %v5011 = vpack.c.bf16 %v4722, %v4705
    %v5012 = vpack.c.bf16 %v4723, %v4706
    %v5013 = vpack.c.bf16 %v4724, %v4707
    %v5014 = vpack.c.bf16 %v4742, %v4725
    %v5015 = vpack.c.bf16 %v4743, %v4726
    %v5016 = vpack.c.bf16 %v4744, %v4727
    %v5017 = vpack.c.bf16 %v4745, %v4728
    %v5018 = vpack.c.bf16 %v4746, %v4729
    %v5019 = vpack.c.bf16 %v4747, %v4730
    %v5020 = vpack.c.bf16 %v4748, %v4731
    %v5021 = vpack.c.bf16 %v4749, %v4732
    %v5022 = vpack.c.bf16 %v4750, %v4733
    %v5023 = vpack.c.bf16 %v4751, %v4734
    %v5024 = vpack.c.bf16 %v4752, %v4735
    %v5025 = vpack.c.bf16 %v4753, %v4736
    %v5026 = vpack.c.bf16 %v4754, %v4737
    %v5027 = vpack.c.bf16 %v4755, %v4738
    %v5028 = vpack.c.bf16 %v4756, %v4739
    %v5029 = vpack.c.bf16 %v4757, %v4740
    %v5030 = vpack.c.bf16 %v4758, %v4741
    %v5031 = vpack.c.bf16 %v4776, %v4759
    %v5032 = vpack.c.bf16 %v4777, %v4760
    %v5033 = vpack.c.bf16 %v4778, %v4761
    %v5034 = vpack.c.bf16 %v4779, %v4762
    %v5035 = vpack.c.bf16 %v4780, %v4763
    %v5036 = vpack.c.bf16 %v4781, %v4764
    %v5037 = vpack.c.bf16 %v4782, %v4765
    %v5038 = vpack.c.bf16 %v4783, %v4766
    %v5039 = vpack.c.bf16 %v4784, %v4767
    %v5040 = vpack.c.bf16 %v4785, %v4768
    %v5041 = vpack.c.bf16 %v4786, %v4769
    %v5042 = vpack.c.bf16 %v4787, %v4770
    %v5043 = vpack.c.bf16 %v4788, %v4771
    %v5044 = vpack.c.bf16 %v4789, %v4772
    %v5045 = vpack.c.bf16 %v4790, %v4773
    %v5046 = vpack.c.bf16 %v4791, %v4774
    %v5047 = vpack.c.bf16 %v4792, %v4775
    %v5048 = vpack.c.bf16 %v4810, %v4793
    %v5049 = vpack.c.bf16 %v4811, %v4794
    %v5050 = vpack.c.bf16 %v4812, %v4795
    %v5051 = vpack.c.bf16 %v4813, %v4796
    %v5052 = vpack.c.bf16 %v4814, %v4797
    %v5053 = vpack.c.bf16 %v4815, %v4798
    %v5054 = vpack.c.bf16 %v4816, %v4799
    %v5055 = vpack.c.bf16 %v4817, %v4800
    %v5056 = vpack.c.bf16 %v4818, %v4801
    %v5057 = vpack.c.bf16 %v4819, %v4802
    %v5058 = vpack.c.bf16 %v4820, %v4803
    %v5059 = vpack.c.bf16 %v4821, %v4804
    %v5060 = vpack.c.bf16 %v4822, %v4805
    %v5061 = vpack.c.bf16 %v4823, %v4806
    %v5062 = vpack.c.bf16 %v4824, %v4807
    %v5063 = vpack.c.bf16 %v4825, %v4808
    %v5064 = vpack.c.bf16 %v4826, %v4809
    %v5065 = vpack.c.bf16 %v4844, %v4827
    %v5066 = vpack.c.bf16 %v4845, %v4828
    %v5067 = vpack.c.bf16 %v4846, %v4829
    %v5068 = vpack.c.bf16 %v4847, %v4830
    %v5069 = vpack.c.bf16 %v4848, %v4831
    %v5070 = vpack.c.bf16 %v4849, %v4832
    %v5071 = vpack.c.bf16 %v4850, %v4833
    %v5072 = vpack.c.bf16 %v4851, %v4834
    %v5073 = vpack.c.bf16 %v4852, %v4835
    %v5074 = vpack.c.bf16 %v4853, %v4836
    %v5075 = vpack.c.bf16 %v4854, %v4837
    %v5076 = vpack.c.bf16 %v4855, %v4838
    %v5077 = vpack.c.bf16 %v4856, %v4839
    %v5078 = vpack.c.bf16 %v4857, %v4840
    %v5079 = vpack.c.bf16 %v4858, %v4841
    %v5080 = vpack.c.bf16 %v4859, %v4842
    %v5081 = vpack.c.bf16 %v4860, %v4843
    %v5082 = vpack.c.bf16 %v4861, %v4861
    %v5083 = vpack.c.bf16 %v4862, %v4862
    %v5084 = vpack.c.bf16 %v4863, %v4863
    %v5085 = vpack.c.bf16 %v4864, %v4864
    %v5086 = vpack.c.bf16 %v4865, %v4865
    %v5087 = vpack.c.bf16 %v4866, %v4866
    %v5088 = vpack.c.bf16 %v4867, %v4867
    %v5089 = vpack.c.bf16 %v4868, %v4868
    %v5090 = vpack.c.bf16 %v4869, %v4869
    %v5091 = vpack.c.bf16 %v4870, %v4870
    %v5092 = vpack.c.bf16 %v4871, %v4871
    %v5093 = vpack.c.bf16 %v4872, %v4872
    %v5094 = vpack.c.bf16 %v4873, %v4873
    %v5095 = vpack.c.bf16 %v4874, %v4874
    %v5096 = vpack.c.bf16 %v4875, %v4875
    %v5097 = vpack.c.bf16 %v4876, %v4876
    %v5098 = vpack.c.bf16 %v4877, %v4877
    %v5099 = vld [vmem:[%s4] sm:$0xff]
    %v5100 = vld [vmem:[%s4 + $0x8] sm:$0xff]
    %5102 = vset.pattern.permute.xlu0 0
    %5103 = vperm.xlu0 %5102, %v5099
    %v5104 = vpop.permute.xlu0 %5103
    %5107 = vset.pattern.permute.xlu0 0
    %5108 = vperm.xlu0 %5107, %v5100
    %v5109 = vpop.permute.xlu0 %5108
    %v5113 = vunpack.c.l.b16 %v4451
    %v5114 = vunpack.c.h.b16 %v4451
    %v5115 = vunpack.c.l.b16 %v4452
    %v5116 = vunpack.c.h.b16 %v4452
    %v5117 = vpack.c.b16 %v5115, %v5113
    %v5118 = vpack.c.b16 %v5116, %v5114
    %vm5120 = vcmask 588800
    %v5122 = vsel %vm5120, %v5118, 0
    %v5125 = vsel %vm813, %v5082, 0
    %v5128 = vsel %vm813, %v5083, 0
    %v5131 = vsel %vm813, %v5084, 0
    %v5134 = vsel %vm813, %v5085, 0
    %v5137 = vsel %vm813, %v5086, 0
    %v5140 = vsel %vm813, %v5087, 0
    %v5143 = vsel %vm813, %v5088, 0
    %v5146 = vsel %vm813, %v5089, 0
    %v5149 = vsel %vm813, %v5090, 0
    %v5152 = vsel %vm813, %v5091, 0
    %v5155 = vsel %vm813, %v5092, 0
    %v5158 = vsel %vm813, %v5093, 0
    %v5161 = vsel %vm813, %v5094, 0
    %v5164 = vsel %vm813, %v5095, 0
    %v5167 = vsel %vm813, %v5096, 0
    %v5170 = vsel %vm813, %v5097, 0
    %v5173 = vsel %vm813, %v5098, 0
    %5175 = vmatprep.subr.bf16.mxu0 %v4879
    %5176 = vmatpush1.bf16.msra.mxu0 %v4878
    %5177 = vmatprep.subr.bf16.mxu0 %v4896
    %5178 = vmatpush1.bf16.msra.mxu0 %v4895
    %5179 = vmatprep.subr.bf16.mxu0 %v4913
    %5180 = vmatpush1.bf16.msra.mxu0 %v4912
    %5181 = vmatprep.subr.bf16.mxu0 %v4930
    %5182 = vmatpush1.bf16.msra.mxu0 %v4929
    %5183 = vmatprep.subr.bf16.mxu0 %v4947
    %5184 = vmatpush1.bf16.msra.mxu0 %v4946
    %5185 = vmatprep.subr.bf16.mxu0 %v4964
    %5186 = vmatpush1.bf16.msra.mxu0 %v4963
    %5187 = vmatprep.subr.bf16.mxu0 %v4981
    %5188 = vmatpush1.bf16.msra.mxu0 %v4980
    %5189 = vmatprep.subr.bf16.mxu0 %v4998
    %5190 = vmatpush1.bf16.msra.mxu0 %v4997
    %5191 = vmatprep.subr.bf16.mxu0 %v5015
    %5192 = vmatpush1.bf16.msra.mxu0 %v5014
    %5193 = vmatprep.subr.bf16.mxu0 %v5032
    %5194 = vmatpush1.bf16.msra.mxu0 %v5031
    %5195 = vmatprep.subr.bf16.mxu0 %v5049
    %5196 = vmatpush1.bf16.msra.mxu0 %v5048
    %5197 = vmatprep.subr.bf16.mxu0 %v5066
    %5198 = vmatpush1.bf16.msra.mxu0 %v5065
    %5199 = vmatprep.subr.bf16.mxu0 %v5128
    %5200 = vmatpush1.bf16.msra.mxu0 %v5125
    %5201 = vmatprep.subr.bf16.mxu0 0
    %5202 = vmatpush1.bf16.msra.mxu0 0
    %5203 = vmatprep.subr.bf16.mxu0 0
    %5204 = vmatpush1.bf16.msra.mxu0 0
    %5205 = vmatprep.subr.bf16.mxu0 0
    %5206 = vmatpush1.bf16.msra.mxu0 0
    %5207 = vmatprep.mubr.bf16.mxu0 %v5122
    %5208 = vmatmul.mubr.bf16.gmra.mrb[0].mxu0 %v5117
    %v5209 = vpop.f32.mrb[0].mxu0
    %v5210 = vadd.f32 %v5104, %v5209
    %v5211 = vpop.f32.mrb[0].mxu0
    %v5212 = vadd.f32 %v5104, %v5211
    %v5213 = vpop.f32.mrb[0].mxu0
    %v5214 = vadd.f32 %v5109, %v5213
    %v5215 = vpop.f32.mrb[0].mxu0
    %v5216 = vadd.f32 %v5109, %v5215
    %5217 = vdwg.mxu0
    %5218 = vmatprep.subr.bf16.mxu0 %v4881
    %5219 = vmatpush1.bf16.msra.mxu0 %v4880
    %5220 = vmatprep.subr.bf16.mxu0 %v4898
    %5221 = vmatpush1.bf16.msra.mxu0 %v4897
    %5222 = vmatprep.subr.bf16.mxu0 %v4915
    %5223 = vmatpush1.bf16.msra.mxu0 %v4914
    %5224 = vmatprep.subr.bf16.mxu0 %v4932
    %5225 = vmatpush1.bf16.msra.mxu0 %v4931
    %5226 = vmatprep.subr.bf16.mxu0 %v4949
    %5227 = vmatpush1.bf16.msra.mxu0 %v4948
    %5228 = vmatprep.subr.bf16.mxu0 %v4966
    %5229 = vmatpush1.bf16.msra.mxu0 %v4965
    %5230 = vmatprep.subr.bf16.mxu0 %v4983
    %5231 = vmatpush1.bf16.msra.mxu0 %v4982
    %5232 = vmatprep.subr.bf16.mxu0 %v5000
    %5233 = vmatpush1.bf16.msra.mxu0 %v4999
    %5234 = vmatprep.subr.bf16.mxu0 %v5017
    %5235 = vmatpush1.bf16.msra.mxu0 %v5016
    %5236 = vmatprep.subr.bf16.mxu0 %v5034
    %5237 = vmatpush1.bf16.msra.mxu0 %v5033
    %5238 = vmatprep.subr.bf16.mxu0 %v5051
    %5239 = vmatpush1.bf16.msra.mxu0 %v5050
    %5240 = vmatprep.subr.bf16.mxu0 %v5068
    %5241 = vmatpush1.bf16.msra.mxu0 %v5067
    %5242 = vmatprep.subr.bf16.mxu0 %v5134
    %5243 = vmatpush1.bf16.msra.mxu0 %v5131
    %5244 = vmatprep.subr.bf16.mxu0 0
    %5245 = vmatpush1.bf16.msra.mxu0 0
    %5246 = vmatprep.subr.bf16.mxu0 0
    %5247 = vmatpush1.bf16.msra.mxu0 0
    %5248 = vmatprep.subr.bf16.mxu0 0
    %5249 = vmatpush1.bf16.msra.mxu0 0
    %5250 = vmatprep.mubr.bf16.mxu0 %v5122
    %5251 = vmatmul.mubr.bf16.gmra.mrb[0].mxu0 %v5117
    %v5252 = vpop.f32.mrb[0].mxu0
    %v5253 = vadd.f32 %v5104, %v5252
    %v5254 = vpop.f32.mrb[0].mxu0
    %v5255 = vadd.f32 %v5104, %v5254
    %v5256 = vpop.f32.mrb[0].mxu0
    %v5257 = vadd.f32 %v5109, %v5256
    %v5258 = vpop.f32.mrb[0].mxu0
    %v5259 = vadd.f32 %v5109, %v5258
    %5260 = vdwg.mxu0
    %5261 = vmatprep.subr.bf16.mxu0 %v4883
    %5262 = vmatpush1.bf16.msra.mxu0 %v4882
    %5263 = vmatprep.subr.bf16.mxu0 %v4900
    %5264 = vmatpush1.bf16.msra.mxu0 %v4899
    %5265 = vmatprep.subr.bf16.mxu0 %v4917
    %5266 = vmatpush1.bf16.msra.mxu0 %v4916
    %5267 = vmatprep.subr.bf16.mxu0 %v4934
    %5268 = vmatpush1.bf16.msra.mxu0 %v4933
    %5269 = vmatprep.subr.bf16.mxu0 %v4951
    %5270 = vmatpush1.bf16.msra.mxu0 %v4950
    %5271 = vmatprep.subr.bf16.mxu0 %v4968
    %5272 = vmatpush1.bf16.msra.mxu0 %v4967
    %5273 = vmatprep.subr.bf16.mxu0 %v4985
    %5274 = vmatpush1.bf16.msra.mxu0 %v4984
    %5275 = vmatprep.subr.bf16.mxu0 %v5002
    %5276 = vmatpush1.bf16.msra.mxu0 %v5001
    %5277 = vmatprep.subr.bf16.mxu0 %v5019
    %5278 = vmatpush1.bf16.msra.mxu0 %v5018
    %5279 = vmatprep.subr.bf16.mxu0 %v5036
    %5280 = vmatpush1.bf16.msra.mxu0 %v5035
    %5281 = vmatprep.subr.bf16.mxu0 %v5053
    %5282 = vmatpush1.bf16.msra.mxu0 %v5052
    %5283 = vmatprep.subr.bf16.mxu0 %v5070
    %5284 = vmatpush1.bf16.msra.mxu0 %v5069
    %5285 = vmatprep.subr.bf16.mxu0 %v5140
    %5286 = vmatpush1.bf16.msra.mxu0 %v5137
    %5287 = vmatprep.subr.bf16.mxu0 0
    %5288 = vmatpush1.bf16.msra.mxu0 0
    %5289 = vmatprep.subr.bf16.mxu0 0
    %5290 = vmatpush1.bf16.msra.mxu0 0
    %5291 = vmatprep.subr.bf16.mxu0 0
    %5292 = vmatpush1.bf16.msra.mxu0 0
    %5293 = vmatprep.mubr.bf16.mxu0 %v5122
    %5294 = vmatmul.mubr.bf16.gmra.mrb[0].mxu0 %v5117
    %v5295 = vpop.f32.mrb[0].mxu0
    %v5296 = vadd.f32 %v5104, %v5295
    %v5297 = vpop.f32.mrb[0].mxu0
    %v5298 = vadd.f32 %v5104, %v5297
    %v5299 = vpop.f32.mrb[0].mxu0
    %v5300 = vadd.f32 %v5109, %v5299
    %v5301 = vpop.f32.mrb[0].mxu0
    %v5302 = vadd.f32 %v5109, %v5301
    %5303 = vdwg.mxu0
    %5304 = vmatprep.subr.bf16.mxu0 %v4885
    %5305 = vmatpush1.bf16.msra.mxu0 %v4884
    %5306 = vmatprep.subr.bf16.mxu0 %v4902
    %5307 = vmatpush1.bf16.msra.mxu0 %v4901
    %5308 = vmatprep.subr.bf16.mxu0 %v4919
    %5309 = vmatpush1.bf16.msra.mxu0 %v4918
    %5310 = vmatprep.subr.bf16.mxu0 %v4936
    %5311 = vmatpush1.bf16.msra.mxu0 %v4935
    %5312 = vmatprep.subr.bf16.mxu0 %v4953
    %5313 = vmatpush1.bf16.msra.mxu0 %v4952
    %5314 = vmatprep.subr.bf16.mxu0 %v4970
    %5315 = vmatpush1.bf16.msra.mxu0 %v4969
    %5316 = vmatprep.subr.bf16.mxu0 %v4987
    %5317 = vmatpush1.bf16.msra.mxu0 %v4986
    %5318 = vmatprep.subr.bf16.mxu0 %v5004
    %5319 = vmatpush1.bf16.msra.mxu0 %v5003
    %5320 = vmatprep.subr.bf16.mxu0 %v5021
    %5321 = vmatpush1.bf16.msra.mxu0 %v5020
    %5322 = vmatprep.subr.bf16.mxu0 %v5038
    %5323 = vmatpush1.bf16.msra.mxu0 %v5037
    %5324 = vmatprep.subr.bf16.mxu0 %v5055
    %5325 = vmatpush1.bf16.msra.mxu0 %v5054
    %5326 = vmatprep.subr.bf16.mxu0 %v5072
    %5327 = vmatpush1.bf16.msra.mxu0 %v5071
    %5328 = vmatprep.subr.bf16.mxu0 %v5146
    %5329 = vmatpush1.bf16.msra.mxu0 %v5143
    %5330 = vmatprep.subr.bf16.mxu0 0
    %5331 = vmatpush1.bf16.msra.mxu0 0
    %5332 = vmatprep.subr.bf16.mxu0 0
    %5333 = vmatpush1.bf16.msra.mxu0 0
    %5334 = vmatprep.subr.bf16.mxu0 0
    %5335 = vmatpush1.bf16.msra.mxu0 0
    %5336 = vmatprep.mubr.bf16.mxu0 %v5122
    %5337 = vmatmul.mubr.bf16.gmra.mrb[0].mxu0 %v5117
    %v5338 = vpop.f32.mrb[0].mxu0
    %v5339 = vadd.f32 %v5104, %v5338
    %v5340 = vpop.f32.mrb[0].mxu0
    %v5341 = vadd.f32 %v5104, %v5340
    %v5342 = vpop.f32.mrb[0].mxu0
    %v5343 = vadd.f32 %v5109, %v5342
    %v5344 = vpop.f32.mrb[0].mxu0
    %v5345 = vadd.f32 %v5109, %v5344
    %5346 = vdwg.mxu0
    %5347 = vmatprep.subr.bf16.mxu0 %v4887
    %5348 = vmatpush1.bf16.msra.mxu0 %v4886
    %5349 = vmatprep.subr.bf16.mxu0 %v4904
    %5350 = vmatpush1.bf16.msra.mxu0 %v4903
    %5351 = vmatprep.subr.bf16.mxu0 %v4921
    %5352 = vmatpush1.bf16.msra.mxu0 %v4920
    %5353 = vmatprep.subr.bf16.mxu0 %v4938
    %5354 = vmatpush1.bf16.msra.mxu0 %v4937
    %5355 = vmatprep.subr.bf16.mxu0 %v4955
    %5356 = vmatpush1.bf16.msra.mxu0 %v4954
    %5357 = vmatprep.subr.bf16.mxu0 %v4972
    %5358 = vmatpush1.bf16.msra.mxu0 %v4971
    %5359 = vmatprep.subr.bf16.mxu0 %v4989
    %5360 = vmatpush1.bf16.msra.mxu0 %v4988
    %5361 = vmatprep.subr.bf16.mxu0 %v5006
    %5362 = vmatpush1.bf16.msra.mxu0 %v5005
    %5363 = vmatprep.subr.bf16.mxu0 %v5023
    %5364 = vmatpush1.bf16.msra.mxu0 %v5022
    %5365 = vmatprep.subr.bf16.mxu0 %v5040
    %5366 = vmatpush1.bf16.msra.mxu0 %v5039
    %5367 = vmatprep.subr.bf16.mxu0 %v5057
    %5368 = vmatpush1.bf16.msra.mxu0 %v5056
    %5369 = vmatprep.subr.bf16.mxu0 %v5074
    %5370 = vmatpush1.bf16.msra.mxu0 %v5073
    %5371 = vmatprep.subr.bf16.mxu0 %v5152
    %5372 = vmatpush1.bf16.msra.mxu0 %v5149
    %5373 = vmatprep.subr.bf16.mxu0 0
    %5374 = vmatpush1.bf16.msra.mxu0 0
    %5375 = vmatprep.subr.bf16.mxu0 0
    %5376 = vmatpush1.bf16.msra.mxu0 0
    %5377 = vmatprep.subr.bf16.mxu0 0
    %5378 = vmatpush1.bf16.msra.mxu0 0
    %5379 = vmatprep.mubr.bf16.mxu0 %v5122
    %5380 = vmatmul.mubr.bf16.gmra.mrb[0].mxu0 %v5117
    %v5381 = vpop.f32.mrb[0].mxu0
    %v5382 = vadd.f32 %v5104, %v5381
    %v5383 = vpop.f32.mrb[0].mxu0
    %v5384 = vadd.f32 %v5104, %v5383
    %v5385 = vpop.f32.mrb[0].mxu0
    %v5386 = vadd.f32 %v5109, %v5385
    %v5387 = vpop.f32.mrb[0].mxu0
    %v5388 = vadd.f32 %v5109, %v5387
    %5389 = vdwg.mxu0
    %5390 = vmatprep.subr.bf16.mxu0 %v4889
    %5391 = vmatpush1.bf16.msra.mxu0 %v4888
    %5392 = vmatprep.subr.bf16.mxu0 %v4906
    %5393 = vmatpush1.bf16.msra.mxu0 %v4905
    %5394 = vmatprep.subr.bf16.mxu0 %v4923
    %5395 = vmatpush1.bf16.msra.mxu0 %v4922
    %5396 = vmatprep.subr.bf16.mxu0 %v4940
    %5397 = vmatpush1.bf16.msra.mxu0 %v4939
    %5398 = vmatprep.subr.bf16.mxu0 %v4957
    %5399 = vmatpush1.bf16.msra.mxu0 %v4956
    %5400 = vmatprep.subr.bf16.mxu0 %v4974
    %5401 = vmatpush1.bf16.msra.mxu0 %v4973
    %5402 = vmatprep.subr.bf16.mxu0 %v4991
    %5403 = vmatpush1.bf16.msra.mxu0 %v4990
    %5404 = vmatprep.subr.bf16.mxu0 %v5008
    %5405 = vmatpush1.bf16.msra.mxu0 %v5007
    %5406 = vmatprep.subr.bf16.mxu0 %v5025
    %5407 = vmatpush1.bf16.msra.mxu0 %v5024
    %5408 = vmatprep.subr.bf16.mxu0 %v5042
    %5409 = vmatpush1.bf16.msra.mxu0 %v5041
    %5410 = vmatprep.subr.bf16.mxu0 %v5059
    %5411 = vmatpush1.bf16.msra.mxu0 %v5058
    %5412 = vmatprep.subr.bf16.mxu0 %v5076
    %5413 = vmatpush1.bf16.msra.mxu0 %v5075
    %5414 = vmatprep.subr.bf16.mxu0 %v5158
    %5415 = vmatpush1.bf16.msra.mxu0 %v5155
    %5416 = vmatprep.subr.bf16.mxu0 0
    %5417 = vmatpush1.bf16.msra.mxu0 0
    %5418 = vmatprep.subr.bf16.mxu0 0
    %5419 = vmatpush1.bf16.msra.mxu0 0
    %5420 = vmatprep.subr.bf16.mxu0 0
    %5421 = vmatpush1.bf16.msra.mxu0 0
    %5422 = vmatprep.mubr.bf16.mxu0 %v5122
    %5423 = vmatmul.mubr.bf16.gmra.mrb[0].mxu0 %v5117
    %v5424 = vpop.f32.mrb[0].mxu0
    %v5425 = vadd.f32 %v5104, %v5424
    %v5426 = vpop.f32.mrb[0].mxu0
    %v5427 = vadd.f32 %v5104, %v5426
    %v5428 = vpop.f32.mrb[0].mxu0
    %v5429 = vadd.f32 %v5109, %v5428
    %v5430 = vpop.f32.mrb[0].mxu0
    %v5431 = vadd.f32 %v5109, %v5430
    %5432 = vdwg.mxu0
    %5433 = vmatprep.subr.bf16.mxu0 %v4891
    %5434 = vmatpush1.bf16.msra.mxu0 %v4890
    %5435 = vmatprep.subr.bf16.mxu0 %v4908
    %5436 = vmatpush1.bf16.msra.mxu0 %v4907
    %5437 = vmatprep.subr.bf16.mxu0 %v4925
    %5438 = vmatpush1.bf16.msra.mxu0 %v4924
    %5439 = vmatprep.subr.bf16.mxu0 %v4942
    %5440 = vmatpush1.bf16.msra.mxu0 %v4941
    %5441 = vmatprep.subr.bf16.mxu0 %v4959
    %5442 = vmatpush1.bf16.msra.mxu0 %v4958
    %5443 = vmatprep.subr.bf16.mxu0 %v4976
    %5444 = vmatpush1.bf16.msra.mxu0 %v4975
    %5445 = vmatprep.subr.bf16.mxu0 %v4993
    %5446 = vmatpush1.bf16.msra.mxu0 %v4992
    %5447 = vmatprep.subr.bf16.mxu0 %v5010
    %5448 = vmatpush1.bf16.msra.mxu0 %v5009
    %5449 = vmatprep.subr.bf16.mxu0 %v5027
    %5450 = vmatpush1.bf16.msra.mxu0 %v5026
    %5451 = vmatprep.subr.bf16.mxu0 %v5044
    %5452 = vmatpush1.bf16.msra.mxu0 %v5043
    %5453 = vmatprep.subr.bf16.mxu0 %v5061
    %5454 = vmatpush1.bf16.msra.mxu0 %v5060
    %5455 = vmatprep.subr.bf16.mxu0 %v5078
    %5456 = vmatpush1.bf16.msra.mxu0 %v5077
    %5457 = vmatprep.subr.bf16.mxu0 %v5164
    %5458 = vmatpush1.bf16.msra.mxu0 %v5161
    %5459 = vmatprep.subr.bf16.mxu0 0
    %5460 = vmatpush1.bf16.msra.mxu0 0
    %5461 = vmatprep.subr.bf16.mxu0 0
    %5462 = vmatpush1.bf16.msra.mxu0 0
    %5463 = vmatprep.subr.bf16.mxu0 0
    %5464 = vmatpush1.bf16.msra.mxu0 0
    %5465 = vmatprep.mubr.bf16.mxu0 %v5122
    %5466 = vmatmul.mubr.bf16.gmra.mrb[0].mxu0 %v5117
    %v5467 = vpop.f32.mrb[0].mxu0
    %v5468 = vadd.f32 %v5104, %v5467
    %v5469 = vpop.f32.mrb[0].mxu0
    %v5470 = vadd.f32 %v5104, %v5469
    %v5471 = vpop.f32.mrb[0].mxu0
    %v5472 = vadd.f32 %v5109, %v5471
    %v5473 = vpop.f32.mrb[0].mxu0
    %v5474 = vadd.f32 %v5109, %v5473
    %5475 = vdwg.mxu0
    %5476 = vmatprep.subr.bf16.mxu0 %v4893
    %5477 = vmatpush1.bf16.msra.mxu0 %v4892
    %5478 = vmatprep.subr.bf16.mxu0 %v4910
    %5479 = vmatpush1.bf16.msra.mxu0 %v4909
    %5480 = vmatprep.subr.bf16.mxu0 %v4927
    %5481 = vmatpush1.bf16.msra.mxu0 %v4926
    %5482 = vmatprep.subr.bf16.mxu0 %v4944
    %5483 = vmatpush1.bf16.msra.mxu0 %v4943
    %5484 = vmatprep.subr.bf16.mxu0 %v4961
    %5485 = vmatpush1.bf16.msra.mxu0 %v4960
    %5486 = vmatprep.subr.bf16.mxu0 %v4978
    %5487 = vmatpush1.bf16.msra.mxu0 %v4977
    %5488 = vmatprep.subr.bf16.mxu0 %v4995
    %5489 = vmatpush1.bf16.msra.mxu0 %v4994
    %5490 = vmatprep.subr.bf16.mxu0 %v5012
    %5491 = vmatpush1.bf16.msra.mxu0 %v5011
    %5492 = vmatprep.subr.bf16.mxu0 %v5029
    %5493 = vmatpush1.bf16.msra.mxu0 %v5028
    %5494 = vmatprep.subr.bf16.mxu0 %v5046
    %5495 = vmatpush1.bf16.msra.mxu0 %v5045
    %5496 = vmatprep.subr.bf16.mxu0 %v5063
    %5497 = vmatpush1.bf16.msra.mxu0 %v5062
    %5498 = vmatprep.subr.bf16.mxu0 %v5080
    %5499 = vmatpush1.bf16.msra.mxu0 %v5079
    %5500 = vmatprep.subr.bf16.mxu0 %v5170
    %5501 = vmatpush1.bf16.msra.mxu0 %v5167
    %5502 = vmatprep.subr.bf16.mxu0 0
    %5503 = vmatpush1.bf16.msra.mxu0 0
    %5504 = vmatprep.subr.bf16.mxu0 0
    %5505 = vmatpush1.bf16.msra.mxu0 0
    %5506 = vmatprep.subr.bf16.mxu0 0
    %5507 = vmatpush1.bf16.msra.mxu0 0
    %5508 = vmatprep.mubr.bf16.mxu0 %v5122
    %5509 = vmatmul.mubr.bf16.gmra.mrb[0].mxu0 %v5117
    %v5510 = vpop.f32.mrb[0].mxu0
    %v5511 = vadd.f32 %v5104, %v5510
    %v5512 = vpop.f32.mrb[0].mxu0
    %v5513 = vadd.f32 %v5104, %v5512
    %v5514 = vpop.f32.mrb[0].mxu0
    %v5515 = vadd.f32 %v5109, %v5514
    %v5516 = vpop.f32.mrb[0].mxu0
    %v5517 = vadd.f32 %v5109, %v5516
    %5518 = vdwg.mxu0
    %5519 = vmatprep.subr.bf16.mxu0 0
    %5520 = vmatpush1.bf16.msra.mxu0 %v4894
    %5521 = vmatprep.subr.bf16.mxu0 0
    %5522 = vmatpush1.bf16.msra.mxu0 %v4911
    %5523 = vmatprep.subr.bf16.mxu0 0
    %5524 = vmatpush1.bf16.msra.mxu0 %v4928
    %5525 = vmatprep.subr.bf16.mxu0 0
    %5526 = vmatpush1.bf16.msra.mxu0 %v4945
    %5527 = vmatprep.subr.bf16.mxu0 0
    %5528 = vmatpush1.bf16.msra.mxu0 %v4962
    %5529 = vmatprep.subr.bf16.mxu0 0
    %5530 = vmatpush1.bf16.msra.mxu0 %v4979
    %5531 = vmatprep.subr.bf16.mxu0 0
    %5532 = vmatpush1.bf16.msra.mxu0 %v4996
    %5533 = vmatprep.subr.bf16.mxu0 0
    %5534 = vmatpush1.bf16.msra.mxu0 %v5013
    %5535 = vmatprep.subr.bf16.mxu0 0
    %5536 = vmatpush1.bf16.msra.mxu0 %v5030
    %5537 = vmatprep.subr.bf16.mxu0 0
    %5538 = vmatpush1.bf16.msra.mxu0 %v5047
    %5539 = vmatprep.subr.bf16.mxu0 0
    %5540 = vmatpush1.bf16.msra.mxu0 %v5064
    %5541 = vmatprep.subr.bf16.mxu0 0
    %5542 = vmatpush1.bf16.msra.mxu0 %v5081
    %5543 = vmatprep.subr.bf16.mxu0 0
    %5544 = vmatpush1.bf16.msra.mxu0 %v5173
    %5545 = vmatprep.subr.bf16.mxu0 0
    %5546 = vmatpush1.bf16.msra.mxu0 0
    %5547 = vmatprep.subr.bf16.mxu0 0
    %5548 = vmatpush1.bf16.msra.mxu0 0
    %5549 = vmatprep.subr.bf16.mxu0 0
    %5550 = vmatpush1.bf16.msra.mxu0 0
    %5551 = vmatprep.mubr.bf16.mxu0 %v5122
    %5552 = vmatmul.mubr.bf16.gmra.mrb[0].mxu0 %v5117
    %v5553 = vpop.f32.mrb[0].mxu0
    %v5554 = vadd.f32 %v5104, %v5553
    %v5555 = vpop.f32.mrb[0].mxu0
    %v5556 = vpop.f32.mrb[0].mxu0
    %v5557 = vadd.f32 %v5109, %v5556
    %v5558 = vpop.f32.mrb[0].mxu0
    %5559 = vdwg.mxu0
    %v5560 = vtanh.pop %v5210
    %v5561 = vtanh.pop %v5212
    %v5562 = vtanh.pop %v5253
    %v5563 = vtanh.pop %v5255
    %v5564 = vtanh.pop %v5296
    %v5565 = vtanh.pop %v5298
    %v5566 = vtanh.pop %v5339
    %v5567 = vtanh.pop %v5341
    %v5568 = vtanh.pop %v5382
    %v5569 = vtanh.pop %v5384
    %v5570 = vtanh.pop %v5425
    %v5571 = vtanh.pop %v5427
    %v5572 = vtanh.pop %v5468
    %v5573 = vtanh.pop %v5470
    %v5574 = vtanh.pop %v5511
    %v5575 = vtanh.pop %v5513
    %v5576 = vtanh.pop %v5554
    %v5577 = vtanh.pop %v5214
    %v5578 = vtanh.pop %v5216
    %v5579 = vtanh.pop %v5257
    %v5580 = vtanh.pop %v5259
    %v5581 = vtanh.pop %v5300
    %v5582 = vtanh.pop %v5302
    %v5583 = vtanh.pop %v5343
    %v5584 = vtanh.pop %v5345
    %v5585 = vtanh.pop %v5386
    %v5586 = vtanh.pop %v5388
    %v5587 = vtanh.pop %v5429
    %v5588 = vtanh.pop %v5431
    %v5589 = vtanh.pop %v5472
    %v5590 = vtanh.pop %v5474
    %v5591 = vtanh.pop %v5515
    %v5592 = vtanh.pop %v5517
    %v5593 = vtanh.pop %v5557
    %5628 = vrot.lane.b32.xlu0 %v5560, 126
    %v5629 = vpop.permute.xlu0 %5628
    %5630 = vrot.lane.b32.xlu0 %v5561, 126
    %v5631 = vpop.permute.xlu0 %5630
    %5632 = vrot.lane.b32.xlu0 %v5562, 126
    %v5633 = vpop.permute.xlu0 %5632
    %5634 = vrot.lane.b32.xlu0 %v5563, 126
    %v5635 = vpop.permute.xlu0 %5634
    %5636 = vrot.lane.b32.xlu0 %v5564, 126
    %v5637 = vpop.permute.xlu0 %5636
    %5638 = vrot.lane.b32.xlu0 %v5565, 126
    %v5639 = vpop.permute.xlu0 %5638
    %5640 = vrot.lane.b32.xlu0 %v5566, 126
    %v5641 = vpop.permute.xlu0 %5640
    %5642 = vrot.lane.b32.xlu0 %v5567, 126
    %v5643 = vpop.permute.xlu0 %5642
    %5644 = vrot.lane.b32.xlu0 %v5568, 126
    %v5645 = vpop.permute.xlu0 %5644
    %5646 = vrot.lane.b32.xlu0 %v5569, 126
    %v5647 = vpop.permute.xlu0 %5646
    %5648 = vrot.lane.b32.xlu0 %v5570, 126
    %v5649 = vpop.permute.xlu0 %5648
    %5650 = vrot.lane.b32.xlu0 %v5571, 126
    %v5651 = vpop.permute.xlu0 %5650
    %5652 = vrot.lane.b32.xlu0 %v5572, 126
    %v5653 = vpop.permute.xlu0 %5652
    %5654 = vrot.lane.b32.xlu0 %v5573, 126
    %v5655 = vpop.permute.xlu0 %5654
    %5656 = vrot.lane.b32.xlu0 %v5574, 126
    %v5657 = vpop.permute.xlu0 %5656
    %5658 = vrot.lane.b32.xlu0 %v5575, 126
    %v5659 = vpop.permute.xlu0 %5658
    %5660 = vrot.lane.b32.xlu0 %v5576, 126
    %v5661 = vpop.permute.xlu0 %5660
    %5662 = vrot.lane.b32.xlu0 %v5577, 126
    %v5663 = vpop.permute.xlu0 %5662
    %5664 = vrot.lane.b32.xlu0 %v5578, 126
    %v5665 = vpop.permute.xlu0 %5664
    %5666 = vrot.lane.b32.xlu0 %v5579, 126
    %v5667 = vpop.permute.xlu0 %5666
    %5668 = vrot.lane.b32.xlu0 %v5580, 126
    %v5669 = vpop.permute.xlu0 %5668
    %5670 = vrot.lane.b32.xlu0 %v5581, 126
    %v5671 = vpop.permute.xlu0 %5670
    %5672 = vrot.lane.b32.xlu0 %v5582, 126
    %v5673 = vpop.permute.xlu0 %5672
    %5674 = vrot.lane.b32.xlu0 %v5583, 126
    %v5675 = vpop.permute.xlu0 %5674
    %5676 = vrot.lane.b32.xlu0 %v5584, 126
    %v5677 = vpop.permute.xlu0 %5676
    %5678 = vrot.lane.b32.xlu0 %v5585, 126
    %v5679 = vpop.permute.xlu0 %5678
    %5680 = vrot.lane.b32.xlu0 %v5586, 126
    %v5681 = vpop.permute.xlu0 %5680
    %5682 = vrot.lane.b32.xlu0 %v5587, 126
    %v5683 = vpop.permute.xlu0 %5682
    %5684 = vrot.lane.b32.xlu0 %v5588, 126
    %v5685 = vpop.permute.xlu0 %5684
    %5686 = vrot.lane.b32.xlu0 %v5589, 126
    %v5687 = vpop.permute.xlu0 %5686
    %5688 = vrot.lane.b32.xlu0 %v5590, 126
    %v5689 = vpop.permute.xlu0 %5688
    %5690 = vrot.lane.b32.xlu0 %v5591, 126
    %v5691 = vpop.permute.xlu0 %5690
    %5692 = vrot.lane.b32.xlu0 %v5592, 126
    %v5693 = vpop.permute.xlu0 %5692
    %5694 = vrot.lane.b32.xlu0 %v5593, 126
    %v5695 = vpop.permute.xlu0 %5694
    %v5696 = vsel %vm102, %v5629, %v5631
    %v5697 = vsel %vm102, %v5631, %v5633
    %v5698 = vsel %vm102, %v5633, %v5635
    %v5699 = vsel %vm102, %v5635, %v5637
    %v5700 = vsel %vm102, %v5637, %v5639
    %v5701 = vsel %vm102, %v5639, %v5641
    %v5702 = vsel %vm102, %v5641, %v5643
    %v5703 = vsel %vm102, %v5643, %v5645
    %v5704 = vsel %vm102, %v5645, %v5647
    %v5705 = vsel %vm102, %v5647, %v5649
    %v5706 = vsel %vm102, %v5649, %v5651
    %v5707 = vsel %vm102, %v5651, %v5653
    %v5708 = vsel %vm102, %v5653, %v5655
    %v5709 = vsel %vm102, %v5655, %v5657
    %v5710 = vsel %vm102, %v5657, %v5659
    %v5711 = vsel %vm102, %v5659, %v5661
    %v5712 = vsel %vm102, %v5663, %v5665
    %v5713 = vsel %vm102, %v5665, %v5667
    %v5714 = vsel %vm102, %v5667, %v5669
    %v5715 = vsel %vm102, %v5669, %v5671
    %v5716 = vsel %vm102, %v5671, %v5673
    %v5717 = vsel %vm102, %v5673, %v5675
    %v5718 = vsel %vm102, %v5675, %v5677
    %v5719 = vsel %vm102, %v5677, %v5679
    %v5720 = vsel %vm102, %v5679, %v5681
    %v5721 = vsel %vm102, %v5681, %v5683
    %v5722 = vsel %vm102, %v5683, %v5685
    %v5723 = vsel %vm102, %v5685, %v5687
    %v5724 = vsel %vm102, %v5687, %v5689
    %v5725 = vsel %vm102, %v5689, %v5691
    %v5726 = vsel %vm102, %v5691, %v5693
    %v5727 = vsel %vm102, %v5693, %v5695
    %v5760 = vmax.f32 %v5560, %v5696
    %v5761 = vmax.f32 %v5561, %v5697
    %v5762 = vmax.f32 %v5562, %v5698
    %v5763 = vmax.f32 %v5563, %v5699
    %v5764 = vmax.f32 %v5564, %v5700
    %v5765 = vmax.f32 %v5565, %v5701
    %v5766 = vmax.f32 %v5566, %v5702
    %v5767 = vmax.f32 %v5567, %v5703
    %v5768 = vmax.f32 %v5568, %v5704
    %v5769 = vmax.f32 %v5569, %v5705
    %v5770 = vmax.f32 %v5570, %v5706
    %v5771 = vmax.f32 %v5571, %v5707
    %v5772 = vmax.f32 %v5572, %v5708
    %v5773 = vmax.f32 %v5573, %v5709
    %v5774 = vmax.f32 %v5574, %v5710
    %v5775 = vmax.f32 %v5575, %v5711
    %v5776 = vmax.f32 %v5577, %v5712
    %v5777 = vmax.f32 %v5578, %v5713
    %v5778 = vmax.f32 %v5579, %v5714
    %v5779 = vmax.f32 %v5580, %v5715
    %v5780 = vmax.f32 %v5581, %v5716
    %v5781 = vmax.f32 %v5582, %v5717
    %v5782 = vmax.f32 %v5583, %v5718
    %v5783 = vmax.f32 %v5584, %v5719
    %v5784 = vmax.f32 %v5585, %v5720
    %v5785 = vmax.f32 %v5586, %v5721
    %v5786 = vmax.f32 %v5587, %v5722
    %v5787 = vmax.f32 %v5588, %v5723
    %v5788 = vmax.f32 %v5589, %v5724
    %v5789 = vmax.f32 %v5590, %v5725
    %v5790 = vmax.f32 %v5591, %v5726
    %v5791 = vmax.f32 %v5592, %v5727
    %v5794 = vmax.f32 %v5576, %v5661
    %v5795 = vmax.f32 %v5593, %v5695
    %5830 = vrot.lane.b32.xlu0 %v5760, 64
    %v5831 = vpop.permute.xlu0 %5830
    %5832 = vrot.lane.b32.xlu0 %v5761, 64
    %v5833 = vpop.permute.xlu0 %5832
    %5834 = vrot.lane.b32.xlu0 %v5762, 64
    %v5835 = vpop.permute.xlu0 %5834
    %5836 = vrot.lane.b32.xlu0 %v5763, 64
    %v5837 = vpop.permute.xlu0 %5836
    %5838 = vrot.lane.b32.xlu0 %v5764, 64
    %v5839 = vpop.permute.xlu0 %5838
    %5840 = vrot.lane.b32.xlu0 %v5765, 64
    %v5841 = vpop.permute.xlu0 %5840
    %5842 = vrot.lane.b32.xlu0 %v5766, 64
    %v5843 = vpop.permute.xlu0 %5842
    %5844 = vrot.lane.b32.xlu0 %v5767, 64
    %v5845 = vpop.permute.xlu0 %5844
    %5846 = vrot.lane.b32.xlu0 %v5768, 64
    %v5847 = vpop.permute.xlu0 %5846
    %5848 = vrot.lane.b32.xlu0 %v5769, 64
    %v5849 = vpop.permute.xlu0 %5848
    %5850 = vrot.lane.b32.xlu0 %v5770, 64
    %v5851 = vpop.permute.xlu0 %5850
    %5852 = vrot.lane.b32.xlu0 %v5771, 64
    %v5853 = vpop.permute.xlu0 %5852
    %5854 = vrot.lane.b32.xlu0 %v5772, 64
    %v5855 = vpop.permute.xlu0 %5854
    %5856 = vrot.lane.b32.xlu0 %v5773, 64
    %v5857 = vpop.permute.xlu0 %5856
    %5858 = vrot.lane.b32.xlu0 %v5774, 64
    %v5859 = vpop.permute.xlu0 %5858
    %5860 = vrot.lane.b32.xlu0 %v5775, 64
    %v5861 = vpop.permute.xlu0 %5860
    %5862 = vrot.lane.b32.xlu0 %v5794, 64
    %v5863 = vpop.permute.xlu0 %5862
    %5864 = vrot.lane.b32.xlu0 %v5776, 64
    %v5865 = vpop.permute.xlu0 %5864
    %5866 = vrot.lane.b32.xlu0 %v5777, 64
    %v5867 = vpop.permute.xlu0 %5866
    %5868 = vrot.lane.b32.xlu0 %v5778, 64
    %v5869 = vpop.permute.xlu0 %5868
    %5870 = vrot.lane.b32.xlu0 %v5779, 64
    %v5871 = vpop.permute.xlu0 %5870
    %5872 = vrot.lane.b32.xlu0 %v5780, 64
    %v5873 = vpop.permute.xlu0 %5872
    %5874 = vrot.lane.b32.xlu0 %v5781, 64
    %v5875 = vpop.permute.xlu0 %5874
    %5876 = vrot.lane.b32.xlu0 %v5782, 64
    %v5877 = vpop.permute.xlu0 %5876
    %5878 = vrot.lane.b32.xlu0 %v5783, 64
    %v5879 = vpop.permute.xlu0 %5878
    %5880 = vrot.lane.b32.xlu0 %v5784, 64
    %v5881 = vpop.permute.xlu0 %5880
    %5882 = vrot.lane.b32.xlu0 %v5785, 64
    %v5883 = vpop.permute.xlu0 %5882
    %5884 = vrot.lane.b32.xlu0 %v5786, 64
    %v5885 = vpop.permute.xlu0 %5884
    %5886 = vrot.lane.b32.xlu0 %v5787, 64
    %v5887 = vpop.permute.xlu0 %5886
    %5888 = vrot.lane.b32.xlu0 %v5788, 64
    %v5889 = vpop.permute.xlu0 %5888
    %5890 = vrot.lane.b32.xlu0 %v5789, 64
    %v5891 = vpop.permute.xlu0 %5890
    %5892 = vrot.lane.b32.xlu0 %v5790, 64
    %v5893 = vpop.permute.xlu0 %5892
    %5894 = vrot.lane.b32.xlu0 %v5791, 64
    %v5895 = vpop.permute.xlu0 %5894
    %5896 = vrot.lane.b32.xlu0 %v5795, 64
    %v5897 = vpop.permute.xlu0 %5896
    %v5898 = vsel %vm318, %v5831, %v5833
    %v5899 = vsel %vm318, %v5833, %v5835
    %v5900 = vsel %vm318, %v5835, %v5837
    %v5901 = vsel %vm318, %v5837, %v5839
    %v5902 = vsel %vm318, %v5839, %v5841
    %v5903 = vsel %vm318, %v5841, %v5843
    %v5904 = vsel %vm318, %v5843, %v5845
    %v5905 = vsel %vm318, %v5845, %v5847
    %v5906 = vsel %vm318, %v5847, %v5849
    %v5907 = vsel %vm318, %v5849, %v5851
    %v5908 = vsel %vm318, %v5851, %v5853
    %v5909 = vsel %vm318, %v5853, %v5855
    %v5910 = vsel %vm318, %v5855, %v5857
    %v5911 = vsel %vm318, %v5857, %v5859
    %v5912 = vsel %vm318, %v5859, %v5861
    %v5913 = vsel %vm318, %v5861, %v5863
    %v5914 = vsel %vm318, %v5865, %v5867
    %v5915 = vsel %vm318, %v5867, %v5869
    %v5916 = vsel %vm318, %v5869, %v5871
    %v5917 = vsel %vm318, %v5871, %v5873
    %v5918 = vsel %vm318, %v5873, %v5875
    %v5919 = vsel %vm318, %v5875, %v5877
    %v5920 = vsel %vm318, %v5877, %v5879
    %v5921 = vsel %vm318, %v5879, %v5881
    %v5922 = vsel %vm318, %v5881, %v5883
    %v5923 = vsel %vm318, %v5883, %v5885
    %v5924 = vsel %vm318, %v5885, %v5887
    %v5925 = vsel %vm318, %v5887, %v5889
    %v5926 = vsel %vm318, %v5889, %v5891
    %v5927 = vsel %vm318, %v5891, %v5893
    %v5928 = vsel %vm318, %v5893, %v5895
    %v5929 = vsel %vm318, %v5895, %v5897
    %v5962 = vmax.f32 %v5760, %v5898
    %v5963 = vmax.f32 %v5761, %v5899
    %v5964 = vmax.f32 %v5762, %v5900
    %v5965 = vmax.f32 %v5763, %v5901
    %v5966 = vmax.f32 %v5764, %v5902
    %v5967 = vmax.f32 %v5765, %v5903
    %v5968 = vmax.f32 %v5766, %v5904
    %v5969 = vmax.f32 %v5767, %v5905
    %v5970 = vmax.f32 %v5768, %v5906
    %v5971 = vmax.f32 %v5769, %v5907
    %v5972 = vmax.f32 %v5770, %v5908
    %v5973 = vmax.f32 %v5771, %v5909
    %v5974 = vmax.f32 %v5772, %v5910
    %v5975 = vmax.f32 %v5773, %v5911
    %v5976 = vmax.f32 %v5774, %v5912
    %v5977 = vmax.f32 %v5775, %v5913
    %v5978 = vmax.f32 %v5776, %v5914
    %v5979 = vmax.f32 %v5777, %v5915
    %v5980 = vmax.f32 %v5778, %v5916
    %v5981 = vmax.f32 %v5779, %v5917
    %v5982 = vmax.f32 %v5780, %v5918
    %v5983 = vmax.f32 %v5781, %v5919
    %v5984 = vmax.f32 %v5782, %v5920
    %v5985 = vmax.f32 %v5783, %v5921
    %v5986 = vmax.f32 %v5784, %v5922
    %v5987 = vmax.f32 %v5785, %v5923
    %v5988 = vmax.f32 %v5786, %v5924
    %v5989 = vmax.f32 %v5787, %v5925
    %v5990 = vmax.f32 %v5788, %v5926
    %v5991 = vmax.f32 %v5789, %v5927
    %v5992 = vmax.f32 %v5790, %v5928
    %v5993 = vmax.f32 %v5791, %v5929
    %v5994 = vpack.c.bf16 %v5978, %v5962
    %v5995 = vpack.c.bf16 %v5979, %v5963
    %v5996 = vpack.c.bf16 %v5980, %v5964
    %v5997 = vpack.c.bf16 %v5981, %v5965
    %v5998 = vpack.c.bf16 %v5982, %v5966
    %v5999 = vpack.c.bf16 %v5983, %v5967
    %v6000 = vpack.c.bf16 %v5984, %v5968
    %v6001 = vpack.c.bf16 %v5985, %v5969
    %v6002 = vpack.c.bf16 %v5986, %v5970
    %v6003 = vpack.c.bf16 %v5987, %v5971
    %v6004 = vpack.c.bf16 %v5988, %v5972
    %v6005 = vpack.c.bf16 %v5989, %v5973
    %v6006 = vpack.c.bf16 %v5990, %v5974
    %v6007 = vpack.c.bf16 %v5991, %v5975
    %v6008 = vpack.c.bf16 %v5992, %v5976
    %v6009 = vpack.c.bf16 %v5993, %v5977
    %v6010 = vld [vmem:[%s6] sm:$0xff]
    %v6011 = vld [vmem:[%s6 + $0x8] sm:$0xff]
    %v6012 = vld [vmem:[%s6 + $0x10] sm:$0xff]
    %v6013 = vld [vmem:[%s6 + $0x18] sm:$0xff]
    %v6014 = vld [vmem:[%s6 + $0x20] sm:$0xff]
    %v6015 = vld [vmem:[%s6 + $0x28] sm:$0xff]
    %v6016 = vld [vmem:[%s6 + $0x30] sm:$0xff]
    %v6017 = vld [vmem:[%s6 + $0x38] sm:$0xff]
    %v6018 = vld [vmem:[%s6 + $0x40] sm:$0xff]
    %v6019 = vld [vmem:[%s6 + $0x48] sm:$0xff]
    %v6020 = vld [vmem:[%s6 + $0x50] sm:$0xff]
    %v6021 = vld [vmem:[%s6 + $0x58] sm:$0xff]
    %v6022 = vld [vmem:[%s6 + $0x60] sm:$0xff]
    %v6023 = vld [vmem:[%s6 + $0x68] sm:$0xff]
    %v6024 = vld [vmem:[%s6 + $0x70] sm:$0xff]
    %v6025 = vld [vmem:[%s6 + $0x78] sm:$0xff]
    %v6026 = vld [vmem:[%s6 + $0x80] sm:$0xff]
    %v6027 = vld [vmem:[%s6 + $0x88] sm:$0xff]
    %v6028 = vld [vmem:[%s6 + $0x90] sm:$0xff]
    %v6029 = vld [vmem:[%s6 + $0x98] sm:$0xff]
    %v6030 = vld [vmem:[%s6 + $0xa0] sm:$0xff]
    %v6031 = vld [vmem:[%s6 + $0xa8] sm:$0xff]
    %v6032 = vld [vmem:[%s6 + $0xb0] sm:$0xff]
    %v6033 = vld [vmem:[%s6 + $0xb8] sm:$0xff]
    %v6034 = vld [vmem:[%s6 + $0xc0] sm:$0xff]
    %v6035 = vld [vmem:[%s6 + $0xc8] sm:$0xff]
    %v6036 = vld [vmem:[%s6 + $0xd0] sm:$0xff]
    %v6037 = vld [vmem:[%s6 + $0xd8] sm:$0xff]
    %v6038 = vld [vmem:[%s6 + $0xe0] sm:$0xff]
    %v6039 = vld [vmem:[%s6 + $0xe8] sm:$0xff]
    %v6040 = vld [vmem:[%s6 + $0xf0] sm:$0xff]
    %v6041 = vld [vmem:[%s6 + $0xf8] sm:$0xff]
    %v6043 = vpack.i.b16 %v5994, %v5994
    %v6045 = vlaneseq
    %v6046 = vshrl.u32 %v6045, 7
    %v6047 = vsub.s32 0, %v6046
    %v6048 = vrot.slane %v6043, %v6047
    %v6050 = vpack.i.b16 %v5995, %v5995
    %v6052 = vlaneseq
    %v6053 = vshrl.u32 %v6052, 7
    %v6054 = vsub.s32 0, %v6053
    %v6055 = vrot.slane %v6050, %v6054
    %v6057 = vpack.i.b16 %v5996, %v5996
    %v6059 = vlaneseq
    %v6060 = vshrl.u32 %v6059, 7
    %v6061 = vsub.s32 0, %v6060
    %v6062 = vrot.slane %v6057, %v6061
    %v6064 = vpack.i.b16 %v5997, %v5997
    %v6066 = vlaneseq
    %v6067 = vshrl.u32 %v6066, 7
    %v6068 = vsub.s32 0, %v6067
    %v6069 = vrot.slane %v6064, %v6068
    %v6071 = vpack.i.b16 %v5998, %v5998
    %v6073 = vlaneseq
    %v6074 = vshrl.u32 %v6073, 7
    %v6075 = vsub.s32 0, %v6074
    %v6076 = vrot.slane %v6071, %v6075
    %v6078 = vpack.i.b16 %v5999, %v5999
    %v6080 = vlaneseq
    %v6081 = vshrl.u32 %v6080, 7
    %v6082 = vsub.s32 0, %v6081
    %v6083 = vrot.slane %v6078, %v6082
    %v6085 = vpack.i.b16 %v6000, %v6000
    %v6087 = vlaneseq
    %v6088 = vshrl.u32 %v6087, 7
    %v6089 = vsub.s32 0, %v6088
    %v6090 = vrot.slane %v6085, %v6089
    %v6092 = vpack.i.b16 %v6001, %v6001
    %v6094 = vlaneseq
    %v6095 = vshrl.u32 %v6094, 7
    %v6096 = vsub.s32 0, %v6095
    %v6097 = vrot.slane %v6092, %v6096
    %v6099 = vpack.i.b16 %v6002, %v6002
    %v6101 = vlaneseq
    %v6102 = vshrl.u32 %v6101, 7
    %v6103 = vsub.s32 0, %v6102
    %v6104 = vrot.slane %v6099, %v6103
    %v6106 = vpack.i.b16 %v6003, %v6003
    %v6108 = vlaneseq
    %v6109 = vshrl.u32 %v6108, 7
    %v6110 = vsub.s32 0, %v6109
    %v6111 = vrot.slane %v6106, %v6110
    %v6113 = vpack.i.b16 %v6004, %v6004
    %v6115 = vlaneseq
    %v6116 = vshrl.u32 %v6115, 7
    %v6117 = vsub.s32 0, %v6116
    %v6118 = vrot.slane %v6113, %v6117
    %v6120 = vpack.i.b16 %v6005, %v6005
    %v6122 = vlaneseq
    %v6123 = vshrl.u32 %v6122, 7
    %v6124 = vsub.s32 0, %v6123
    %v6125 = vrot.slane %v6120, %v6124
    %v6127 = vpack.i.b16 %v6006, %v6006
    %v6129 = vlaneseq
    %v6130 = vshrl.u32 %v6129, 7
    %v6131 = vsub.s32 0, %v6130
    %v6132 = vrot.slane %v6127, %v6131
    %v6134 = vpack.i.b16 %v6007, %v6007
    %v6136 = vlaneseq
    %v6137 = vshrl.u32 %v6136, 7
    %v6138 = vsub.s32 0, %v6137
    %v6139 = vrot.slane %v6134, %v6138
    %v6141 = vpack.i.b16 %v6008, %v6008
    %v6143 = vlaneseq
    %v6144 = vshrl.u32 %v6143, 7
    %v6145 = vsub.s32 0, %v6144
    %v6146 = vrot.slane %v6141, %v6145
    %v6148 = vpack.i.b16 %v6009, %v6009
    %v6150 = vlaneseq
    %v6151 = vshrl.u32 %v6150, 7
    %v6152 = vsub.s32 0, %v6151
    %v6153 = vrot.slane %v6148, %v6152
    %v6186 = vunpack.c.l.b16 %v6010
    %v6187 = vunpack.c.h.b16 %v6010
    %v6188 = vunpack.c.l.b16 %v6011
    %v6189 = vunpack.c.h.b16 %v6011
    %v6190 = vunpack.c.l.b16 %v6012
    %v6191 = vunpack.c.h.b16 %v6012
    %v6192 = vunpack.c.l.b16 %v6013
    %v6193 = vunpack.c.h.b16 %v6013
    %v6194 = vunpack.c.l.b16 %v6014
    %v6195 = vunpack.c.h.b16 %v6014
    %v6196 = vunpack.c.l.b16 %v6015
    %v6197 = vunpack.c.h.b16 %v6015
    %v6198 = vunpack.c.l.b16 %v6016
    %v6199 = vunpack.c.h.b16 %v6016
    %v6200 = vunpack.c.l.b16 %v6017
    %v6201 = vunpack.c.h.b16 %v6017
    %v6202 = vunpack.c.l.b16 %v6018
    %v6203 = vunpack.c.h.b16 %v6018
    %v6204 = vunpack.c.l.b16 %v6019
    %v6205 = vunpack.c.h.b16 %v6019
    %v6206 = vunpack.c.l.b16 %v6020
    %v6207 = vunpack.c.h.b16 %v6020
    %v6208 = vunpack.c.l.b16 %v6021
    %v6209 = vunpack.c.h.b16 %v6021
    %v6210 = vunpack.c.l.b16 %v6022
    %v6211 = vunpack.c.h.b16 %v6022
    %v6212 = vunpack.c.l.b16 %v6023
    %v6213 = vunpack.c.h.b16 %v6023
    %v6214 = vunpack.c.l.b16 %v6024
    %v6215 = vunpack.c.h.b16 %v6024
    %v6216 = vunpack.c.l.b16 %v6025
    %v6217 = vunpack.c.h.b16 %v6025
    %v6218 = vunpack.c.l.b16 %v6026
    %v6219 = vunpack.c.h.b16 %v6026
    %v6220 = vunpack.c.l.b16 %v6027
    %v6221 = vunpack.c.h.b16 %v6027
    %v6222 = vunpack.c.l.b16 %v6028
    %v6223 = vunpack.c.h.b16 %v6028
    %v6224 = vunpack.c.l.b16 %v6029
    %v6225 = vunpack.c.h.b16 %v6029
    %v6226 = vunpack.c.l.b16 %v6030
    %v6227 = vunpack.c.h.b16 %v6030
    %v6228 = vunpack.c.l.b16 %v6031
    %v6229 = vunpack.c.h.b16 %v6031
    %v6230 = vunpack.c.l.b16 %v6032
    %v6231 = vunpack.c.h.b16 %v6032
    %v6232 = vunpack.c.l.b16 %v6033
    %v6233 = vunpack.c.h.b16 %v6033
    %v6234 = vunpack.c.l.b16 %v6034
    %v6235 = vunpack.c.h.b16 %v6034
    %v6236 = vunpack.c.l.b16 %v6035
    %v6237 = vunpack.c.h.b16 %v6035
    %v6238 = vunpack.c.l.b16 %v6036
    %v6239 = vunpack.c.h.b16 %v6036
    %v6240 = vunpack.c.l.b16 %v6037
    %v6241 = vunpack.c.h.b16 %v6037
    %v6242 = vunpack.c.l.b16 %v6038
    %v6243 = vunpack.c.h.b16 %v6038
    %v6244 = vunpack.c.l.b16 %v6039
    %v6245 = vunpack.c.h.b16 %v6039
    %v6246 = vunpack.c.l.b16 %v6040
    %v6247 = vunpack.c.h.b16 %v6040
    %v6248 = vunpack.c.l.b16 %v6041
    %v6249 = vunpack.c.h.b16 %v6041
    %v6250 = vpack.c.b16 %v6202, %v6186
    %v6251 = vpack.c.b16 %v6203, %v6187
    %v6252 = vpack.c.b16 %v6204, %v6188
    %v6253 = vpack.c.b16 %v6205, %v6189
    %v6254 = vpack.c.b16 %v6206, %v6190
    %v6255 = vpack.c.b16 %v6207, %v6191
    %v6256 = vpack.c.b16 %v6208, %v6192
    %v6257 = vpack.c.b16 %v6209, %v6193
    %v6258 = vpack.c.b16 %v6210, %v6194
    %v6259 = vpack.c.b16 %v6211, %v6195
    %v6260 = vpack.c.b16 %v6212, %v6196
    %v6261 = vpack.c.b16 %v6213, %v6197
    %v6262 = vpack.c.b16 %v6214, %v6198
    %v6263 = vpack.c.b16 %v6215, %v6199
    %v6264 = vpack.c.b16 %v6216, %v6200
    %v6265 = vpack.c.b16 %v6217, %v6201
    %v6266 = vpack.c.b16 %v6234, %v6218
    %v6267 = vpack.c.b16 %v6235, %v6219
    %v6268 = vpack.c.b16 %v6236, %v6220
    %v6269 = vpack.c.b16 %v6237, %v6221
    %v6270 = vpack.c.b16 %v6238, %v6222
    %v6271 = vpack.c.b16 %v6239, %v6223
    %v6272 = vpack.c.b16 %v6240, %v6224
    %v6273 = vpack.c.b16 %v6241, %v6225
    %v6274 = vpack.c.b16 %v6242, %v6226
    %v6275 = vpack.c.b16 %v6243, %v6227
    %v6276 = vpack.c.b16 %v6244, %v6228
    %v6277 = vpack.c.b16 %v6245, %v6229
    %v6278 = vpack.c.b16 %v6246, %v6230
    %v6279 = vpack.c.b16 %v6247, %v6231
    %v6280 = vpack.c.b16 %v6248, %v6232
    %v6281 = vpack.c.b16 %v6249, %v6233
    %v6314 = vmul.bf16 %v6048, %v6250
    %v6315 = vmul.bf16 %v6055, %v6251
    %v6316 = vmul.bf16 %v6062, %v6252
    %v6317 = vmul.bf16 %v6069, %v6253
    %v6318 = vmul.bf16 %v6076, %v6254
    %v6319 = vmul.bf16 %v6083, %v6255
    %v6320 = vmul.bf16 %v6090, %v6256
    %v6321 = vmul.bf16 %v6097, %v6257
    %v6322 = vmul.bf16 %v6104, %v6258
    %v6323 = vmul.bf16 %v6111, %v6259
    %v6324 = vmul.bf16 %v6118, %v6260
    %v6325 = vmul.bf16 %v6125, %v6261
    %v6326 = vmul.bf16 %v6132, %v6262
    %v6327 = vmul.bf16 %v6139, %v6263
    %v6328 = vmul.bf16 %v6146, %v6264
    %v6329 = vmul.bf16 %v6153, %v6265
    %v6330 = vmul.bf16 %v6048, %v6266
    %v6331 = vmul.bf16 %v6055, %v6267
    %v6332 = vmul.bf16 %v6062, %v6268
    %v6333 = vmul.bf16 %v6069, %v6269
    %v6334 = vmul.bf16 %v6076, %v6270
    %v6335 = vmul.bf16 %v6083, %v6271
    %v6336 = vmul.bf16 %v6090, %v6272
    %v6337 = vmul.bf16 %v6097, %v6273
    %v6338 = vmul.bf16 %v6104, %v6274
    %v6339 = vmul.bf16 %v6111, %v6275
    %v6340 = vmul.bf16 %v6118, %v6276
    %v6341 = vmul.bf16 %v6125, %v6277
    %v6342 = vmul.bf16 %v6132, %v6278
    %v6343 = vmul.bf16 %v6139, %v6279
    %v6344 = vmul.bf16 %v6146, %v6280
    %v6345 = vmul.bf16 %v6153, %v6281
    %6346 = vst [vmem:[#allocation5] sm:$0xff] %v6314
    %6347 = vst [vmem:[#allocation5 + $0x8] sm:$0xff] %v6315
    %6348 = vst [vmem:[#allocation5 + $0x10] sm:$0xff] %v6316
    %6349 = vst [vmem:[#allocation5 + $0x18] sm:$0xff] %v6317
    %6350 = vst [vmem:[#allocation5 + $0x20] sm:$0xff] %v6318
    %6351 = vst [vmem:[#allocation5 + $0x28] sm:$0xff] %v6319
    %6352 = vst [vmem:[#allocation5 + $0x30] sm:$0xff] %v6320
    %6353 = vst [vmem:[#allocation5 + $0x38] sm:$0xff] %v6321
    %6354 = vst [vmem:[#allocation5 + $0x40] sm:$0xff] %v6322
    %6355 = vst [vmem:[#allocation5 + $0x48] sm:$0xff] %v6323
    %6356 = vst [vmem:[#allocation5 + $0x50] sm:$0xff] %v6324
    %6357 = vst [vmem:[#allocation5 + $0x58] sm:$0xff] %v6325
    %6358 = vst [vmem:[#allocation5 + $0x60] sm:$0xff] %v6326
    %6359 = vst [vmem:[#allocation5 + $0x68] sm:$0xff] %v6327
    %6360 = vst [vmem:[#allocation5 + $0x70] sm:$0xff] %v6328
    %6361 = vst [vmem:[#allocation5 + $0x78] sm:$0xff] %v6329
    %6362 = vst [vmem:[#allocation5 + $0x80] sm:$0xff] %v6330
    %6363 = vst [vmem:[#allocation5 + $0x88] sm:$0xff] %v6331
    %6364 = vst [vmem:[#allocation5 + $0x90] sm:$0xff] %v6332
    %6365 = vst [vmem:[#allocation5 + $0x98] sm:$0xff] %v6333
    %6366 = vst [vmem:[#allocation5 + $0xa0] sm:$0xff] %v6334
    %6367 = vst [vmem:[#allocation5 + $0xa8] sm:$0xff] %v6335
    %6368 = vst [vmem:[#allocation5 + $0xb0] sm:$0xff] %v6336
    %6369 = vst [vmem:[#allocation5 + $0xb8] sm:$0xff] %v6337
    %6370 = vst [vmem:[#allocation5 + $0xc0] sm:$0xff] %v6338
    %6371 = vst [vmem:[#allocation5 + $0xc8] sm:$0xff] %v6339
    %6372 = vst [vmem:[#allocation5 + $0xd0] sm:$0xff] %v6340
    %6373 = vst [vmem:[#allocation5 + $0xd8] sm:$0xff] %v6341
    %6374 = vst [vmem:[#allocation5 + $0xe0] sm:$0xff] %v6342
    %6375 = vst [vmem:[#allocation5 + $0xe8] sm:$0xff] %v6343
    %6376 = vst [vmem:[#allocation5 + $0xf0] sm:$0xff] %v6344
    %6377 = vst [vmem:[#allocation5 + $0xf8] sm:$0xff] %v6345
    %v6378 = vshrl.u32 %v5994, 16
    %v6379 = vpack.i.b16 %v6378, %v6378
    %v6381 = vlaneseq
    %v6382 = vshrl.u32 %v6381, 7
    %v6383 = vsub.s32 0, %v6382
    %v6384 = vrot.slane %v6379, %v6383
    %v6385 = vshrl.u32 %v5995, 16
    %v6386 = vpack.i.b16 %v6385, %v6385
    %v6388 = vlaneseq
    %v6389 = vshrl.u32 %v6388, 7
    %v6390 = vsub.s32 0, %v6389
    %v6391 = vrot.slane %v6386, %v6390
    %v6392 = vshrl.u32 %v5996, 16
    %v6393 = vpack.i.b16 %v6392, %v6392
    %v6395 = vlaneseq
    %v6396 = vshrl.u32 %v6395, 7
    %v6397 = vsub.s32 0, %v6396
    %v6398 = vrot.slane %v6393, %v6397
    %v6399 = vshrl.u32 %v5997, 16
    %v6400 = vpack.i.b16 %v6399, %v6399
    %v6402 = vlaneseq
    %v6403 = vshrl.u32 %v6402, 7
    %v6404 = vsub.s32 0, %v6403
    %v6405 = vrot.slane %v6400, %v6404
    %v6406 = vshrl.u32 %v5998, 16
    %v6407 = vpack.i.b16 %v6406, %v6406
    %v6409 = vlaneseq
    %v6410 = vshrl.u32 %v6409, 7
    %v6411 = vsub.s32 0, %v6410
    %v6412 = vrot.slane %v6407, %v6411
    %v6413 = vshrl.u32 %v5999, 16
    %v6414 = vpack.i.b16 %v6413, %v6413
    %v6416 = vlaneseq
    %v6417 = vshrl.u32 %v6416, 7
    %v6418 = vsub.s32 0, %v6417
    %v6419 = vrot.slane %v6414, %v6418
    %v6420 = vshrl.u32 %v6000, 16
    %v6421 = vpack.i.b16 %v6420, %v6420
    %v6423 = vlaneseq
    %v6424 = vshrl.u32 %v6423, 7
    %v6425 = vsub.s32 0, %v6424
    %v6426 = vrot.slane %v6421, %v6425
    %v6427 = vshrl.u32 %v6001, 16
    %v6428 = vpack.i.b16 %v6427, %v6427
    %v6430 = vlaneseq
    %v6431 = vshrl.u32 %v6430, 7
    %v6432 = vsub.s32 0, %v6431
    %v6433 = vrot.slane %v6428, %v6432
    %v6434 = vshrl.u32 %v6002, 16
    %v6435 = vpack.i.b16 %v6434, %v6434
    %v6437 = vlaneseq
    %v6438 = vshrl.u32 %v6437, 7
    %v6439 = vsub.s32 0, %v6438
    %v6440 = vrot.slane %v6435, %v6439
    %v6441 = vshrl.u32 %v6003, 16
    %v6442 = vpack.i.b16 %v6441, %v6441
    %v6444 = vlaneseq
    %v6445 = vshrl.u32 %v6444, 7
    %v6446 = vsub.s32 0, %v6445
    %v6447 = vrot.slane %v6442, %v6446
    %v6448 = vshrl.u32 %v6004, 16
    %v6449 = vpack.i.b16 %v6448, %v6448
    %v6451 = vlaneseq
    %v6452 = vshrl.u32 %v6451, 7
    %v6453 = vsub.s32 0, %v6452
    %v6454 = vrot.slane %v6449, %v6453
    %v6455 = vshrl.u32 %v6005, 16
    %v6456 = vpack.i.b16 %v6455, %v6455
    %v6458 = vlaneseq
    %v6459 = vshrl.u32 %v6458, 7
    %v6460 = vsub.s32 0, %v6459
    %v6461 = vrot.slane %v6456, %v6460
    %v6462 = vshrl.u32 %v6006, 16
    %v6463 = vpack.i.b16 %v6462, %v6462
    %v6465 = vlaneseq
    %v6466 = vshrl.u32 %v6465, 7
    %v6467 = vsub.s32 0, %v6466
    %v6468 = vrot.slane %v6463, %v6467
    %v6469 = vshrl.u32 %v6007, 16
    %v6470 = vpack.i.b16 %v6469, %v6469
    %v6472 = vlaneseq
    %v6473 = vshrl.u32 %v6472, 7
    %v6474 = vsub.s32 0, %v6473
    %v6475 = vrot.slane %v6470, %v6474
    %v6476 = vshrl.u32 %v6008, 16
    %v6477 = vpack.i.b16 %v6476, %v6476
    %v6479 = vlaneseq
    %v6480 = vshrl.u32 %v6479, 7
    %v6481 = vsub.s32 0, %v6480
    %v6482 = vrot.slane %v6477, %v6481
    %v6483 = vshrl.u32 %v6009, 16
    %v6484 = vpack.i.b16 %v6483, %v6483
    %v6486 = vlaneseq
    %v6487 = vshrl.u32 %v6486, 7
    %v6488 = vsub.s32 0, %v6487
    %v6489 = vrot.slane %v6484, %v6488
    %v6490 = vmul.bf16 %v6384, %v6250
    %v6491 = vmul.bf16 %v6391, %v6251
    %v6492 = vmul.bf16 %v6398, %v6252
    %v6493 = vmul.bf16 %v6405, %v6253
    %v6494 = vmul.bf16 %v6412, %v6254
    %v6495 = vmul.bf16 %v6419, %v6255
    %v6496 = vmul.bf16 %v6426, %v6256
    %v6497 = vmul.bf16 %v6433, %v6257
    %v6498 = vmul.bf16 %v6440, %v6258
    %v6499 = vmul.bf16 %v6447, %v6259
    %v6500 = vmul.bf16 %v6454, %v6260
    %v6501 = vmul.bf16 %v6461, %v6261
    %v6502 = vmul.bf16 %v6468, %v6262
    %v6503 = vmul.bf16 %v6475, %v6263
    %v6504 = vmul.bf16 %v6482, %v6264
    %v6505 = vmul.bf16 %v6489, %v6265
    %v6506 = vmul.bf16 %v6384, %v6266
    %v6507 = vmul.bf16 %v6391, %v6267
    %v6508 = vmul.bf16 %v6398, %v6268
    %v6509 = vmul.bf16 %v6405, %v6269
    %v6510 = vmul.bf16 %v6412, %v6270
    %v6511 = vmul.bf16 %v6419, %v6271
    %v6512 = vmul.bf16 %v6426, %v6272
    %v6513 = vmul.bf16 %v6433, %v6273
    %v6514 = vmul.bf16 %v6440, %v6274
    %v6515 = vmul.bf16 %v6447, %v6275
    %v6516 = vmul.bf16 %v6454, %v6276
    %v6517 = vmul.bf16 %v6461, %v6277
    %v6518 = vmul.bf16 %v6468, %v6278
    %v6519 = vmul.bf16 %v6475, %v6279
    %v6520 = vmul.bf16 %v6482, %v6280
    %v6521 = vmul.bf16 %v6489, %v6281
    %6522 = vst [vmem:[#allocation5 + $0x100] sm:$0xff] %v6490
    %6523 = vst [vmem:[#allocation5 + $0x108] sm:$0xff] %v6491
    %6524 = vst [vmem:[#allocation5 + $0x110] sm:$0xff] %v6492
    %6525 = vst [vmem:[#allocation5 + $0x118] sm:$0xff] %v6493
    %6526 = vst [vmem:[#allocation5 + $0x120] sm:$0xff] %v6494
    %6527 = vst [vmem:[#allocation5 + $0x128] sm:$0xff] %v6495
    %6528 = vst [vmem:[#allocation5 + $0x130] sm:$0xff] %v6496
    %6529 = vst [vmem:[#allocation5 + $0x138] sm:$0xff] %v6497
    %6530 = vst [vmem:[#allocation5 + $0x140] sm:$0xff] %v6498
    %6531 = vst [vmem:[#allocation5 + $0x148] sm:$0xff] %v6499
    %6532 = vst [vmem:[#allocation5 + $0x150] sm:$0xff] %v6500
    %6533 = vst [vmem:[#allocation5 + $0x158] sm:$0xff] %v6501
    %6534 = vst [vmem:[#allocation5 + $0x160] sm:$0xff] %v6502
    %6535 = vst [vmem:[#allocation5 + $0x168] sm:$0xff] %v6503
    %6536 = vst [vmem:[#allocation5 + $0x170] sm:$0xff] %v6504
    %6537 = vst [vmem:[#allocation5 + $0x178] sm:$0xff] %v6505
    %6538 = vst [vmem:[#allocation5 + $0x180] sm:$0xff] %v6506
    %6539 = vst [vmem:[#allocation5 + $0x188] sm:$0xff] %v6507
    %6540 = vst [vmem:[#allocation5 + $0x190] sm:$0xff] %v6508
    %6541 = vst [vmem:[#allocation5 + $0x198] sm:$0xff] %v6509
    %6542 = vst [vmem:[#allocation5 + $0x1a0] sm:$0xff] %v6510
    %6543 = vst [vmem:[#allocation5 + $0x1a8] sm:$0xff] %v6511
    %6544 = vst [vmem:[#allocation5 + $0x1b0] sm:$0xff] %v6512
    %6545 = vst [vmem:[#allocation5 + $0x1b8] sm:$0xff] %v6513
    %6546 = vst [vmem:[#allocation5 + $0x1c0] sm:$0xff] %v6514
    %6547 = vst [vmem:[#allocation5 + $0x1c8] sm:$0xff] %v6515
    %6548 = vst [vmem:[#allocation5 + $0x1d0] sm:$0xff] %v6516
    %6549 = vst [vmem:[#allocation5 + $0x1d8] sm:$0xff] %v6517
    %6550 = vst [vmem:[#allocation5 + $0x1e0] sm:$0xff] %v6518
    %6551 = vst [vmem:[#allocation5 + $0x1e8] sm:$0xff] %v6519
    %6552 = vst [vmem:[#allocation5 + $0x1f0] sm:$0xff] %v6520
    %6553 = vst [vmem:[#allocation5 + $0x1f8] sm:$0xff] %v6521
    %v6554 = vlaneseq
    %v6555 = vshrl.u32 %v6554, 7
    %v6556 = vsub.s32 1, %v6555
    %v6557 = vrot.slane %v6043, %v6556
    %v6558 = vlaneseq
    %v6559 = vshrl.u32 %v6558, 7
    %v6560 = vsub.s32 1, %v6559
    %v6561 = vrot.slane %v6050, %v6560
    %v6562 = vlaneseq
    %v6563 = vshrl.u32 %v6562, 7
    %v6564 = vsub.s32 1, %v6563
    %v6565 = vrot.slane %v6057, %v6564
    %v6566 = vlaneseq
    %v6567 = vshrl.u32 %v6566, 7
    %v6568 = vsub.s32 1, %v6567
    %v6569 = vrot.slane %v6064, %v6568
    %v6570 = vlaneseq
    %v6571 = vshrl.u32 %v6570, 7
    %v6572 = vsub.s32 1, %v6571
    %v6573 = vrot.slane %v6071, %v6572
    %v6574 = vlaneseq
    %v6575 = vshrl.u32 %v6574, 7
    %v6576 = vsub.s32 1, %v6575
    %v6577 = vrot.slane %v6078, %v6576
    %v6578 = vlaneseq
    %v6579 = vshrl.u32 %v6578, 7
    %v6580 = vsub.s32 1, %v6579
    %v6581 = vrot.slane %v6085, %v6580
    %v6582 = vlaneseq
    %v6583 = vshrl.u32 %v6582, 7
    %v6584 = vsub.s32 1, %v6583
    %v6585 = vrot.slane %v6092, %v6584
    %v6586 = vlaneseq
    %v6587 = vshrl.u32 %v6586, 7
    %v6588 = vsub.s32 1, %v6587
    %v6589 = vrot.slane %v6099, %v6588
    %v6590 = vlaneseq
    %v6591 = vshrl.u32 %v6590, 7
    %v6592 = vsub.s32 1, %v6591
    %v6593 = vrot.slane %v6106, %v6592
    %v6594 = vlaneseq
    %v6595 = vshrl.u32 %v6594, 7
    %v6596 = vsub.s32 1, %v6595
    %v6597 = vrot.slane %v6113, %v6596
    %v6598 = vlaneseq
    %v6599 = vshrl.u32 %v6598, 7
    %v6600 = vsub.s32 1, %v6599
    %v6601 = vrot.slane %v6120, %v6600
    %v6602 = vlaneseq
    %v6603 = vshrl.u32 %v6602, 7
    %v6604 = vsub.s32 1, %v6603
    %v6605 = vrot.slane %v6127, %v6604
    %v6606 = vlaneseq
    %v6607 = vshrl.u32 %v6606, 7
    %v6608 = vsub.s32 1, %v6607
    %v6609 = vrot.slane %v6134, %v6608
    %v6610 = vlaneseq
    %v6611 = vshrl.u32 %v6610, 7
    %v6612 = vsub.s32 1, %v6611
    %v6613 = vrot.slane %v6141, %v6612
    %v6614 = vlaneseq
    %v6615 = vshrl.u32 %v6614, 7
    %v6616 = vsub.s32 1, %v6615
    %v6617 = vrot.slane %v6148, %v6616
    %v6618 = vmul.bf16 %v6557, %v6250
    %v6619 = vmul.bf16 %v6561, %v6251
    %v6620 = vmul.bf16 %v6565, %v6252
    %v6621 = vmul.bf16 %v6569, %v6253
    %v6622 = vmul.bf16 %v6573, %v6254
    %v6623 = vmul.bf16 %v6577, %v6255
    %v6624 = vmul.bf16 %v6581, %v6256
    %v6625 = vmul.bf16 %v6585, %v6257
    %v6626 = vmul.bf16 %v6589, %v6258
    %v6627 = vmul.bf16 %v6593, %v6259
    %v6628 = vmul.bf16 %v6597, %v6260
    %v6629 = vmul.bf16 %v6601, %v6261
    %v6630 = vmul.bf16 %v6605, %v6262
    %v6631 = vmul.bf16 %v6609, %v6263
    %v6632 = vmul.bf16 %v6613, %v6264
    %v6633 = vmul.bf16 %v6617, %v6265
    %v6634 = vmul.bf16 %v6557, %v6266
    %v6635 = vmul.bf16 %v6561, %v6267
    %v6636 = vmul.bf16 %v6565, %v6268
    %v6637 = vmul.bf16 %v6569, %v6269
    %v6638 = vmul.bf16 %v6573, %v6270
    %v6639 = vmul.bf16 %v6577, %v6271
    %v6640 = vmul.bf16 %v6581, %v6272
    %v6641 = vmul.bf16 %v6585, %v6273
    %v6642 = vmul.bf16 %v6589, %v6274
    %v6643 = vmul.bf16 %v6593, %v6275
    %v6644 = vmul.bf16 %v6597, %v6276
    %v6645 = vmul.bf16 %v6601, %v6277
    %v6646 = vmul.bf16 %v6605, %v6278
    %v6647 = vmul.bf16 %v6609, %v6279
    %v6648 = vmul.bf16 %v6613, %v6280
    %v6649 = vmul.bf16 %v6617, %v6281
    %6650 = vst [vmem:[#allocation5 + $0x200] sm:$0xff] %v6618
    %6651 = vst [vmem:[#allocation5 + $0x208] sm:$0xff] %v6619
    %6652 = vst [vmem:[#allocation5 + $0x210] sm:$0xff] %v6620
    %6653 = vst [vmem:[#allocation5 + $0x218] sm:$0xff] %v6621
    %6654 = vst [vmem:[#allocation5 + $0x220] sm:$0xff] %v6622
    %6655 = vst [vmem:[#allocation5 + $0x228] sm:$0xff] %v6623
    %6656 = vst [vmem:[#allocation5 + $0x230] sm:$0xff] %v6624
    %6657 = vst [vmem:[#allocation5 + $0x238] sm:$0xff] %v6625
    %6658 = vst [vmem:[#allocation5 + $0x240] sm:$0xff] %v6626
    %6659 = vst [vmem:[#allocation5 + $0x248] sm:$0xff] %v6627
    %6660 = vst [vmem:[#allocation5 + $0x250] sm:$0xff] %v6628
    %6661 = vst [vmem:[#allocation5 + $0x258] sm:$0xff] %v6629
    %6662 = vst [vmem:[#allocation5 + $0x260] sm:$0xff] %v6630
    %6663 = vst [vmem:[#allocation5 + $0x268] sm:$0xff] %v6631
    %6664 = vst [vmem:[#allocation5 + $0x270] sm:$0xff] %v6632
    %6665 = vst [vmem:[#allocation5 + $0x278] sm:$0xff] %v6633
    %6666 = vst [vmem:[#allocation5 + $0x280] sm:$0xff] %v6634
    %6667 = vst [vmem:[#allocation5 + $0x288] sm:$0xff] %v6635
    %6668 = vst [vmem:[#allocation5 + $0x290] sm:$0xff] %v6636
    %6669 = vst [vmem:[#allocation5 + $0x298] sm:$0xff] %v6637
    %6670 = vst [vmem:[#allocation5 + $0x2a0] sm:$0xff] %v6638
    %6671 = vst [vmem:[#allocation5 + $0x2a8] sm:$0xff] %v6639
    %6672 = vst [vmem:[#allocation5 + $0x2b0] sm:$0xff] %v6640
    %6673 = vst [vmem:[#allocation5 + $0x2b8] sm:$0xff] %v6641
    %6674 = vst [vmem:[#allocation5 + $0x2c0] sm:$0xff] %v6642
    %6675 = vst [vmem:[#allocation5 + $0x2c8] sm:$0xff] %v6643
    %6676 = vst [vmem:[#allocation5 + $0x2d0] sm:$0xff] %v6644
    %6677 = vst [vmem:[#allocation5 + $0x2d8] sm:$0xff] %v6645
    %6678 = vst [vmem:[#allocation5 + $0x2e0] sm:$0xff] %v6646
    %6679 = vst [vmem:[#allocation5 + $0x2e8] sm:$0xff] %v6647
    %6680 = vst [vmem:[#allocation5 + $0x2f0] sm:$0xff] %v6648
    %6681 = vst [vmem:[#allocation5 + $0x2f8] sm:$0xff] %v6649
    %v6682 = vlaneseq
    %v6683 = vshrl.u32 %v6682, 7
    %v6684 = vsub.s32 1, %v6683
    %v6685 = vrot.slane %v6379, %v6684
    %v6686 = vlaneseq
    %v6687 = vshrl.u32 %v6686, 7
    %v6688 = vsub.s32 1, %v6687
    %v6689 = vrot.slane %v6386, %v6688
    %v6690 = vlaneseq
    %v6691 = vshrl.u32 %v6690, 7
    %v6692 = vsub.s32 1, %v6691
    %v6693 = vrot.slane %v6393, %v6692
    %v6694 = vlaneseq
    %v6695 = vshrl.u32 %v6694, 7
    %v6696 = vsub.s32 1, %v6695
    %v6697 = vrot.slane %v6400, %v6696
    %v6698 = vlaneseq
    %v6699 = vshrl.u32 %v6698, 7
    %v6700 = vsub.s32 1, %v6699
    %v6701 = vrot.slane %v6407, %v6700
    %v6702 = vlaneseq
    %v6703 = vshrl.u32 %v6702, 7
    %v6704 = vsub.s32 1, %v6703
    %v6705 = vrot.slane %v6414, %v6704
    %v6706 = vlaneseq
    %v6707 = vshrl.u32 %v6706, 7
    %v6708 = vsub.s32 1, %v6707
    %v6709 = vrot.slane %v6421, %v6708
    %v6710 = vlaneseq
    %v6711 = vshrl.u32 %v6710, 7
    %v6712 = vsub.s32 1, %v6711
    %v6713 = vrot.slane %v6428, %v6712
    %v6714 = vlaneseq
    %v6715 = vshrl.u32 %v6714, 7
    %v6716 = vsub.s32 1, %v6715
    %v6717 = vrot.slane %v6435, %v6716
    %v6718 = vlaneseq
    %v6719 = vshrl.u32 %v6718, 7
    %v6720 = vsub.s32 1, %v6719
    %v6721 = vrot.slane %v6442, %v6720
    %v6722 = vlaneseq
    %v6723 = vshrl.u32 %v6722, 7
    %v6724 = vsub.s32 1, %v6723
    %v6725 = vrot.slane %v6449, %v6724
    %v6726 = vlaneseq
    %v6727 = vshrl.u32 %v6726, 7
    %v6728 = vsub.s32 1, %v6727
    %v6729 = vrot.slane %v6456, %v6728
    %v6730 = vlaneseq
    %v6731 = vshrl.u32 %v6730, 7
    %v6732 = vsub.s32 1, %v6731
    %v6733 = vrot.slane %v6463, %v6732
    %v6734 = vlaneseq
    %v6735 = vshrl.u32 %v6734, 7
    %v6736 = vsub.s32 1, %v6735
    %v6737 = vrot.slane %v6470, %v6736
    %v6738 = vlaneseq
    %v6739 = vshrl.u32 %v6738, 7
    %v6740 = vsub.s32 1, %v6739
    %v6741 = vrot.slane %v6477, %v6740
    %v6742 = vlaneseq
    %v6743 = vshrl.u32 %v6742, 7
    %v6744 = vsub.s32 1, %v6743
    %v6745 = vrot.slane %v6484, %v6744
    %v6746 = vmul.bf16 %v6685, %v6250
    %v6747 = vmul.bf16 %v6689, %v6251
    %v6748 = vmul.bf16 %v6693, %v6252
    %v6749 = vmul.bf16 %v6697, %v6253
    %v6750 = vmul.bf16 %v6701, %v6254
    %v6751 = vmul.bf16 %v6705, %v6255
    %v6752 = vmul.bf16 %v6709, %v6256
    %v6753 = vmul.bf16 %v6713, %v6257
    %v6754 = vmul.bf16 %v6717, %v6258
    %v6755 = vmul.bf16 %v6721, %v6259
    %v6756 = vmul.bf16 %v6725, %v6260
    %v6757 = vmul.bf16 %v6729, %v6261
    %v6758 = vmul.bf16 %v6733, %v6262
    %v6759 = vmul.bf16 %v6737, %v6263
    %v6760 = vmul.bf16 %v6741, %v6264
    %v6761 = vmul.bf16 %v6745, %v6265
    %v6762 = vmul.bf16 %v6685, %v6266
    %v6763 = vmul.bf16 %v6689, %v6267
    %v6764 = vmul.bf16 %v6693, %v6268
    %v6765 = vmul.bf16 %v6697, %v6269
    %v6766 = vmul.bf16 %v6701, %v6270
    %v6767 = vmul.bf16 %v6705, %v6271
    %v6768 = vmul.bf16 %v6709, %v6272
    %v6769 = vmul.bf16 %v6713, %v6273
    %v6770 = vmul.bf16 %v6717, %v6274
    %v6771 = vmul.bf16 %v6721, %v6275
    %v6772 = vmul.bf16 %v6725, %v6276
    %v6773 = vmul.bf16 %v6729, %v6277
    %v6774 = vmul.bf16 %v6733, %v6278
    %v6775 = vmul.bf16 %v6737, %v6279
    %v6776 = vmul.bf16 %v6741, %v6280
    %v6777 = vmul.bf16 %v6745, %v6281
    %6778 = vst [vmem:[#allocation5 + $0x300] sm:$0xff] %v6746
    %6779 = vst [vmem:[#allocation5 + $0x308] sm:$0xff] %v6747
    %6780 = vst [vmem:[#allocation5 + $0x310] sm:$0xff] %v6748
    %6781 = vst [vmem:[#allocation5 + $0x318] sm:$0xff] %v6749
    %6782 = vst [vmem:[#allocation5 + $0x320] sm:$0xff] %v6750
    %6783 = vst [vmem:[#allocation5 + $0x328] sm:$0xff] %v6751
    %6784 = vst [vmem:[#allocation5 + $0x330] sm:$0xff] %v6752
    %6785 = vst [vmem:[#allocation5 + $0x338] sm:$0xff] %v6753
    %6786 = vst [vmem:[#allocation5 + $0x340] sm:$0xff] %v6754
    %6787 = vst [vmem:[#allocation5 + $0x348] sm:$0xff] %v6755
    %6788 = vst [vmem:[#allocation5 + $0x350] sm:$0xff] %v6756
    %6789 = vst [vmem:[#allocation5 + $0x358] sm:$0xff] %v6757
    %6790 = vst [vmem:[#allocation5 + $0x360] sm:$0xff] %v6758
    %6791 = vst [vmem:[#allocation5 + $0x368] sm:$0xff] %v6759
    %6792 = vst [vmem:[#allocation5 + $0x370] sm:$0xff] %v6760
    %6793 = vst [vmem:[#allocation5 + $0x378] sm:$0xff] %v6761
    %6794 = vst [vmem:[#allocation5 + $0x380] sm:$0xff] %v6762
    %6795 = vst [vmem:[#allocation5 + $0x388] sm:$0xff] %v6763
    %6796 = vst [vmem:[#allocation5 + $0x390] sm:$0xff] %v6764
    %6797 = vst [vmem:[#allocation5 + $0x398] sm:$0xff] %v6765
    %6798 = vst [vmem:[#allocation5 + $0x3a0] sm:$0xff] %v6766
    %6799 = vst [vmem:[#allocation5 + $0x3a8] sm:$0xff] %v6767
    %6800 = vst [vmem:[#allocation5 + $0x3b0] sm:$0xff] %v6768
    %6801 = vst [vmem:[#allocation5 + $0x3b8] sm:$0xff] %v6769
    %6802 = vst [vmem:[#allocation5 + $0x3c0] sm:$0xff] %v6770
    %6803 = vst [vmem:[#allocation5 + $0x3c8] sm:$0xff] %v6771
    %6804 = vst [vmem:[#allocation5 + $0x3d0] sm:$0xff] %v6772
    %6805 = vst [vmem:[#allocation5 + $0x3d8] sm:$0xff] %v6773
    %6806 = vst [vmem:[#allocation5 + $0x3e0] sm:$0xff] %v6774
    %6807 = vst [vmem:[#allocation5 + $0x3e8] sm:$0xff] %v6775
    %6808 = vst [vmem:[#allocation5 + $0x3f0] sm:$0xff] %v6776
    %6809 = vst [vmem:[#allocation5 + $0x3f8] sm:$0xff] %v6777
    %v6810 = vlaneseq
    %v6811 = vshrl.u32 %v6810, 7
    %v6812 = vsub.s32 2, %v6811
    %v6813 = vrot.slane %v6043, %v6812
    %v6814 = vlaneseq
    %v6815 = vshrl.u32 %v6814, 7
    %v6816 = vsub.s32 2, %v6815
    %v6817 = vrot.slane %v6050, %v6816
    %v6818 = vlaneseq
    %v6819 = vshrl.u32 %v6818, 7
    %v6820 = vsub.s32 2, %v6819
    %v6821 = vrot.slane %v6057, %v6820
    %v6822 = vlaneseq
    %v6823 = vshrl.u32 %v6822, 7
    %v6824 = vsub.s32 2, %v6823
    %v6825 = vrot.slane %v6064, %v6824
    %v6826 = vlaneseq
    %v6827 = vshrl.u32 %v6826, 7
    %v6828 = vsub.s32 2, %v6827
    %v6829 = vrot.slane %v6071, %v6828
    %v6830 = vlaneseq
    %v6831 = vshrl.u32 %v6830, 7
    %v6832 = vsub.s32 2, %v6831
    %v6833 = vrot.slane %v6078, %v6832
    %v6834 = vlaneseq
    %v6835 = vshrl.u32 %v6834, 7
    %v6836 = vsub.s32 2, %v6835
    %v6837 = vrot.slane %v6085, %v6836
    %v6838 = vlaneseq
    %v6839 = vshrl.u32 %v6838, 7
    %v6840 = vsub.s32 2, %v6839
    %v6841 = vrot.slane %v6092, %v6840
    %v6842 = vlaneseq
    %v6843 = vshrl.u32 %v6842, 7
    %v6844 = vsub.s32 2, %v6843
    %v6845 = vrot.slane %v6099, %v6844
    %v6846 = vlaneseq
    %v6847 = vshrl.u32 %v6846, 7
    %v6848 = vsub.s32 2, %v6847
    %v6849 = vrot.slane %v6106, %v6848
    %v6850 = vlaneseq
    %v6851 = vshrl.u32 %v6850, 7
    %v6852 = vsub.s32 2, %v6851
    %v6853 = vrot.slane %v6113, %v6852
    %v6854 = vlaneseq
    %v6855 = vshrl.u32 %v6854, 7
    %v6856 = vsub.s32 2, %v6855
    %v6857 = vrot.slane %v6120, %v6856
    %v6858 = vlaneseq
    %v6859 = vshrl.u32 %v6858, 7
    %v6860 = vsub.s32 2, %v6859
    %v6861 = vrot.slane %v6127, %v6860
    %v6862 = vlaneseq
    %v6863 = vshrl.u32 %v6862, 7
    %v6864 = vsub.s32 2, %v6863
    %v6865 = vrot.slane %v6134, %v6864
    %v6866 = vlaneseq
    %v6867 = vshrl.u32 %v6866, 7
    %v6868 = vsub.s32 2, %v6867
    %v6869 = vrot.slane %v6141, %v6868
    %v6870 = vlaneseq
    %v6871 = vshrl.u32 %v6870, 7
    %v6872 = vsub.s32 2, %v6871
    %v6873 = vrot.slane %v6148, %v6872
    %v6874 = vmul.bf16 %v6813, %v6250
    %v6875 = vmul.bf16 %v6817, %v6251
    %v6876 = vmul.bf16 %v6821, %v6252
    %v6877 = vmul.bf16 %v6825, %v6253
    %v6878 = vmul.bf16 %v6829, %v6254
    %v6879 = vmul.bf16 %v6833, %v6255
    %v6880 = vmul.bf16 %v6837, %v6256
    %v6881 = vmul.bf16 %v6841, %v6257
    %v6882 = vmul.bf16 %v6845, %v6258
    %v6883 = vmul.bf16 %v6849, %v6259
    %v6884 = vmul.bf16 %v6853, %v6260
    %v6885 = vmul.bf16 %v6857, %v6261
    %v6886 = vmul.bf16 %v6861, %v6262
    %v6887 = vmul.bf16 %v6865, %v6263
    %v6888 = vmul.bf16 %v6869, %v6264
    %v6889 = vmul.bf16 %v6873, %v6265
    %v6890 = vmul.bf16 %v6813, %v6266
    %v6891 = vmul.bf16 %v6817, %v6267
    %v6892 = vmul.bf16 %v6821, %v6268
    %v6893 = vmul.bf16 %v6825, %v6269
    %v6894 = vmul.bf16 %v6829, %v6270
    %v6895 = vmul.bf16 %v6833, %v6271
    %v6896 = vmul.bf16 %v6837, %v6272
    %v6897 = vmul.bf16 %v6841, %v6273
    %v6898 = vmul.bf16 %v6845, %v6274
    %v6899 = vmul.bf16 %v6849, %v6275
    %v6900 = vmul.bf16 %v6853, %v6276
    %v6901 = vmul.bf16 %v6857, %v6277
    %v6902 = vmul.bf16 %v6861, %v6278
    %v6903 = vmul.bf16 %v6865, %v6279
    %v6904 = vmul.bf16 %v6869, %v6280
    %v6905 = vmul.bf16 %v6873, %v6281
    %6906 = vst [vmem:[#allocation5 + $0x400] sm:$0xff] %v6874
    %6907 = vst [vmem:[#allocation5 + $0x408] sm:$0xff] %v6875
    %6908 = vst [vmem:[#allocation5 + $0x410] sm:$0xff] %v6876
    %6909 = vst [vmem:[#allocation5 + $0x418] sm:$0xff] %v6877
    %6910 = vst [vmem:[#allocation5 + $0x420] sm:$0xff] %v6878
    %6911 = vst [vmem:[#allocation5 + $0x428] sm:$0xff] %v6879
    %6912 = vst [vmem:[#allocation5 + $0x430] sm:$0xff] %v6880
    %6913 = vst [vmem:[#allocation5 + $0x438] sm:$0xff] %v6881
    %6914 = vst [vmem:[#allocation5 + $0x440] sm:$0xff] %v6882
    %6915 = vst [vmem:[#allocation5 + $0x448] sm:$0xff] %v6883
    %6916 = vst [vmem:[#allocation5 + $0x450] sm:$0xff] %v6884
    %6917 = vst [vmem:[#allocation5 + $0x458] sm:$0xff] %v6885
    %6918 = vst [vmem:[#allocation5 + $0x460] sm:$0xff] %v6886
    %6919 = vst [vmem:[#allocation5 + $0x468] sm:$0xff] %v6887
    %6920 = vst [vmem:[#allocation5 + $0x470] sm:$0xff] %v6888
    %6921 = vst [vmem:[#allocation5 + $0x478] sm:$0xff] %v6889
    %6922 = vst [vmem:[#allocation5 + $0x480] sm:$0xff] %v6890
    %6923 = vst [vmem:[#allocation5 + $0x488] sm:$0xff] %v6891
    %6924 = vst [vmem:[#allocation5 + $0x490] sm:$0xff] %v6892
    %6925 = vst [vmem:[#allocation5 + $0x498] sm:$0xff] %v6893
    %6926 = vst [vmem:[#allocation5 + $0x4a0] sm:$0xff] %v6894
    %6927 = vst [vmem:[#allocation5 + $0x4a8] sm:$0xff] %v6895
    %6928 = vst [vmem:[#allocation5 + $0x4b0] sm:$0xff] %v6896
    %6929 = vst [vmem:[#allocation5 + $0x4b8] sm:$0xff] %v6897
    %6930 = vst [vmem:[#allocation5 + $0x4c0] sm:$0xff] %v6898
    %6931 = vst [vmem:[#allocation5 + $0x4c8] sm:$0xff] %v6899
    %6932 = vst [vmem:[#allocation5 + $0x4d0] sm:$0xff] %v6900
    %6933 = vst [vmem:[#allocation5 + $0x4d8] sm:$0xff] %v6901
    %6934 = vst [vmem:[#allocation5 + $0x4e0] sm:$0xff] %v6902
    %6935 = vst [vmem:[#allocation5 + $0x4e8] sm:$0xff] %v6903
    %6936 = vst [vmem:[#allocation5 + $0x4f0] sm:$0xff] %v6904
    %6937 = vst [vmem:[#allocation5 + $0x4f8] sm:$0xff] %v6905
    %v6938 = vlaneseq
    %v6939 = vshrl.u32 %v6938, 7
    %v6940 = vsub.s32 2, %v6939
    %v6941 = vrot.slane %v6379, %v6940
    %v6942 = vlaneseq
    %v6943 = vshrl.u32 %v6942, 7
    %v6944 = vsub.s32 2, %v6943
    %v6945 = vrot.slane %v6386, %v6944
    %v6946 = vlaneseq
    %v6947 = vshrl.u32 %v6946, 7
    %v6948 = vsub.s32 2, %v6947
    %v6949 = vrot.slane %v6393, %v6948
    %v6950 = vlaneseq
    %v6951 = vshrl.u32 %v6950, 7
    %v6952 = vsub.s32 2, %v6951
    %v6953 = vrot.slane %v6400, %v6952
    %v6954 = vlaneseq
    %v6955 = vshrl.u32 %v6954, 7
    %v6956 = vsub.s32 2, %v6955
    %v6957 = vrot.slane %v6407, %v6956
    %v6958 = vlaneseq
    %v6959 = vshrl.u32 %v6958, 7
    %v6960 = vsub.s32 2, %v6959
    %v6961 = vrot.slane %v6414, %v6960
    %v6962 = vlaneseq
    %v6963 = vshrl.u32 %v6962, 7
    %v6964 = vsub.s32 2, %v6963
    %v6965 = vrot.slane %v6421, %v6964
    %v6966 = vlaneseq
    %v6967 = vshrl.u32 %v6966, 7
    %v6968 = vsub.s32 2, %v6967
    %v6969 = vrot.slane %v6428, %v6968
    %v6970 = vlaneseq
    %v6971 = vshrl.u32 %v6970, 7
    %v6972 = vsub.s32 2, %v6971
    %v6973 = vrot.slane %v6435, %v6972
    %v6974 = vlaneseq
    %v6975 = vshrl.u32 %v6974, 7
    %v6976 = vsub.s32 2, %v6975
    %v6977 = vrot.slane %v6442, %v6976
    %v6978 = vlaneseq
    %v6979 = vshrl.u32 %v6978, 7
    %v6980 = vsub.s32 2, %v6979
    %v6981 = vrot.slane %v6449, %v6980
    %v6982 = vlaneseq
    %v6983 = vshrl.u32 %v6982, 7
    %v6984 = vsub.s32 2, %v6983
    %v6985 = vrot.slane %v6456, %v6984
    %v6986 = vlaneseq
    %v6987 = vshrl.u32 %v6986, 7
    %v6988 = vsub.s32 2, %v6987
    %v6989 = vrot.slane %v6463, %v6988
    %v6990 = vlaneseq
    %v6991 = vshrl.u32 %v6990, 7
    %v6992 = vsub.s32 2, %v6991
    %v6993 = vrot.slane %v6470, %v6992
    %v6994 = vlaneseq
    %v6995 = vshrl.u32 %v6994, 7
    %v6996 = vsub.s32 2, %v6995
    %v6997 = vrot.slane %v6477, %v6996
    %v6998 = vlaneseq
    %v6999 = vshrl.u32 %v6998, 7
    %v7000 = vsub.s32 2, %v6999
    %v7001 = vrot.slane %v6484, %v7000
    %v7002 = vmul.bf16 %v6941, %v6250
    %v7003 = vmul.bf16 %v6945, %v6251
    %v7004 = vmul.bf16 %v6949, %v6252
    %v7005 = vmul.bf16 %v6953, %v6253
    %v7006 = vmul.bf16 %v6957, %v6254
    %v7007 = vmul.bf16 %v6961, %v6255
    %v7008 = vmul.bf16 %v6965, %v6256
    %v7009 = vmul.bf16 %v6969, %v6257
    %v7010 = vmul.bf16 %v6973, %v6258
    %v7011 = vmul.bf16 %v6977, %v6259
    %v7012 = vmul.bf16 %v6981, %v6260
    %v7013 = vmul.bf16 %v6985, %v6261
    %v7014 = vmul.bf16 %v6989, %v6262
    %v7015 = vmul.bf16 %v6993, %v6263
    %v7016 = vmul.bf16 %v6997, %v6264
    %v7017 = vmul.bf16 %v7001, %v6265
    %v7018 = vmul.bf16 %v6941, %v6266
    %v7019 = vmul.bf16 %v6945, %v6267
    %v7020 = vmul.bf16 %v6949, %v6268
    %v7021 = vmul.bf16 %v6953, %v6269
    %v7022 = vmul.bf16 %v6957, %v6270
    %v7023 = vmul.bf16 %v6961, %v6271
    %v7024 = vmul.bf16 %v6965, %v6272
    %v7025 = vmul.bf16 %v6969, %v6273
    %v7026 = vmul.bf16 %v6973, %v6274
    %v7027 = vmul.bf16 %v6977, %v6275
    %v7028 = vmul.bf16 %v6981, %v6276
    %v7029 = vmul.bf16 %v6985, %v6277
    %v7030 = vmul.bf16 %v6989, %v6278
    %v7031 = vmul.bf16 %v6993, %v6279
    %v7032 = vmul.bf16 %v6997, %v6280
    %v7033 = vmul.bf16 %v7001, %v6281
    %7034 = vst [vmem:[#allocation5 + $0x500] sm:$0xff] %v7002
    %7035 = vst [vmem:[#allocation5 + $0x508] sm:$0xff] %v7003
    %7036 = vst [vmem:[#allocation5 + $0x510] sm:$0xff] %v7004
    %7037 = vst [vmem:[#allocation5 + $0x518] sm:$0xff] %v7005
    %7038 = vst [vmem:[#allocation5 + $0x520] sm:$0xff] %v7006
    %7039 = vst [vmem:[#allocation5 + $0x528] sm:$0xff] %v7007
    %7040 = vst [vmem:[#allocation5 + $0x530] sm:$0xff] %v7008
    %7041 = vst [vmem:[#allocation5 + $0x538] sm:$0xff] %v7009
    %7042 = vst [vmem:[#allocation5 + $0x540] sm:$0xff] %v7010
    %7043 = vst [vmem:[#allocation5 + $0x548] sm:$0xff] %v7011
    %7044 = vst [vmem:[#allocation5 + $0x550] sm:$0xff] %v7012
    %7045 = vst [vmem:[#allocation5 + $0x558] sm:$0xff] %v7013
    %7046 = vst [vmem:[#allocation5 + $0x560] sm:$0xff] %v7014
    %7047 = vst [vmem:[#allocation5 + $0x568] sm:$0xff] %v7015
    %7048 = vst [vmem:[#allocation5 + $0x570] sm:$0xff] %v7016
    %7049 = vst [vmem:[#allocation5 + $0x578] sm:$0xff] %v7017
    %7050 = vst [vmem:[#allocation5 + $0x580] sm:$0xff] %v7018
    %7051 = vst [vmem:[#allocation5 + $0x588] sm:$0xff] %v7019
    %7052 = vst [vmem:[#allocation5 + $0x590] sm:$0xff] %v7020
    %7053 = vst [vmem:[#allocation5 + $0x598] sm:$0xff] %v7021
    %7054 = vst [vmem:[#allocation5 + $0x5a0] sm:$0xff] %v7022
    %7055 = vst [vmem:[#allocation5 + $0x5a8] sm:$0xff] %v7023
    %7056 = vst [vmem:[#allocation5 + $0x5b0] sm:$0xff] %v7024
    %7057 = vst [vmem:[#allocation5 + $0x5b8] sm:$0xff] %v7025
    %7058 = vst [vmem:[#allocation5 + $0x5c0] sm:$0xff] %v7026
    %7059 = vst [vmem:[#allocation5 + $0x5c8] sm:$0xff] %v7027
    %7060 = vst [vmem:[#allocation5 + $0x5d0] sm:$0xff] %v7028
    %7061 = vst [vmem:[#allocation5 + $0x5d8] sm:$0xff] %v7029
    %7062 = vst [vmem:[#allocation5 + $0x5e0] sm:$0xff] %v7030
    %7063 = vst [vmem:[#allocation5 + $0x5e8] sm:$0xff] %v7031
    %7064 = vst [vmem:[#allocation5 + $0x5f0] sm:$0xff] %v7032
    %7065 = vst [vmem:[#allocation5 + $0x5f8] sm:$0xff] %v7033
    %v7066 = vlaneseq
    %v7067 = vshrl.u32 %v7066, 7
    %v7068 = vsub.s32 3, %v7067
    %v7069 = vrot.slane %v6043, %v7068
    %v7070 = vlaneseq
    %v7071 = vshrl.u32 %v7070, 7
    %v7072 = vsub.s32 3, %v7071
    %v7073 = vrot.slane %v6050, %v7072
    %v7074 = vlaneseq
    %v7075 = vshrl.u32 %v7074, 7
    %v7076 = vsub.s32 3, %v7075
    %v7077 = vrot.slane %v6057, %v7076
    %v7078 = vlaneseq
    %v7079 = vshrl.u32 %v7078, 7
    %v7080 = vsub.s32 3, %v7079
    %v7081 = vrot.slane %v6064, %v7080
    %v7082 = vlaneseq
    %v7083 = vshrl.u32 %v7082, 7
    %v7084 = vsub.s32 3, %v7083
    %v7085 = vrot.slane %v6071, %v7084
    %v7086 = vlaneseq
    %v7087 = vshrl.u32 %v7086, 7
    %v7088 = vsub.s32 3, %v7087
    %v7089 = vrot.slane %v6078, %v7088
    %v7090 = vlaneseq
    %v7091 = vshrl.u32 %v7090, 7
    %v7092 = vsub.s32 3, %v7091
    %v7093 = vrot.slane %v6085, %v7092
    %v7094 = vlaneseq
    %v7095 = vshrl.u32 %v7094, 7
    %v7096 = vsub.s32 3, %v7095
    %v7097 = vrot.slane %v6092, %v7096
    %v7098 = vlaneseq
    %v7099 = vshrl.u32 %v7098, 7
    %v7100 = vsub.s32 3, %v7099
    %v7101 = vrot.slane %v6099, %v7100
    %v7102 = vlaneseq
    %v7103 = vshrl.u32 %v7102, 7
    %v7104 = vsub.s32 3, %v7103
    %v7105 = vrot.slane %v6106, %v7104
    %v7106 = vlaneseq
    %v7107 = vshrl.u32 %v7106, 7
    %v7108 = vsub.s32 3, %v7107
    %v7109 = vrot.slane %v6113, %v7108
    %v7110 = vlaneseq
    %v7111 = vshrl.u32 %v7110, 7
    %v7112 = vsub.s32 3, %v7111
    %v7113 = vrot.slane %v6120, %v7112
    %v7114 = vlaneseq
    %v7115 = vshrl.u32 %v7114, 7
    %v7116 = vsub.s32 3, %v7115
    %v7117 = vrot.slane %v6127, %v7116
    %v7118 = vlaneseq
    %v7119 = vshrl.u32 %v7118, 7
    %v7120 = vsub.s32 3, %v7119
    %v7121 = vrot.slane %v6134, %v7120
    %v7122 = vlaneseq
    %v7123 = vshrl.u32 %v7122, 7
    %v7124 = vsub.s32 3, %v7123
    %v7125 = vrot.slane %v6141, %v7124
    %v7126 = vlaneseq
    %v7127 = vshrl.u32 %v7126, 7
    %v7128 = vsub.s32 3, %v7127
    %v7129 = vrot.slane %v6148, %v7128
    %v7130 = vmul.bf16 %v7069, %v6250
    %v7131 = vmul.bf16 %v7073, %v6251
    %v7132 = vmul.bf16 %v7077, %v6252
    %v7133 = vmul.bf16 %v7081, %v6253
    %v7134 = vmul.bf16 %v7085, %v6254
    %v7135 = vmul.bf16 %v7089, %v6255
    %v7136 = vmul.bf16 %v7093, %v6256
    %v7137 = vmul.bf16 %v7097, %v6257
    %v7138 = vmul.bf16 %v7101, %v6258
    %v7139 = vmul.bf16 %v7105, %v6259
    %v7140 = vmul.bf16 %v7109, %v6260
    %v7141 = vmul.bf16 %v7113, %v6261
    %v7142 = vmul.bf16 %v7117, %v6262
    %v7143 = vmul.bf16 %v7121, %v6263
    %v7144 = vmul.bf16 %v7125, %v6264
    %v7145 = vmul.bf16 %v7129, %v6265
    %v7146 = vmul.bf16 %v7069, %v6266
    %v7147 = vmul.bf16 %v7073, %v6267
    %v7148 = vmul.bf16 %v7077, %v6268
    %v7149 = vmul.bf16 %v7081, %v6269
    %v7150 = vmul.bf16 %v7085, %v6270
    %v7151 = vmul.bf16 %v7089, %v6271
    %v7152 = vmul.bf16 %v7093, %v6272
    %v7153 = vmul.bf16 %v7097, %v6273
    %v7154 = vmul.bf16 %v7101, %v6274
    %v7155 = vmul.bf16 %v7105, %v6275
    %v7156 = vmul.bf16 %v7109, %v6276
    %v7157 = vmul.bf16 %v7113, %v6277
    %v7158 = vmul.bf16 %v7117, %v6278
    %v7159 = vmul.bf16 %v7121, %v6279
    %v7160 = vmul.bf16 %v7125, %v6280
    %v7161 = vmul.bf16 %v7129, %v6281
    %7162 = vst [vmem:[#allocation5 + $0x600] sm:$0xff] %v7130
    %7163 = vst [vmem:[#allocation5 + $0x608] sm:$0xff] %v7131
    %7164 = vst [vmem:[#allocation5 + $0x610] sm:$0xff] %v7132
    %7165 = vst [vmem:[#allocation5 + $0x618] sm:$0xff] %v7133
    %7166 = vst [vmem:[#allocation5 + $0x620] sm:$0xff] %v7134
    %7167 = vst [vmem:[#allocation5 + $0x628] sm:$0xff] %v7135
    %7168 = vst [vmem:[#allocation5 + $0x630] sm:$0xff] %v7136
    %7169 = vst [vmem:[#allocation5 + $0x638] sm:$0xff] %v7137
    %7170 = vst [vmem:[#allocation5 + $0x640] sm:$0xff] %v7138
    %7171 = vst [vmem:[#allocation5 + $0x648] sm:$0xff] %v7139
    %7172 = vst [vmem:[#allocation5 + $0x650] sm:$0xff] %v7140
    %7173 = vst [vmem:[#allocation5 + $0x658] sm:$0xff] %v7141
    %7174 = vst [vmem:[#allocation5 + $0x660] sm:$0xff] %v7142
    %7175 = vst [vmem:[#allocation5 + $0x668] sm:$0xff] %v7143
    %7176 = vst [vmem:[#allocation5 + $0x670] sm:$0xff] %v7144
    %7177 = vst [vmem:[#allocation5 + $0x678] sm:$0xff] %v7145
    %7178 = vst [vmem:[#allocation5 + $0x680] sm:$0xff] %v7146
    %7179 = vst [vmem:[#allocation5 + $0x688] sm:$0xff] %v7147
    %7180 = vst [vmem:[#allocation5 + $0x690] sm:$0xff] %v7148
    %7181 = vst [vmem:[#allocation5 + $0x698] sm:$0xff] %v7149
    %7182 = vst [vmem:[#allocation5 + $0x6a0] sm:$0xff] %v7150
    %7183 = vst [vmem:[#allocation5 + $0x6a8] sm:$0xff] %v7151
    %7184 = vst [vmem:[#allocation5 + $0x6b0] sm:$0xff] %v7152
    %7185 = vst [vmem:[#allocation5 + $0x6b8] sm:$0xff] %v7153
    %7186 = vst [vmem:[#allocation5 + $0x6c0] sm:$0xff] %v7154
    %7187 = vst [vmem:[#allocation5 + $0x6c8] sm:$0xff] %v7155
    %7188 = vst [vmem:[#allocation5 + $0x6d0] sm:$0xff] %v7156
    %7189 = vst [vmem:[#allocation5 + $0x6d8] sm:$0xff] %v7157
    %7190 = vst [vmem:[#allocation5 + $0x6e0] sm:$0xff] %v7158
    %7191 = vst [vmem:[#allocation5 + $0x6e8] sm:$0xff] %v7159
    %7192 = vst [vmem:[#allocation5 + $0x6f0] sm:$0xff] %v7160
    %7193 = vst [vmem:[#allocation5 + $0x6f8] sm:$0xff] %v7161
    %v7194 = vlaneseq
    %v7195 = vshrl.u32 %v7194, 7
    %v7196 = vsub.s32 3, %v7195
    %v7197 = vrot.slane %v6379, %v7196
    %v7198 = vlaneseq
    %v7199 = vshrl.u32 %v7198, 7
    %v7200 = vsub.s32 3, %v7199
    %v7201 = vrot.slane %v6386, %v7200
    %v7202 = vlaneseq
    %v7203 = vshrl.u32 %v7202, 7
    %v7204 = vsub.s32 3, %v7203
    %v7205 = vrot.slane %v6393, %v7204
    %v7206 = vlaneseq
    %v7207 = vshrl.u32 %v7206, 7
    %v7208 = vsub.s32 3, %v7207
    %v7209 = vrot.slane %v6400, %v7208
    %v7210 = vlaneseq
    %v7211 = vshrl.u32 %v7210, 7
    %v7212 = vsub.s32 3, %v7211
    %v7213 = vrot.slane %v6407, %v7212
    %v7214 = vlaneseq
    %v7215 = vshrl.u32 %v7214, 7
    %v7216 = vsub.s32 3, %v7215
    %v7217 = vrot.slane %v6414, %v7216
    %v7218 = vlaneseq
    %v7219 = vshrl.u32 %v7218, 7
    %v7220 = vsub.s32 3, %v7219
    %v7221 = vrot.slane %v6421, %v7220
    %v7222 = vlaneseq
    %v7223 = vshrl.u32 %v7222, 7
    %v7224 = vsub.s32 3, %v7223
    %v7225 = vrot.slane %v6428, %v7224
    %v7226 = vlaneseq
    %v7227 = vshrl.u32 %v7226, 7
    %v7228 = vsub.s32 3, %v7227
    %v7229 = vrot.slane %v6435, %v7228
    %v7230 = vlaneseq
    %v7231 = vshrl.u32 %v7230, 7
    %v7232 = vsub.s32 3, %v7231
    %v7233 = vrot.slane %v6442, %v7232
    %v7234 = vlaneseq
    %v7235 = vshrl.u32 %v7234, 7
    %v7236 = vsub.s32 3, %v7235
    %v7237 = vrot.slane %v6449, %v7236
    %v7238 = vlaneseq
    %v7239 = vshrl.u32 %v7238, 7
    %v7240 = vsub.s32 3, %v7239
    %v7241 = vrot.slane %v6456, %v7240
    %v7242 = vlaneseq
    %v7243 = vshrl.u32 %v7242, 7
    %v7244 = vsub.s32 3, %v7243
    %v7245 = vrot.slane %v6463, %v7244
    %v7246 = vlaneseq
    %v7247 = vshrl.u32 %v7246, 7
    %v7248 = vsub.s32 3, %v7247
    %v7249 = vrot.slane %v6470, %v7248
    %v7250 = vlaneseq
    %v7251 = vshrl.u32 %v7250, 7
    %v7252 = vsub.s32 3, %v7251
    %v7253 = vrot.slane %v6477, %v7252
    %v7254 = vlaneseq
    %v7255 = vshrl.u32 %v7254, 7
    %v7256 = vsub.s32 3, %v7255
    %v7257 = vrot.slane %v6484, %v7256
    %v7258 = vmul.bf16 %v7197, %v6250
    %v7259 = vmul.bf16 %v7201, %v6251
    %v7260 = vmul.bf16 %v7205, %v6252
    %v7261 = vmul.bf16 %v7209, %v6253
    %v7262 = vmul.bf16 %v7213, %v6254
    %v7263 = vmul.bf16 %v7217, %v6255
    %v7264 = vmul.bf16 %v7221, %v6256
    %v7265 = vmul.bf16 %v7225, %v6257
    %v7266 = vmul.bf16 %v7229, %v6258
    %v7267 = vmul.bf16 %v7233, %v6259
    %v7268 = vmul.bf16 %v7237, %v6260
    %v7269 = vmul.bf16 %v7241, %v6261
    %v7270 = vmul.bf16 %v7245, %v6262
    %v7271 = vmul.bf16 %v7249, %v6263
    %v7272 = vmul.bf16 %v7253, %v6264
    %v7273 = vmul.bf16 %v7257, %v6265
    %v7274 = vmul.bf16 %v7197, %v6266
    %v7275 = vmul.bf16 %v7201, %v6267
    %v7276 = vmul.bf16 %v7205, %v6268
    %v7277 = vmul.bf16 %v7209, %v6269
    %v7278 = vmul.bf16 %v7213, %v6270
    %v7279 = vmul.bf16 %v7217, %v6271
    %v7280 = vmul.bf16 %v7221, %v6272
    %v7281 = vmul.bf16 %v7225, %v6273
    %v7282 = vmul.bf16 %v7229, %v6274
    %v7283 = vmul.bf16 %v7233, %v6275
    %v7284 = vmul.bf16 %v7237, %v6276
    %v7285 = vmul.bf16 %v7241, %v6277
    %v7286 = vmul.bf16 %v7245, %v6278
    %v7287 = vmul.bf16 %v7249, %v6279
    %v7288 = vmul.bf16 %v7253, %v6280
    %v7289 = vmul.bf16 %v7257, %v6281
    %7290 = vst [vmem:[#allocation5 + $0x700] sm:$0xff] %v7258
    %7291 = vst [vmem:[#allocation5 + $0x708] sm:$0xff] %v7259
    %7292 = vst [vmem:[#allocation5 + $0x710] sm:$0xff] %v7260
    %7293 = vst [vmem:[#allocation5 + $0x718] sm:$0xff] %v7261
    %7294 = vst [vmem:[#allocation5 + $0x720] sm:$0xff] %v7262
    %7295 = vst [vmem:[#allocation5 + $0x728] sm:$0xff] %v7263
    %7296 = vst [vmem:[#allocation5 + $0x730] sm:$0xff] %v7264
    %7297 = vst [vmem:[#allocation5 + $0x738] sm:$0xff] %v7265
    %7298 = vst [vmem:[#allocation5 + $0x740] sm:$0xff] %v7266
    %7299 = vst [vmem:[#allocation5 + $0x748] sm:$0xff] %v7267
    %7300 = vst [vmem:[#allocation5 + $0x750] sm:$0xff] %v7268
    %7301 = vst [vmem:[#allocation5 + $0x758] sm:$0xff] %v7269
    %7302 = vst [vmem:[#allocation5 + $0x760] sm:$0xff] %v7270
    %7303 = vst [vmem:[#allocation5 + $0x768] sm:$0xff] %v7271
    %7304 = vst [vmem:[#allocation5 + $0x770] sm:$0xff] %v7272
    %7305 = vst [vmem:[#allocation5 + $0x778] sm:$0xff] %v7273
    %7306 = vst [vmem:[#allocation5 + $0x780] sm:$0xff] %v7274
    %7307 = vst [vmem:[#allocation5 + $0x788] sm:$0xff] %v7275
    %7308 = vst [vmem:[#allocation5 + $0x790] sm:$0xff] %v7276
    %7309 = vst [vmem:[#allocation5 + $0x798] sm:$0xff] %v7277
    %7310 = vst [vmem:[#allocation5 + $0x7a0] sm:$0xff] %v7278
    %7311 = vst [vmem:[#allocation5 + $0x7a8] sm:$0xff] %v7279
    %7312 = vst [vmem:[#allocation5 + $0x7b0] sm:$0xff] %v7280
    %7313 = vst [vmem:[#allocation5 + $0x7b8] sm:$0xff] %v7281
    %7314 = vst [vmem:[#allocation5 + $0x7c0] sm:$0xff] %v7282
    %7315 = vst [vmem:[#allocation5 + $0x7c8] sm:$0xff] %v7283
    %7316 = vst [vmem:[#allocation5 + $0x7d0] sm:$0xff] %v7284
    %7317 = vst [vmem:[#allocation5 + $0x7d8] sm:$0xff] %v7285
    %7318 = vst [vmem:[#allocation5 + $0x7e0] sm:$0xff] %v7286
    %7319 = vst [vmem:[#allocation5 + $0x7e8] sm:$0xff] %v7287
    %7320 = vst [vmem:[#allocation5 + $0x7f0] sm:$0xff] %v7288
    %7321 = vst [vmem:[#allocation5 + $0x7f8] sm:$0xff] %v7289
    %v7322 = vlaneseq
    %v7323 = vshrl.u32 %v7322, 7
    %v7324 = vsub.s32 4, %v7323
    %v7325 = vrot.slane %v6043, %v7324
    %v7326 = vlaneseq
    %v7327 = vshrl.u32 %v7326, 7
    %v7328 = vsub.s32 4, %v7327
    %v7329 = vrot.slane %v6050, %v7328
    %v7330 = vlaneseq
    %v7331 = vshrl.u32 %v7330, 7
    %v7332 = vsub.s32 4, %v7331
    %v7333 = vrot.slane %v6057, %v7332
    %v7334 = vlaneseq
    %v7335 = vshrl.u32 %v7334, 7
    %v7336 = vsub.s32 4, %v7335
    %v7337 = vrot.slane %v6064, %v7336
    %v7338 = vlaneseq
    %v7339 = vshrl.u32 %v7338, 7
    %v7340 = vsub.s32 4, %v7339
    %v7341 = vrot.slane %v6071, %v7340
    %v7342 = vlaneseq
    %v7343 = vshrl.u32 %v7342, 7
    %v7344 = vsub.s32 4, %v7343
    %v7345 = vrot.slane %v6078, %v7344
    %v7346 = vlaneseq
    %v7347 = vshrl.u32 %v7346, 7
    %v7348 = vsub.s32 4, %v7347
    %v7349 = vrot.slane %v6085, %v7348
    %v7350 = vlaneseq
    %v7351 = vshrl.u32 %v7350, 7
    %v7352 = vsub.s32 4, %v7351
    %v7353 = vrot.slane %v6092, %v7352
    %v7354 = vlaneseq
    %v7355 = vshrl.u32 %v7354, 7
    %v7356 = vsub.s32 4, %v7355
    %v7357 = vrot.slane %v6099, %v7356
    %v7358 = vlaneseq
    %v7359 = vshrl.u32 %v7358, 7
    %v7360 = vsub.s32 4, %v7359
    %v7361 = vrot.slane %v6106, %v7360
    %v7362 = vlaneseq
    %v7363 = vshrl.u32 %v7362, 7
    %v7364 = vsub.s32 4, %v7363
    %v7365 = vrot.slane %v6113, %v7364
    %v7366 = vlaneseq
    %v7367 = vshrl.u32 %v7366, 7
    %v7368 = vsub.s32 4, %v7367
    %v7369 = vrot.slane %v6120, %v7368
    %v7370 = vlaneseq
    %v7371 = vshrl.u32 %v7370, 7
    %v7372 = vsub.s32 4, %v7371
    %v7373 = vrot.slane %v6127, %v7372
    %v7374 = vlaneseq
    %v7375 = vshrl.u32 %v7374, 7
    %v7376 = vsub.s32 4, %v7375
    %v7377 = vrot.slane %v6134, %v7376
    %v7378 = vlaneseq
    %v7379 = vshrl.u32 %v7378, 7
    %v7380 = vsub.s32 4, %v7379
    %v7381 = vrot.slane %v6141, %v7380
    %v7382 = vlaneseq
    %v7383 = vshrl.u32 %v7382, 7
    %v7384 = vsub.s32 4, %v7383
    %v7385 = vrot.slane %v6148, %v7384
    %v7386 = vmul.bf16 %v7325, %v6250
    %v7387 = vmul.bf16 %v7329, %v6251
    %v7388 = vmul.bf16 %v7333, %v6252
    %v7389 = vmul.bf16 %v7337, %v6253
    %v7390 = vmul.bf16 %v7341, %v6254
    %v7391 = vmul.bf16 %v7345, %v6255
    %v7392 = vmul.bf16 %v7349, %v6256
    %v7393 = vmul.bf16 %v7353, %v6257
    %v7394 = vmul.bf16 %v7357, %v6258
    %v7395 = vmul.bf16 %v7361, %v6259
    %v7396 = vmul.bf16 %v7365, %v6260
    %v7397 = vmul.bf16 %v7369, %v6261
    %v7398 = vmul.bf16 %v7373, %v6262
    %v7399 = vmul.bf16 %v7377, %v6263
    %v7400 = vmul.bf16 %v7381, %v6264
    %v7401 = vmul.bf16 %v7385, %v6265
    %v7402 = vmul.bf16 %v7325, %v6266
    %v7403 = vmul.bf16 %v7329, %v6267
    %v7404 = vmul.bf16 %v7333, %v6268
    %v7405 = vmul.bf16 %v7337, %v6269
    %v7406 = vmul.bf16 %v7341, %v6270
    %v7407 = vmul.bf16 %v7345, %v6271
    %v7408 = vmul.bf16 %v7349, %v6272
    %v7409 = vmul.bf16 %v7353, %v6273
    %v7410 = vmul.bf16 %v7357, %v6274
    %v7411 = vmul.bf16 %v7361, %v6275
    %v7412 = vmul.bf16 %v7365, %v6276
    %v7413 = vmul.bf16 %v7369, %v6277
    %v7414 = vmul.bf16 %v7373, %v6278
    %v7415 = vmul.bf16 %v7377, %v6279
    %v7416 = vmul.bf16 %v7381, %v6280
    %v7417 = vmul.bf16 %v7385, %v6281
    %7418 = vst [vmem:[#allocation5 + $0x800] sm:$0xff] %v7386
    %7419 = vst [vmem:[#allocation5 + $0x808] sm:$0xff] %v7387
    %7420 = vst [vmem:[#allocation5 + $0x810] sm:$0xff] %v7388
    %7421 = vst [vmem:[#allocation5 + $0x818] sm:$0xff] %v7389
    %7422 = vst [vmem:[#allocation5 + $0x820] sm:$0xff] %v7390
    %7423 = vst [vmem:[#allocation5 + $0x828] sm:$0xff] %v7391
    %7424 = vst [vmem:[#allocation5 + $0x830] sm:$0xff] %v7392
    %7425 = vst [vmem:[#allocation5 + $0x838] sm:$0xff] %v7393
    %7426 = vst [vmem:[#allocation5 + $0x840] sm:$0xff] %v7394
    %7427 = vst [vmem:[#allocation5 + $0x848] sm:$0xff] %v7395
    %7428 = vst [vmem:[#allocation5 + $0x850] sm:$0xff] %v7396
    %7429 = vst [vmem:[#allocation5 + $0x858] sm:$0xff] %v7397
    %7430 = vst [vmem:[#allocation5 + $0x860] sm:$0xff] %v7398
    %7431 = vst [vmem:[#allocation5 + $0x868] sm:$0xff] %v7399
    %7432 = vst [vmem:[#allocation5 + $0x870] sm:$0xff] %v7400
    %7433 = vst [vmem:[#allocation5 + $0x878] sm:$0xff] %v7401
    %7434 = vst [vmem:[#allocation5 + $0x880] sm:$0xff] %v7402
    %7435 = vst [vmem:[#allocation5 + $0x888] sm:$0xff] %v7403
    %7436 = vst [vmem:[#allocation5 + $0x890] sm:$0xff] %v7404
    %7437 = vst [vmem:[#allocation5 + $0x898] sm:$0xff] %v7405
    %7438 = vst [vmem:[#allocation5 + $0x8a0] sm:$0xff] %v7406
    %7439 = vst [vmem:[#allocation5 + $0x8a8] sm:$0xff] %v7407
    %7440 = vst [vmem:[#allocation5 + $0x8b0] sm:$0xff] %v7408
    %7441 = vst [vmem:[#allocation5 + $0x8b8] sm:$0xff] %v7409
    %7442 = vst [vmem:[#allocation5 + $0x8c0] sm:$0xff] %v7410
    %7443 = vst [vmem:[#allocation5 + $0x8c8] sm:$0xff] %v7411
    %7444 = vst [vmem:[#allocation5 + $0x8d0] sm:$0xff] %v7412
    %7445 = vst [vmem:[#allocation5 + $0x8d8] sm:$0xff] %v7413
    %7446 = vst [vmem:[#allocation5 + $0x8e0] sm:$0xff] %v7414
    %7447 = vst [vmem:[#allocation5 + $0x8e8] sm:$0xff] %v7415
    %7448 = vst [vmem:[#allocation5 + $0x8f0] sm:$0xff] %v7416
    %7449 = vst [vmem:[#allocation5 + $0x8f8] sm:$0xff] %v7417
    %v7450 = vlaneseq
    %v7451 = vshrl.u32 %v7450, 7
    %v7452 = vsub.s32 4, %v7451
    %v7453 = vrot.slane %v6379, %v7452
    %v7454 = vlaneseq
    %v7455 = vshrl.u32 %v7454, 7
    %v7456 = vsub.s32 4, %v7455
    %v7457 = vrot.slane %v6386, %v7456
    %v7458 = vlaneseq
    %v7459 = vshrl.u32 %v7458, 7
    %v7460 = vsub.s32 4, %v7459
    %v7461 = vrot.slane %v6393, %v7460
    %v7462 = vlaneseq
    %v7463 = vshrl.u32 %v7462, 7
    %v7464 = vsub.s32 4, %v7463
    %v7465 = vrot.slane %v6400, %v7464
    %v7466 = vlaneseq
    %v7467 = vshrl.u32 %v7466, 7
    %v7468 = vsub.s32 4, %v7467
    %v7469 = vrot.slane %v6407, %v7468
    %v7470 = vlaneseq
    %v7471 = vshrl.u32 %v7470, 7
    %v7472 = vsub.s32 4, %v7471
    %v7473 = vrot.slane %v6414, %v7472
    %v7474 = vlaneseq
    %v7475 = vshrl.u32 %v7474, 7
    %v7476 = vsub.s32 4, %v7475
    %v7477 = vrot.slane %v6421, %v7476
    %v7478 = vlaneseq
    %v7479 = vshrl.u32 %v7478, 7
    %v7480 = vsub.s32 4, %v7479
    %v7481 = vrot.slane %v6428, %v7480
    %v7482 = vlaneseq
    %v7483 = vshrl.u32 %v7482, 7
    %v7484 = vsub.s32 4, %v7483
    %v7485 = vrot.slane %v6435, %v7484
    %v7486 = vlaneseq
    %v7487 = vshrl.u32 %v7486, 7
    %v7488 = vsub.s32 4, %v7487
    %v7489 = vrot.slane %v6442, %v7488
    %v7490 = vlaneseq
    %v7491 = vshrl.u32 %v7490, 7
    %v7492 = vsub.s32 4, %v7491
    %v7493 = vrot.slane %v6449, %v7492
    %v7494 = vlaneseq
    %v7495 = vshrl.u32 %v7494, 7
    %v7496 = vsub.s32 4, %v7495
    %v7497 = vrot.slane %v6456, %v7496
    %v7498 = vlaneseq
    %v7499 = vshrl.u32 %v7498, 7
    %v7500 = vsub.s32 4, %v7499
    %v7501 = vrot.slane %v6463, %v7500
    %v7502 = vlaneseq
    %v7503 = vshrl.u32 %v7502, 7
    %v7504 = vsub.s32 4, %v7503
    %v7505 = vrot.slane %v6470, %v7504
    %v7506 = vlaneseq
    %v7507 = vshrl.u32 %v7506, 7
    %v7508 = vsub.s32 4, %v7507
    %v7509 = vrot.slane %v6477, %v7508
    %v7510 = vlaneseq
    %v7511 = vshrl.u32 %v7510, 7
    %v7512 = vsub.s32 4, %v7511
    %v7513 = vrot.slane %v6484, %v7512
    %v7514 = vmul.bf16 %v7453, %v6250
    %v7515 = vmul.bf16 %v7457, %v6251
    %v7516 = vmul.bf16 %v7461, %v6252
    %v7517 = vmul.bf16 %v7465, %v6253
    %v7518 = vmul.bf16 %v7469, %v6254
    %v7519 = vmul.bf16 %v7473, %v6255
    %v7520 = vmul.bf16 %v7477, %v6256
    %v7521 = vmul.bf16 %v7481, %v6257
    %v7522 = vmul.bf16 %v7485, %v6258
    %v7523 = vmul.bf16 %v7489, %v6259
    %v7524 = vmul.bf16 %v7493, %v6260
    %v7525 = vmul.bf16 %v7497, %v6261
    %v7526 = vmul.bf16 %v7501, %v6262
    %v7527 = vmul.bf16 %v7505, %v6263
    %v7528 = vmul.bf16 %v7509, %v6264
    %v7529 = vmul.bf16 %v7513, %v6265
    %v7530 = vmul.bf16 %v7453, %v6266
    %v7531 = vmul.bf16 %v7457, %v6267
    %v7532 = vmul.bf16 %v7461, %v6268
    %v7533 = vmul.bf16 %v7465, %v6269
    %v7534 = vmul.bf16 %v7469, %v6270
    %v7535 = vmul.bf16 %v7473, %v6271
    %v7536 = vmul.bf16 %v7477, %v6272
    %v7537 = vmul.bf16 %v7481, %v6273
    %v7538 = vmul.bf16 %v7485, %v6274
    %v7539 = vmul.bf16 %v7489, %v6275
    %v7540 = vmul.bf16 %v7493, %v6276
    %v7541 = vmul.bf16 %v7497, %v6277
    %v7542 = vmul.bf16 %v7501, %v6278
    %v7543 = vmul.bf16 %v7505, %v6279
    %v7544 = vmul.bf16 %v7509, %v6280
    %v7545 = vmul.bf16 %v7513, %v6281
    %7546 = vst [vmem:[#allocation5 + $0x900] sm:$0xff] %v7514
    %7547 = vst [vmem:[#allocation5 + $0x908] sm:$0xff] %v7515
    %7548 = vst [vmem:[#allocation5 + $0x910] sm:$0xff] %v7516
    %7549 = vst [vmem:[#allocation5 + $0x918] sm:$0xff] %v7517
    %7550 = vst [vmem:[#allocation5 + $0x920] sm:$0xff] %v7518
    %7551 = vst [vmem:[#allocation5 + $0x928] sm:$0xff] %v7519
    %7552 = vst [vmem:[#allocation5 + $0x930] sm:$0xff] %v7520
    %7553 = vst [vmem:[#allocation5 + $0x938] sm:$0xff] %v7521
    %7554 = vst [vmem:[#allocation5 + $0x940] sm:$0xff] %v7522
    %7555 = vst [vmem:[#allocation5 + $0x948] sm:$0xff] %v7523
    %7556 = vst [vmem:[#allocation5 + $0x950] sm:$0xff] %v7524
    %7557 = vst [vmem:[#allocation5 + $0x958] sm:$0xff] %v7525
    %7558 = vst [vmem:[#allocation5 + $0x960] sm:$0xff] %v7526
    %7559 = vst [vmem:[#allocation5 + $0x968] sm:$0xff] %v7527
    %7560 = vst [vmem:[#allocation5 + $0x970] sm:$0xff] %v7528
    %7561 = vst [vmem:[#allocation5 + $0x978] sm:$0xff] %v7529
    %7562 = vst [vmem:[#allocation5 + $0x980] sm:$0xff] %v7530
    %7563 = vst [vmem:[#allocation5 + $0x988] sm:$0xff] %v7531
    %7564 = vst [vmem:[#allocation5 + $0x990] sm:$0xff] %v7532
    %7565 = vst [vmem:[#allocation5 + $0x998] sm:$0xff] %v7533
    %7566 = vst [vmem:[#allocation5 + $0x9a0] sm:$0xff] %v7534
    %7567 = vst [vmem:[#allocation5 + $0x9a8] sm:$0xff] %v7535
    %7568 = vst [vmem:[#allocation5 + $0x9b0] sm:$0xff] %v7536
    %7569 = vst [vmem:[#allocation5 + $0x9b8] sm:$0xff] %v7537
    %7570 = vst [vmem:[#allocation5 + $0x9c0] sm:$0xff] %v7538
    %7571 = vst [vmem:[#allocation5 + $0x9c8] sm:$0xff] %v7539
    %7572 = vst [vmem:[#allocation5 + $0x9d0] sm:$0xff] %v7540
    %7573 = vst [vmem:[#allocation5 + $0x9d8] sm:$0xff] %v7541
    %7574 = vst [vmem:[#allocation5 + $0x9e0] sm:$0xff] %v7542
    %7575 = vst [vmem:[#allocation5 + $0x9e8] sm:$0xff] %v7543
    %7576 = vst [vmem:[#allocation5 + $0x9f0] sm:$0xff] %v7544
    %7577 = vst [vmem:[#allocation5 + $0x9f8] sm:$0xff] %v7545
    %v7578 = vlaneseq
    %v7579 = vshrl.u32 %v7578, 7
    %v7580 = vsub.s32 5, %v7579
    %v7581 = vrot.slane %v6043, %v7580
    %v7582 = vlaneseq
    %v7583 = vshrl.u32 %v7582, 7
    %v7584 = vsub.s32 5, %v7583
    %v7585 = vrot.slane %v6050, %v7584
    %v7586 = vlaneseq
    %v7587 = vshrl.u32 %v7586, 7
    %v7588 = vsub.s32 5, %v7587
    %v7589 = vrot.slane %v6057, %v7588
    %v7590 = vlaneseq
    %v7591 = vshrl.u32 %v7590, 7
    %v7592 = vsub.s32 5, %v7591
    %v7593 = vrot.slane %v6064, %v7592
    %v7594 = vlaneseq
    %v7595 = vshrl.u32 %v7594, 7
    %v7596 = vsub.s32 5, %v7595
    %v7597 = vrot.slane %v6071, %v7596
    %v7598 = vlaneseq
    %v7599 = vshrl.u32 %v7598, 7
    %v7600 = vsub.s32 5, %v7599
    %v7601 = vrot.slane %v6078, %v7600
    %v7602 = vlaneseq
    %v7603 = vshrl.u32 %v7602, 7
    %v7604 = vsub.s32 5, %v7603
    %v7605 = vrot.slane %v6085, %v7604
    %v7606 = vlaneseq
    %v7607 = vshrl.u32 %v7606, 7
    %v7608 = vsub.s32 5, %v7607
    %v7609 = vrot.slane %v6092, %v7608
    %v7610 = vlaneseq
    %v7611 = vshrl.u32 %v7610, 7
    %v7612 = vsub.s32 5, %v7611
    %v7613 = vrot.slane %v6099, %v7612
    %v7614 = vlaneseq
    %v7615 = vshrl.u32 %v7614, 7
    %v7616 = vsub.s32 5, %v7615
    %v7617 = vrot.slane %v6106, %v7616
    %v7618 = vlaneseq
    %v7619 = vshrl.u32 %v7618, 7
    %v7620 = vsub.s32 5, %v7619
    %v7621 = vrot.slane %v6113, %v7620
    %v7622 = vlaneseq
    %v7623 = vshrl.u32 %v7622, 7
    %v7624 = vsub.s32 5, %v7623
    %v7625 = vrot.slane %v6120, %v7624
    %v7626 = vlaneseq
    %v7627 = vshrl.u32 %v7626, 7
    %v7628 = vsub.s32 5, %v7627
    %v7629 = vrot.slane %v6127, %v7628
    %v7630 = vlaneseq
    %v7631 = vshrl.u32 %v7630, 7
    %v7632 = vsub.s32 5, %v7631
    %v7633 = vrot.slane %v6134, %v7632
    %v7634 = vlaneseq
    %v7635 = vshrl.u32 %v7634, 7
    %v7636 = vsub.s32 5, %v7635
    %v7637 = vrot.slane %v6141, %v7636
    %v7638 = vlaneseq
    %v7639 = vshrl.u32 %v7638, 7
    %v7640 = vsub.s32 5, %v7639
    %v7641 = vrot.slane %v6148, %v7640
    %v7642 = vmul.bf16 %v7581, %v6250
    %v7643 = vmul.bf16 %v7585, %v6251
    %v7644 = vmul.bf16 %v7589, %v6252
    %v7645 = vmul.bf16 %v7593, %v6253
    %v7646 = vmul.bf16 %v7597, %v6254
    %v7647 = vmul.bf16 %v7601, %v6255
    %v7648 = vmul.bf16 %v7605, %v6256
    %v7649 = vmul.bf16 %v7609, %v6257
    %v7650 = vmul.bf16 %v7613, %v6258
    %v7651 = vmul.bf16 %v7617, %v6259
    %v7652 = vmul.bf16 %v7621, %v6260
    %v7653 = vmul.bf16 %v7625, %v6261
    %v7654 = vmul.bf16 %v7629, %v6262
    %v7655 = vmul.bf16 %v7633, %v6263
    %v7656 = vmul.bf16 %v7637, %v6264
    %v7657 = vmul.bf16 %v7641, %v6265
    %v7658 = vmul.bf16 %v7581, %v6266
    %v7659 = vmul.bf16 %v7585, %v6267
    %v7660 = vmul.bf16 %v7589, %v6268
    %v7661 = vmul.bf16 %v7593, %v6269
    %v7662 = vmul.bf16 %v7597, %v6270
    %v7663 = vmul.bf16 %v7601, %v6271
    %v7664 = vmul.bf16 %v7605, %v6272
    %v7665 = vmul.bf16 %v7609, %v6273
    %v7666 = vmul.bf16 %v7613, %v6274
    %v7667 = vmul.bf16 %v7617, %v6275
    %v7668 = vmul.bf16 %v7621, %v6276
    %v7669 = vmul.bf16 %v7625, %v6277
    %v7670 = vmul.bf16 %v7629, %v6278
    %v7671 = vmul.bf16 %v7633, %v6279
    %v7672 = vmul.bf16 %v7637, %v6280
    %v7673 = vmul.bf16 %v7641, %v6281
    %7674 = vst [vmem:[#allocation5 + $0xa00] sm:$0xff] %v7642
    %7675 = vst [vmem:[#allocation5 + $0xa08] sm:$0xff] %v7643
    %7676 = vst [vmem:[#allocation5 + $0xa10] sm:$0xff] %v7644
    %7677 = vst [vmem:[#allocation5 + $0xa18] sm:$0xff] %v7645
    %7678 = vst [vmem:[#allocation5 + $0xa20] sm:$0xff] %v7646
    %7679 = vst [vmem:[#allocation5 + $0xa28] sm:$0xff] %v7647
    %7680 = vst [vmem:[#allocation5 + $0xa30] sm:$0xff] %v7648
    %7681 = vst [vmem:[#allocation5 + $0xa38] sm:$0xff] %v7649
    %7682 = vst [vmem:[#allocation5 + $0xa40] sm:$0xff] %v7650
    %7683 = vst [vmem:[#allocation5 + $0xa48] sm:$0xff] %v7651
    %7684 = vst [vmem:[#allocation5 + $0xa50] sm:$0xff] %v7652
    %7685 = vst [vmem:[#allocation5 + $0xa58] sm:$0xff] %v7653
    %7686 = vst [vmem:[#allocation5 + $0xa60] sm:$0xff] %v7654
    %7687 = vst [vmem:[#allocation5 + $0xa68] sm:$0xff] %v7655
    %7688 = vst [vmem:[#allocation5 + $0xa70] sm:$0xff] %v7656
    %7689 = vst [vmem:[#allocation5 + $0xa78] sm:$0xff] %v7657
    %7690 = vst [vmem:[#allocation5 + $0xa80] sm:$0xff] %v7658
    %7691 = vst [vmem:[#allocation5 + $0xa88] sm:$0xff] %v7659
    %7692 = vst [vmem:[#allocation5 + $0xa90] sm:$0xff] %v7660
    %7693 = vst [vmem:[#allocation5 + $0xa98] sm:$0xff] %v7661
    %7694 = vst [vmem:[#allocation5 + $0xaa0] sm:$0xff] %v7662
    %7695 = vst [vmem:[#allocation5 + $0xaa8] sm:$0xff] %v7663
    %7696 = vst [vmem:[#allocation5 + $0xab0] sm:$0xff] %v7664
    %7697 = vst [vmem:[#allocation5 + $0xab8] sm:$0xff] %v7665
    %7698 = vst [vmem:[#allocation5 + $0xac0] sm:$0xff] %v7666
    %7699 = vst [vmem:[#allocation5 + $0xac8] sm:$0xff] %v7667
    %7700 = vst [vmem:[#allocation5 + $0xad0] sm:$0xff] %v7668
    %7701 = vst [vmem:[#allocation5 + $0xad8] sm:$0xff] %v7669
    %7702 = vst [vmem:[#allocation5 + $0xae0] sm:$0xff] %v7670
    %7703 = vst [vmem:[#allocation5 + $0xae8] sm:$0xff] %v7671
    %7704 = vst [vmem:[#allocation5 + $0xaf0] sm:$0xff] %v7672
    %7705 = vst [vmem:[#allocation5 + $0xaf8] sm:$0xff] %v7673
    %v7706 = vlaneseq
    %v7707 = vshrl.u32 %v7706, 7
    %v7708 = vsub.s32 5, %v7707
    %v7709 = vrot.slane %v6379, %v7708
    %v7710 = vlaneseq
    %v7711 = vshrl.u32 %v7710, 7
    %v7712 = vsub.s32 5, %v7711
    %v7713 = vrot.slane %v6386, %v7712
    %v7714 = vlaneseq
    %v7715 = vshrl.u32 %v7714, 7
    %v7716 = vsub.s32 5, %v7715
    %v7717 = vrot.slane %v6393, %v7716
    %v7718 = vlaneseq
    %v7719 = vshrl.u32 %v7718, 7
    %v7720 = vsub.s32 5, %v7719
    %v7721 = vrot.slane %v6400, %v7720
    %v7722 = vlaneseq
    %v7723 = vshrl.u32 %v7722, 7
    %v7724 = vsub.s32 5, %v7723
    %v7725 = vrot.slane %v6407, %v7724
    %v7726 = vlaneseq
    %v7727 = vshrl.u32 %v7726, 7
    %v7728 = vsub.s32 5, %v7727
    %v7729 = vrot.slane %v6414, %v7728
    %v7730 = vlaneseq
    %v7731 = vshrl.u32 %v7730, 7
    %v7732 = vsub.s32 5, %v7731
    %v7733 = vrot.slane %v6421, %v7732
    %v7734 = vlaneseq
    %v7735 = vshrl.u32 %v7734, 7
    %v7736 = vsub.s32 5, %v7735
    %v7737 = vrot.slane %v6428, %v7736
    %v7738 = vlaneseq
    %v7739 = vshrl.u32 %v7738, 7
    %v7740 = vsub.s32 5, %v7739
    %v7741 = vrot.slane %v6435, %v7740
    %v7742 = vlaneseq
    %v7743 = vshrl.u32 %v7742, 7
    %v7744 = vsub.s32 5, %v7743
    %v7745 = vrot.slane %v6442, %v7744
    %v7746 = vlaneseq
    %v7747 = vshrl.u32 %v7746, 7
    %v7748 = vsub.s32 5, %v7747
    %v7749 = vrot.slane %v6449, %v7748
    %v7750 = vlaneseq
    %v7751 = vshrl.u32 %v7750, 7
    %v7752 = vsub.s32 5, %v7751
    %v7753 = vrot.slane %v6456, %v7752
    %v7754 = vlaneseq
    %v7755 = vshrl.u32 %v7754, 7
    %v7756 = vsub.s32 5, %v7755
    %v7757 = vrot.slane %v6463, %v7756
    %v7758 = vlaneseq
    %v7759 = vshrl.u32 %v7758, 7
    %v7760 = vsub.s32 5, %v7759
    %v7761 = vrot.slane %v6470, %v7760
    %v7762 = vlaneseq
    %v7763 = vshrl.u32 %v7762, 7
    %v7764 = vsub.s32 5, %v7763
    %v7765 = vrot.slane %v6477, %v7764
    %v7766 = vlaneseq
    %v7767 = vshrl.u32 %v7766, 7
    %v7768 = vsub.s32 5, %v7767
    %v7769 = vrot.slane %v6484, %v7768
    %v7770 = vmul.bf16 %v7709, %v6250
    %v7771 = vmul.bf16 %v7713, %v6251
    %v7772 = vmul.bf16 %v7717, %v6252
    %v7773 = vmul.bf16 %v7721, %v6253
    %v7774 = vmul.bf16 %v7725, %v6254
    %v7775 = vmul.bf16 %v7729, %v6255
    %v7776 = vmul.bf16 %v7733, %v6256
    %v7777 = vmul.bf16 %v7737, %v6257
    %v7778 = vmul.bf16 %v7741, %v6258
    %v7779 = vmul.bf16 %v7745, %v6259
    %v7780 = vmul.bf16 %v7749, %v6260
    %v7781 = vmul.bf16 %v7753, %v6261
    %v7782 = vmul.bf16 %v7757, %v6262
    %v7783 = vmul.bf16 %v7761, %v6263
    %v7784 = vmul.bf16 %v7765, %v6264
    %v7785 = vmul.bf16 %v7769, %v6265
    %v7786 = vmul.bf16 %v7709, %v6266
    %v7787 = vmul.bf16 %v7713, %v6267
    %v7788 = vmul.bf16 %v7717, %v6268
    %v7789 = vmul.bf16 %v7721, %v6269
    %v7790 = vmul.bf16 %v7725, %v6270
    %v7791 = vmul.bf16 %v7729, %v6271
    %v7792 = vmul.bf16 %v7733, %v6272
    %v7793 = vmul.bf16 %v7737, %v6273
    %v7794 = vmul.bf16 %v7741, %v6274
    %v7795 = vmul.bf16 %v7745, %v6275
    %v7796 = vmul.bf16 %v7749, %v6276
    %v7797 = vmul.bf16 %v7753, %v6277
    %v7798 = vmul.bf16 %v7757, %v6278
    %v7799 = vmul.bf16 %v7761, %v6279
    %v7800 = vmul.bf16 %v7765, %v6280
    %v7801 = vmul.bf16 %v7769, %v6281
    %7802 = vst [vmem:[#allocation5 + $0xb00] sm:$0xff] %v7770
    %7803 = vst [vmem:[#allocation5 + $0xb08] sm:$0xff] %v7771
    %7804 = vst [vmem:[#allocation5 + $0xb10] sm:$0xff] %v7772
    %7805 = vst [vmem:[#allocation5 + $0xb18] sm:$0xff] %v7773
    %7806 = vst [vmem:[#allocation5 + $0xb20] sm:$0xff] %v7774
    %7807 = vst [vmem:[#allocation5 + $0xb28] sm:$0xff] %v7775
    %7808 = vst [vmem:[#allocation5 + $0xb30] sm:$0xff] %v7776
    %7809 = vst [vmem:[#allocation5 + $0xb38] sm:$0xff] %v7777
    %7810 = vst [vmem:[#allocation5 + $0xb40] sm:$0xff] %v7778
    %7811 = vst [vmem:[#allocation5 + $0xb48] sm:$0xff] %v7779
    %7812 = vst [vmem:[#allocation5 + $0xb50] sm:$0xff] %v7780
    %7813 = vst [vmem:[#allocation5 + $0xb58] sm:$0xff] %v7781
    %7814 = vst [vmem:[#allocation5 + $0xb60] sm:$0xff] %v7782
    %7815 = vst [vmem:[#allocation5 + $0xb68] sm:$0xff] %v7783
    %7816 = vst [vmem:[#allocation5 + $0xb70] sm:$0xff] %v7784
    %7817 = vst [vmem:[#allocation5 + $0xb78] sm:$0xff] %v7785
    %7818 = vst [vmem:[#allocation5 + $0xb80] sm:$0xff] %v7786
    %7819 = vst [vmem:[#allocation5 + $0xb88] sm:$0xff] %v7787
    %7820 = vst [vmem:[#allocation5 + $0xb90] sm:$0xff] %v7788
    %7821 = vst [vmem:[#allocation5 + $0xb98] sm:$0xff] %v7789
    %7822 = vst [vmem:[#allocation5 + $0xba0] sm:$0xff] %v7790
    %7823 = vst [vmem:[#allocation5 + $0xba8] sm:$0xff] %v7791
    %7824 = vst [vmem:[#allocation5 + $0xbb0] sm:$0xff] %v7792
    %7825 = vst [vmem:[#allocation5 + $0xbb8] sm:$0xff] %v7793
    %7826 = vst [vmem:[#allocation5 + $0xbc0] sm:$0xff] %v7794
    %7827 = vst [vmem:[#allocation5 + $0xbc8] sm:$0xff] %v7795
    %7828 = vst [vmem:[#allocation5 + $0xbd0] sm:$0xff] %v7796
    %7829 = vst [vmem:[#allocation5 + $0xbd8] sm:$0xff] %v7797
    %7830 = vst [vmem:[#allocation5 + $0xbe0] sm:$0xff] %v7798
    %7831 = vst [vmem:[#allocation5 + $0xbe8] sm:$0xff] %v7799
    %7832 = vst [vmem:[#allocation5 + $0xbf0] sm:$0xff] %v7800
    %7833 = vst [vmem:[#allocation5 + $0xbf8] sm:$0xff] %v7801
    %v7834 = vlaneseq
    %v7835 = vshrl.u32 %v7834, 7
    %v7836 = vsub.s32 6, %v7835
    %v7837 = vrot.slane %v6043, %v7836
    %v7838 = vlaneseq
    %v7839 = vshrl.u32 %v7838, 7
    %v7840 = vsub.s32 6, %v7839
    %v7841 = vrot.slane %v6050, %v7840
    %v7842 = vlaneseq
    %v7843 = vshrl.u32 %v7842, 7
    %v7844 = vsub.s32 6, %v7843
    %v7845 = vrot.slane %v6057, %v7844
    %v7846 = vlaneseq
    %v7847 = vshrl.u32 %v7846, 7
    %v7848 = vsub.s32 6, %v7847
    %v7849 = vrot.slane %v6064, %v7848
    %v7850 = vlaneseq
    %v7851 = vshrl.u32 %v7850, 7
    %v7852 = vsub.s32 6, %v7851
    %v7853 = vrot.slane %v6071, %v7852
    %v7854 = vlaneseq
    %v7855 = vshrl.u32 %v7854, 7
    %v7856 = vsub.s32 6, %v7855
    %v7857 = vrot.slane %v6078, %v7856
    %v7858 = vlaneseq
    %v7859 = vshrl.u32 %v7858, 7
    %v7860 = vsub.s32 6, %v7859
    %v7861 = vrot.slane %v6085, %v7860
    %v7862 = vlaneseq
    %v7863 = vshrl.u32 %v7862, 7
    %v7864 = vsub.s32 6, %v7863
    %v7865 = vrot.slane %v6092, %v7864
    %v7866 = vlaneseq
    %v7867 = vshrl.u32 %v7866, 7
    %v7868 = vsub.s32 6, %v7867
    %v7869 = vrot.slane %v6099, %v7868
    %v7870 = vlaneseq
    %v7871 = vshrl.u32 %v7870, 7
    %v7872 = vsub.s32 6, %v7871
    %v7873 = vrot.slane %v6106, %v7872
    %v7874 = vlaneseq
    %v7875 = vshrl.u32 %v7874, 7
    %v7876 = vsub.s32 6, %v7875
    %v7877 = vrot.slane %v6113, %v7876
    %v7878 = vlaneseq
    %v7879 = vshrl.u32 %v7878, 7
    %v7880 = vsub.s32 6, %v7879
    %v7881 = vrot.slane %v6120, %v7880
    %v7882 = vlaneseq
    %v7883 = vshrl.u32 %v7882, 7
    %v7884 = vsub.s32 6, %v7883
    %v7885 = vrot.slane %v6127, %v7884
    %v7886 = vlaneseq
    %v7887 = vshrl.u32 %v7886, 7
    %v7888 = vsub.s32 6, %v7887
    %v7889 = vrot.slane %v6134, %v7888
    %v7890 = vlaneseq
    %v7891 = vshrl.u32 %v7890, 7
    %v7892 = vsub.s32 6, %v7891
    %v7893 = vrot.slane %v6141, %v7892
    %v7894 = vlaneseq
    %v7895 = vshrl.u32 %v7894, 7
    %v7896 = vsub.s32 6, %v7895
    %v7897 = vrot.slane %v6148, %v7896
    %v7898 = vmul.bf16 %v7837, %v6250
    %v7899 = vmul.bf16 %v7841, %v6251
    %v7900 = vmul.bf16 %v7845, %v6252
    %v7901 = vmul.bf16 %v7849, %v6253
    %v7902 = vmul.bf16 %v7853, %v6254
    %v7903 = vmul.bf16 %v7857, %v6255
    %v7904 = vmul.bf16 %v7861, %v6256
    %v7905 = vmul.bf16 %v7865, %v6257
    %v7906 = vmul.bf16 %v7869, %v6258
    %v7907 = vmul.bf16 %v7873, %v6259
    %v7908 = vmul.bf16 %v7877, %v6260
    %v7909 = vmul.bf16 %v7881, %v6261
    %v7910 = vmul.bf16 %v7885, %v6262
    %v7911 = vmul.bf16 %v7889, %v6263
    %v7912 = vmul.bf16 %v7893, %v6264
    %v7913 = vmul.bf16 %v7897, %v6265
    %v7914 = vmul.bf16 %v7837, %v6266
    %v7915 = vmul.bf16 %v7841, %v6267
    %v7916 = vmul.bf16 %v7845, %v6268
    %v7917 = vmul.bf16 %v7849, %v6269
    %v7918 = vmul.bf16 %v7853, %v6270
    %v7919 = vmul.bf16 %v7857, %v6271
    %v7920 = vmul.bf16 %v7861, %v6272
    %v7921 = vmul.bf16 %v7865, %v6273
    %v7922 = vmul.bf16 %v7869, %v6274
    %v7923 = vmul.bf16 %v7873, %v6275
    %v7924 = vmul.bf16 %v7877, %v6276
    %v7925 = vmul.bf16 %v7881, %v6277
    %v7926 = vmul.bf16 %v7885, %v6278
    %v7927 = vmul.bf16 %v7889, %v6279
    %v7928 = vmul.bf16 %v7893, %v6280
    %v7929 = vmul.bf16 %v7897, %v6281
    %7930 = vst [vmem:[#allocation5 + $0xc00] sm:$0xff] %v7898
    %7931 = vst [vmem:[#allocation5 + $0xc08] sm:$0xff] %v7899
    %7932 = vst [vmem:[#allocation5 + $0xc10] sm:$0xff] %v7900
    %7933 = vst [vmem:[#allocation5 + $0xc18] sm:$0xff] %v7901
    %7934 = vst [vmem:[#allocation5 + $0xc20] sm:$0xff] %v7902
    %7935 = vst [vmem:[#allocation5 + $0xc28] sm:$0xff] %v7903
    %7936 = vst [vmem:[#allocation5 + $0xc30] sm:$0xff] %v7904
    %7937 = vst [vmem:[#allocation5 + $0xc38] sm:$0xff] %v7905
    %7938 = vst [vmem:[#allocation5 + $0xc40] sm:$0xff] %v7906
    %7939 = vst [vmem:[#allocation5 + $0xc48] sm:$0xff] %v7907
    %7940 = vst [vmem:[#allocation5 + $0xc50] sm:$0xff] %v7908
    %7941 = vst [vmem:[#allocation5 + $0xc58] sm:$0xff] %v7909
    %7942 = vst [vmem:[#allocation5 + $0xc60] sm:$0xff] %v7910
    %7943 = vst [vmem:[#allocation5 + $0xc68] sm:$0xff] %v7911
    %7944 = vst [vmem:[#allocation5 + $0xc70] sm:$0xff] %v7912
    %7945 = vst [vmem:[#allocation5 + $0xc78] sm:$0xff] %v7913
    %7946 = vst [vmem:[#allocation5 + $0xc80] sm:$0xff] %v7914
    %7947 = vst [vmem:[#allocation5 + $0xc88] sm:$0xff] %v7915
    %7948 = vst [vmem:[#allocation5 + $0xc90] sm:$0xff] %v7916
    %7949 = vst [vmem:[#allocation5 + $0xc98] sm:$0xff] %v7917
    %7950 = vst [vmem:[#allocation5 + $0xca0] sm:$0xff] %v7918
    %7951 = vst [vmem:[#allocation5 + $0xca8] sm:$0xff] %v7919
    %7952 = vst [vmem:[#allocation5 + $0xcb0] sm:$0xff] %v7920
    %7953 = vst [vmem:[#allocation5 + $0xcb8] sm:$0xff] %v7921
    %7954 = vst [vmem:[#allocation5 + $0xcc0] sm:$0xff] %v7922
    %7955 = vst [vmem:[#allocation5 + $0xcc8] sm:$0xff] %v7923
    %7956 = vst [vmem:[#allocation5 + $0xcd0] sm:$0xff] %v7924
    %7957 = vst [vmem:[#allocation5 + $0xcd8] sm:$0xff] %v7925
    %7958 = vst [vmem:[#allocation5 + $0xce0] sm:$0xff] %v7926
    %7959 = vst [vmem:[#allocation5 + $0xce8] sm:$0xff] %v7927
    %7960 = vst [vmem:[#allocation5 + $0xcf0] sm:$0xff] %v7928
    %7961 = vst [vmem:[#allocation5 + $0xcf8] sm:$0xff] %v7929
    %v7962 = vlaneseq
    %v7963 = vshrl.u32 %v7962, 7
    %v7964 = vsub.s32 6, %v7963
    %v7965 = vrot.slane %v6379, %v7964
    %v7966 = vlaneseq
    %v7967 = vshrl.u32 %v7966, 7
    %v7968 = vsub.s32 6, %v7967
    %v7969 = vrot.slane %v6386, %v7968
    %v7970 = vlaneseq
    %v7971 = vshrl.u32 %v7970, 7
    %v7972 = vsub.s32 6, %v7971
    %v7973 = vrot.slane %v6393, %v7972
    %v7974 = vlaneseq
    %v7975 = vshrl.u32 %v7974, 7
    %v7976 = vsub.s32 6, %v7975
    %v7977 = vrot.slane %v6400, %v7976
    %v7978 = vlaneseq
    %v7979 = vshrl.u32 %v7978, 7
    %v7980 = vsub.s32 6, %v7979
    %v7981 = vrot.slane %v6407, %v7980
    %v7982 = vlaneseq
    %v7983 = vshrl.u32 %v7982, 7
    %v7984 = vsub.s32 6, %v7983
    %v7985 = vrot.slane %v6414, %v7984
    %v7986 = vlaneseq
    %v7987 = vshrl.u32 %v7986, 7
    %v7988 = vsub.s32 6, %v7987
    %v7989 = vrot.slane %v6421, %v7988
    %v7990 = vlaneseq
    %v7991 = vshrl.u32 %v7990, 7
    %v7992 = vsub.s32 6, %v7991
    %v7993 = vrot.slane %v6428, %v7992
    %v7994 = vlaneseq
    %v7995 = vshrl.u32 %v7994, 7
    %v7996 = vsub.s32 6, %v7995
    %v7997 = vrot.slane %v6435, %v7996
    %v7998 = vlaneseq
    %v7999 = vshrl.u32 %v7998, 7
    %v8000 = vsub.s32 6, %v7999
    %v8001 = vrot.slane %v6442, %v8000
    %v8002 = vlaneseq
    %v8003 = vshrl.u32 %v8002, 7
    %v8004 = vsub.s32 6, %v8003
    %v8005 = vrot.slane %v6449, %v8004
    %v8006 = vlaneseq
    %v8007 = vshrl.u32 %v8006, 7
    %v8008 = vsub.s32 6, %v8007
    %v8009 = vrot.slane %v6456, %v8008
    %v8010 = vlaneseq
    %v8011 = vshrl.u32 %v8010, 7
    %v8012 = vsub.s32 6, %v8011
    %v8013 = vrot.slane %v6463, %v8012
    %v8014 = vlaneseq
    %v8015 = vshrl.u32 %v8014, 7
    %v8016 = vsub.s32 6, %v8015
    %v8017 = vrot.slane %v6470, %v8016
    %v8018 = vlaneseq
    %v8019 = vshrl.u32 %v8018, 7
    %v8020 = vsub.s32 6, %v8019
    %v8021 = vrot.slane %v6477, %v8020
    %v8022 = vlaneseq
    %v8023 = vshrl.u32 %v8022, 7
    %v8024 = vsub.s32 6, %v8023
    %v8025 = vrot.slane %v6484, %v8024
    %v8026 = vmul.bf16 %v7965, %v6250
    %v8027 = vmul.bf16 %v7969, %v6251
    %v8028 = vmul.bf16 %v7973, %v6252
    %v8029 = vmul.bf16 %v7977, %v6253
    %v8030 = vmul.bf16 %v7981, %v6254
    %v8031 = vmul.bf16 %v7985, %v6255
    %v8032 = vmul.bf16 %v7989, %v6256
    %v8033 = vmul.bf16 %v7993, %v6257
    %v8034 = vmul.bf16 %v7997, %v6258
    %v8035 = vmul.bf16 %v8001, %v6259
    %v8036 = vmul.bf16 %v8005, %v6260
    %v8037 = vmul.bf16 %v8009, %v6261
    %v8038 = vmul.bf16 %v8013, %v6262
    %v8039 = vmul.bf16 %v8017, %v6263
    %v8040 = vmul.bf16 %v8021, %v6264
    %v8041 = vmul.bf16 %v8025, %v6265
    %v8042 = vmul.bf16 %v7965, %v6266
    %v8043 = vmul.bf16 %v7969, %v6267
    %v8044 = vmul.bf16 %v7973, %v6268
    %v8045 = vmul.bf16 %v7977, %v6269
    %v8046 = vmul.bf16 %v7981, %v6270
    %v8047 = vmul.bf16 %v7985, %v6271
    %v8048 = vmul.bf16 %v7989, %v6272
    %v8049 = vmul.bf16 %v7993, %v6273
    %v8050 = vmul.bf16 %v7997, %v6274
    %v8051 = vmul.bf16 %v8001, %v6275
    %v8052 = vmul.bf16 %v8005, %v6276
    %v8053 = vmul.bf16 %v8009, %v6277
    %v8054 = vmul.bf16 %v8013, %v6278
    %v8055 = vmul.bf16 %v8017, %v6279
    %v8056 = vmul.bf16 %v8021, %v6280
    %v8057 = vmul.bf16 %v8025, %v6281
    %8058 = vst [vmem:[#allocation5 + $0xd00] sm:$0xff] %v8026
    %8059 = vst [vmem:[#allocation5 + $0xd08] sm:$0xff] %v8027
    %8060 = vst [vmem:[#allocation5 + $0xd10] sm:$0xff] %v8028
    %8061 = vst [vmem:[#allocation5 + $0xd18] sm:$0xff] %v8029
    %8062 = vst [vmem:[#allocation5 + $0xd20] sm:$0xff] %v8030
    %8063 = vst [vmem:[#allocation5 + $0xd28] sm:$0xff] %v8031
    %8064 = vst [vmem:[#allocation5 + $0xd30] sm:$0xff] %v8032
    %8065 = vst [vmem:[#allocation5 + $0xd38] sm:$0xff] %v8033
    %8066 = vst [vmem:[#allocation5 + $0xd40] sm:$0xff] %v8034
    %8067 = vst [vmem:[#allocation5 + $0xd48] sm:$0xff] %v8035
    %8068 = vst [vmem:[#allocation5 + $0xd50] sm:$0xff] %v8036
    %8069 = vst [vmem:[#allocation5 + $0xd58] sm:$0xff] %v8037
    %8070 = vst [vmem:[#allocation5 + $0xd60] sm:$0xff] %v8038
    %8071 = vst [vmem:[#allocation5 + $0xd68] sm:$0xff] %v8039
    %8072 = vst [vmem:[#allocation5 + $0xd70] sm:$0xff] %v8040
    %8073 = vst [vmem:[#allocation5 + $0xd78] sm:$0xff] %v8041
    %8074 = vst [vmem:[#allocation5 + $0xd80] sm:$0xff] %v8042
    %8075 = vst [vmem:[#allocation5 + $0xd88] sm:$0xff] %v8043
    %8076 = vst [vmem:[#allocation5 + $0xd90] sm:$0xff] %v8044
    %8077 = vst [vmem:[#allocation5 + $0xd98] sm:$0xff] %v8045
    %8078 = vst [vmem:[#allocation5 + $0xda0] sm:$0xff] %v8046
    %8079 = vst [vmem:[#allocation5 + $0xda8] sm:$0xff] %v8047
    %8080 = vst [vmem:[#allocation5 + $0xdb0] sm:$0xff] %v8048
    %8081 = vst [vmem:[#allocation5 + $0xdb8] sm:$0xff] %v8049
    %8082 = vst [vmem:[#allocation5 + $0xdc0] sm:$0xff] %v8050
    %8083 = vst [vmem:[#allocation5 + $0xdc8] sm:$0xff] %v8051
    %8084 = vst [vmem:[#allocation5 + $0xdd0] sm:$0xff] %v8052
    %8085 = vst [vmem:[#allocation5 + $0xdd8] sm:$0xff] %v8053
    %8086 = vst [vmem:[#allocation5 + $0xde0] sm:$0xff] %v8054
    %8087 = vst [vmem:[#allocation5 + $0xde8] sm:$0xff] %v8055
    %8088 = vst [vmem:[#allocation5 + $0xdf0] sm:$0xff] %v8056
    %8089 = vst [vmem:[#allocation5 + $0xdf8] sm:$0xff] %v8057
    %v8090 = vlaneseq
    %v8091 = vshrl.u32 %v8090, 7
    %v8092 = vsub.s32 7, %v8091
    %v8093 = vrot.slane %v6043, %v8092
    %v8094 = vlaneseq
    %v8095 = vshrl.u32 %v8094, 7
    %v8096 = vsub.s32 7, %v8095
    %v8097 = vrot.slane %v6050, %v8096
    %v8098 = vlaneseq
    %v8099 = vshrl.u32 %v8098, 7
    %v8100 = vsub.s32 7, %v8099
    %v8101 = vrot.slane %v6057, %v8100
    %v8102 = vlaneseq
    %v8103 = vshrl.u32 %v8102, 7
    %v8104 = vsub.s32 7, %v8103
    %v8105 = vrot.slane %v6064, %v8104
    %v8106 = vlaneseq
    %v8107 = vshrl.u32 %v8106, 7
    %v8108 = vsub.s32 7, %v8107
    %v8109 = vrot.slane %v6071, %v8108
    %v8110 = vlaneseq
    %v8111 = vshrl.u32 %v8110, 7
    %v8112 = vsub.s32 7, %v8111
    %v8113 = vrot.slane %v6078, %v8112
    %v8114 = vlaneseq
    %v8115 = vshrl.u32 %v8114, 7
    %v8116 = vsub.s32 7, %v8115
    %v8117 = vrot.slane %v6085, %v8116
    %v8118 = vlaneseq
    %v8119 = vshrl.u32 %v8118, 7
    %v8120 = vsub.s32 7, %v8119
    %v8121 = vrot.slane %v6092, %v8120
    %v8122 = vlaneseq
    %v8123 = vshrl.u32 %v8122, 7
    %v8124 = vsub.s32 7, %v8123
    %v8125 = vrot.slane %v6099, %v8124
    %v8126 = vlaneseq
    %v8127 = vshrl.u32 %v8126, 7
    %v8128 = vsub.s32 7, %v8127
    %v8129 = vrot.slane %v6106, %v8128
    %v8130 = vlaneseq
    %v8131 = vshrl.u32 %v8130, 7
    %v8132 = vsub.s32 7, %v8131
    %v8133 = vrot.slane %v6113, %v8132
    %v8134 = vlaneseq
    %v8135 = vshrl.u32 %v8134, 7
    %v8136 = vsub.s32 7, %v8135
    %v8137 = vrot.slane %v6120, %v8136
    %v8138 = vlaneseq
    %v8139 = vshrl.u32 %v8138, 7
    %v8140 = vsub.s32 7, %v8139
    %v8141 = vrot.slane %v6127, %v8140
    %v8142 = vlaneseq
    %v8143 = vshrl.u32 %v8142, 7
    %v8144 = vsub.s32 7, %v8143
    %v8145 = vrot.slane %v6134, %v8144
    %v8146 = vlaneseq
    %v8147 = vshrl.u32 %v8146, 7
    %v8148 = vsub.s32 7, %v8147
    %v8149 = vrot.slane %v6141, %v8148
    %v8150 = vlaneseq
    %v8151 = vshrl.u32 %v8150, 7
    %v8152 = vsub.s32 7, %v8151
    %v8153 = vrot.slane %v6148, %v8152
    %v8154 = vmul.bf16 %v8093, %v6250
    %v8155 = vmul.bf16 %v8097, %v6251
    %v8156 = vmul.bf16 %v8101, %v6252
    %v8157 = vmul.bf16 %v8105, %v6253
    %v8158 = vmul.bf16 %v8109, %v6254
    %v8159 = vmul.bf16 %v8113, %v6255
    %v8160 = vmul.bf16 %v8117, %v6256
    %v8161 = vmul.bf16 %v8121, %v6257
    %v8162 = vmul.bf16 %v8125, %v6258
    %v8163 = vmul.bf16 %v8129, %v6259
    %v8164 = vmul.bf16 %v8133, %v6260
    %v8165 = vmul.bf16 %v8137, %v6261
    %v8166 = vmul.bf16 %v8141, %v6262
    %v8167 = vmul.bf16 %v8145, %v6263
    %v8168 = vmul.bf16 %v8149, %v6264
    %v8169 = vmul.bf16 %v8153, %v6265
    %v8170 = vmul.bf16 %v8093, %v6266
    %v8171 = vmul.bf16 %v8097, %v6267
    %v8172 = vmul.bf16 %v8101, %v6268
    %v8173 = vmul.bf16 %v8105, %v6269
    %v8174 = vmul.bf16 %v8109, %v6270
    %v8175 = vmul.bf16 %v8113, %v6271
    %v8176 = vmul.bf16 %v8117, %v6272
    %v8177 = vmul.bf16 %v8121, %v6273
    %v8178 = vmul.bf16 %v8125, %v6274
    %v8179 = vmul.bf16 %v8129, %v6275
    %v8180 = vmul.bf16 %v8133, %v6276
    %v8181 = vmul.bf16 %v8137, %v6277
    %v8182 = vmul.bf16 %v8141, %v6278
    %v8183 = vmul.bf16 %v8145, %v6279
    %v8184 = vmul.bf16 %v8149, %v6280
    %v8185 = vmul.bf16 %v8153, %v6281
    %8186 = vst [vmem:[#allocation5 + $0xe00] sm:$0xff] %v8154
    %8187 = vst [vmem:[#allocation5 + $0xe08] sm:$0xff] %v8155
    %8188 = vst [vmem:[#allocation5 + $0xe10] sm:$0xff] %v8156
    %8189 = vst [vmem:[#allocation5 + $0xe18] sm:$0xff] %v8157
    %8190 = vst [vmem:[#allocation5 + $0xe20] sm:$0xff] %v8158
    %8191 = vst [vmem:[#allocation5 + $0xe28] sm:$0xff] %v8159
    %8192 = vst [vmem:[#allocation5 + $0xe30] sm:$0xff] %v8160
    %8193 = vst [vmem:[#allocation5 + $0xe38] sm:$0xff] %v8161
    %8194 = vst [vmem:[#allocation5 + $0xe40] sm:$0xff] %v8162
    %8195 = vst [vmem:[#allocation5 + $0xe48] sm:$0xff] %v8163
    %8196 = vst [vmem:[#allocation5 + $0xe50] sm:$0xff] %v8164
    %8197 = vst [vmem:[#allocation5 + $0xe58] sm:$0xff] %v8165
    %8198 = vst [vmem:[#allocation5 + $0xe60] sm:$0xff] %v8166
    %8199 = vst [vmem:[#allocation5 + $0xe68] sm:$0xff] %v8167
    %8200 = vst [vmem:[#allocation5 + $0xe70] sm:$0xff] %v8168
    %8201 = vst [vmem:[#allocation5 + $0xe78] sm:$0xff] %v8169
    %8202 = vst [vmem:[#allocation5 + $0xe80] sm:$0xff] %v8170
    %8203 = vst [vmem:[#allocation5 + $0xe88] sm:$0xff] %v8171
    %8204 = vst [vmem:[#allocation5 + $0xe90] sm:$0xff] %v8172
    %8205 = vst [vmem:[#allocation5 + $0xe98] sm:$0xff] %v8173
    %8206 = vst [vmem:[#allocation5 + $0xea0] sm:$0xff] %v8174
    %8207 = vst [vmem:[#allocation5 + $0xea8] sm:$0xff] %v8175
    %8208 = vst [vmem:[#allocation5 + $0xeb0] sm:$0xff] %v8176
    %8209 = vst [vmem:[#allocation5 + $0xeb8] sm:$0xff] %v8177
    %8210 = vst [vmem:[#allocation5 + $0xec0] sm:$0xff] %v8178
    %8211 = vst [vmem:[#allocation5 + $0xec8] sm:$0xff] %v8179
    %8212 = vst [vmem:[#allocation5 + $0xed0] sm:$0xff] %v8180
    %8213 = vst [vmem:[#allocation5 + $0xed8] sm:$0xff] %v8181
    %8214 = vst [vmem:[#allocation5 + $0xee0] sm:$0xff] %v8182
    %8215 = vst [vmem:[#allocation5 + $0xee8] sm:$0xff] %v8183
    %8216 = vst [vmem:[#allocation5 + $0xef0] sm:$0xff] %v8184
    %8217 = vst [vmem:[#allocation5 + $0xef8] sm:$0xff] %v8185
    %v8218 = vlaneseq
    %v8219 = vshrl.u32 %v8218, 7
    %v8220 = vsub.s32 7, %v8219
    %v8221 = vrot.slane %v6379, %v8220
    %v8222 = vlaneseq
    %v8223 = vshrl.u32 %v8222, 7
    %v8224 = vsub.s32 7, %v8223
    %v8225 = vrot.slane %v6386, %v8224
    %v8226 = vlaneseq
    %v8227 = vshrl.u32 %v8226, 7
    %v8228 = vsub.s32 7, %v8227
    %v8229 = vrot.slane %v6393, %v8228
    %v8230 = vlaneseq
    %v8231 = vshrl.u32 %v8230, 7
    %v8232 = vsub.s32 7, %v8231
    %v8233 = vrot.slane %v6400, %v8232
    %v8234 = vlaneseq
    %v8235 = vshrl.u32 %v8234, 7
    %v8236 = vsub.s32 7, %v8235
    %v8237 = vrot.slane %v6407, %v8236
    %v8238 = vlaneseq
    %v8239 = vshrl.u32 %v8238, 7
    %v8240 = vsub.s32 7, %v8239
    %v8241 = vrot.slane %v6414, %v8240
    %v8242 = vlaneseq
    %v8243 = vshrl.u32 %v8242, 7
    %v8244 = vsub.s32 7, %v8243
    %v8245 = vrot.slane %v6421, %v8244
    %v8246 = vlaneseq
    %v8247 = vshrl.u32 %v8246, 7
    %v8248 = vsub.s32 7, %v8247
    %v8249 = vrot.slane %v6428, %v8248
    %v8250 = vlaneseq
    %v8251 = vshrl.u32 %v8250, 7
    %v8252 = vsub.s32 7, %v8251
    %v8253 = vrot.slane %v6435, %v8252
    %v8254 = vlaneseq
    %v8255 = vshrl.u32 %v8254, 7
    %v8256 = vsub.s32 7, %v8255
    %v8257 = vrot.slane %v6442, %v8256
    %v8258 = vlaneseq
    %v8259 = vshrl.u32 %v8258, 7
    %v8260 = vsub.s32 7, %v8259
    %v8261 = vrot.slane %v6449, %v8260
    %v8262 = vlaneseq
    %v8263 = vshrl.u32 %v8262, 7
    %v8264 = vsub.s32 7, %v8263
    %v8265 = vrot.slane %v6456, %v8264
    %v8266 = vlaneseq
    %v8267 = vshrl.u32 %v8266, 7
    %v8268 = vsub.s32 7, %v8267
    %v8269 = vrot.slane %v6463, %v8268
    %v8270 = vlaneseq
    %v8271 = vshrl.u32 %v8270, 7
    %v8272 = vsub.s32 7, %v8271
    %v8273 = vrot.slane %v6470, %v8272
    %v8274 = vlaneseq
    %v8275 = vshrl.u32 %v8274, 7
    %v8276 = vsub.s32 7, %v8275
    %v8277 = vrot.slane %v6477, %v8276
    %v8278 = vlaneseq
    %v8279 = vshrl.u32 %v8278, 7
    %v8280 = vsub.s32 7, %v8279
    %v8281 = vrot.slane %v6484, %v8280
    %v8282 = vmul.bf16 %v8221, %v6250
    %v8283 = vmul.bf16 %v8225, %v6251
    %v8284 = vmul.bf16 %v8229, %v6252
    %v8285 = vmul.bf16 %v8233, %v6253
    %v8286 = vmul.bf16 %v8237, %v6254
    %v8287 = vmul.bf16 %v8241, %v6255
    %v8288 = vmul.bf16 %v8245, %v6256
    %v8289 = vmul.bf16 %v8249, %v6257
    %v8290 = vmul.bf16 %v8253, %v6258
    %v8291 = vmul.bf16 %v8257, %v6259
    %v8292 = vmul.bf16 %v8261, %v6260
    %v8293 = vmul.bf16 %v8265, %v6261
    %v8294 = vmul.bf16 %v8269, %v6262
    %v8295 = vmul.bf16 %v8273, %v6263
    %v8296 = vmul.bf16 %v8277, %v6264
    %v8297 = vmul.bf16 %v8281, %v6265
    %v8298 = vmul.bf16 %v8221, %v6266
    %v8299 = vmul.bf16 %v8225, %v6267
    %v8300 = vmul.bf16 %v8229, %v6268
    %v8301 = vmul.bf16 %v8233, %v6269
    %v8302 = vmul.bf16 %v8237, %v6270
    %v8303 = vmul.bf16 %v8241, %v6271
    %v8304 = vmul.bf16 %v8245, %v6272
    %v8305 = vmul.bf16 %v8249, %v6273
    %v8306 = vmul.bf16 %v8253, %v6274
    %v8307 = vmul.bf16 %v8257, %v6275
    %v8308 = vmul.bf16 %v8261, %v6276
    %v8309 = vmul.bf16 %v8265, %v6277
    %v8310 = vmul.bf16 %v8269, %v6278
    %v8311 = vmul.bf16 %v8273, %v6279
    %v8312 = vmul.bf16 %v8277, %v6280
    %v8313 = vmul.bf16 %v8281, %v6281
    %8314 = vst [vmem:[#allocation5 + $0xf00] sm:$0xff] %v8282
    %8315 = vst [vmem:[#allocation5 + $0xf08] sm:$0xff] %v8283
    %8316 = vst [vmem:[#allocation5 + $0xf10] sm:$0xff] %v8284
    %8317 = vst [vmem:[#allocation5 + $0xf18] sm:$0xff] %v8285
    %8318 = vst [vmem:[#allocation5 + $0xf20] sm:$0xff] %v8286
    %8319 = vst [vmem:[#allocation5 + $0xf28] sm:$0xff] %v8287
    %8320 = vst [vmem:[#allocation5 + $0xf30] sm:$0xff] %v8288
    %8321 = vst [vmem:[#allocation5 + $0xf38] sm:$0xff] %v8289
    %8322 = vst [vmem:[#allocation5 + $0xf40] sm:$0xff] %v8290
    %8323 = vst [vmem:[#allocation5 + $0xf48] sm:$0xff] %v8291
    %8324 = vst [vmem:[#allocation5 + $0xf50] sm:$0xff] %v8292
    %8325 = vst [vmem:[#allocation5 + $0xf58] sm:$0xff] %v8293
    %8326 = vst [vmem:[#allocation5 + $0xf60] sm:$0xff] %v8294
    %8327 = vst [vmem:[#allocation5 + $0xf68] sm:$0xff] %v8295
    %8328 = vst [vmem:[#allocation5 + $0xf70] sm:$0xff] %v8296
    %8329 = vst [vmem:[#allocation5 + $0xf78] sm:$0xff] %v8297
    %8330 = vst [vmem:[#allocation5 + $0xf80] sm:$0xff] %v8298
    %8331 = vst [vmem:[#allocation5 + $0xf88] sm:$0xff] %v8299
    %8332 = vst [vmem:[#allocation5 + $0xf90] sm:$0xff] %v8300
    %8333 = vst [vmem:[#allocation5 + $0xf98] sm:$0xff] %v8301
    %8334 = vst [vmem:[#allocation5 + $0xfa0] sm:$0xff] %v8302
    %8335 = vst [vmem:[#allocation5 + $0xfa8] sm:$0xff] %v8303
    %8336 = vst [vmem:[#allocation5 + $0xfb0] sm:$0xff] %v8304
    %8337 = vst [vmem:[#allocation5 + $0xfb8] sm:$0xff] %v8305
    %8338 = vst [vmem:[#allocation5 + $0xfc0] sm:$0xff] %v8306
    %8339 = vst [vmem:[#allocation5 + $0xfc8] sm:$0xff] %v8307
    %8340 = vst [vmem:[#allocation5 + $0xfd0] sm:$0xff] %v8308
    %8341 = vst [vmem:[#allocation5 + $0xfd8] sm:$0xff] %v8309
    %8342 = vst [vmem:[#allocation5 + $0xfe0] sm:$0xff] %v8310
    %8343 = vst [vmem:[#allocation5 + $0xfe8] sm:$0xff] %v8311
    %8344 = vst [vmem:[#allocation5 + $0xff0] sm:$0xff] %v8312
    %8345 = vst [vmem:[#allocation5 + $0xff8] sm:$0xff] %v8313
    %v8346 = vld [vmem:[%s5] sm:$0xff]
    %v8347 = vld [vmem:[%s5 + $0x8] sm:$0xff]
    %v8348 = vld [vmem:[#allocation5] sm:$0xff]
    %v8349 = vld [vmem:[#allocation5 + $0x8] sm:$0xff]
    %v8350 = vld [vmem:[#allocation5 + $0x10] sm:$0xff]
    %v8351 = vld [vmem:[#allocation5 + $0x18] sm:$0xff]
    %v8352 = vld [vmem:[#allocation5 + $0x20] sm:$0xff]
    %v8353 = vld [vmem:[#allocation5 + $0x28] sm:$0xff]
    %v8354 = vld [vmem:[#allocation5 + $0x30] sm:$0xff]
    %v8355 = vld [vmem:[#allocation5 + $0x38] sm:$0xff]
    %v8356 = vld [vmem:[#allocation5 + $0x40] sm:$0xff]
    %v8357 = vld [vmem:[#allocation5 + $0x48] sm:$0xff]
    %v8358 = vld [vmem:[#allocation5 + $0x50] sm:$0xff]
    %v8359 = vld [vmem:[#allocation5 + $0x58] sm:$0xff]
    %v8360 = vld [vmem:[#allocation5 + $0x60] sm:$0xff]
    %v8361 = vld [vmem:[#allocation5 + $0x68] sm:$0xff]
    %v8362 = vld [vmem:[#allocation5 + $0x70] sm:$0xff]
    %v8363 = vld [vmem:[#allocation5 + $0x78] sm:$0xff]
    %v8364 = vld [vmem:[#allocation5 + $0x80] sm:$0xff]
    %v8365 = vld [vmem:[#allocation5 + $0x88] sm:$0xff]
    %v8366 = vld [vmem:[#allocation5 + $0x90] sm:$0xff]
    %v8367 = vld [vmem:[#allocation5 + $0x98] sm:$0xff]
    %v8368 = vld [vmem:[#allocation5 + $0xa0] sm:$0xff]
    %v8369 = vld [vmem:[#allocation5 + $0xa8] sm:$0xff]
    %v8370 = vld [vmem:[#allocation5 + $0xb0] sm:$0xff]
    %v8371 = vld [vmem:[#allocation5 + $0xb8] sm:$0xff]
    %v8372 = vld [vmem:[#allocation5 + $0xc0] sm:$0xff]
    %v8373 = vld [vmem:[#allocation5 + $0xc8] sm:$0xff]
    %v8374 = vld [vmem:[#allocation5 + $0xd0] sm:$0xff]
    %v8375 = vld [vmem:[#allocation5 + $0xd8] sm:$0xff]
    %v8376 = vld [vmem:[#allocation5 + $0xe0] sm:$0xff]
    %v8377 = vld [vmem:[#allocation5 + $0xe8] sm:$0xff]
    %v8378 = vld [vmem:[#allocation5 + $0xf0] sm:$0xff]
    %v8379 = vld [vmem:[#allocation5 + $0xf8] sm:$0xff]
    %v8380 = vld [vmem:[#allocation5 + $0x100] sm:$0xff]
    %v8381 = vld [vmem:[#allocation5 + $0x108] sm:$0xff]
    %v8382 = vld [vmem:[#allocation5 + $0x110] sm:$0xff]
    %v8383 = vld [vmem:[#allocation5 + $0x118] sm:$0xff]
    %v8384 = vld [vmem:[#allocation5 + $0x120] sm:$0xff]
    %v8385 = vld [vmem:[#allocation5 + $0x128] sm:$0xff]
    %v8386 = vld [vmem:[#allocation5 + $0x130] sm:$0xff]
    %v8387 = vld [vmem:[#allocation5 + $0x138] sm:$0xff]
    %v8388 = vld [vmem:[#allocation5 + $0x140] sm:$0xff]
    %v8389 = vld [vmem:[#allocation5 + $0x148] sm:$0xff]
    %v8390 = vld [vmem:[#allocation5 + $0x150] sm:$0xff]
    %v8391 = vld [vmem:[#allocation5 + $0x158] sm:$0xff]
    %v8392 = vld [vmem:[#allocation5 + $0x160] sm:$0xff]
    %v8393 = vld [vmem:[#allocation5 + $0x168] sm:$0xff]
    %v8394 = vld [vmem:[#allocation5 + $0x170] sm:$0xff]
    %v8395 = vld [vmem:[#allocation5 + $0x178] sm:$0xff]
    %v8396 = vld [vmem:[#allocation5 + $0x180] sm:$0xff]
    %v8397 = vld [vmem:[#allocation5 + $0x188] sm:$0xff]
    %v8398 = vld [vmem:[#allocation5 + $0x190] sm:$0xff]
    %v8399 = vld [vmem:[#allocation5 + $0x198] sm:$0xff]
    %v8400 = vld [vmem:[#allocation5 + $0x1a0] sm:$0xff]
    %v8401 = vld [vmem:[#allocation5 + $0x1a8] sm:$0xff]
    %v8402 = vld [vmem:[#allocation5 + $0x1b0] sm:$0xff]
    %v8403 = vld [vmem:[#allocation5 + $0x1b8] sm:$0xff]
    %v8404 = vld [vmem:[#allocation5 + $0x1c0] sm:$0xff]
    %v8405 = vld [vmem:[#allocation5 + $0x1c8] sm:$0xff]
    %v8406 = vld [vmem:[#allocation5 + $0x1d0] sm:$0xff]
    %v8407 = vld [vmem:[#allocation5 + $0x1d8] sm:$0xff]
    %v8408 = vld [vmem:[#allocation5 + $0x1e0] sm:$0xff]
    %v8409 = vld [vmem:[#allocation5 + $0x1e8] sm:$0xff]
    %v8410 = vld [vmem:[#allocation5 + $0x1f0] sm:$0xff]
    %v8411 = vld [vmem:[#allocation5 + $0x1f8] sm:$0xff]
    %v8412 = vld [vmem:[#allocation5 + $0x200] sm:$0xff]
    %v8413 = vld [vmem:[#allocation5 + $0x208] sm:$0xff]
    %v8414 = vld [vmem:[#allocation5 + $0x210] sm:$0xff]
    %v8415 = vld [vmem:[#allocation5 + $0x218] sm:$0xff]
    %v8416 = vld [vmem:[#allocation5 + $0x220] sm:$0xff]
    %v8417 = vld [vmem:[#allocation5 + $0x228] sm:$0xff]
    %v8418 = vld [vmem:[#allocation5 + $0x230] sm:$0xff]
    %v8419 = vld [vmem:[#allocation5 + $0x238] sm:$0xff]
    %v8420 = vld [vmem:[#allocation5 + $0x240] sm:$0xff]
    %v8421 = vld [vmem:[#allocation5 + $0x248] sm:$0xff]
    %v8422 = vld [vmem:[#allocation5 + $0x250] sm:$0xff]
    %v8423 = vld [vmem:[#allocation5 + $0x258] sm:$0xff]
    %v8424 = vld [vmem:[#allocation5 + $0x260] sm:$0xff]
    %v8425 = vld [vmem:[#allocation5 + $0x268] sm:$0xff]
    %v8426 = vld [vmem:[#allocation5 + $0x270] sm:$0xff]
    %v8427 = vld [vmem:[#allocation5 + $0x278] sm:$0xff]
    %v8428 = vld [vmem:[#allocation5 + $0x280] sm:$0xff]
    %v8429 = vld [vmem:[#allocation5 + $0x288] sm:$0xff]
    %v8430 = vld [vmem:[#allocation5 + $0x290] sm:$0xff]
    %v8431 = vld [vmem:[#allocation5 + $0x298] sm:$0xff]
    %v8432 = vld [vmem:[#allocation5 + $0x2a0] sm:$0xff]
    %v8433 = vld [vmem:[#allocation5 + $0x2a8] sm:$0xff]
    %v8434 = vld [vmem:[#allocation5 + $0x2b0] sm:$0xff]
    %v8435 = vld [vmem:[#allocation5 + $0x2b8] sm:$0xff]
    %v8436 = vld [vmem:[#allocation5 + $0x2c0] sm:$0xff]
    %v8437 = vld [vmem:[#allocation5 + $0x2c8] sm:$0xff]
    %v8438 = vld [vmem:[#allocation5 + $0x2d0] sm:$0xff]
    %v8439 = vld [vmem:[#allocation5 + $0x2d8] sm:$0xff]
    %v8440 = vld [vmem:[#allocation5 + $0x2e0] sm:$0xff]
    %v8441 = vld [vmem:[#allocation5 + $0x2e8] sm:$0xff]
    %v8442 = vld [vmem:[#allocation5 + $0x2f0] sm:$0xff]
    %v8443 = vld [vmem:[#allocation5 + $0x2f8] sm:$0xff]
    %v8444 = vld [vmem:[#allocation5 + $0x300] sm:$0xff]
    %v8445 = vld [vmem:[#allocation5 + $0x308] sm:$0xff]
    %v8446 = vld [vmem:[#allocation5 + $0x310] sm:$0xff]
    %v8447 = vld [vmem:[#allocation5 + $0x318] sm:$0xff]
    %v8448 = vld [vmem:[#allocation5 + $0x320] sm:$0xff]
    %v8449 = vld [vmem:[#allocation5 + $0x328] sm:$0xff]
    %v8450 = vld [vmem:[#allocation5 + $0x330] sm:$0xff]
    %v8451 = vld [vmem:[#allocation5 + $0x338] sm:$0xff]
    %v8452 = vld [vmem:[#allocation5 + $0x340] sm:$0xff]
    %v8453 = vld [vmem:[#allocation5 + $0x348] sm:$0xff]
    %v8454 = vld [vmem:[#allocation5 + $0x350] sm:$0xff]
    %v8455 = vld [vmem:[#allocation5 + $0x358] sm:$0xff]
    %v8456 = vld [vmem:[#allocation5 + $0x360] sm:$0xff]
    %v8457 = vld [vmem:[#allocation5 + $0x368] sm:$0xff]
    %v8458 = vld [vmem:[#allocation5 + $0x370] sm:$0xff]
    %v8459 = vld [vmem:[#allocation5 + $0x378] sm:$0xff]
    %v8460 = vld [vmem:[#allocation5 + $0x380] sm:$0xff]
    %v8461 = vld [vmem:[#allocation5 + $0x388] sm:$0xff]
    %v8462 = vld [vmem:[#allocation5 + $0x390] sm:$0xff]
    %v8463 = vld [vmem:[#allocation5 + $0x398] sm:$0xff]
    %v8464 = vld [vmem:[#allocation5 + $0x3a0] sm:$0xff]
    %v8465 = vld [vmem:[#allocation5 + $0x3a8] sm:$0xff]
    %v8466 = vld [vmem:[#allocation5 + $0x3b0] sm:$0xff]
    %v8467 = vld [vmem:[#allocation5 + $0x3b8] sm:$0xff]
    %v8468 = vld [vmem:[#allocation5 + $0x3c0] sm:$0xff]
    %v8469 = vld [vmem:[#allocation5 + $0x3c8] sm:$0xff]
    %v8470 = vld [vmem:[#allocation5 + $0x3d0] sm:$0xff]
    %v8471 = vld [vmem:[#allocation5 + $0x3d8] sm:$0xff]
    %v8472 = vld [vmem:[#allocation5 + $0x3e0] sm:$0xff]
    %v8473 = vld [vmem:[#allocation5 + $0x3e8] sm:$0xff]
    %v8474 = vld [vmem:[#allocation5 + $0x3f0] sm:$0xff]
    %v8475 = vld [vmem:[#allocation5 + $0x3f8] sm:$0xff]
    %v8476 = vld [vmem:[#allocation5 + $0x400] sm:$0xff]
    %v8477 = vld [vmem:[#allocation5 + $0x408] sm:$0xff]
    %v8478 = vld [vmem:[#allocation5 + $0x410] sm:$0xff]
    %v8479 = vld [vmem:[#allocation5 + $0x418] sm:$0xff]
    %v8480 = vld [vmem:[#allocation5 + $0x420] sm:$0xff]
    %v8481 = vld [vmem:[#allocation5 + $0x428] sm:$0xff]
    %v8482 = vld [vmem:[#allocation5 + $0x430] sm:$0xff]
    %v8483 = vld [vmem:[#allocation5 + $0x438] sm:$0xff]
    %v8484 = vld [vmem:[#allocation5 + $0x440] sm:$0xff]
    %v8485 = vld [vmem:[#allocation5 + $0x448] sm:$0xff]
    %v8486 = vld [vmem:[#allocation5 + $0x450] sm:$0xff]
    %v8487 = vld [vmem:[#allocation5 + $0x458] sm:$0xff]
    %v8488 = vld [vmem:[#allocation5 + $0x460] sm:$0xff]
    %v8489 = vld [vmem:[#allocation5 + $0x468] sm:$0xff]
    %v8490 = vld [vmem:[#allocation5 + $0x470] sm:$0xff]
    %v8491 = vld [vmem:[#allocation5 + $0x478] sm:$0xff]
    %v8492 = vld [vmem:[#allocation5 + $0x480] sm:$0xff]
    %v8493 = vld [vmem:[#allocation5 + $0x488] sm:$0xff]
    %v8494 = vld [vmem:[#allocation5 + $0x490] sm:$0xff]
    %v8495 = vld [vmem:[#allocation5 + $0x498] sm:$0xff]
    %v8496 = vld [vmem:[#allocation5 + $0x4a0] sm:$0xff]
    %v8497 = vld [vmem:[#allocation5 + $0x4a8] sm:$0xff]
    %v8498 = vld [vmem:[#allocation5 + $0x4b0] sm:$0xff]
    %v8499 = vld [vmem:[#allocation5 + $0x4b8] sm:$0xff]
    %v8500 = vld [vmem:[#allocation5 + $0x4c0] sm:$0xff]
    %v8501 = vld [vmem:[#allocation5 + $0x4c8] sm:$0xff]
    %v8502 = vld [vmem:[#allocation5 + $0x4d0] sm:$0xff]
    %v8503 = vld [vmem:[#allocation5 + $0x4d8] sm:$0xff]
    %v8504 = vld [vmem:[#allocation5 + $0x4e0] sm:$0xff]
    %v8505 = vld [vmem:[#allocation5 + $0x4e8] sm:$0xff]
    %v8506 = vld [vmem:[#allocation5 + $0x4f0] sm:$0xff]
    %v8507 = vld [vmem:[#allocation5 + $0x4f8] sm:$0xff]
    %v8508 = vld [vmem:[#allocation5 + $0x500] sm:$0xff]
    %v8509 = vld [vmem:[#allocation5 + $0x508] sm:$0xff]
    %v8510 = vld [vmem:[#allocation5 + $0x510] sm:$0xff]
    %v8511 = vld [vmem:[#allocation5 + $0x518] sm:$0xff]
    %v8512 = vld [vmem:[#allocation5 + $0x520] sm:$0xff]
    %v8513 = vld [vmem:[#allocation5 + $0x528] sm:$0xff]
    %v8514 = vld [vmem:[#allocation5 + $0x530] sm:$0xff]
    %v8515 = vld [vmem:[#allocation5 + $0x538] sm:$0xff]
    %v8516 = vld [vmem:[#allocation5 + $0x540] sm:$0xff]
    %v8517 = vld [vmem:[#allocation5 + $0x548] sm:$0xff]
    %v8518 = vld [vmem:[#allocation5 + $0x550] sm:$0xff]
    %v8519 = vld [vmem:[#allocation5 + $0x558] sm:$0xff]
    %v8520 = vld [vmem:[#allocation5 + $0x560] sm:$0xff]
    %v8521 = vld [vmem:[#allocation5 + $0x568] sm:$0xff]
    %v8522 = vld [vmem:[#allocation5 + $0x570] sm:$0xff]
    %v8523 = vld [vmem:[#allocation5 + $0x578] sm:$0xff]
    %v8524 = vld [vmem:[#allocation5 + $0x580] sm:$0xff]
    %v8525 = vld [vmem:[#allocation5 + $0x588] sm:$0xff]
    %v8526 = vld [vmem:[#allocation5 + $0x590] sm:$0xff]
    %v8527 = vld [vmem:[#allocation5 + $0x598] sm:$0xff]
    %v8528 = vld [vmem:[#allocation5 + $0x5a0] sm:$0xff]
    %v8529 = vld [vmem:[#allocation5 + $0x5a8] sm:$0xff]
    %v8530 = vld [vmem:[#allocation5 + $0x5b0] sm:$0xff]
    %v8531 = vld [vmem:[#allocation5 + $0x5b8] sm:$0xff]
    %v8532 = vld [vmem:[#allocation5 + $0x5c0] sm:$0xff]
    %v8533 = vld [vmem:[#allocation5 + $0x5c8] sm:$0xff]
    %v8534 = vld [vmem:[#allocation5 + $0x5d0] sm:$0xff]
    %v8535 = vld [vmem:[#allocation5 + $0x5d8] sm:$0xff]
    %v8536 = vld [vmem:[#allocation5 + $0x5e0] sm:$0xff]
    %v8537 = vld [vmem:[#allocation5 + $0x5e8] sm:$0xff]
    %v8538 = vld [vmem:[#allocation5 + $0x5f0] sm:$0xff]
    %v8539 = vld [vmem:[#allocation5 + $0x5f8] sm:$0xff]
    %v8540 = vld [vmem:[#allocation5 + $0x600] sm:$0xff]
    %v8541 = vld [vmem:[#allocation5 + $0x608] sm:$0xff]
    %v8542 = vld [vmem:[#allocation5 + $0x610] sm:$0xff]
    %v8543 = vld [vmem:[#allocation5 + $0x618] sm:$0xff]
    %v8544 = vld [vmem:[#allocation5 + $0x620] sm:$0xff]
    %v8545 = vld [vmem:[#allocation5 + $0x628] sm:$0xff]
    %v8546 = vld [vmem:[#allocation5 + $0x630] sm:$0xff]
    %v8547 = vld [vmem:[#allocation5 + $0x638] sm:$0xff]
    %v8548 = vld [vmem:[#allocation5 + $0x640] sm:$0xff]
    %v8549 = vld [vmem:[#allocation5 + $0x648] sm:$0xff]
    %v8550 = vld [vmem:[#allocation5 + $0x650] sm:$0xff]
    %v8551 = vld [vmem:[#allocation5 + $0x658] sm:$0xff]
    %v8552 = vld [vmem:[#allocation5 + $0x660] sm:$0xff]
    %v8553 = vld [vmem:[#allocation5 + $0x668] sm:$0xff]
    %v8554 = vld [vmem:[#allocation5 + $0x670] sm:$0xff]
    %v8555 = vld [vmem:[#allocation5 + $0x678] sm:$0xff]
    %v8556 = vld [vmem:[#allocation5 + $0x680] sm:$0xff]
    %v8557 = vld [vmem:[#allocation5 + $0x688] sm:$0xff]
    %v8558 = vld [vmem:[#allocation5 + $0x690] sm:$0xff]
    %v8559 = vld [vmem:[#allocation5 + $0x698] sm:$0xff]
    %v8560 = vld [vmem:[#allocation5 + $0x6a0] sm:$0xff]
    %v8561 = vld [vmem:[#allocation5 + $0x6a8] sm:$0xff]
    %v8562 = vld [vmem:[#allocation5 + $0x6b0] sm:$0xff]
    %v8563 = vld [vmem:[#allocation5 + $0x6b8] sm:$0xff]
    %v8564 = vld [vmem:[#allocation5 + $0x6c0] sm:$0xff]
    %v8565 = vld [vmem:[#allocation5 + $0x6c8] sm:$0xff]
    %v8566 = vld [vmem:[#allocation5 + $0x6d0] sm:$0xff]
    %v8567 = vld [vmem:[#allocation5 + $0x6d8] sm:$0xff]
    %v8568 = vld [vmem:[#allocation5 + $0x6e0] sm:$0xff]
    %v8569 = vld [vmem:[#allocation5 + $0x6e8] sm:$0xff]
    %v8570 = vld [vmem:[#allocation5 + $0x6f0] sm:$0xff]
    %v8571 = vld [vmem:[#allocation5 + $0x6f8] sm:$0xff]
    %v8572 = vld [vmem:[#allocation5 + $0x700] sm:$0xff]
    %v8573 = vld [vmem:[#allocation5 + $0x708] sm:$0xff]
    %v8574 = vld [vmem:[#allocation5 + $0x710] sm:$0xff]
    %v8575 = vld [vmem:[#allocation5 + $0x718] sm:$0xff]
    %v8576 = vld [vmem:[#allocation5 + $0x720] sm:$0xff]
    %v8577 = vld [vmem:[#allocation5 + $0x728] sm:$0xff]
    %v8578 = vld [vmem:[#allocation5 + $0x730] sm:$0xff]
    %v8579 = vld [vmem:[#allocation5 + $0x738] sm:$0xff]
    %v8580 = vld [vmem:[#allocation5 + $0x740] sm:$0xff]
    %v8581 = vld [vmem:[#allocation5 + $0x748] sm:$0xff]
    %v8582 = vld [vmem:[#allocation5 + $0x750] sm:$0xff]
    %v8583 = vld [vmem:[#allocation5 + $0x758] sm:$0xff]
    %v8584 = vld [vmem:[#allocation5 + $0x760] sm:$0xff]
    %v8585 = vld [vmem:[#allocation5 + $0x768] sm:$0xff]
    %v8586 = vld [vmem:[#allocation5 + $0x770] sm:$0xff]
    %v8587 = vld [vmem:[#allocation5 + $0x778] sm:$0xff]
    %v8588 = vld [vmem:[#allocation5 + $0x780] sm:$0xff]
    %v8589 = vld [vmem:[#allocation5 + $0x788] sm:$0xff]
    %v8590 = vld [vmem:[#allocation5 + $0x790] sm:$0xff]
    %v8591 = vld [vmem:[#allocation5 + $0x798] sm:$0xff]
    %v8592 = vld [vmem:[#allocation5 + $0x7a0] sm:$0xff]
    %v8593 = vld [vmem:[#allocation5 + $0x7a8] sm:$0xff]
    %v8594 = vld [vmem:[#allocation5 + $0x7b0] sm:$0xff]
    %v8595 = vld [vmem:[#allocation5 + $0x7b8] sm:$0xff]
    %v8596 = vld [vmem:[#allocation5 + $0x7c0] sm:$0xff]
    %v8597 = vld [vmem:[#allocation5 + $0x7c8] sm:$0xff]
    %v8598 = vld [vmem:[#allocation5 + $0x7d0] sm:$0xff]
    %v8599 = vld [vmem:[#allocation5 + $0x7d8] sm:$0xff]
    %v8600 = vld [vmem:[#allocation5 + $0x7e0] sm:$0xff]
    %v8601 = vld [vmem:[#allocation5 + $0x7e8] sm:$0xff]
    %v8602 = vld [vmem:[#allocation5 + $0x7f0] sm:$0xff]
    %v8603 = vld [vmem:[#allocation5 + $0x7f8] sm:$0xff]
    %v8604 = vld [vmem:[#allocation5 + $0x800] sm:$0xff]
    %v8605 = vld [vmem:[#allocation5 + $0x808] sm:$0xff]
    %v8606 = vld [vmem:[#allocation5 + $0x810] sm:$0xff]
    %v8607 = vld [vmem:[#allocation5 + $0x818] sm:$0xff]
    %v8608 = vld [vmem:[#allocation5 + $0x820] sm:$0xff]
    %v8609 = vld [vmem:[#allocation5 + $0x828] sm:$0xff]
    %v8610 = vld [vmem:[#allocation5 + $0x830] sm:$0xff]
    %v8611 = vld [vmem:[#allocation5 + $0x838] sm:$0xff]
    %v8612 = vld [vmem:[#allocation5 + $0x840] sm:$0xff]
    %v8613 = vld [vmem:[#allocation5 + $0x848] sm:$0xff]
    %v8614 = vld [vmem:[#allocation5 + $0x850] sm:$0xff]
    %v8615 = vld [vmem:[#allocation5 + $0x858] sm:$0xff]
    %v8616 = vld [vmem:[#allocation5 + $0x860] sm:$0xff]
    %v8617 = vld [vmem:[#allocation5 + $0x868] sm:$0xff]
    %v8618 = vld [vmem:[#allocation5 + $0x870] sm:$0xff]
    %v8619 = vld [vmem:[#allocation5 + $0x878] sm:$0xff]
    %v8620 = vld [vmem:[#allocation5 + $0x880] sm:$0xff]
    %v8621 = vld [vmem:[#allocation5 + $0x888] sm:$0xff]
    %v8622 = vld [vmem:[#allocation5 + $0x890] sm:$0xff]
    %v8623 = vld [vmem:[#allocation5 + $0x898] sm:$0xff]
    %v8624 = vld [vmem:[#allocation5 + $0x8a0] sm:$0xff]
    %v8625 = vld [vmem:[#allocation5 + $0x8a8] sm:$0xff]
    %v8626 = vld [vmem:[#allocation5 + $0x8b0] sm:$0xff]
    %v8627 = vld [vmem:[#allocation5 + $0x8b8] sm:$0xff]
    %v8628 = vld [vmem:[#allocation5 + $0x8c0] sm:$0xff]
    %v8629 = vld [vmem:[#allocation5 + $0x8c8] sm:$0xff]
    %v8630 = vld [vmem:[#allocation5 + $0x8d0] sm:$0xff]
    %v8631 = vld [vmem:[#allocation5 + $0x8d8] sm:$0xff]
    %v8632 = vld [vmem:[#allocation5 + $0x8e0] sm:$0xff]
    %v8633 = vld [vmem:[#allocation5 + $0x8e8] sm:$0xff]
    %v8634 = vld [vmem:[#allocation5 + $0x8f0] sm:$0xff]
    %v8635 = vld [vmem:[#allocation5 + $0x8f8] sm:$0xff]
    %v8636 = vld [vmem:[#allocation5 + $0x900] sm:$0xff]
    %v8637 = vld [vmem:[#allocation5 + $0x908] sm:$0xff]
    %v8638 = vld [vmem:[#allocation5 + $0x910] sm:$0xff]
    %v8639 = vld [vmem:[#allocation5 + $0x918] sm:$0xff]
    %v8640 = vld [vmem:[#allocation5 + $0x920] sm:$0xff]
    %v8641 = vld [vmem:[#allocation5 + $0x928] sm:$0xff]
    %v8642 = vld [vmem:[#allocation5 + $0x930] sm:$0xff]
    %v8643 = vld [vmem:[#allocation5 + $0x938] sm:$0xff]
    %v8644 = vld [vmem:[#allocation5 + $0x940] sm:$0xff]
    %v8645 = vld [vmem:[#allocation5 + $0x948] sm:$0xff]
    %v8646 = vld [vmem:[#allocation5 + $0x950] sm:$0xff]
    %v8647 = vld [vmem:[#allocation5 + $0x958] sm:$0xff]
    %v8648 = vld [vmem:[#allocation5 + $0x960] sm:$0xff]
    %v8649 = vld [vmem:[#allocation5 + $0x968] sm:$0xff]
    %v8650 = vld [vmem:[#allocation5 + $0x970] sm:$0xff]
    %v8651 = vld [vmem:[#allocation5 + $0x978] sm:$0xff]
    %v8652 = vld [vmem:[#allocation5 + $0x980] sm:$0xff]
    %v8653 = vld [vmem:[#allocation5 + $0x988] sm:$0xff]
    %v8654 = vld [vmem:[#allocation5 + $0x990] sm:$0xff]
    %v8655 = vld [vmem:[#allocation5 + $0x998] sm:$0xff]
    %v8656 = vld [vmem:[#allocation5 + $0x9a0] sm:$0xff]
    %v8657 = vld [vmem:[#allocation5 + $0x9a8] sm:$0xff]
    %v8658 = vld [vmem:[#allocation5 + $0x9b0] sm:$0xff]
    %v8659 = vld [vmem:[#allocation5 + $0x9b8] sm:$0xff]
    %v8660 = vld [vmem:[#allocation5 + $0x9c0] sm:$0xff]
    %v8661 = vld [vmem:[#allocation5 + $0x9c8] sm:$0xff]
    %v8662 = vld [vmem:[#allocation5 + $0x9d0] sm:$0xff]
    %v8663 = vld [vmem:[#allocation5 + $0x9d8] sm:$0xff]
    %v8664 = vld [vmem:[#allocation5 + $0x9e0] sm:$0xff]
    %v8665 = vld [vmem:[#allocation5 + $0x9e8] sm:$0xff]
    %v8666 = vld [vmem:[#allocation5 + $0x9f0] sm:$0xff]
    %v8667 = vld [vmem:[#allocation5 + $0x9f8] sm:$0xff]
    %v8668 = vld [vmem:[#allocation5 + $0xa00] sm:$0xff]
    %v8669 = vld [vmem:[#allocation5 + $0xa08] sm:$0xff]
    %v8670 = vld [vmem:[#allocation5 + $0xa10] sm:$0xff]
    %v8671 = vld [vmem:[#allocation5 + $0xa18] sm:$0xff]
    %v8672 = vld [vmem:[#allocation5 + $0xa20] sm:$0xff]
    %v8673 = vld [vmem:[#allocation5 + $0xa28] sm:$0xff]
    %v8674 = vld [vmem:[#allocation5 + $0xa30] sm:$0xff]
    %v8675 = vld [vmem:[#allocation5 + $0xa38] sm:$0xff]
    %v8676 = vld [vmem:[#allocation5 + $0xa40] sm:$0xff]
    %v8677 = vld [vmem:[#allocation5 + $0xa48] sm:$0xff]
    %v8678 = vld [vmem:[#allocation5 + $0xa50] sm:$0xff]
    %v8679 = vld [vmem:[#allocation5 + $0xa58] sm:$0xff]
    %v8680 = vld [vmem:[#allocation5 + $0xa60] sm:$0xff]
    %v8681 = vld [vmem:[#allocation5 + $0xa68] sm:$0xff]
    %v8682 = vld [vmem:[#allocation5 + $0xa70] sm:$0xff]
    %v8683 = vld [vmem:[#allocation5 + $0xa78] sm:$0xff]
    %v8684 = vld [vmem:[#allocation5 + $0xa80] sm:$0xff]
    %v8685 = vld [vmem:[#allocation5 + $0xa88] sm:$0xff]
    %v8686 = vld [vmem:[#allocation5 + $0xa90] sm:$0xff]
    %v8687 = vld [vmem:[#allocation5 + $0xa98] sm:$0xff]
    %v8688 = vld [vmem:[#allocation5 + $0xaa0] sm:$0xff]
    %v8689 = vld [vmem:[#allocation5 + $0xaa8] sm:$0xff]
    %v8690 = vld [vmem:[#allocation5 + $0xab0] sm:$0xff]
    %v8691 = vld [vmem:[#allocation5 + $0xab8] sm:$0xff]
    %v8692 = vld [vmem:[#allocation5 + $0xac0] sm:$0xff]
    %v8693 = vld [vmem:[#allocation5 + $0xac8] sm:$0xff]
    %v8694 = vld [vmem:[#allocation5 + $0xad0] sm:$0xff]
    %v8695 = vld [vmem:[#allocation5 + $0xad8] sm:$0xff]
    %v8696 = vld [vmem:[#allocation5 + $0xae0] sm:$0xff]
    %v8697 = vld [vmem:[#allocation5 + $0xae8] sm:$0xff]
    %v8698 = vld [vmem:[#allocation5 + $0xaf0] sm:$0xff]
    %v8699 = vld [vmem:[#allocation5 + $0xaf8] sm:$0xff]
    %v8700 = vld [vmem:[#allocation5 + $0xb00] sm:$0xff]
    %v8701 = vld [vmem:[#allocation5 + $0xb08] sm:$0xff]
    %v8702 = vld [vmem:[#allocation5 + $0xb10] sm:$0xff]
    %v8703 = vld [vmem:[#allocation5 + $0xb18] sm:$0xff]
    %v8704 = vld [vmem:[#allocation5 + $0xb20] sm:$0xff]
    %v8705 = vld [vmem:[#allocation5 + $0xb28] sm:$0xff]
    %v8706 = vld [vmem:[#allocation5 + $0xb30] sm:$0xff]
    %v8707 = vld [vmem:[#allocation5 + $0xb38] sm:$0xff]
    %v8708 = vld [vmem:[#allocation5 + $0xb40] sm:$0xff]
    %v8709 = vld [vmem:[#allocation5 + $0xb48] sm:$0xff]
    %v8710 = vld [vmem:[#allocation5 + $0xb50] sm:$0xff]
    %v8711 = vld [vmem:[#allocation5 + $0xb58] sm:$0xff]
    %v8712 = vld [vmem:[#allocation5 + $0xb60] sm:$0xff]
    %v8713 = vld [vmem:[#allocation5 + $0xb68] sm:$0xff]
    %v8714 = vld [vmem:[#allocation5 + $0xb70] sm:$0xff]
    %v8715 = vld [vmem:[#allocation5 + $0xb78] sm:$0xff]
    %v8716 = vld [vmem:[#allocation5 + $0xb80] sm:$0xff]
    %v8717 = vld [vmem:[#allocation5 + $0xb88] sm:$0xff]
    %v8718 = vld [vmem:[#allocation5 + $0xb90] sm:$0xff]
    %v8719 = vld [vmem:[#allocation5 + $0xb98] sm:$0xff]
    %v8720 = vld [vmem:[#allocation5 + $0xba0] sm:$0xff]
    %v8721 = vld [vmem:[#allocation5 + $0xba8] sm:$0xff]
    %v8722 = vld [vmem:[#allocation5 + $0xbb0] sm:$0xff]
    %v8723 = vld [vmem:[#allocation5 + $0xbb8] sm:$0xff]
    %v8724 = vld [vmem:[#allocation5 + $0xbc0] sm:$0xff]
    %v8725 = vld [vmem:[#allocation5 + $0xbc8] sm:$0xff]
    %v8726 = vld [vmem:[#allocation5 + $0xbd0] sm:$0xff]
    %v8727 = vld [vmem:[#allocation5 + $0xbd8] sm:$0xff]
    %v8728 = vld [vmem:[#allocation5 + $0xbe0] sm:$0xff]
    %v8729 = vld [vmem:[#allocation5 + $0xbe8] sm:$0xff]
    %v8730 = vld [vmem:[#allocation5 + $0xbf0] sm:$0xff]
    %v8731 = vld [vmem:[#allocation5 + $0xbf8] sm:$0xff]
    %v8732 = vld [vmem:[#allocation5 + $0xc00] sm:$0xff]
    %v8733 = vld [vmem:[#allocation5 + $0xc08] sm:$0xff]
    %v8734 = vld [vmem:[#allocation5 + $0xc10] sm:$0xff]
    %v8735 = vld [vmem:[#allocation5 + $0xc18] sm:$0xff]
    %v8736 = vld [vmem:[#allocation5 + $0xc20] sm:$0xff]
    %v8737 = vld [vmem:[#allocation5 + $0xc28] sm:$0xff]
    %v8738 = vld [vmem:[#allocation5 + $0xc30] sm:$0xff]
    %v8739 = vld [vmem:[#allocation5 + $0xc38] sm:$0xff]
    %v8740 = vld [vmem:[#allocation5 + $0xc40] sm:$0xff]
    %v8741 = vld [vmem:[#allocation5 + $0xc48] sm:$0xff]
    %v8742 = vld [vmem:[#allocation5 + $0xc50] sm:$0xff]
    %v8743 = vld [vmem:[#allocation5 + $0xc58] sm:$0xff]
    %v8744 = vld [vmem:[#allocation5 + $0xc60] sm:$0xff]
    %v8745 = vld [vmem:[#allocation5 + $0xc68] sm:$0xff]
    %v8746 = vld [vmem:[#allocation5 + $0xc70] sm:$0xff]
    %v8747 = vld [vmem:[#allocation5 + $0xc78] sm:$0xff]
    %v8748 = vld [vmem:[#allocation5 + $0xc80] sm:$0xff]
    %v8749 = vld [vmem:[#allocation5 + $0xc88] sm:$0xff]
    %v8750 = vld [vmem:[#allocation5 + $0xc90] sm:$0xff]
    %v8751 = vld [vmem:[#allocation5 + $0xc98] sm:$0xff]
    %v8752 = vld [vmem:[#allocation5 + $0xca0] sm:$0xff]
    %v8753 = vld [vmem:[#allocation5 + $0xca8] sm:$0xff]
    %v8754 = vld [vmem:[#allocation5 + $0xcb0] sm:$0xff]
    %v8755 = vld [vmem:[#allocation5 + $0xcb8] sm:$0xff]
    %v8756 = vld [vmem:[#allocation5 + $0xcc0] sm:$0xff]
    %v8757 = vld [vmem:[#allocation5 + $0xcc8] sm:$0xff]
    %v8758 = vld [vmem:[#allocation5 + $0xcd0] sm:$0xff]
    %v8759 = vld [vmem:[#allocation5 + $0xcd8] sm:$0xff]
    %v8760 = vld [vmem:[#allocation5 + $0xce0] sm:$0xff]
    %v8761 = vld [vmem:[#allocation5 + $0xce8] sm:$0xff]
    %v8762 = vld [vmem:[#allocation5 + $0xcf0] sm:$0xff]
    %v8763 = vld [vmem:[#allocation5 + $0xcf8] sm:$0xff]
    %v8764 = vld [vmem:[#allocation5 + $0xd00] sm:$0xff]
    %v8765 = vld [vmem:[#allocation5 + $0xd08] sm:$0xff]
    %v8766 = vld [vmem:[#allocation5 + $0xd10] sm:$0xff]
    %v8767 = vld [vmem:[#allocation5 + $0xd18] sm:$0xff]
    %v8768 = vld [vmem:[#allocation5 + $0xd20] sm:$0xff]
    %v8769 = vld [vmem:[#allocation5 + $0xd28] sm:$0xff]
    %v8770 = vld [vmem:[#allocation5 + $0xd30] sm:$0xff]
    %v8771 = vld [vmem:[#allocation5 + $0xd38] sm:$0xff]
    %v8772 = vld [vmem:[#allocation5 + $0xd40] sm:$0xff]
    %v8773 = vld [vmem:[#allocation5 + $0xd48] sm:$0xff]
    %v8774 = vld [vmem:[#allocation5 + $0xd50] sm:$0xff]
    %v8775 = vld [vmem:[#allocation5 + $0xd58] sm:$0xff]
    %v8776 = vld [vmem:[#allocation5 + $0xd60] sm:$0xff]
    %v8777 = vld [vmem:[#allocation5 + $0xd68] sm:$0xff]
    %v8778 = vld [vmem:[#allocation5 + $0xd70] sm:$0xff]
    %v8779 = vld [vmem:[#allocation5 + $0xd78] sm:$0xff]
    %v8780 = vld [vmem:[#allocation5 + $0xd80] sm:$0xff]
    %v8781 = vld [vmem:[#allocation5 + $0xd88] sm:$0xff]
    %v8782 = vld [vmem:[#allocation5 + $0xd90] sm:$0xff]
    %v8783 = vld [vmem:[#allocation5 + $0xd98] sm:$0xff]
    %v8784 = vld [vmem:[#allocation5 + $0xda0] sm:$0xff]
    %v8785 = vld [vmem:[#allocation5 + $0xda8] sm:$0xff]
    %v8786 = vld [vmem:[#allocation5 + $0xdb0] sm:$0xff]
    %v8787 = vld [vmem:[#allocation5 + $0xdb8] sm:$0xff]
    %v8788 = vld [vmem:[#allocation5 + $0xdc0] sm:$0xff]
    %v8789 = vld [vmem:[#allocation5 + $0xdc8] sm:$0xff]
    %v8790 = vld [vmem:[#allocation5 + $0xdd0] sm:$0xff]
    %v8791 = vld [vmem:[#allocation5 + $0xdd8] sm:$0xff]
    %v8792 = vld [vmem:[#allocation5 + $0xde0] sm:$0xff]
    %v8793 = vld [vmem:[#allocation5 + $0xde8] sm:$0xff]
    %v8794 = vld [vmem:[#allocation5 + $0xdf0] sm:$0xff]
    %v8795 = vld [vmem:[#allocation5 + $0xdf8] sm:$0xff]
    %v8796 = vld [vmem:[#allocation5 + $0xe00] sm:$0xff]
    %v8797 = vld [vmem:[#allocation5 + $0xe08] sm:$0xff]
    %v8798 = vld [vmem:[#allocation5 + $0xe10] sm:$0xff]
    %v8799 = vld [vmem:[#allocation5 + $0xe18] sm:$0xff]
    %v8800 = vld [vmem:[#allocation5 + $0xe20] sm:$0xff]
    %v8801 = vld [vmem:[#allocation5 + $0xe28] sm:$0xff]
    %v8802 = vld [vmem:[#allocation5 + $0xe30] sm:$0xff]
    %v8803 = vld [vmem:[#allocation5 + $0xe38] sm:$0xff]
    %v8804 = vld [vmem:[#allocation5 + $0xe40] sm:$0xff]
    %v8805 = vld [vmem:[#allocation5 + $0xe48] sm:$0xff]
    %v8806 = vld [vmem:[#allocation5 + $0xe50] sm:$0xff]
    %v8807 = vld [vmem:[#allocation5 + $0xe58] sm:$0xff]
    %v8808 = vld [vmem:[#allocation5 + $0xe60] sm:$0xff]
    %v8809 = vld [vmem:[#allocation5 + $0xe68] sm:$0xff]
    %v8810 = vld [vmem:[#allocation5 + $0xe70] sm:$0xff]
    %v8811 = vld [vmem:[#allocation5 + $0xe78] sm:$0xff]
    %v8812 = vld [vmem:[#allocation5 + $0xe80] sm:$0xff]
    %v8813 = vld [vmem:[#allocation5 + $0xe88] sm:$0xff]
    %v8814 = vld [vmem:[#allocation5 + $0xe90] sm:$0xff]
    %v8815 = vld [vmem:[#allocation5 + $0xe98] sm:$0xff]
    %v8816 = vld [vmem:[#allocation5 + $0xea0] sm:$0xff]
    %v8817 = vld [vmem:[#allocation5 + $0xea8] sm:$0xff]
    %v8818 = vld [vmem:[#allocation5 + $0xeb0] sm:$0xff]
    %v8819 = vld [vmem:[#allocation5 + $0xeb8] sm:$0xff]
    %v8820 = vld [vmem:[#allocation5 + $0xec0] sm:$0xff]
    %v8821 = vld [vmem:[#allocation5 + $0xec8] sm:$0xff]
    %v8822 = vld [vmem:[#allocation5 + $0xed0] sm:$0xff]
    %v8823 = vld [vmem:[#allocation5 + $0xed8] sm:$0xff]
    %v8824 = vld [vmem:[#allocation5 + $0xee0] sm:$0xff]
    %v8825 = vld [vmem:[#allocation5 + $0xee8] sm:$0xff]
    %v8826 = vld [vmem:[#allocation5 + $0xef0] sm:$0xff]
    %v8827 = vld [vmem:[#allocation5 + $0xef8] sm:$0xff]
    %v8828 = vld [vmem:[#allocation5 + $0xf00] sm:$0xff]
    %v8829 = vld [vmem:[#allocation5 + $0xf08] sm:$0xff]
    %v8830 = vld [vmem:[#allocation5 + $0xf10] sm:$0xff]
    %v8831 = vld [vmem:[#allocation5 + $0xf18] sm:$0xff]
    %v8832 = vld [vmem:[#allocation5 + $0xf20] sm:$0xff]
    %v8833 = vld [vmem:[#allocation5 + $0xf28] sm:$0xff]
    %v8834 = vld [vmem:[#allocation5 + $0xf30] sm:$0xff]
    %v8835 = vld [vmem:[#allocation5 + $0xf38] sm:$0xff]
    %v8836 = vld [vmem:[#allocation5 + $0xf40] sm:$0xff]
    %v8837 = vld [vmem:[#allocation5 + $0xf48] sm:$0xff]
    %v8838 = vld [vmem:[#allocation5 + $0xf50] sm:$0xff]
    %v8839 = vld [vmem:[#allocation5 + $0xf58] sm:$0xff]
    %v8840 = vld [vmem:[#allocation5 + $0xf60] sm:$0xff]
    %v8841 = vld [vmem:[#allocation5 + $0xf68] sm:$0xff]
    %v8842 = vld [vmem:[#allocation5 + $0xf70] sm:$0xff]
    %v8843 = vld [vmem:[#allocation5 + $0xf78] sm:$0xff]
    %v8844 = vld [vmem:[#allocation5 + $0xf80] sm:$0xff]
    %v8845 = vld [vmem:[#allocation5 + $0xf88] sm:$0xff]
    %v8846 = vld [vmem:[#allocation5 + $0xf90] sm:$0xff]
    %v8847 = vld [vmem:[#allocation5 + $0xf98] sm:$0xff]
    %v8848 = vld [vmem:[#allocation5 + $0xfa0] sm:$0xff]
    %v8849 = vld [vmem:[#allocation5 + $0xfa8] sm:$0xff]
    %v8850 = vld [vmem:[#allocation5 + $0xfb0] sm:$0xff]
    %v8851 = vld [vmem:[#allocation5 + $0xfb8] sm:$0xff]
    %v8852 = vld [vmem:[#allocation5 + $0xfc0] sm:$0xff]
    %v8853 = vld [vmem:[#allocation5 + $0xfc8] sm:$0xff]
    %v8854 = vld [vmem:[#allocation5 + $0xfd0] sm:$0xff]
    %v8855 = vld [vmem:[#allocation5 + $0xfd8] sm:$0xff]
    %v8856 = vld [vmem:[#allocation5 + $0xfe0] sm:$0xff]
    %v8857 = vld [vmem:[#allocation5 + $0xfe8] sm:$0xff]
    %v8858 = vld [vmem:[#allocation5 + $0xff0] sm:$0xff]
    %v8859 = vld [vmem:[#allocation5 + $0xff8] sm:$0xff]
    %v8862 = vcombine.high %v8346, %v8346
    %v8864 = vunpack.c.l.s4 1966171168
    %v8865 = vunpack.c.0.s8 %v8864
    %v8866 = vlaneseq
    %v8867 = vshrl.u32 %v8866, 7
    %v8868 = vsub.s32 %v8865, %v8867
    %v8869 = vrot.slane %v8346, %v8868
    %v8871 = vunpack.c.l.s4 1966171168
    %v8872 = vunpack.c.0.s8 %v8871
    %v8873 = vlaneseq
    %v8874 = vshrl.u32 %v8873, 7
    %v8875 = vsub.s32 %v8872, %v8874
    %v8876 = vrot.slane %v8862, %v8875
    %v8877 = vcombine.high %v8869, %v8869
    %v8878 = vcombine.high %v8876, %v8876
    %v8880 = vunpack.c.l.s4 1966171168
    %v8881 = vunpack.c.0.s8 %v8880
    %v8882 = vlaneseq
    %v8883 = vshrl.u32 %v8882, 7
    %v8884 = vsub.s32 %v8881, %v8883
    %v8885 = vrot.slane %v8869, %v8884
    %v8887 = vunpack.c.l.s4 1966171168
    %v8888 = vunpack.c.0.s8 %v8887
    %v8889 = vlaneseq
    %v8890 = vshrl.u32 %v8889, 7
    %v8891 = vsub.s32 %v8888, %v8890
    %v8892 = vrot.slane %v8876, %v8891
    %v8894 = vunpack.c.l.s4 1966171168
    %v8895 = vunpack.c.0.s8 %v8894
    %v8896 = vlaneseq
    %v8897 = vshrl.u32 %v8896, 7
    %v8898 = vsub.s32 %v8895, %v8897
    %v8899 = vrot.slane %v8877, %v8898
    %v8901 = vunpack.c.l.s4 1966171168
    %v8902 = vunpack.c.0.s8 %v8901
    %v8903 = vlaneseq
    %v8904 = vshrl.u32 %v8903, 7
    %v8905 = vsub.s32 %v8902, %v8904
    %v8906 = vrot.slane %v8878, %v8905
    %v8907 = vcombine.high %v8885, %v8885
    %v8908 = vcombine.high %v8892, %v8892
    %v8909 = vcombine.high %v8899, %v8899
    %v8910 = vcombine.high %v8906, %v8906
    %v8911 = vcombine.high %v8347, %v8347
    %v8913 = vunpack.c.l.s4 1966171168
    %v8914 = vunpack.c.0.s8 %v8913
    %v8915 = vlaneseq
    %v8916 = vshrl.u32 %v8915, 7
    %v8917 = vsub.s32 %v8914, %v8916
    %v8918 = vrot.slane %v8347, %v8917
    %v8920 = vunpack.c.l.s4 1966171168
    %v8921 = vunpack.c.0.s8 %v8920
    %v8922 = vlaneseq
    %v8923 = vshrl.u32 %v8922, 7
    %v8924 = vsub.s32 %v8921, %v8923
    %v8925 = vrot.slane %v8911, %v8924
    %v8926 = vcombine.high %v8918, %v8918
    %v8927 = vcombine.high %v8925, %v8925
    %v8929 = vunpack.c.l.s4 1966171168
    %v8930 = vunpack.c.0.s8 %v8929
    %v8931 = vlaneseq
    %v8932 = vshrl.u32 %v8931, 7
    %v8933 = vsub.s32 %v8930, %v8932
    %v8934 = vrot.slane %v8918, %v8933
    %v8936 = vunpack.c.l.s4 1966171168
    %v8937 = vunpack.c.0.s8 %v8936
    %v8938 = vlaneseq
    %v8939 = vshrl.u32 %v8938, 7
    %v8940 = vsub.s32 %v8937, %v8939
    %v8941 = vrot.slane %v8925, %v8940
    %v8943 = vunpack.c.l.s4 1966171168
    %v8944 = vunpack.c.0.s8 %v8943
    %v8945 = vlaneseq
    %v8946 = vshrl.u32 %v8945, 7
    %v8947 = vsub.s32 %v8944, %v8946
    %v8948 = vrot.slane %v8926, %v8947
    %v8950 = vunpack.c.l.s4 1966171168
    %v8951 = vunpack.c.0.s8 %v8950
    %v8952 = vlaneseq
    %v8953 = vshrl.u32 %v8952, 7
    %v8954 = vsub.s32 %v8951, %v8953
    %v8955 = vrot.slane %v8927, %v8954
    %v8956 = vcombine.high %v8934, %v8934
    %v8957 = vcombine.high %v8941, %v8941
    %v8958 = vcombine.high %v8948, %v8948
    %v8959 = vcombine.high %v8955, %v8955
    %8976 = vmatprep.subr.bf16.mxu0 %v8349
    %8977 = vmatpush1.bf16.xpose.msra.mxu0 %v8348
    %8978 = vmatprep.subr.bf16.mxu0 %v8365
    %8979 = vmatpush1.bf16.xpose.msra.mxu0 %v8364
    %8980 = vmatprep.subr.bf16.mxu0 %v8381
    %8981 = vmatpush1.bf16.xpose.msra.mxu0 %v8380
    %8982 = vmatprep.subr.bf16.mxu0 %v8397
    %8983 = vmatpush1.bf16.xpose.msra.mxu0 %v8396
    %8984 = vmatprep.subr.bf16.mxu0 %v8413
    %8985 = vmatpush1.bf16.xpose.msra.mxu0 %v8412
    %8986 = vmatprep.subr.bf16.mxu0 %v8429
    %8987 = vmatpush1.bf16.xpose.msra.mxu0 %v8428
    %8988 = vmatprep.subr.bf16.mxu0 %v8445
    %8989 = vmatpush1.bf16.xpose.msra.mxu0 %v8444
    %8990 = vmatprep.subr.bf16.mxu0 %v8461
    %8991 = vmatpush1.bf16.xpose.msra.mxu0 %v8460
    %8992 = vmatprep.subr.bf16.mxu0 %v8477
    %8993 = vmatpush1.bf16.xpose.msra.mxu0 %v8476
    %8994 = vmatprep.subr.bf16.mxu0 %v8493
    %8995 = vmatpush1.bf16.xpose.msra.mxu0 %v8492
    %8996 = vmatprep.subr.bf16.mxu0 %v8509
    %8997 = vmatpush1.bf16.xpose.msra.mxu0 %v8508
    %8998 = vmatprep.subr.bf16.mxu0 %v8525
    %8999 = vmatpush1.bf16.xpose.msra.mxu0 %v8524
    %9000 = vmatprep.subr.bf16.mxu0 %v8541
    %9001 = vmatpush1.bf16.xpose.msra.mxu0 %v8540
    %9002 = vmatprep.subr.bf16.mxu0 %v8557
    %9003 = vmatpush1.bf16.xpose.msra.mxu0 %v8556
    %9004 = vmatprep.subr.bf16.mxu0 %v8573
    %9005 = vmatpush1.bf16.xpose.msra.mxu0 %v8572
    %9006 = vmatprep.subr.bf16.mxu0 %v8589
    %9007 = vmatpush1.bf16.xpose.msra.mxu0 %v8588
    %9008 = vmatprep.mubr.bf16.mxu0 %v8899
    %9009 = vmatmul.mubr.bf16.gmra.mrb[0].mxu0 %v8885
    %v9010 = vpop.f32.mrb[0].mxu0
    %v9011 = vadd.f32 0.0, %v9010
    %v9012 = vpop.f32.mrb[0].mxu0
    %v9013 = vadd.f32 0.0, %v9012
    %v9014 = vpop.f32.mrb[0].mxu0
    %v9015 = vpop.f32.mrb[0].mxu0
    %9016 = vdwg.mxu0
    %9017 = vmatprep.subr.bf16.mxu0 %v8351
    %9018 = vmatpush1.bf16.xpose.msra.mxu0 %v8350
    %9019 = vmatprep.subr.bf16.mxu0 %v8367
    %9020 = vmatpush1.bf16.xpose.msra.mxu0 %v8366
    %9021 = vmatprep.subr.bf16.mxu0 %v8383
    %9022 = vmatpush1.bf16.xpose.msra.mxu0 %v8382
    %9023 = vmatprep.subr.bf16.mxu0 %v8399
    %9024 = vmatpush1.bf16.xpose.msra.mxu0 %v8398
    %9025 = vmatprep.subr.bf16.mxu0 %v8415
    %9026 = vmatpush1.bf16.xpose.msra.mxu0 %v8414
    %9027 = vmatprep.subr.bf16.mxu0 %v8431
    %9028 = vmatpush1.bf16.xpose.msra.mxu0 %v8430
    %9029 = vmatprep.subr.bf16.mxu0 %v8447
    %9030 = vmatpush1.bf16.xpose.msra.mxu0 %v8446
    %9031 = vmatprep.subr.bf16.mxu0 %v8463
    %9032 = vmatpush1.bf16.xpose.msra.mxu0 %v8462
    %9033 = vmatprep.subr.bf16.mxu0 %v8479
    %9034 = vmatpush1.bf16.xpose.msra.mxu0 %v8478
    %9035 = vmatprep.subr.bf16.mxu0 %v8495
    %9036 = vmatpush1.bf16.xpose.msra.mxu0 %v8494
    %9037 = vmatprep.subr.bf16.mxu0 %v8511
    %9038 = vmatpush1.bf16.xpose.msra.mxu0 %v8510
    %9039 = vmatprep.subr.bf16.mxu0 %v8527
    %9040 = vmatpush1.bf16.xpose.msra.mxu0 %v8526
    %9041 = vmatprep.subr.bf16.mxu0 %v8543
    %9042 = vmatpush1.bf16.xpose.msra.mxu0 %v8542
    %9043 = vmatprep.subr.bf16.mxu0 %v8559
    %9044 = vmatpush1.bf16.xpose.msra.mxu0 %v8558
    %9045 = vmatprep.subr.bf16.mxu0 %v8575
    %9046 = vmatpush1.bf16.xpose.msra.mxu0 %v8574
    %9047 = vmatprep.subr.bf16.mxu0 %v8591
    %9048 = vmatpush1.bf16.xpose.msra.mxu0 %v8590
    %9049 = vmatprep.mubr.bf16.mxu0 %v8909
    %9050 = vmatmul.mubr.bf16.gmra.mrb[0].mxu0 %v8907
    %v9051 = vpop.f32.mrb[0].mxu0
    %v9052 = vadd.f32 %v9011, %v9051
    %v9053 = vpop.f32.mrb[0].mxu0
    %v9054 = vadd.f32 %v9013, %v9053
    %v9055 = vpop.f32.mrb[0].mxu0
    %v9056 = vpop.f32.mrb[0].mxu0
    %9057 = vdwg.mxu0
    %9058 = vmatprep.subr.bf16.mxu0 %v8353
    %9059 = vmatpush1.bf16.xpose.msra.mxu0 %v8352
    %9060 = vmatprep.subr.bf16.mxu0 %v8369
    %9061 = vmatpush1.bf16.xpose.msra.mxu0 %v8368
    %9062 = vmatprep.subr.bf16.mxu0 %v8385
    %9063 = vmatpush1.bf16.xpose.msra.mxu0 %v8384
    %9064 = vmatprep.subr.bf16.mxu0 %v8401
    %9065 = vmatpush1.bf16.xpose.msra.mxu0 %v8400
    %9066 = vmatprep.subr.bf16.mxu0 %v8417
    %9067 = vmatpush1.bf16.xpose.msra.mxu0 %v8416
    %9068 = vmatprep.subr.bf16.mxu0 %v8433
    %9069 = vmatpush1.bf16.xpose.msra.mxu0 %v8432
    %9070 = vmatprep.subr.bf16.mxu0 %v8449
    %9071 = vmatpush1.bf16.xpose.msra.mxu0 %v8448
    %9072 = vmatprep.subr.bf16.mxu0 %v8465
    %9073 = vmatpush1.bf16.xpose.msra.mxu0 %v8464
    %9074 = vmatprep.subr.bf16.mxu0 %v8481
    %9075 = vmatpush1.bf16.xpose.msra.mxu0 %v8480
    %9076 = vmatprep.subr.bf16.mxu0 %v8497
    %9077 = vmatpush1.bf16.xpose.msra.mxu0 %v8496
    %9078 = vmatprep.subr.bf16.mxu0 %v8513
    %9079 = vmatpush1.bf16.xpose.msra.mxu0 %v8512
    %9080 = vmatprep.subr.bf16.mxu0 %v8529
    %9081 = vmatpush1.bf16.xpose.msra.mxu0 %v8528
    %9082 = vmatprep.subr.bf16.mxu0 %v8545
    %9083 = vmatpush1.bf16.xpose.msra.mxu0 %v8544
    %9084 = vmatprep.subr.bf16.mxu0 %v8561
    %9085 = vmatpush1.bf16.xpose.msra.mxu0 %v8560
    %9086 = vmatprep.subr.bf16.mxu0 %v8577
    %9087 = vmatpush1.bf16.xpose.msra.mxu0 %v8576
    %9088 = vmatprep.subr.bf16.mxu0 %v8593
    %9089 = vmatpush1.bf16.xpose.msra.mxu0 %v8592
    %9090 = vmatprep.mubr.bf16.mxu0 %v8906
    %9091 = vmatmul.mubr.bf16.gmra.mrb[0].mxu0 %v8892
    %v9092 = vpop.f32.mrb[0].mxu0
    %v9093 = vadd.f32 %v9052, %v9092
    %v9094 = vpop.f32.mrb[0].mxu0
    %v9095 = vadd.f32 %v9054, %v9094
    %v9096 = vpop.f32.mrb[0].mxu0
    %v9097 = vpop.f32.mrb[0].mxu0
    %9098 = vdwg.mxu0
    %9099 = vmatprep.subr.bf16.mxu0 %v8355
    %9100 = vmatpush1.bf16.xpose.msra.mxu0 %v8354
    %9101 = vmatprep.subr.bf16.mxu0 %v8371
    %9102 = vmatpush1.bf16.xpose.msra.mxu0 %v8370
    %9103 = vmatprep.subr.bf16.mxu0 %v8387
    %9104 = vmatpush1.bf16.xpose.msra.mxu0 %v8386
    %9105 = vmatprep.subr.bf16.mxu0 %v8403
    %9106 = vmatpush1.bf16.xpose.msra.mxu0 %v8402
    %9107 = vmatprep.subr.bf16.mxu0 %v8419
    %9108 = vmatpush1.bf16.xpose.msra.mxu0 %v8418
    %9109 = vmatprep.subr.bf16.mxu0 %v8435
    %9110 = vmatpush1.bf16.xpose.msra.mxu0 %v8434
    %9111 = vmatprep.subr.bf16.mxu0 %v8451
    %9112 = vmatpush1.bf16.xpose.msra.mxu0 %v8450
    %9113 = vmatprep.subr.bf16.mxu0 %v8467
    %9114 = vmatpush1.bf16.xpose.msra.mxu0 %v8466
    %9115 = vmatprep.subr.bf16.mxu0 %v8483
    %9116 = vmatpush1.bf16.xpose.msra.mxu0 %v8482
    %9117 = vmatprep.subr.bf16.mxu0 %v8499
    %9118 = vmatpush1.bf16.xpose.msra.mxu0 %v8498
    %9119 = vmatprep.subr.bf16.mxu0 %v8515
    %9120 = vmatpush1.bf16.xpose.msra.mxu0 %v8514
    %9121 = vmatprep.subr.bf16.mxu0 %v8531
    %9122 = vmatpush1.bf16.xpose.msra.mxu0 %v8530
    %9123 = vmatprep.subr.bf16.mxu0 %v8547
    %9124 = vmatpush1.bf16.xpose.msra.mxu0 %v8546
    %9125 = vmatprep.subr.bf16.mxu0 %v8563
    %9126 = vmatpush1.bf16.xpose.msra.mxu0 %v8562
    %9127 = vmatprep.subr.bf16.mxu0 %v8579
    %9128 = vmatpush1.bf16.xpose.msra.mxu0 %v8578
    %9129 = vmatprep.subr.bf16.mxu0 %v8595
    %9130 = vmatpush1.bf16.xpose.msra.mxu0 %v8594
    %9131 = vmatprep.mubr.bf16.mxu0 %v8910
    %9132 = vmatmul.mubr.bf16.gmra.mrb[0].mxu0 %v8908
    %v9133 = vpop.f32.mrb[0].mxu0
    %v9134 = vadd.f32 %v9093, %v9133
    %v9135 = vpop.f32.mrb[0].mxu0
    %v9136 = vadd.f32 %v9095, %v9135
    %v9137 = vpop.f32.mrb[0].mxu0
    %v9138 = vpop.f32.mrb[0].mxu0
    %9139 = vdwg.mxu0
    %9140 = vmatprep.subr.bf16.mxu0 %v8357
    %9141 = vmatpush1.bf16.xpose.msra.mxu0 %v8356
    %9142 = vmatprep.subr.bf16.mxu0 %v8373
    %9143 = vmatpush1.bf16.xpose.msra.mxu0 %v8372
    %9144 = vmatprep.subr.bf16.mxu0 %v8389
    %9145 = vmatpush1.bf16.xpose.msra.mxu0 %v8388
    %9146 = vmatprep.subr.bf16.mxu0 %v8405
    %9147 = vmatpush1.bf16.xpose.msra.mxu0 %v8404
    %9148 = vmatprep.subr.bf16.mxu0 %v8421
    %9149 = vmatpush1.bf16.xpose.msra.mxu0 %v8420
    %9150 = vmatprep.subr.bf16.mxu0 %v8437
    %9151 = vmatpush1.bf16.xpose.msra.mxu0 %v8436
    %9152 = vmatprep.subr.bf16.mxu0 %v8453
    %9153 = vmatpush1.bf16.xpose.msra.mxu0 %v8452
    %9154 = vmatprep.subr.bf16.mxu0 %v8469
    %9155 = vmatpush1.bf16.xpose.msra.mxu0 %v8468
    %9156 = vmatprep.subr.bf16.mxu0 %v8485
    %9157 = vmatpush1.bf16.xpose.msra.mxu0 %v8484
    %9158 = vmatprep.subr.bf16.mxu0 %v8501
    %9159 = vmatpush1.bf16.xpose.msra.mxu0 %v8500
    %9160 = vmatprep.subr.bf16.mxu0 %v8517
    %9161 = vmatpush1.bf16.xpose.msra.mxu0 %v8516
    %9162 = vmatprep.subr.bf16.mxu0 %v8533
    %9163 = vmatpush1.bf16.xpose.msra.mxu0 %v8532
    %9164 = vmatprep.subr.bf16.mxu0 %v8549
    %9165 = vmatpush1.bf16.xpose.msra.mxu0 %v8548
    %9166 = vmatprep.subr.bf16.mxu0 %v8565
    %9167 = vmatpush1.bf16.xpose.msra.mxu0 %v8564
    %9168 = vmatprep.subr.bf16.mxu0 %v8581
    %9169 = vmatpush1.bf16.xpose.msra.mxu0 %v8580
    %9170 = vmatprep.subr.bf16.mxu0 %v8597
    %9171 = vmatpush1.bf16.xpose.msra.mxu0 %v8596
    %9172 = vmatprep.mubr.bf16.mxu0 %v8948
    %9173 = vmatmul.mubr.bf16.gmra.mrb[0].mxu0 %v8934
    %v9174 = vpop.f32.mrb[0].mxu0
    %v9175 = vadd.f32 %v9134, %v9174
    %v9176 = vpop.f32.mrb[0].mxu0
    %v9177 = vadd.f32 %v9136, %v9176
    %v9178 = vpop.f32.mrb[0].mxu0
    %v9179 = vpop.f32.mrb[0].mxu0
    %9180 = vdwg.mxu0
    %9181 = vmatprep.subr.bf16.mxu0 %v8359
    %9182 = vmatpush1.bf16.xpose.msra.mxu0 %v8358
    %9183 = vmatprep.subr.bf16.mxu0 %v8375
    %9184 = vmatpush1.bf16.xpose.msra.mxu0 %v8374
    %9185 = vmatprep.subr.bf16.mxu0 %v8391
    %9186 = vmatpush1.bf16.xpose.msra.mxu0 %v8390
    %9187 = vmatprep.subr.bf16.mxu0 %v8407
    %9188 = vmatpush1.bf16.xpose.msra.mxu0 %v8406
    %9189 = vmatprep.subr.bf16.mxu0 %v8423
    %9190 = vmatpush1.bf16.xpose.msra.mxu0 %v8422
    %9191 = vmatprep.subr.bf16.mxu0 %v8439
    %9192 = vmatpush1.bf16.xpose.msra.mxu0 %v8438
    %9193 = vmatprep.subr.bf16.mxu0 %v8455
    %9194 = vmatpush1.bf16.xpose.msra.mxu0 %v8454
    %9195 = vmatprep.subr.bf16.mxu0 %v8471
    %9196 = vmatpush1.bf16.xpose.msra.mxu0 %v8470
    %9197 = vmatprep.subr.bf16.mxu0 %v8487
    %9198 = vmatpush1.bf16.xpose.msra.mxu0 %v8486
    %9199 = vmatprep.subr.bf16.mxu0 %v8503
    %9200 = vmatpush1.bf16.xpose.msra.mxu0 %v8502
    %9201 = vmatprep.subr.bf16.mxu0 %v8519
    %9202 = vmatpush1.bf16.xpose.msra.mxu0 %v8518
    %9203 = vmatprep.subr.bf16.mxu0 %v8535
    %9204 = vmatpush1.bf16.xpose.msra.mxu0 %v8534
    %9205 = vmatprep.subr.bf16.mxu0 %v8551
    %9206 = vmatpush1.bf16.xpose.msra.mxu0 %v8550
    %9207 = vmatprep.subr.bf16.mxu0 %v8567
    %9208 = vmatpush1.bf16.xpose.msra.mxu0 %v8566
    %9209 = vmatprep.subr.bf16.mxu0 %v8583
    %9210 = vmatpush1.bf16.xpose.msra.mxu0 %v8582
    %9211 = vmatprep.subr.bf16.mxu0 %v8599
    %9212 = vmatpush1.bf16.xpose.msra.mxu0 %v8598
    %9213 = vmatprep.mubr.bf16.mxu0 %v8958
    %9214 = vmatmul.mubr.bf16.gmra.mrb[0].mxu0 %v8956
    %v9215 = vpop.f32.mrb[0].mxu0
    %v9216 = vadd.f32 %v9175, %v9215
    %v9217 = vpop.f32.mrb[0].mxu0
    %v9218 = vadd.f32 %v9177, %v9217
    %v9219 = vpop.f32.mrb[0].mxu0
    %v9220 = vpop.f32.mrb[0].mxu0
    %9221 = vdwg.mxu0
    %9222 = vmatprep.subr.bf16.mxu0 %v8361
    %9223 = vmatpush1.bf16.xpose.msra.mxu0 %v8360
    %9224 = vmatprep.subr.bf16.mxu0 %v8377
    %9225 = vmatpush1.bf16.xpose.msra.mxu0 %v8376
    %9226 = vmatprep.subr.bf16.mxu0 %v8393
    %9227 = vmatpush1.bf16.xpose.msra.mxu0 %v8392
    %9228 = vmatprep.subr.bf16.mxu0 %v8409
    %9229 = vmatpush1.bf16.xpose.msra.mxu0 %v8408
    %9230 = vmatprep.subr.bf16.mxu0 %v8425
    %9231 = vmatpush1.bf16.xpose.msra.mxu0 %v8424
    %9232 = vmatprep.subr.bf16.mxu0 %v8441
    %9233 = vmatpush1.bf16.xpose.msra.mxu0 %v8440
    %9234 = vmatprep.subr.bf16.mxu0 %v8457
    %9235 = vmatpush1.bf16.xpose.msra.mxu0 %v8456
    %9236 = vmatprep.subr.bf16.mxu0 %v8473
    %9237 = vmatpush1.bf16.xpose.msra.mxu0 %v8472
    %9238 = vmatprep.subr.bf16.mxu0 %v8489
    %9239 = vmatpush1.bf16.xpose.msra.mxu0 %v8488
    %9240 = vmatprep.subr.bf16.mxu0 %v8505
    %9241 = vmatpush1.bf16.xpose.msra.mxu0 %v8504
    %9242 = vmatprep.subr.bf16.mxu0 %v8521
    %9243 = vmatpush1.bf16.xpose.msra.mxu0 %v8520
    %9244 = vmatprep.subr.bf16.mxu0 %v8537
    %9245 = vmatpush1.bf16.xpose.msra.mxu0 %v8536
    %9246 = vmatprep.subr.bf16.mxu0 %v8553
    %9247 = vmatpush1.bf16.xpose.msra.mxu0 %v8552
    %9248 = vmatprep.subr.bf16.mxu0 %v8569
    %9249 = vmatpush1.bf16.xpose.msra.mxu0 %v8568
    %9250 = vmatprep.subr.bf16.mxu0 %v8585
    %9251 = vmatpush1.bf16.xpose.msra.mxu0 %v8584
    %9252 = vmatprep.subr.bf16.mxu0 %v8601
    %9253 = vmatpush1.bf16.xpose.msra.mxu0 %v8600
    %9254 = vmatprep.mubr.bf16.mxu0 %v8955
    %9255 = vmatmul.mubr.bf16.gmra.mrb[0].mxu0 %v8941
    %v9256 = vpop.f32.mrb[0].mxu0
    %v9257 = vadd.f32 %v9216, %v9256
    %v9258 = vpop.f32.mrb[0].mxu0
    %v9259 = vadd.f32 %v9218, %v9258
    %v9260 = vpop.f32.mrb[0].mxu0
    %v9261 = vpop.f32.mrb[0].mxu0
    %9262 = vdwg.mxu0
    %9263 = vmatprep.subr.bf16.mxu0 %v8363
    %9264 = vmatpush1.bf16.xpose.msra.mxu0 %v8362
    %9265 = vmatprep.subr.bf16.mxu0 %v8379
    %9266 = vmatpush1.bf16.xpose.msra.mxu0 %v8378
    %9267 = vmatprep.subr.bf16.mxu0 %v8395
    %9268 = vmatpush1.bf16.xpose.msra.mxu0 %v8394
    %9269 = vmatprep.subr.bf16.mxu0 %v8411
    %9270 = vmatpush1.bf16.xpose.msra.mxu0 %v8410
    %9271 = vmatprep.subr.bf16.mxu0 %v8427
    %9272 = vmatpush1.bf16.xpose.msra.mxu0 %v8426
    %9273 = vmatprep.subr.bf16.mxu0 %v8443
    %9274 = vmatpush1.bf16.xpose.msra.mxu0 %v8442
    %9275 = vmatprep.subr.bf16.mxu0 %v8459
    %9276 = vmatpush1.bf16.xpose.msra.mxu0 %v8458
    %9277 = vmatprep.subr.bf16.mxu0 %v8475
    %9278 = vmatpush1.bf16.xpose.msra.mxu0 %v8474
    %9279 = vmatprep.subr.bf16.mxu0 %v8491
    %9280 = vmatpush1.bf16.xpose.msra.mxu0 %v8490
    %9281 = vmatprep.subr.bf16.mxu0 %v8507
    %9282 = vmatpush1.bf16.xpose.msra.mxu0 %v8506
    %9283 = vmatprep.subr.bf16.mxu0 %v8523
    %9284 = vmatpush1.bf16.xpose.msra.mxu0 %v8522
    %9285 = vmatprep.subr.bf16.mxu0 %v8539
    %9286 = vmatpush1.bf16.xpose.msra.mxu0 %v8538
    %9287 = vmatprep.subr.bf16.mxu0 %v8555
    %9288 = vmatpush1.bf16.xpose.msra.mxu0 %v8554
    %9289 = vmatprep.subr.bf16.mxu0 %v8571
    %9290 = vmatpush1.bf16.xpose.msra.mxu0 %v8570
    %9291 = vmatprep.subr.bf16.mxu0 %v8587
    %9292 = vmatpush1.bf16.xpose.msra.mxu0 %v8586
    %9293 = vmatprep.subr.bf16.mxu0 %v8603
    %9294 = vmatpush1.bf16.xpose.msra.mxu0 %v8602
    %9295 = vmatprep.mubr.bf16.mxu0 %v8959
    %9296 = vmatmul.mubr.bf16.gmra.mrb[0].mxu0 %v8957
    %v9297 = vpop.f32.mrb[0].mxu0
    %v9298 = vadd.f32 %v9257, %v9297
    %v9299 = vpop.f32.mrb[0].mxu0
    %v9300 = vadd.f32 %v9259, %v9299
    %v9301 = vpop.f32.mrb[0].mxu0
    %v9302 = vpop.f32.mrb[0].mxu0
    %9303 = vdwg.mxu0
    %9304 = vmatprep.subr.bf16.mxu0 %v8605
    %9305 = vmatpush1.bf16.xpose.msra.mxu0 %v8604
    %9306 = vmatprep.subr.bf16.mxu0 %v8621
    %9307 = vmatpush1.bf16.xpose.msra.mxu0 %v8620
    %9308 = vmatprep.subr.bf16.mxu0 %v8637
    %9309 = vmatpush1.bf16.xpose.msra.mxu0 %v8636
    %9310 = vmatprep.subr.bf16.mxu0 %v8653
    %9311 = vmatpush1.bf16.xpose.msra.mxu0 %v8652
    %9312 = vmatprep.subr.bf16.mxu0 %v8669
    %9313 = vmatpush1.bf16.xpose.msra.mxu0 %v8668
    %9314 = vmatprep.subr.bf16.mxu0 %v8685
    %9315 = vmatpush1.bf16.xpose.msra.mxu0 %v8684
    %9316 = vmatprep.subr.bf16.mxu0 %v8701
    %9317 = vmatpush1.bf16.xpose.msra.mxu0 %v8700
    %9318 = vmatprep.subr.bf16.mxu0 %v8717
    %9319 = vmatpush1.bf16.xpose.msra.mxu0 %v8716
    %9320 = vmatprep.subr.bf16.mxu0 %v8733
    %9321 = vmatpush1.bf16.xpose.msra.mxu0 %v8732
    %9322 = vmatprep.subr.bf16.mxu0 %v8749
    %9323 = vmatpush1.bf16.xpose.msra.mxu0 %v8748
    %9324 = vmatprep.subr.bf16.mxu0 %v8765
    %9325 = vmatpush1.bf16.xpose.msra.mxu0 %v8764
    %9326 = vmatprep.subr.bf16.mxu0 %v8781
    %9327 = vmatpush1.bf16.xpose.msra.mxu0 %v8780
    %9328 = vmatprep.subr.bf16.mxu0 %v8797
    %9329 = vmatpush1.bf16.xpose.msra.mxu0 %v8796
    %9330 = vmatprep.subr.bf16.mxu0 %v8813
    %9331 = vmatpush1.bf16.xpose.msra.mxu0 %v8812
    %9332 = vmatprep.subr.bf16.mxu0 %v8829
    %9333 = vmatpush1.bf16.xpose.msra.mxu0 %v8828
    %9334 = vmatprep.subr.bf16.mxu0 %v8845
    %9335 = vmatpush1.bf16.xpose.msra.mxu0 %v8844
    %9336 = vmatprep.mubr.bf16.mxu0 %v8899
    %9337 = vmatmul.mubr.bf16.gmra.mrb[0].mxu0 %v8885
    %v9338 = vpop.f32.mrb[0].mxu0
    %v9339 = vadd.f32 0.0, %v9338
    %v9340 = vpop.f32.mrb[0].mxu0
    %v9341 = vadd.f32 0.0, %v9340
    %v9342 = vpop.f32.mrb[0].mxu0
    %v9343 = vpop.f32.mrb[0].mxu0
    %9344 = vdwg.mxu0
    %9345 = vmatprep.subr.bf16.mxu0 %v8607
    %9346 = vmatpush1.bf16.xpose.msra.mxu0 %v8606
    %9347 = vmatprep.subr.bf16.mxu0 %v8623
    %9348 = vmatpush1.bf16.xpose.msra.mxu0 %v8622
    %9349 = vmatprep.subr.bf16.mxu0 %v8639
    %9350 = vmatpush1.bf16.xpose.msra.mxu0 %v8638
    %9351 = vmatprep.subr.bf16.mxu0 %v8655
    %9352 = vmatpush1.bf16.xpose.msra.mxu0 %v8654
    %9353 = vmatprep.subr.bf16.mxu0 %v8671
    %9354 = vmatpush1.bf16.xpose.msra.mxu0 %v8670
    %9355 = vmatprep.subr.bf16.mxu0 %v8687
    %9356 = vmatpush1.bf16.xpose.msra.mxu0 %v8686
    %9357 = vmatprep.subr.bf16.mxu0 %v8703
    %9358 = vmatpush1.bf16.xpose.msra.mxu0 %v8702
    %9359 = vmatprep.subr.bf16.mxu0 %v8719
    %9360 = vmatpush1.bf16.xpose.msra.mxu0 %v8718
    %9361 = vmatprep.subr.bf16.mxu0 %v8735
    %9362 = vmatpush1.bf16.xpose.msra.mxu0 %v8734
    %9363 = vmatprep.subr.bf16.mxu0 %v8751
    %9364 = vmatpush1.bf16.xpose.msra.mxu0 %v8750
    %9365 = vmatprep.subr.bf16.mxu0 %v8767
    %9366 = vmatpush1.bf16.xpose.msra.mxu0 %v8766
    %9367 = vmatprep.subr.bf16.mxu0 %v8783
    %9368 = vmatpush1.bf16.xpose.msra.mxu0 %v8782
    %9369 = vmatprep.subr.bf16.mxu0 %v8799
    %9370 = vmatpush1.bf16.xpose.msra.mxu0 %v8798
    %9371 = vmatprep.subr.bf16.mxu0 %v8815
    %9372 = vmatpush1.bf16.xpose.msra.mxu0 %v8814
    %9373 = vmatprep.subr.bf16.mxu0 %v8831
    %9374 = vmatpush1.bf16.xpose.msra.mxu0 %v8830
    %9375 = vmatprep.subr.bf16.mxu0 %v8847
    %9376 = vmatpush1.bf16.xpose.msra.mxu0 %v8846
    %9377 = vmatprep.mubr.bf16.mxu0 %v8909
    %9378 = vmatmul.mubr.bf16.gmra.mrb[0].mxu0 %v8907
    %v9379 = vpop.f32.mrb[0].mxu0
    %v9380 = vadd.f32 %v9339, %v9379
    %v9381 = vpop.f32.mrb[0].mxu0
    %v9382 = vadd.f32 %v9341, %v9381
    %v9383 = vpop.f32.mrb[0].mxu0
    %v9384 = vpop.f32.mrb[0].mxu0
    %9385 = vdwg.mxu0
    %9386 = vmatprep.subr.bf16.mxu0 %v8609
    %9387 = vmatpush1.bf16.xpose.msra.mxu0 %v8608
    %9388 = vmatprep.subr.bf16.mxu0 %v8625
    %9389 = vmatpush1.bf16.xpose.msra.mxu0 %v8624
    %9390 = vmatprep.subr.bf16.mxu0 %v8641
    %9391 = vmatpush1.bf16.xpose.msra.mxu0 %v8640
    %9392 = vmatprep.subr.bf16.mxu0 %v8657
    %9393 = vmatpush1.bf16.xpose.msra.mxu0 %v8656
    %9394 = vmatprep.subr.bf16.mxu0 %v8673
    %9395 = vmatpush1.bf16.xpose.msra.mxu0 %v8672
    %9396 = vmatprep.subr.bf16.mxu0 %v8689
    %9397 = vmatpush1.bf16.xpose.msra.mxu0 %v8688
    %9398 = vmatprep.subr.bf16.mxu0 %v8705
    %9399 = vmatpush1.bf16.xpose.msra.mxu0 %v8704
    %9400 = vmatprep.subr.bf16.mxu0 %v8721
    %9401 = vmatpush1.bf16.xpose.msra.mxu0 %v8720
    %9402 = vmatprep.subr.bf16.mxu0 %v8737
    %9403 = vmatpush1.bf16.xpose.msra.mxu0 %v8736
    %9404 = vmatprep.subr.bf16.mxu0 %v8753
    %9405 = vmatpush1.bf16.xpose.msra.mxu0 %v8752
    %9406 = vmatprep.subr.bf16.mxu0 %v8769
    %9407 = vmatpush1.bf16.xpose.msra.mxu0 %v8768
    %9408 = vmatprep.subr.bf16.mxu0 %v8785
    %9409 = vmatpush1.bf16.xpose.msra.mxu0 %v8784
    %9410 = vmatprep.subr.bf16.mxu0 %v8801
    %9411 = vmatpush1.bf16.xpose.msra.mxu0 %v8800
    %9412 = vmatprep.subr.bf16.mxu0 %v8817
    %9413 = vmatpush1.bf16.xpose.msra.mxu0 %v8816
    %9414 = vmatprep.subr.bf16.mxu0 %v8833
    %9415 = vmatpush1.bf16.xpose.msra.mxu0 %v8832
    %9416 = vmatprep.subr.bf16.mxu0 %v8849
    %9417 = vmatpush1.bf16.xpose.msra.mxu0 %v8848
    %9418 = vmatprep.mubr.bf16.mxu0 %v8906
    %9419 = vmatmul.mubr.bf16.gmra.mrb[0].mxu0 %v8892
    %v9420 = vpop.f32.mrb[0].mxu0
    %v9421 = vadd.f32 %v9380, %v9420
    %v9422 = vpop.f32.mrb[0].mxu0
    %v9423 = vadd.f32 %v9382, %v9422
    %v9424 = vpop.f32.mrb[0].mxu0
    %v9425 = vpop.f32.mrb[0].mxu0
    %9426 = vdwg.mxu0
    %9427 = vmatprep.subr.bf16.mxu0 %v8611
    %9428 = vmatpush1.bf16.xpose.msra.mxu0 %v8610
    %9429 = vmatprep.subr.bf16.mxu0 %v8627
    %9430 = vmatpush1.bf16.xpose.msra.mxu0 %v8626
    %9431 = vmatprep.subr.bf16.mxu0 %v8643
    %9432 = vmatpush1.bf16.xpose.msra.mxu0 %v8642
    %9433 = vmatprep.subr.bf16.mxu0 %v8659
    %9434 = vmatpush1.bf16.xpose.msra.mxu0 %v8658
    %9435 = vmatprep.subr.bf16.mxu0 %v8675
    %9436 = vmatpush1.bf16.xpose.msra.mxu0 %v8674
    %9437 = vmatprep.subr.bf16.mxu0 %v8691
    %9438 = vmatpush1.bf16.xpose.msra.mxu0 %v8690
    %9439 = vmatprep.subr.bf16.mxu0 %v8707
    %9440 = vmatpush1.bf16.xpose.msra.mxu0 %v8706
    %9441 = vmatprep.subr.bf16.mxu0 %v8723
    %9442 = vmatpush1.bf16.xpose.msra.mxu0 %v8722
    %9443 = vmatprep.subr.bf16.mxu0 %v8739
    %9444 = vmatpush1.bf16.xpose.msra.mxu0 %v8738
    %9445 = vmatprep.subr.bf16.mxu0 %v8755
    %9446 = vmatpush1.bf16.xpose.msra.mxu0 %v8754
    %9447 = vmatprep.subr.bf16.mxu0 %v8771
    %9448 = vmatpush1.bf16.xpose.msra.mxu0 %v8770
    %9449 = vmatprep.subr.bf16.mxu0 %v8787
    %9450 = vmatpush1.bf16.xpose.msra.mxu0 %v8786
    %9451 = vmatprep.subr.bf16.mxu0 %v8803
    %9452 = vmatpush1.bf16.xpose.msra.mxu0 %v8802
    %9453 = vmatprep.subr.bf16.mxu0 %v8819
    %9454 = vmatpush1.bf16.xpose.msra.mxu0 %v8818
    %9455 = vmatprep.subr.bf16.mxu0 %v8835
    %9456 = vmatpush1.bf16.xpose.msra.mxu0 %v8834
    %9457 = vmatprep.subr.bf16.mxu0 %v8851
    %9458 = vmatpush1.bf16.xpose.msra.mxu0 %v8850
    %9459 = vmatprep.mubr.bf16.mxu0 %v8910
    %9460 = vmatmul.mubr.bf16.gmra.mrb[0].mxu0 %v8908
    %v9461 = vpop.f32.mrb[0].mxu0
    %v9462 = vadd.f32 %v9421, %v9461
    %v9463 = vpop.f32.mrb[0].mxu0
    %v9464 = vadd.f32 %v9423, %v9463
    %v9465 = vpop.f32.mrb[0].mxu0
    %v9466 = vpop.f32.mrb[0].mxu0
    %9467 = vdwg.mxu0
    %9468 = vmatprep.subr.bf16.mxu0 %v8613
    %9469 = vmatpush1.bf16.xpose.msra.mxu0 %v8612
    %9470 = vmatprep.subr.bf16.mxu0 %v8629
    %9471 = vmatpush1.bf16.xpose.msra.mxu0 %v8628
    %9472 = vmatprep.subr.bf16.mxu0 %v8645
    %9473 = vmatpush1.bf16.xpose.msra.mxu0 %v8644
    %9474 = vmatprep.subr.bf16.mxu0 %v8661
    %9475 = vmatpush1.bf16.xpose.msra.mxu0 %v8660
    %9476 = vmatprep.subr.bf16.mxu0 %v8677
    %9477 = vmatpush1.bf16.xpose.msra.mxu0 %v8676
    %9478 = vmatprep.subr.bf16.mxu0 %v8693
    %9479 = vmatpush1.bf16.xpose.msra.mxu0 %v8692
    %9480 = vmatprep.subr.bf16.mxu0 %v8709
    %9481 = vmatpush1.bf16.xpose.msra.mxu0 %v8708
    %9482 = vmatprep.subr.bf16.mxu0 %v8725
    %9483 = vmatpush1.bf16.xpose.msra.mxu0 %v8724
    %9484 = vmatprep.subr.bf16.mxu0 %v8741
    %9485 = vmatpush1.bf16.xpose.msra.mxu0 %v8740
    %9486 = vmatprep.subr.bf16.mxu0 %v8757
    %9487 = vmatpush1.bf16.xpose.msra.mxu0 %v8756
    %9488 = vmatprep.subr.bf16.mxu0 %v8773
    %9489 = vmatpush1.bf16.xpose.msra.mxu0 %v8772
    %9490 = vmatprep.subr.bf16.mxu0 %v8789
    %9491 = vmatpush1.bf16.xpose.msra.mxu0 %v8788
    %9492 = vmatprep.subr.bf16.mxu0 %v8805
    %9493 = vmatpush1.bf16.xpose.msra.mxu0 %v8804
    %9494 = vmatprep.subr.bf16.mxu0 %v8821
    %9495 = vmatpush1.bf16.xpose.msra.mxu0 %v8820
    %9496 = vmatprep.subr.bf16.mxu0 %v8837
    %9497 = vmatpush1.bf16.xpose.msra.mxu0 %v8836
    %9498 = vmatprep.subr.bf16.mxu0 %v8853
    %9499 = vmatpush1.bf16.xpose.msra.mxu0 %v8852
    %9500 = vmatprep.mubr.bf16.mxu0 %v8948
    %9501 = vmatmul.mubr.bf16.gmra.mrb[0].mxu0 %v8934
    %v9502 = vpop.f32.mrb[0].mxu0
    %v9503 = vadd.f32 %v9462, %v9502
    %v9504 = vpop.f32.mrb[0].mxu0
    %v9505 = vadd.f32 %v9464, %v9504
    %v9506 = vpop.f32.mrb[0].mxu0
    %v9507 = vpop.f32.mrb[0].mxu0
    %9508 = vdwg.mxu0
    %9509 = vmatprep.subr.bf16.mxu0 %v8615
    %9510 = vmatpush1.bf16.xpose.msra.mxu0 %v8614
    %9511 = vmatprep.subr.bf16.mxu0 %v8631
    %9512 = vmatpush1.bf16.xpose.msra.mxu0 %v8630
    %9513 = vmatprep.subr.bf16.mxu0 %v8647
    %9514 = vmatpush1.bf16.xpose.msra.mxu0 %v8646
    %9515 = vmatprep.subr.bf16.mxu0 %v8663
    %9516 = vmatpush1.bf16.xpose.msra.mxu0 %v8662
    %9517 = vmatprep.subr.bf16.mxu0 %v8679
    %9518 = vmatpush1.bf16.xpose.msra.mxu0 %v8678
    %9519 = vmatprep.subr.bf16.mxu0 %v8695
    %9520 = vmatpush1.bf16.xpose.msra.mxu0 %v8694
    %9521 = vmatprep.subr.bf16.mxu0 %v8711
    %9522 = vmatpush1.bf16.xpose.msra.mxu0 %v8710
    %9523 = vmatprep.subr.bf16.mxu0 %v8727
    %9524 = vmatpush1.bf16.xpose.msra.mxu0 %v8726
    %9525 = vmatprep.subr.bf16.mxu0 %v8743
    %9526 = vmatpush1.bf16.xpose.msra.mxu0 %v8742
    %9527 = vmatprep.subr.bf16.mxu0 %v8759
    %9528 = vmatpush1.bf16.xpose.msra.mxu0 %v8758
    %9529 = vmatprep.subr.bf16.mxu0 %v8775
    %9530 = vmatpush1.bf16.xpose.msra.mxu0 %v8774
    %9531 = vmatprep.subr.bf16.mxu0 %v8791
    %9532 = vmatpush1.bf16.xpose.msra.mxu0 %v8790
    %9533 = vmatprep.subr.bf16.mxu0 %v8807
    %9534 = vmatpush1.bf16.xpose.msra.mxu0 %v8806
    %9535 = vmatprep.subr.bf16.mxu0 %v8823
    %9536 = vmatpush1.bf16.xpose.msra.mxu0 %v8822
    %9537 = vmatprep.subr.bf16.mxu0 %v8839
    %9538 = vmatpush1.bf16.xpose.msra.mxu0 %v8838
    %9539 = vmatprep.subr.bf16.mxu0 %v8855
    %9540 = vmatpush1.bf16.xpose.msra.mxu0 %v8854
    %9541 = vmatprep.mubr.bf16.mxu0 %v8958
    %9542 = vmatmul.mubr.bf16.gmra.mrb[0].mxu0 %v8956
    %v9543 = vpop.f32.mrb[0].mxu0
    %v9544 = vadd.f32 %v9503, %v9543
    %v9545 = vpop.f32.mrb[0].mxu0
    %v9546 = vadd.f32 %v9505, %v9545
    %v9547 = vpop.f32.mrb[0].mxu0
    %v9548 = vpop.f32.mrb[0].mxu0
    %9549 = vdwg.mxu0
    %9550 = vmatprep.subr.bf16.mxu0 %v8617
    %9551 = vmatpush1.bf16.xpose.msra.mxu0 %v8616
    %9552 = vmatprep.subr.bf16.mxu0 %v8633
    %9553 = vmatpush1.bf16.xpose.msra.mxu0 %v8632
    %9554 = vmatprep.subr.bf16.mxu0 %v8649
    %9555 = vmatpush1.bf16.xpose.msra.mxu0 %v8648
    %9556 = vmatprep.subr.bf16.mxu0 %v8665
    %9557 = vmatpush1.bf16.xpose.msra.mxu0 %v8664
    %9558 = vmatprep.subr.bf16.mxu0 %v8681
    %9559 = vmatpush1.bf16.xpose.msra.mxu0 %v8680
    %9560 = vmatprep.subr.bf16.mxu0 %v8697
    %9561 = vmatpush1.bf16.xpose.msra.mxu0 %v8696
    %9562 = vmatprep.subr.bf16.mxu0 %v8713
    %9563 = vmatpush1.bf16.xpose.msra.mxu0 %v8712
    %9564 = vmatprep.subr.bf16.mxu0 %v8729
    %9565 = vmatpush1.bf16.xpose.msra.mxu0 %v8728
    %9566 = vmatprep.subr.bf16.mxu0 %v8745
    %9567 = vmatpush1.bf16.xpose.msra.mxu0 %v8744
    %9568 = vmatprep.subr.bf16.mxu0 %v8761
    %9569 = vmatpush1.bf16.xpose.msra.mxu0 %v8760
    %9570 = vmatprep.subr.bf16.mxu0 %v8777
    %9571 = vmatpush1.bf16.xpose.msra.mxu0 %v8776
    %9572 = vmatprep.subr.bf16.mxu0 %v8793
    %9573 = vmatpush1.bf16.xpose.msra.mxu0 %v8792
    %9574 = vmatprep.subr.bf16.mxu0 %v8809
    %9575 = vmatpush1.bf16.xpose.msra.mxu0 %v8808
    %9576 = vmatprep.subr.bf16.mxu0 %v8825
    %9577 = vmatpush1.bf16.xpose.msra.mxu0 %v8824
    %9578 = vmatprep.subr.bf16.mxu0 %v8841
    %9579 = vmatpush1.bf16.xpose.msra.mxu0 %v8840
    %9580 = vmatprep.subr.bf16.mxu0 %v8857
    %9581 = vmatpush1.bf16.xpose.msra.mxu0 %v8856
    %9582 = vmatprep.mubr.bf16.mxu0 %v8955
    %9583 = vmatmul.mubr.bf16.gmra.mrb[0].mxu0 %v8941
    %v9584 = vpop.f32.mrb[0].mxu0
    %v9585 = vadd.f32 %v9544, %v9584
    %v9586 = vpop.f32.mrb[0].mxu0
    %v9587 = vadd.f32 %v9546, %v9586
    %v9588 = vpop.f32.mrb[0].mxu0
    %v9589 = vpop.f32.mrb[0].mxu0
    %9590 = vdwg.mxu0
    %9591 = vmatprep.subr.bf16.mxu0 %v8619
    %9592 = vmatpush1.bf16.xpose.msra.mxu0 %v8618
    %9593 = vmatprep.subr.bf16.mxu0 %v8635
    %9594 = vmatpush1.bf16.xpose.msra.mxu0 %v8634
    %9595 = vmatprep.subr.bf16.mxu0 %v8651
    %9596 = vmatpush1.bf16.xpose.msra.mxu0 %v8650
    %9597 = vmatprep.subr.bf16.mxu0 %v8667
    %9598 = vmatpush1.bf16.xpose.msra.mxu0 %v8666
    %9599 = vmatprep.subr.bf16.mxu0 %v8683
    %9600 = vmatpush1.bf16.xpose.msra.mxu0 %v8682
    %9601 = vmatprep.subr.bf16.mxu0 %v8699
    %9602 = vmatpush1.bf16.xpose.msra.mxu0 %v8698
    %9603 = vmatprep.subr.bf16.mxu0 %v8715
    %9604 = vmatpush1.bf16.xpose.msra.mxu0 %v8714
    %9605 = vmatprep.subr.bf16.mxu0 %v8731
    %9606 = vmatpush1.bf16.xpose.msra.mxu0 %v8730
    %9607 = vmatprep.subr.bf16.mxu0 %v8747
    %9608 = vmatpush1.bf16.xpose.msra.mxu0 %v8746
    %9609 = vmatprep.subr.bf16.mxu0 %v8763
    %9610 = vmatpush1.bf16.xpose.msra.mxu0 %v8762
    %9611 = vmatprep.subr.bf16.mxu0 %v8779
    %9612 = vmatpush1.bf16.xpose.msra.mxu0 %v8778
    %9613 = vmatprep.subr.bf16.mxu0 %v8795
    %9614 = vmatpush1.bf16.xpose.msra.mxu0 %v8794
    %9615 = vmatprep.subr.bf16.mxu0 %v8811
    %9616 = vmatpush1.bf16.xpose.msra.mxu0 %v8810
    %9617 = vmatprep.subr.bf16.mxu0 %v8827
    %9618 = vmatpush1.bf16.xpose.msra.mxu0 %v8826
    %9619 = vmatprep.subr.bf16.mxu0 %v8843
    %9620 = vmatpush1.bf16.xpose.msra.mxu0 %v8842
    %9621 = vmatprep.subr.bf16.mxu0 %v8859
    %9622 = vmatpush1.bf16.xpose.msra.mxu0 %v8858
    %9623 = vmatprep.mubr.bf16.mxu0 %v8959
    %9624 = vmatmul.mubr.bf16.gmra.mrb[0].mxu0 %v8957
    %v9625 = vpop.f32.mrb[0].mxu0
    %v9626 = vadd.f32 %v9585, %v9625
    %v9627 = vpop.f32.mrb[0].mxu0
    %v9628 = vadd.f32 %v9587, %v9627
    %v9629 = vpop.f32.mrb[0].mxu0
    %v9630 = vpop.f32.mrb[0].mxu0
    %9631 = vdwg.mxu0
    %v9632 = vpack.c.bf16 %v9298, %v9298
    %v9633 = vpack.c.bf16 %v9300, %v9300
    %v9634 = vpack.c.bf16 %v9626, %v9626
    %v9635 = vpack.c.bf16 %v9628, %v9628
    %v9636 = vld [vmem:[%s7] sm:$0xf]
    %v9637 = vld [vmem:[%s7 + $0x4] sm:$0xf]
    %v9638 = vld [vmem:[%s7 + $0x8] sm:$0xf]
    %v9639 = vld [vmem:[%s7 + $0xc] sm:$0xf]
    %v9640 = vld [vmem:[%s7 + $0x10] sm:$0xf]
    %v9641 = vld [vmem:[%s7 + $0x14] sm:$0xf]
    %v9642 = vld [vmem:[%s7 + $0x18] sm:$0xf]
    %v9643 = vld [vmem:[%s7 + $0x1c] sm:$0xf]
    %v9644 = vld [vmem:[%s7 + $0x20] sm:$0xf]
    %v9645 = vld [vmem:[%s7 + $0x24] sm:$0xf]
    %v9646 = vld [vmem:[%s7 + $0x28] sm:$0xf]
    %v9647 = vld [vmem:[%s7 + $0x2c] sm:$0xf]
    %v9648 = vld [vmem:[%s7 + $0x30] sm:$0xf]
    %v9649 = vld [vmem:[%s7 + $0x34] sm:$0xf]
    %v9650 = vld [vmem:[%s7 + $0x38] sm:$0xf]
    %v9651 = vld [vmem:[%s7 + $0x3c] sm:$0xf]
    %v9652 = vld [vmem:[%s7 + $0x40] sm:$0xf]
    %v9653 = vld [vmem:[%s7 + $0x44] sm:$0xf]
    %v9654 = vld [vmem:[%s7 + $0x48] sm:$0xf]
    %v9655 = vld [vmem:[%s7 + $0x4c] sm:$0xf]
    %v9656 = vld [vmem:[%s7 + $0x50] sm:$0xf]
    %v9657 = vld [vmem:[%s7 + $0x54] sm:$0xf]
    %v9658 = vld [vmem:[%s7 + $0x58] sm:$0xf]
    %v9659 = vld [vmem:[%s7 + $0x5c] sm:$0xf]
    %v9660 = vld [vmem:[%s7 + $0x60] sm:$0xf]
    %v9661 = vld [vmem:[%s7 + $0x64] sm:$0xf]
    %v9662 = vld [vmem:[%s7 + $0x68] sm:$0xf]
    %v9663 = vld [vmem:[%s7 + $0x6c] sm:$0xf]
    %v9664 = vld [vmem:[%s7 + $0x70] sm:$0xf]
    %v9665 = vld [vmem:[%s7 + $0x74] sm:$0xf]
    %v9666 = vld [vmem:[%s7 + $0x78] sm:$0xf]
    %v9667 = vld [vmem:[%s7 + $0x7c] sm:$0xf]
    %v9668 = vld [vmem:[%s7 + $0x80] sm:$0xf]
    %v9669 = vld [vmem:[%s7 + $0x84] sm:$0xf]
    %v9670 = vld [vmem:[%s7 + $0x88] sm:$0xf]
    %v9671 = vld [vmem:[%s7 + $0x8c] sm:$0xf]
    %v9672 = vld [vmem:[%s7 + $0x90] sm:$0xf]
    %v9673 = vld [vmem:[%s7 + $0x94] sm:$0xf]
    %v9674 = vld [vmem:[%s7 + $0x98] sm:$0xf]
    %v9675 = vld [vmem:[%s7 + $0x9c] sm:$0xf]
    %v9676 = vld [vmem:[%s7 + $0xa0] sm:$0xf]
    %v9677 = vld [vmem:[%s7 + $0xa4] sm:$0xf]
    %v9678 = vld [vmem:[%s7 + $0xa8] sm:$0xf]
    %v9679 = vld [vmem:[%s7 + $0xac] sm:$0xf]
    %v9680 = vld [vmem:[%s7 + $0xb0] sm:$0xf]
    %v9681 = vld [vmem:[%s7 + $0xb4] sm:$0xf]
    %v9682 = vld [vmem:[%s7 + $0xb8] sm:$0xf]
    %v9683 = vld [vmem:[%s7 + $0xbc] sm:$0xf]
    %v9684 = vld [vmem:[%s7 + $0xc0] sm:$0xf]
    %v9685 = vld [vmem:[%s7 + $0xc4] sm:$0xf]
    %v9686 = vld [vmem:[%s7 + $0xc8] sm:$0xf]
    %v9687 = vld [vmem:[%s7 + $0xcc] sm:$0xf]
    %v9688 = vld [vmem:[%s7 + $0xd0] sm:$0xf]
    %v9689 = vld [vmem:[%s7 + $0xd4] sm:$0xf]
    %v9690 = vld [vmem:[%s7 + $0xd8] sm:$0xf]
    %v9691 = vld [vmem:[%s7 + $0xdc] sm:$0xf]
    %v9692 = vld [vmem:[%s7 + $0xe0] sm:$0xf]
    %v9693 = vld [vmem:[%s7 + $0xe4] sm:$0xf]
    %v9694 = vld [vmem:[%s7 + $0xe8] sm:$0xf]
    %v9695 = vld [vmem:[%s7 + $0xec] sm:$0xf]
    %v9696 = vld [vmem:[%s7 + $0xf0] sm:$0xf]
    %v9697 = vld [vmem:[%s7 + $0xf4] sm:$0xf]
    %v9698 = vld [vmem:[%s7 + $0xf8] sm:$0xf]
    %v9699 = vld [vmem:[%s7 + $0xfc] sm:$0xf]
    %v9700 = vld [vmem:[%s8] sm:$0x1]
    %v9702 = vlaneseq
    %v9703 = vshrl.u32 %v9702, 7
    %v9704 = vsub.s32 0, %v9703
    %v9705 = vrot.slane %v9700, %v9704
    %v9771 = vunpack.c.l.b16 %v9636
    %v9772 = vunpack.c.l.b16 %v9637
    %v9773 = vunpack.c.l.b16 %v9638
    %v9774 = vunpack.c.l.b16 %v9639
    %v9775 = vunpack.c.l.b16 %v9640
    %v9776 = vunpack.c.l.b16 %v9641
    %v9777 = vunpack.c.l.b16 %v9642
    %v9778 = vunpack.c.l.b16 %v9643
    %v9779 = vunpack.c.l.b16 %v9644
    %v9780 = vunpack.c.l.b16 %v9645
    %v9781 = vunpack.c.l.b16 %v9646
    %v9782 = vunpack.c.l.b16 %v9647
    %v9783 = vunpack.c.l.b16 %v9648
    %v9784 = vunpack.c.l.b16 %v9649
    %v9785 = vunpack.c.l.b16 %v9650
    %v9786 = vunpack.c.l.b16 %v9651
    %v9787 = vunpack.c.l.b16 %v9652
    %v9788 = vunpack.c.l.b16 %v9653
    %v9789 = vunpack.c.l.b16 %v9654
    %v9790 = vunpack.c.l.b16 %v9655
    %v9791 = vunpack.c.l.b16 %v9656
    %v9792 = vunpack.c.l.b16 %v9657
    %v9793 = vunpack.c.l.b16 %v9658
    %v9794 = vunpack.c.l.b16 %v9659
    %v9795 = vunpack.c.l.b16 %v9660
    %v9796 = vunpack.c.l.b16 %v9661
    %v9797 = vunpack.c.l.b16 %v9662
    %v9798 = vunpack.c.l.b16 %v9663
    %v9799 = vunpack.c.l.b16 %v9664
    %v9800 = vunpack.c.l.b16 %v9665
    %v9801 = vunpack.c.l.b16 %v9666
    %v9802 = vunpack.c.l.b16 %v9667
    %v9803 = vunpack.c.l.b16 %v9668
    %v9804 = vunpack.c.l.b16 %v9669
    %v9805 = vunpack.c.l.b16 %v9670
    %v9806 = vunpack.c.l.b16 %v9671
    %v9807 = vunpack.c.l.b16 %v9672
    %v9808 = vunpack.c.l.b16 %v9673
    %v9809 = vunpack.c.l.b16 %v9674
    %v9810 = vunpack.c.l.b16 %v9675
    %v9811 = vunpack.c.l.b16 %v9676
    %v9812 = vunpack.c.l.b16 %v9677
    %v9813 = vunpack.c.l.b16 %v9678
    %v9814 = vunpack.c.l.b16 %v9679
    %v9815 = vunpack.c.l.b16 %v9680
    %v9816 = vunpack.c.l.b16 %v9681
    %v9817 = vunpack.c.l.b16 %v9682
    %v9818 = vunpack.c.l.b16 %v9683
    %v9819 = vunpack.c.l.b16 %v9684
    %v9820 = vunpack.c.l.b16 %v9685
    %v9821 = vunpack.c.l.b16 %v9686
    %v9822 = vunpack.c.l.b16 %v9687
    %v9823 = vunpack.c.l.b16 %v9688
    %v9824 = vunpack.c.l.b16 %v9689
    %v9825 = vunpack.c.l.b16 %v9690
    %v9826 = vunpack.c.l.b16 %v9691
    %v9827 = vunpack.c.l.b16 %v9692
    %v9828 = vunpack.c.l.b16 %v9693
    %v9829 = vunpack.c.l.b16 %v9694
    %v9830 = vunpack.c.l.b16 %v9695
    %v9831 = vunpack.c.l.b16 %v9696
    %v9832 = vunpack.c.l.b16 %v9697
    %v9833 = vunpack.c.l.b16 %v9698
    %v9834 = vunpack.c.l.b16 %v9699
    %v9835 = vpack.c.b16 %v9772, %v9771
    %v9836 = vpack.c.b16 %v9774, %v9773
    %v9837 = vpack.c.b16 %v9776, %v9775
    %v9838 = vpack.c.b16 %v9778, %v9777
    %v9839 = vpack.c.b16 %v9780, %v9779
    %v9840 = vpack.c.b16 %v9782, %v9781
    %v9841 = vpack.c.b16 %v9784, %v9783
    %v9842 = vpack.c.b16 %v9786, %v9785
    %v9843 = vpack.c.b16 %v9788, %v9787
    %v9844 = vpack.c.b16 %v9790, %v9789
    %v9845 = vpack.c.b16 %v9792, %v9791
    %v9846 = vpack.c.b16 %v9794, %v9793
    %v9847 = vpack.c.b16 %v9796, %v9795
    %v9848 = vpack.c.b16 %v9798, %v9797
    %v9849 = vpack.c.b16 %v9800, %v9799
    %v9850 = vpack.c.b16 %v9802, %v9801
    %v9851 = vpack.c.b16 %v9804, %v9803
    %v9852 = vpack.c.b16 %v9806, %v9805
    %v9853 = vpack.c.b16 %v9808, %v9807
    %v9854 = vpack.c.b16 %v9810, %v9809
    %v9855 = vpack.c.b16 %v9812, %v9811
    %v9856 = vpack.c.b16 %v9814, %v9813
    %v9857 = vpack.c.b16 %v9816, %v9815
    %v9858 = vpack.c.b16 %v9818, %v9817
    %v9859 = vpack.c.b16 %v9820, %v9819
    %v9860 = vpack.c.b16 %v9822, %v9821
    %v9861 = vpack.c.b16 %v9824, %v9823
    %v9862 = vpack.c.b16 %v9826, %v9825
    %v9863 = vpack.c.b16 %v9828, %v9827
    %v9864 = vpack.c.b16 %v9830, %v9829
    %v9865 = vpack.c.b16 %v9832, %v9831
    %v9866 = vpack.c.b16 %v9834, %v9833
    %9899 = vmatprep.subr.bf16.mxu0 0
    %9900 = vmatpush1.bf16.msra.mxu0 %v9835
    %9901 = vmatprep.subr.bf16.mxu0 0
    %9902 = vmatpush1.bf16.msra.mxu0 %v9836
    %9903 = vmatprep.subr.bf16.mxu0 0
    %9904 = vmatpush1.bf16.msra.mxu0 %v9837
    %9905 = vmatprep.subr.bf16.mxu0 0
    %9906 = vmatpush1.bf16.msra.mxu0 %v9838
    %9907 = vmatprep.subr.bf16.mxu0 0
    %9908 = vmatpush1.bf16.msra.mxu0 %v9839
    %9909 = vmatprep.subr.bf16.mxu0 0
    %9910 = vmatpush1.bf16.msra.mxu0 %v9840
    %9911 = vmatprep.subr.bf16.mxu0 0
    %9912 = vmatpush1.bf16.msra.mxu0 %v9841
    %9913 = vmatprep.subr.bf16.mxu0 0
    %9914 = vmatpush1.bf16.msra.mxu0 %v9842
    %9915 = vmatprep.subr.bf16.mxu0 0
    %9916 = vmatpush1.bf16.msra.mxu0 %v9843
    %9917 = vmatprep.subr.bf16.mxu0 0
    %9918 = vmatpush1.bf16.msra.mxu0 %v9844
    %9919 = vmatprep.subr.bf16.mxu0 0
    %9920 = vmatpush1.bf16.msra.mxu0 %v9845
    %9921 = vmatprep.subr.bf16.mxu0 0
    %9922 = vmatpush1.bf16.msra.mxu0 %v9846
    %9923 = vmatprep.subr.bf16.mxu0 0
    %9924 = vmatpush1.bf16.msra.mxu0 %v9847
    %9925 = vmatprep.subr.bf16.mxu0 0
    %9926 = vmatpush1.bf16.msra.mxu0 %v9848
    %9927 = vmatprep.subr.bf16.mxu0 0
    %9928 = vmatpush1.bf16.msra.mxu0 %v9849
    %9929 = vmatprep.subr.bf16.mxu0 0
    %9930 = vmatpush1.bf16.msra.mxu0 %v9850
    %9931 = vmatprep.mubr.bf16.mxu0 %v9633
    %9932 = vmatmul.mubr.bf16.gmra.mrb[0].mxu0 %v9632
    %v9933 = vpop.f32.mrb[0].mxu0
    %v9934 = vadd.f32 %v9705, %v9933
    %v9935 = vpop.f32.mrb[0].mxu0
    %v9936 = vpop.f32.mrb[0].mxu0
    %v9937 = vpop.f32.mrb[0].mxu0
    %9938 = vdwg.mxu0
    %9939 = vmatprep.subr.bf16.mxu0 0
    %9940 = vmatpush1.bf16.msra.mxu0 %v9851
    %9941 = vmatprep.subr.bf16.mxu0 0
    %9942 = vmatpush1.bf16.msra.mxu0 %v9852
    %9943 = vmatprep.subr.bf16.mxu0 0
    %9944 = vmatpush1.bf16.msra.mxu0 %v9853
    %9945 = vmatprep.subr.bf16.mxu0 0
    %9946 = vmatpush1.bf16.msra.mxu0 %v9854
    %9947 = vmatprep.subr.bf16.mxu0 0
    %9948 = vmatpush1.bf16.msra.mxu0 %v9855
    %9949 = vmatprep.subr.bf16.mxu0 0
    %9950 = vmatpush1.bf16.msra.mxu0 %v9856
    %9951 = vmatprep.subr.bf16.mxu0 0
    %9952 = vmatpush1.bf16.msra.mxu0 %v9857
    %9953 = vmatprep.subr.bf16.mxu0 0
    %9954 = vmatpush1.bf16.msra.mxu0 %v9858
    %9955 = vmatprep.subr.bf16.mxu0 0
    %9956 = vmatpush1.bf16.msra.mxu0 %v9859
    %9957 = vmatprep.subr.bf16.mxu0 0
    %9958 = vmatpush1.bf16.msra.mxu0 %v9860
    %9959 = vmatprep.subr.bf16.mxu0 0
    %9960 = vmatpush1.bf16.msra.mxu0 %v9861
    %9961 = vmatprep.subr.bf16.mxu0 0
    %9962 = vmatpush1.bf16.msra.mxu0 %v9862
    %9963 = vmatprep.subr.bf16.mxu0 0
    %9964 = vmatpush1.bf16.msra.mxu0 %v9863
    %9965 = vmatprep.subr.bf16.mxu0 0
    %9966 = vmatpush1.bf16.msra.mxu0 %v9864
    %9967 = vmatprep.subr.bf16.mxu0 0
    %9968 = vmatpush1.bf16.msra.mxu0 %v9865
    %9969 = vmatprep.subr.bf16.mxu0 0
    %9970 = vmatpush1.bf16.msra.mxu0 %v9866
    %9971 = vmatprep.mubr.bf16.mxu0 %v9635
    %9972 = vmatmul.mubr.bf16.gmra.mrb[0].mxu0 %v9634
    %v9973 = vpop.f32.mrb[0].mxu0
    %v9974 = vadd.f32 %v9934, %v9973
    %v9975 = vpop.f32.mrb[0].mxu0
    %v9976 = vpop.f32.mrb[0].mxu0
    %v9977 = vpop.f32.mrb[0].mxu0
    %9978 = vdwg.mxu0
    %v9979 = vtanh.pop %v9974
    %v9980 = vpack.c.bf16 %v9979, %v9979
    %v9981 = vld [vmem:[%s9] sm:$0xf]
    %v9982 = vld [vmem:[%s9 + $0x4] sm:$0xf]
    %v9983 = vld [vmem:[%s9 + $0x8] sm:$0xf]
    %v9984 = vld [vmem:[%s9 + $0xc] sm:$0xf]
    %v9985 = vld [vmem:[%s9 + $0x10] sm:$0xf]
    %v9986 = vld [vmem:[%s9 + $0x14] sm:$0xf]
    %v9987 = vld [vmem:[%s9 + $0x18] sm:$0xf]
    %v9988 = vld [vmem:[%s9 + $0x1c] sm:$0xf]
    %v9989 = vld [vmem:[%s9 + $0x20] sm:$0xf]
    %v9990 = vld [vmem:[%s9 + $0x24] sm:$0xf]
    %v9991 = vld [vmem:[%s9 + $0x28] sm:$0xf]
    %v9992 = vld [vmem:[%s9 + $0x2c] sm:$0xf]
    %v9993 = vld [vmem:[%s9 + $0x30] sm:$0xf]
    %v9994 = vld [vmem:[%s9 + $0x34] sm:$0xf]
    %v9995 = vld [vmem:[%s9 + $0x38] sm:$0xf]
    %v9996 = vld [vmem:[%s10] sm:$0x1]
    %v9998 = vlaneseq
    %v9999 = vshrl.u32 %v9998, 7
    %v10000 = vsub.s32 0, %v9999
    %v10001 = vrot.slane %v9996, %v10000
    %v10018 = vunpack.c.l.b16 %v9981
    %v10019 = vunpack.c.l.b16 %v9982
    %v10020 = vunpack.c.l.b16 %v9983
    %v10021 = vunpack.c.l.b16 %v9984
    %v10022 = vunpack.c.l.b16 %v9985
    %v10023 = vunpack.c.l.b16 %v9986
    %v10024 = vunpack.c.l.b16 %v9987
    %v10025 = vunpack.c.l.b16 %v9988
    %v10026 = vunpack.c.l.b16 %v9989
    %v10027 = vunpack.c.l.b16 %v9990
    %v10028 = vunpack.c.l.b16 %v9991
    %v10029 = vunpack.c.l.b16 %v9992
    %v10030 = vunpack.c.l.b16 %v9993
    %v10031 = vunpack.c.l.b16 %v9994
    %v10032 = vunpack.c.l.b16 %v9995
    %v10033 = vpack.c.b16 %v10019, %v10018
    %v10034 = vpack.c.b16 %v10021, %v10020
    %v10035 = vpack.c.b16 %v10023, %v10022
    %v10036 = vpack.c.b16 %v10025, %v10024
    %v10037 = vpack.c.b16 %v10027, %v10026
    %v10038 = vpack.c.b16 %v10029, %v10028
    %v10039 = vpack.c.b16 %v10031, %v10030
    %v10040 = vpack.c.b16 %v10032, %v10032
    %v10049 = vsel %vm2115, %v9980, 0
    %v10052 = vsel %vm813, %v10040, 0
    %10054 = vmatprep.subr.bf16.mxu0 0
    %10055 = vmatpush1.bf16.msra.mxu0 %v10033
    %10056 = vmatprep.subr.bf16.mxu0 0
    %10057 = vmatpush1.bf16.msra.mxu0 %v10034
    %10058 = vmatprep.subr.bf16.mxu0 0
    %10059 = vmatpush1.bf16.msra.mxu0 %v10035
    %10060 = vmatprep.subr.bf16.mxu0 0
    %10061 = vmatpush1.bf16.msra.mxu0 %v10036
    %10062 = vmatprep.subr.bf16.mxu0 0
    %10063 = vmatpush1.bf16.msra.mxu0 %v10037
    %10064 = vmatprep.subr.bf16.mxu0 0
    %10065 = vmatpush1.bf16.msra.mxu0 %v10038
    %10066 = vmatprep.subr.bf16.mxu0 0
    %10067 = vmatpush1.bf16.msra.mxu0 %v10039
    %10068 = vmatprep.subr.bf16.mxu0 0
    %10069 = vmatpush1.bf16.msra.mxu0 %v10052
    %10070 = vmatprep.subr.bf16.mxu0 0
    %10071 = vmatpush1.bf16.msra.mxu0 0
    %10072 = vmatprep.subr.bf16.mxu0 0
    %10073 = vmatpush1.bf16.msra.mxu0 0
    %10074 = vmatprep.subr.bf16.mxu0 0
    %10075 = vmatpush1.bf16.msra.mxu0 0
    %10076 = vmatprep.subr.bf16.mxu0 0
    %10077 = vmatpush1.bf16.msra.mxu0 0
    %10078 = vmatprep.subr.bf16.mxu0 0
    %10079 = vmatpush1.bf16.msra.mxu0 0
    %10080 = vmatprep.subr.bf16.mxu0 0
    %10081 = vmatpush1.bf16.msra.mxu0 0
    %10082 = vmatprep.subr.bf16.mxu0 0
    %10083 = vmatpush1.bf16.msra.mxu0 0
    %10084 = vmatprep.subr.bf16.mxu0 0
    %10085 = vmatpush1.bf16.msra.mxu0 0
    %10086 = vmatprep.mubr.bf16.mxu0 0
    %10087 = vmatmul.mubr.bf16.gmra.mrb[0].mxu0 %v10049
    %v10088 = vpop.f32.mrb[0].mxu0
    %v10089 = vadd.f32 %v10001, %v10088
    %v10090 = vpop.f32.mrb[0].mxu0
    %v10091 = vpop.f32.mrb[0].mxu0
    %v10092 = vpop.f32.mrb[0].mxu0
    %10093 = vdwg.mxu0
    %v10094 = vtanh.pop %v10089
    %v10095 = vpack.c.bf16 %v10094, %v10094
    %v10096 = vld [vmem:[%s11] sm:$0xf]
    %v10097 = vld [vmem:[%s11 + $0x4] sm:$0xf]
    %v10098 = vld [vmem:[%s11 + $0x8] sm:$0xf]
    %v10099 = vld [vmem:[%s11 + $0xc] sm:$0xf]
    %v10100 = vld [vmem:[%s11 + $0x10] sm:$0xf]
    %v10101 = vld [vmem:[%s11 + $0x14] sm:$0xf]
    %v10102 = vld [vmem:[%s11 + $0x18] sm:$0xf]
    %v10103 = vld [vmem:[%s11 + $0x1c] sm:$0xf]
    %v10104 = vld [vmem:[%s11 + $0x20] sm:$0xf]
    %v10105 = vld [vmem:[%s11 + $0x24] sm:$0xf]
    %v10106 = vld [vmem:[%s11 + $0x28] sm:$0x3]
    %v10107 = vld [vmem:[%s12] sm:$0x1]
    %v10109 = vlaneseq
    %v10110 = vshrl.u32 %v10109, 7
    %v10111 = vsub.s32 0, %v10110
    %v10112 = vrot.slane %v10107, %v10111
    %v10125 = vunpack.c.l.b16 %v10096
    %v10126 = vunpack.c.l.b16 %v10097
    %v10127 = vunpack.c.l.b16 %v10098
    %v10128 = vunpack.c.l.b16 %v10099
    %v10129 = vunpack.c.l.b16 %v10100
    %v10130 = vunpack.c.l.b16 %v10101
    %v10131 = vunpack.c.l.b16 %v10102
    %v10132 = vunpack.c.l.b16 %v10103
    %v10133 = vunpack.c.l.b16 %v10104
    %v10134 = vunpack.c.l.b16 %v10105
    %v10135 = vunpack.c.l.b16 %v10106
    %v10136 = vpack.c.b16 %v10126, %v10125
    %v10137 = vpack.c.b16 %v10128, %v10127
    %v10138 = vpack.c.b16 %v10130, %v10129
    %v10139 = vpack.c.b16 %v10132, %v10131
    %v10140 = vpack.c.b16 %v10134, %v10133
    %v10141 = vpack.c.b16 %v10135, %v10135
    %vm10147 = vcmask 687104
    %v10149 = vsel %vm10147, %v10095, 0
    %vm10151 = vcmask 1041408
    %v10153 = vsel %vm10151, %v10141, 0
    %10155 = vmatprep.subr.bf16.mxu0 0
    %10156 = vmatpush1.bf16.msra.mxu0 %v10136
    %10157 = vmatprep.subr.bf16.mxu0 0
    %10158 = vmatpush1.bf16.msra.mxu0 %v10137
    %10159 = vmatprep.subr.bf16.mxu0 0
    %10160 = vmatpush1.bf16.msra.mxu0 %v10138
    %10161 = vmatprep.subr.bf16.mxu0 0
    %10162 = vmatpush1.bf16.msra.mxu0 %v10139
    %10163 = vmatprep.subr.bf16.mxu0 0
    %10164 = vmatpush1.bf16.msra.mxu0 %v10140
    %10165 = vmatprep.subr.bf16.mxu0 0
    %10166 = vmatpush1.bf16.msra.mxu0 %v10153
    %10167 = vmatprep.subr.bf16.mxu0 0
    %10168 = vmatpush1.bf16.msra.mxu0 0
    %10169 = vmatprep.subr.bf16.mxu0 0
    %10170 = vmatpush1.bf16.msra.mxu0 0
    %10171 = vmatprep.subr.bf16.mxu0 0
    %10172 = vmatpush1.bf16.msra.mxu0 0
    %10173 = vmatprep.subr.bf16.mxu0 0
    %10174 = vmatpush1.bf16.msra.mxu0 0
    %10175 = vmatprep.subr.bf16.mxu0 0
    %10176 = vmatpush1.bf16.msra.mxu0 0
    %10177 = vmatprep.subr.bf16.mxu0 0
    %10178 = vmatpush1.bf16.msra.mxu0 0
    %10179 = vmatprep.subr.bf16.mxu0 0
    %10180 = vmatpush1.bf16.msra.mxu0 0
    %10181 = vmatprep.subr.bf16.mxu0 0
    %10182 = vmatpush1.bf16.msra.mxu0 0
    %10183 = vmatprep.subr.bf16.mxu0 0
    %10184 = vmatpush1.bf16.msra.mxu0 0
    %10185 = vmatprep.subr.bf16.mxu0 0
    %10186 = vmatpush1.bf16.msra.mxu0 0
    %10187 = vmatprep.mubr.bf16.mxu0 0
    %10188 = vmatmul.mubr.bf16.gmra.mrb[0].mxu0 %v10149
    %v10189 = vpop.f32.mrb[0].mxu0
    %v10190 = vadd.f32 %v10112, %v10189
    %v10191 = vpop.f32.mrb[0].mxu0
    %v10192 = vpop.f32.mrb[0].mxu0
    %v10193 = vpop.f32.mrb[0].mxu0
    %10194 = vdwg.mxu0
    %v10195 = vsel %vm10151, %v10190, -inf
    %10196 = vmax.xlane.f32.xlu0 %v10195
    %v10197 = vpop.xlane.xlu0 %10196
    %v10198 = vsub.f32 %v10190, %v10197
    %v10199 = vmul.f32 %v10198, 1.442695
    %v10200 = vpow.pop %v10199
    %v10201 = vsel %vm10151, %v10200, 0.0
    %10202 = vadd.xlane.f32.xlu0 %v10201
    %v10203 = vpop.xlane.xlu0 %10202
    %v10204 = vrcp.pop %v10203
    %v10205 = vmul.f32 %v10200, %v10204
    %10206 = vst [vmem:[#allocation6] sm:$0x3] %v10205
    // Predicated region
    $region54: #{lenet_forward.1} parent=1 // pred_check
      _
    $region55: #{lenet_forward.1} parent=1 // pred_check_branch
      %10208 = sbr.rel (0) target = $region57
    $region56: #{lenet_forward.1} parent=1 // pred_region
      %s10210 = ssub.s32 32, 32
      %10211 = vsyncadd [#allocation7], %s10210
      %s10213 = sshll.u32 [#allocation6], 4
      %s10214 = int_to_ptr.vmem [resolvable:$true] %s10213
      %10216 = dma.vmem_to_hbm [thread:$0]  %s10214, 32, %s13, [#allocation7]
    $region57: #{lenet_forward.1} parent=1 // pred_fallthru
      _
    // Predicated region
    $region58: #{lenet_forward.1} parent=1 // pred_check
      _
    $region59: #{lenet_forward.1} parent=1 // pred_check_branch
      %10218 = sbr.rel (0) target = $region61
    $region60: #{lenet_forward.1} parent=1 // pred_region
      %10219 = dma.done [#allocation7], 32
    $region61: #{lenet_forward.1} parent=1 // pred_fallthru
      _
    %10220 = vsyncpa [#allocation7], 1

</llo_original>
